<compile_context>
chip_gen: v7x
topology: tpu7x:2x2x1
jax: 0.10.0
libtpu: 0.0.40
codegen_flags: <defaults>
</compile_context>

<pallas_src>
import functools
import math

import jax
import jax.numpy as jnp
from jax import lax
from jax.experimental import pallas as pl
from jax.experimental.pallas import tpu as pltpu

F32 = jnp.float32
BF16 = jnp.bfloat16


def _chip_defaults():
    """VMEM budget + row-tile cap from the chip (v5e/v6e: 128 MiB VMEM, v7x: 64 MiB)."""
    try:
        cap = int(getattr(pltpu.get_tpu_info(), "vmem_capacity_bytes", 0))
    except Exception:
        cap = 0
    if cap >= 100 * 1024 * 1024:          # v5e / v6e
        return 96 * 1024 * 1024, 512
    return 48 * 1024 * 1024, 256          # v7x or unknown: stay conservative


_VMEM_LIMIT, _ROW_TILE_CAP = _chip_defaults()


def _cparams(n_parallel):
    return pltpu.CompilerParams(
        dimension_semantics=("parallel",) * n_parallel,
        vmem_limit_bytes=_VMEM_LIMIT)


def _row_tile(rows):
    return rows if rows <= _ROW_TILE_CAP else _ROW_TILE_CAP


def _pick_tb(B):
    # The Mamba block is (L, TB, D): TB sits on the sublane axis, so it must be a
    # multiple of 8 or equal the full batch.  Prefer >=2 grid steps (v7x megacore).
    for tb in (16, 8):
        if B % tb == 0 and B // tb >= 2:
            return tb
    return B


# ---------------- in-kernel math helpers (f32 elementwise; only exp/log/rsqrt) -----

def _sigmoid(x):
    return 1.0 / (1.0 + jnp.exp(-x))


def _silu(x):
    return x * _sigmoid(x)


def _softplus(x):
    return jnp.maximum(x, 0.0) + jnp.log(1.0 + jnp.exp(-jnp.abs(x)))


def _erf(x):
    # Abramowitz & Stegun 7.1.26 polynomial (|err| < 1.5e-7) — GELU without erf prim.
    a1, a2, a3, a4, a5 = (0.254829592, -0.284496736, 1.421413741,
                          -1.453152027, 1.061405429)
    p = 0.3275911
    s = jnp.where(x >= 0.0, 1.0, -1.0)
    ax = jnp.abs(x)
    t = 1.0 / (1.0 + p * ax)
    poly = ((((a5 * t + a4) * t + a3) * t + a2) * t + a1) * t
    return s * (1.0 - poly * jnp.exp(-ax * ax))


def _act(x, activation):
    if activation == "gelu":
        return 0.5 * x * (1.0 + _erf(x * 0.7071067811865476))
    return jnp.maximum(x, 0.0)


def _layernorm(x, g, b):
    mu = jnp.mean(x, axis=-1, keepdims=True)
    var = jnp.mean(jnp.square(x - mu), axis=-1, keepdims=True)
    return (x - mu) * lax.rsqrt(var + 1e-5) * g + b


# ---------------- RevIN (row-tiled over B*N; reduction over lanes, rsqrt on EUP) ------

def _revin_kernel(z_ref, zn_ref, mean_ref, std_ref):
    z = z_ref[...]
    mu = jnp.mean(z, axis=-1, keepdims=True)
    zc = z - mu
    var = jnp.mean(zc * zc, axis=-1, keepdims=True)
    rstd = lax.rsqrt(var + 1e-5)
    zn_ref[...] = zc * rstd
    mean_ref[...] = mu
    std_ref[...] = (var + 1e-5) * rstd            # == sqrt(var + eps)


def revin_normalize(zt):
    """zt: (B, N, T) f32 -> normalized (B, N, T), mean (B, N, 1), std (B, N, 1)."""
    B, N, T = zt.shape
    rows = B * N
    z2 = zt.reshape(rows, T)
    tm = _row_tile(rows)
    zn, mu, sd = pl.pallas_call(
        _revin_kernel,
        grid=(pl.cdiv(rows, tm),),
        in_specs=[pl.BlockSpec((tm, T), lambda i: (i, 0))],
        out_specs=[pl.BlockSpec((tm, T), lambda i: (i, 0)),
                   pl.BlockSpec((tm, 1), lambda i: (i, 0)),
                   pl.BlockSpec((tm, 1), lambda i: (i, 0))],
        out_shape=(jax.ShapeDtypeStruct((rows, T), F32),
                   jax.ShapeDtypeStruct((rows, 1), F32),
                   jax.ShapeDtypeStruct((rows, 1), F32)),
        compiler_params=_cparams(1),
    )(z2)
    return zn.reshape(B, N, T), mu.reshape(B, N, 1), sd.reshape(B, N, 1)


# ---------------- generic tiled linear ------------------------------------------------

def _linear_bias_kernel(x_ref, w_ref, b_ref, o_ref):
    o_ref[...] = (jnp.dot(x_ref[...], w_ref[...], preferred_element_type=F32)
                  + b_ref[...]).astype(o_ref.dtype)


def linear_pallas(x, w, b):
    shp = x.shape
    K = shp[-1]
    N = w.shape[1]
    x2 = x.reshape(-1, K).astype(BF16)
    rows = x2.shape[0]
    tm = _row_tile(rows)
    out = pl.pallas_call(
        _linear_bias_kernel,
        grid=(pl.cdiv(rows, tm),),
        in_specs=[pl.BlockSpec((tm, K), lambda i: (i, 0)),
                  pl.BlockSpec((K, N), lambda i: (0, 0)),
                  pl.BlockSpec((1, N), lambda i: (0, 0))],
        out_specs=pl.BlockSpec((tm, N), lambda i: (i, 0)),
        out_shape=jax.ShapeDtypeStruct((rows, N), BF16),
        compiler_params=_cparams(1),
    )(x2, w.astype(BF16), b.reshape(1, N).astype(F32))
    return out.reshape(shp[:-1] + (N,))


# ---------------- layernorm (tiled) ---------------------------------------------------

def _layernorm_kernel(x_ref, g_ref, b_ref, o_ref):
    o_ref[...] = _layernorm(x_ref[...].astype(F32), g_ref[...],
                            b_ref[...]).astype(o_ref.dtype)


def layernorm_pallas(x, g, b):
    shp = x.shape
    Dm = shp[-1]
    x2 = x.reshape(-1, Dm).astype(BF16)
    rows = x2.shape[0]
    tm = _row_tile(rows)
    out = pl.pallas_call(
        _layernorm_kernel,
        grid=(pl.cdiv(rows, tm),),
        in_specs=[pl.BlockSpec((tm, Dm), lambda i: (i, 0)),
                  pl.BlockSpec((1, Dm), lambda i: (0, 0)),
                  pl.BlockSpec((1, Dm), lambda i: (0, 0))],
        out_specs=pl.BlockSpec((tm, Dm), lambda i: (i, 0)),
        out_shape=jax.ShapeDtypeStruct((rows, Dm), BF16),
        compiler_params=_cparams(1),
    )(x2, g.reshape(1, Dm).astype(F32), b.reshape(1, Dm).astype(F32))
    return out.reshape(shp)


# ---------------- fused LN -> FFN -> LN (post-mamba half of an encoder layer) ---------

def _ln_ffn_ln_kernel(x_ref, g1_ref, b1_ref, w1_ref, c1b_ref, w2_ref, c2b_ref,
                      g2_ref, b2_ref, o_ref, *, activation):
    x = x_ref[...].astype(F32)                      # x already contains the residual add
    x1 = _layernorm(x, g1_ref[...], b1_ref[...])
    h = jnp.dot(x1.astype(w1_ref.dtype), w1_ref[...],
                preferred_element_type=F32) + c1b_ref[...]
    h = _act(h, activation)
    y = jnp.dot(h.astype(w2_ref.dtype), w2_ref[...],
                preferred_element_type=F32) + c2b_ref[...]
    o_ref[...] = _layernorm(x1 + y, g2_ref[...], b2_ref[...]).astype(o_ref.dtype)


def ln_ffn_ln(x, lp, activation):
    shp = x.shape
    Dm = shp[-1]
    dff = lp["conv1_w"].shape[1]
    x2 = x.reshape(-1, Dm).astype(BF16)
    rows = x2.shape[0]
    tm = _row_tile(rows)
    out = pl.pallas_call(
        functools.partial(_ln_ffn_ln_kernel, activation=activation),
        grid=(pl.cdiv(rows, tm),),
        in_specs=[pl.BlockSpec((tm, Dm), lambda i: (i, 0)),
                  pl.BlockSpec((1, Dm), lambda i: (0, 0)),
                  pl.BlockSpec((1, Dm), lambda i: (0, 0)),
                  pl.BlockSpec((Dm, dff), lambda i: (0, 0)),
                  pl.BlockSpec((1, dff), lambda i: (0, 0)),
                  pl.BlockSpec((dff, Dm), lambda i: (0, 0)),
                  pl.BlockSpec((1, Dm), lambda i: (0, 0)),
                  pl.BlockSpec((1, Dm), lambda i: (0, 0)),
                  pl.BlockSpec((1, Dm), lambda i: (0, 0))],
        out_specs=pl.BlockSpec((tm, Dm), lambda i: (i, 0)),
        out_shape=jax.ShapeDtypeStruct((rows, Dm), BF16),
        compiler_params=_cparams(1),
    )(x2,
      lp["norm1_g"].reshape(1, Dm), lp["norm1_b"].reshape(1, Dm),
      lp["conv1_w"], lp["conv1_b"].reshape(1, dff),
      lp["conv2_w"], lp["conv2_b"].reshape(1, Dm),
      lp["norm2_g"].reshape(1, Dm), lp["norm2_b"].reshape(1, Dm))
    return out.reshape(shp)


# ---------------- fused bidirectional Mamba (in_proj .. out_proj + residual) ----------
# Input / output are TIME-MAJOR (L, B, D); the grid tiles the batch axis with TB.

def _bimamba_kernel(x_ref, win_ref, cc_ref, cn_ref, cb_ref, wxp_ref, wdt_ref,
                    dtb_ref, at_ref, dsk_ref, wout_ref, o_ref,
                    daf, dab, dbf, dbb, hf_scr, hb_scr,
                    *, d_inner, d_state, dt_rank, seq_len, tb):
    Di, S, R, L, TB = d_inner, d_state, dt_rank, seq_len, tb
    Dm = x_ref.shape[2]
    rows = L * TB

    xt = x_ref[...].reshape(rows, Dm)                      # time-major rows (bf16)
    # packed in_proj: columns = [x_fwd | x_bwd | z_fwd | z_bwd] -> 4*Di wide
    xz = jnp.dot(xt, win_ref[...], preferred_element_type=F32)
    xin = xz[:, :2 * Di]
    zin = xz[:, 2 * Di:]

    # depthwise conv (kernel 2): fwd uses t-1 (causal), bwd uses t+1 (anti-causal).
    # One timestep == TB rows, so the shift is a TB-row sublane roll + iota mask.
    row = lax.broadcasted_iota(jnp.int32, (rows, 1), 0)
    lane = lax.broadcasted_iota(jnp.int32, (rows, 2 * Di), 1)
    xprev = jnp.where(row < TB, 0.0, pltpu.roll(xin, shift=TB, axis=0))
    xnext = jnp.where(row >= (L - 1) * TB, 0.0,
                      pltpu.roll(xin, shift=(L - 1) * TB, axis=0))
    nbr = jnp.where(lane < Di, xprev, xnext)
    xc = _silu(xin * cc_ref[...] + nbr * cn_ref[...] + cb_ref[...])   # (rows, 2Di)

    # packed x_proj (block-diagonal): cols = [dt_f | dt_b | B_f | C_f | B_b | C_b]
    x_dbl = jnp.dot(xc.astype(wxp_ref.dtype), wxp_ref[...],
                    preferred_element_type=F32)                       # (rows, 2R+4S)
    dt = _softplus(jnp.dot(x_dbl[:, :2 * R].astype(wdt_ref.dtype), wdt_ref[...],
                           preferred_element_type=F32) + dtb_ref[...])  # (rows, 2Di)
    u = dt * xc

    # ---- precompute everything the scan needs on full tiles (exp / B / x off the
    #      serial chain), write per-direction slabs into time-leading scratch --------
    a_t = at_ref[...]                                      # (S, 2Di) = -exp(A_log).T
    dA = jnp.exp(dt.reshape(rows, 1, 2 * Di) * a_t.reshape(1, S, 2 * Di))
    Bf = x_dbl[:, 2 * R:2 * R + S].reshape(rows, S, 1)
    Cf = x_dbl[:, 2 * R + S:2 * R + 2 * S].reshape(rows, S, 1)
    Bb = x_dbl[:, 2 * R + 2 * S:2 * R + 3 * S].reshape(rows, S, 1)
    Cb = x_dbl[:, 2 * R + 3 * S:].reshape(rows, S, 1)

    daf[...] = dA[:, :, :Di].reshape(L, TB, S, Di)
    dab[...] = dA[:, :, Di:].reshape(L, TB, S, Di)
    dbf[...] = (Bf * u[:, :Di].reshape(rows, 1, Di)).reshape(L, TB, S, Di)
    dbb[...] = (Bb * u[:, Di:].reshape(rows, 1, Di)).reshape(L, TB, S, Di)

    # ---- lean serial recurrence: one FMA + one full-slab store per direction -------
    def step(i, carry):
        h_f, h_b = carry
        j = L - 1 - i
        h_f = daf[i] * h_f + dbf[i]                        # (TB, S, Di)
        h_b = dab[j] * h_b + dbb[j]
        hf_scr[i] = h_f
        hb_scr[j] = h_b
        return (h_f, h_b)

    h0 = jnp.zeros((TB, S, Di), F32)
    lax.fori_loop(0, L, step, (h0, h0))

    # ---- y[t] = sum_s h[t, s, :] * C[t, s]  (full-tile reduction, outside the loop) -
    yf = jnp.sum(hf_scr[...].reshape(rows, S, Di) * Cf, axis=1)       # (rows, Di)
    yb = jnp.sum(hb_scr[...].reshape(rows, S, Di) * Cb, axis=1)

    g = _silu(zin)
    dsk = dsk_ref[...]
    yf = (yf + xc[:, :Di] * dsk[:, :Di]) * g[:, :Di]
    yb = (yb + xc[:, Di:] * dsk[:, Di:]) * g[:, Di:]
    newx = (jnp.dot(yf.astype(wout_ref.dtype), wout_ref[:Di, :],
                    preferred_element_type=F32)
            + jnp.dot(yb.astype(wout_ref.dtype), wout_ref[Di:, :],
                      preferred_element_type=F32))
    out = xt.astype(F32) + newx                            # fused residual
    o_ref[...] = out.reshape(L, TB, Dm).astype(o_ref.dtype)


def bidir_mamba(mp, xt):
    """xt: (L, B, D) time-major bf16/f32 -> (L, B, D) bf16; x + fwd-mamba + rev(bwd)."""
    L, B, D = xt.shape
    S, two_di = mp["a_t"].shape
    Di = two_di // 2
    R = mp["wdt"].shape[0] // 2
    TB = _pick_tb(B)
    kern = functools.partial(_bimamba_kernel, d_inner=Di, d_state=S,
                             dt_rank=R, seq_len=L, tb=TB)
    return pl.pallas_call(
        kern,
        grid=(pl.cdiv(B, TB),),
        in_specs=[
            pl.BlockSpec((L, TB, D), lambda b: (0, b, 0)),
            pl.BlockSpec(mp["win"].shape, lambda b: (0, 0)),
            pl.BlockSpec(mp["conv_cur"].shape, lambda b: (0, 0)),
            pl.BlockSpec(mp["conv_nb"].shape, lambda b: (0, 0)),
            pl.BlockSpec(mp["conv_b"].shape, lambda b: (0, 0)),
            pl.BlockSpec(mp["wxp"].shape, lambda b: (0, 0)),
            pl.BlockSpec(mp["wdt"].shape, lambda b: (0, 0)),
            pl.BlockSpec(mp["dt_b"].shape, lambda b: (0, 0)),
            pl.BlockSpec(mp["a_t"].shape, lambda b: (0, 0)),
            pl.BlockSpec(mp["d_skip"].shape, lambda b: (0, 0)),
            pl.BlockSpec(mp["wout"].shape, lambda b: (0, 0)),
        ],
        out_specs=pl.BlockSpec((L, TB, D), lambda b: (0, b, 0)),
        out_shape=jax.ShapeDtypeStruct((L, B, D), BF16),
        scratch_shapes=[
            pltpu.VMEM((L, TB, S, Di), F32),   # exp(dt*A)  fwd
            pltpu.VMEM((L, TB, S, Di), F32),   # exp(dt*A)  bwd
            pltpu.VMEM((L, TB, S, Di), F32),   # dt*x*B     fwd
            pltpu.VMEM((L, TB, S, Di), F32),   # dt*x*B     bwd
            pltpu.VMEM((L, TB, S, Di), F32),   # scan states fwd
            pltpu.VMEM((L, TB, S, Di), F32),   # scan states bwd
        ],
        compiler_params=_cparams(1),
    )(xt.astype(BF16), mp["win"], mp["conv_cur"], mp["conv_nb"], mp["conv_b"],
      mp["wxp"], mp["wdt"], mp["dt_b"], mp["a_t"], mp["d_skip"], mp["wout"])


# ---------------- gated flatten head --------------------------------------------------

def _gate_head_kernel(x_ref, wg_ref, bg_ref, wl_ref, bl_ref, o_ref):
    xb = x_ref[...]
    x = xb.astype(F32)
    g = jnp.dot(xb, wg_ref[...], preferred_element_type=F32) + bg_ref[...]
    xg = x * _silu(g)
    o_ref[...] = (jnp.dot(xg.astype(wl_ref.dtype), wl_ref[...],
                          preferred_element_type=F32) + bl_ref[...]).astype(o_ref.dtype)


def flatten_head_forward(hp, x):
    B, Nv, Dm, P = x.shape
    nf = Dm * P
    x2 = x.reshape(B * Nv, nf).astype(BF16)
    rows = B * Nv
    tm = _row_tile(rows)
    dout = hp["linear_w"].shape[1]
    out = pl.pallas_call(
        _gate_head_kernel,
        grid=(pl.cdiv(rows, tm),),
        in_specs=[pl.BlockSpec((tm, nf), lambda i: (i, 0)),
                  pl.BlockSpec((nf, nf), lambda i: (0, 0)),
                  pl.BlockSpec((1, nf), lambda i: (0, 0)),
                  pl.BlockSpec((nf, dout), lambda i: (0, 0)),
                  pl.BlockSpec((1, dout), lambda i: (0, 0))],
        out_specs=pl.BlockSpec((tm, dout), lambda i: (i, 0)),
        out_shape=jax.ShapeDtypeStruct((rows, dout), BF16),
        compiler_params=_cparams(1),
    )(x2, hp["gate_w"], hp["gate_b"].reshape(1, nf),
      hp["linear_w"], hp["linear_b"].reshape(1, dout))
    return out.reshape(B, Nv, dout)


# ---------------- model blocks --------------------------------------------------------

def encoder_forward(ep, x, activation):
    # x: (B, L, D).  Activations stay time-major (L, B, D) across layers so the
    # Mamba kernel's batch tile lands on the sublane axis without in-kernel transposes.
    xt = jnp.transpose(x, (1, 0, 2))
    for lp in ep["layers"]:
        xt = bidir_mamba(lp["mamba"], xt)        # x + (fwd-mamba + reversed bwd-mamba)
        xt = ln_ffn_ln(xt, lp, activation)
    xt = layernorm_pallas(xt, ep["norm_g"], ep["norm_b"])
    return jnp.transpose(xt, (1, 0, 2))


def tsti_encoder_forward(bp, x, view, activation):
    # x: (B, N, P, patch_len), view: (B, 1, d_model)
    x = linear_pallas(x, bp["W_P_w"], bp["W_P_b"])           # (B, N, P, D) bf16
    b, n, pnum, d = x.shape
    u = x.reshape(b, n * pnum, d)
    u = jnp.concatenate([u, view.astype(BF16)], axis=1)
    z = encoder_forward(bp["encoder"], u, activation)
    z = z[:, :-1, :]
    z = z.reshape(b, n, pnum, d)
    return jnp.transpose(z, (0, 1, 3, 2))                    # (B, N, D, P)


def pamba_forward(params, cfg, z, x_mark_enc=None, x_dec=None, x_mark_dec=None):
    B, T, N = z.shape

    # RevIN-style instance normalization (row-tiled Pallas kernel, reduction over T)
    zt = jnp.transpose(z.astype(F32), (0, 2, 1))             # (B, N, T)
    ztn, mean_t, std_t = revin_normalize(zt)
    z_norm = jnp.transpose(ztn, (0, 2, 1))                   # (B, T, N)
    means = jnp.transpose(mean_t, (0, 2, 1))                 # (B, 1, N)
    stdev = jnp.transpose(std_t, (0, 2, 1))

    # TODO(synk): horizon() view projections are a few kFLOPs — left to XLA fusion.
    p = jnp.transpose(z_norm @ params["view1_w"] + params["view1_b"], (0, 2, 1))
    pview = p @ params["view2_w"] + params["view2_b"]        # (B, 1, d_model)
    nv = jnp.transpose(z_norm @ params["view3_w"] + params["view3_b"], (0, 2, 1))
    nview = nv @ params["view4_w"] + params["view4_b"]       # (B, 1, d_model)

    # patching: ReplicationPad1d((0, stride)) + unfold (plain JAX gather)
    if cfg["padding_patch"] == "end":
        ztp = jnp.concatenate(
            [ztn, jnp.repeat(ztn[:, :, -1:], cfg["stride"], axis=-1)], axis=-1)
    else:
        ztp = ztn
    P = (ztp.shape[-1] - cfg["patch_len"]) // cfg["stride"] + 1
    idx = (jnp.arange(P)[:, None] * cfg["stride"]
           + jnp.arange(cfg["patch_len"])[None, :])
    zp = ztp[:, :, idx]                                      # (B, N, P, patch_len)

    z_enc = tsti_encoder_forward(params["backbone"], zp, pview, cfg["activation"])
    zh = flatten_head_forward(params["head"], z_enc)         # (B, N, d_model) bf16

    out = jnp.concatenate([zh, nview.astype(BF16)], axis=1)
    out = encoder_forward(params["encoder"], out, cfg["activation"])
    out = out[:, :-1, :]

    r = (zh.astype(F32) + out.astype(F32)) @ params["nvars_header_w"] \
        + params["nvars_header_b"]
    r = jnp.transpose(r, (0, 2, 1))                          # (B, pred_len, N)
    return r * stdev + means                                 # de-normalize


# ---------------- parameters ----------------------------------------------------------

class KeyGen:
    def __init__(self, key):
        self.key = key

    def __call__(self):
        self.key, sub = jax.random.split(self.key)
        return sub


def make_linear(kg, din, dout, bias=True, scale=0.02):
    w = jax.random.normal(kg(), (din, dout), F32) * scale
    b = jax.random.normal(kg(), (dout,), F32) * scale if bias else None
    return w, b


def make_mamba(kg, d_model, d_state):
    d_inner = d_model                                        # expand = 1
    dt_rank = math.ceil(d_model / 16)
    in_proj_w, _ = make_linear(kg, d_model, 2 * d_inner, bias=False)
    conv_w = jax.random.normal(kg(), (2, d_inner), F32) * 0.02   # d_conv = 2
    conv_b = jnp.zeros((d_inner,), F32)
    x_proj_w, _ = make_linear(kg, d_inner, dt_rank + 2 * d_state, bias=False)
    dt_proj_w, dt_proj_b = make_linear(kg, dt_rank, d_inner, bias=True)
    A_log = jnp.log(jnp.tile(jnp.arange(1, d_state + 1, dtype=F32)[None, :],
                             (d_inner, 1)))
    D = jnp.ones((d_inner,), F32)
    out_proj_w, _ = make_linear(kg, d_inner, d_model, bias=False)
    return dict(in_proj_w=in_proj_w, conv_w=conv_w, conv_b=conv_b,
                x_proj_w=x_proj_w, dt_proj_w=dt_proj_w, dt_proj_b=dt_proj_b,
                A_log=A_log, D=D, out_proj_w=out_proj_w)


def pack_bimamba(pf, pb):
    """Pack fwd+bwd Mamba weights into lane-dense / block-diagonal matrices."""
    Di, S = pf["A_log"].shape
    R = pf["dt_proj_w"].shape[0]
    win = jnp.concatenate([pf["in_proj_w"][:, :Di], pb["in_proj_w"][:, :Di],
                           pf["in_proj_w"][:, Di:], pb["in_proj_w"][:, Di:]], axis=1)
    conv_cur = jnp.concatenate([pf["conv_w"][1], pb["conv_w"][1]])[None, :]
    conv_nb = jnp.concatenate([pf["conv_w"][0], pb["conv_w"][0]])[None, :]
    conv_b = jnp.concatenate([pf["conv_b"], pb["conv_b"]])[None, :]
    wxp = jnp.zeros((2 * Di, 2 * R + 4 * S), F32)
    wxp = wxp.at[:Di, :R].set(pf["x_proj_w"][:, :R])
    wxp = wxp.at[Di:, R:2 * R].set(pb["x_proj_w"][:, :R])
    wxp = wxp.at[:Di, 2 * R:2 * R + 2 * S].set(pf["x_proj_w"][:, R:])
    wxp = wxp.at[Di:, 2 * R + 2 * S:].set(pb["x_proj_w"][:, R:])
    wdt = jnp.zeros((2 * R, 2 * Di), F32)
    wdt = wdt.at[:R, :Di].set(pf["dt_proj_w"])
    wdt = wdt.at[R:, Di:].set(pb["dt_proj_w"])
    dt_b = jnp.concatenate([pf["dt_proj_b"], pb["dt_proj_b"]])[None, :]
    a_t = jnp.concatenate([-jnp.exp(pf["A_log"]).T, -jnp.exp(pb["A_log"]).T], axis=1)
    d_skip = jnp.concatenate([pf["D"], pb["D"]])[None, :]
    wout = jnp.concatenate([pf["out_proj_w"], pb["out_proj_w"]], axis=0)
    return dict(win=win.astype(BF16), conv_cur=conv_cur, conv_nb=conv_nb,
                conv_b=conv_b, wxp=wxp.astype(BF16), wdt=wdt.astype(BF16),
                dt_b=dt_b, a_t=a_t, d_skip=d_skip, wout=wout.astype(BF16))


def make_encoder_layer(kg, d_model, d_state, d_ff):
    c1w, c1b = make_linear(kg, d_model, d_ff)
    c2w, c2b = make_linear(kg, d_ff, d_model)
    mf = make_mamba(kg, d_model, d_state)
    mb = make_mamba(kg, d_model, d_state)
    return dict(mamba=pack_bimamba(mf, mb),
                conv1_w=c1w.astype(BF16), conv1_b=c1b,
                conv2_w=c2w.astype(BF16), conv2_b=c2b,
                norm1_g=jnp.ones((d_model,), F32),
                norm1_b=jnp.zeros((d_model,), F32),
                norm2_g=jnp.ones((d_model,), F32),
                norm2_b=jnp.zeros((d_model,), F32))


def make_encoder(kg, e_layers, d_model, d_state, d_ff):
    return dict(layers=[make_encoder_layer(kg, d_model, d_state, d_ff)
                        for _ in range(e_layers)],
                norm_g=jnp.ones((d_model,), F32),
                norm_b=jnp.zeros((d_model,), F32))


def init_params(key, cfg):
    kg = KeyGen(key)
    D, S, Dff = cfg["d_model"], cfg["d_state"], cfg["d_ff"]
    patch_num = (cfg["seq_len"] - cfg["patch_len"]) // cfg["stride"] + 1
    if cfg["padding_patch"] == "end":
        patch_num += 1
    nf = D * patch_num

    v1w, v1b = make_linear(kg, cfg["enc_in"], 1)
    v2w, v2b = make_linear(kg, cfg["seq_len"], D)
    v3w, v3b = make_linear(kg, cfg["enc_in"], 1)
    v4w, v4b = make_linear(kg, cfg["seq_len"], D)
    wpw, wpb = make_linear(kg, cfg["patch_len"], D)
    gw, gb = make_linear(kg, nf, nf)
    lw, lb = make_linear(kg, nf, D)
    nhw, nhb = make_linear(kg, D, cfg["pred_len"])

    return dict(
        view1_w=v1w, view1_b=v1b, view2_w=v2w, view2_b=v2b,
        view3_w=v3w, view3_b=v3b, view4_w=v4w, view4_b=v4b,
        backbone=dict(W_P_w=wpw.astype(BF16), W_P_b=wpb,
                      encoder=make_encoder(kg, cfg["e_layers"], D, S, Dff)),
        head=dict(gate_w=gw.astype(BF16), gate_b=gb,
                  linear_w=lw.astype(BF16), linear_b=lb),
        encoder=make_encoder(kg, cfg["e_layers"], D, S, Dff),
        nvars_header_w=nhw, nvars_header_b=nhb,
    )


# ---------------- main ----------------------------------------------------------------

if __name__ == "__main__":
    cfg = dict(seq_len=16, pred_len=8, patch_len=4, stride=4, padding_patch="end",
               d_model=32, d_state=8, d_ff=32, e_layers=1, enc_in=4,
               activation="gelu", dropout=0.0, head_dropout=0.0,
               revin=True, individual=False, K=2, embed_size=4)

    root = jax.random.PRNGKey(0)
    kparam, kdata = jax.random.split(root)
    params = init_params(kparam, cfg)

    B = 2
    kx, km, kd, kmd = jax.random.split(kdata, 4)
    x = jax.random.normal(kx, (B, cfg["seq_len"], cfg["enc_in"]), F32)
    x_mark_enc = jax.random.normal(km, (B, cfg["seq_len"], cfg["enc_in"]), F32)
    x_dec = jax.random.normal(kd, (B, cfg["pred_len"], cfg["enc_in"]), F32)
    x_mark_dec = jax.random.normal(kmd, (B, cfg["pred_len"], cfg["enc_in"]), F32)

    fwd = jax.jit(lambda p, a, b_, c, d: pamba_forward(p, cfg, a, b_, c, d))
    r = fwd(params, x, x_mark_enc, x_dec, x_mark_dec)
    r = jax.block_until_ready(r)

    assert r.shape == (B, cfg["pred_len"], cfg["enc_in"]), r.shape
    assert bool(jnp.all(jnp.isfinite(r)))
    print("KERNEL_OK")
</pallas_src>

<mosaic_0001>
module attributes {stable_mosaic.version = 11 : i64} {
  func.func @_revin_kernel(%arg0: i32, %arg1: memref<8x16xf32, #tpu.memory_space<vmem>>, %arg2: memref<8x16xf32, #tpu.memory_space<vmem>>, %arg3: memref<8x1xf32, #tpu.memory_space<vmem>>, %arg4: memref<8x1xf32, #tpu.memory_space<vmem>>) attributes {dimension_semantics = [#tpu.dimension_semantics<parallel>], iteration_bounds = array<i64: 1>, scalar_prefetch = 0 : i64, scratch_operands = 0 : i64, tpu.core_type = #tpu.core_type<tc>, window_params = [{transform_indices = @transform_0, window_bounds = array<i64: 8, 16>}, {transform_indices = @transform_1, window_bounds = array<i64: 8, 16>}, {transform_indices = @transform_2, window_bounds = array<i64: 8, 1>}, {transform_indices = @transform_3, window_bounds = array<i64: 8, 1>}]} {
    %c0 = arith.constant 0 : index
    %c0_0 = arith.constant 0 : index
    %0 = vector.load %arg1[%c0, %c0_0] : memref<8x16xf32, #tpu.memory_space<vmem>>, vector<8x16xf32>
    %cst = arith.constant dense<0.000000e+00> : vector<8xf32>
    %1 = vector.multi_reduction <add>, %0, %cst [1] : vector<8x16xf32> to vector<8xf32>
    %2 = vector.shape_cast %1 : vector<8xf32> to vector<8x1xf32>
    %cst_1 = arith.constant 1.600000e+01 : f32
    %3 = vector.broadcast %cst_1 : f32 to vector<8x1xf32>
    %4 = arith.divf %2, %3 : vector<8x1xf32>
    %5 = vector.broadcast %4 : vector<8x1xf32> to vector<8x16xf32>
    %6 = arith.subf %0, %5 : vector<8x16xf32>
    %7 = arith.mulf %6, %6 : vector<8x16xf32>
    %cst_2 = arith.constant dense<0.000000e+00> : vector<8xf32>
    %8 = vector.multi_reduction <add>, %7, %cst_2 [1] : vector<8x16xf32> to vector<8xf32>
    %9 = vector.shape_cast %8 : vector<8xf32> to vector<8x1xf32>
    %cst_3 = arith.constant 1.600000e+01 : f32
    %10 = vector.broadcast %cst_3 : f32 to vector<8x1xf32>
    %11 = arith.divf %9, %10 : vector<8x1xf32>
    %cst_4 = arith.constant 9.99999974E-6 : f32
    %12 = vector.broadcast %cst_4 : f32 to vector<8x1xf32>
    %13 = arith.addf %11, %12 : vector<8x1xf32>
    %14 = math.rsqrt %13 : vector<8x1xf32>
    %15 = vector.broadcast %14 : vector<8x1xf32> to vector<8x16xf32>
    %16 = arith.mulf %6, %15 : vector<8x16xf32>
    %c0_5 = arith.constant 0 : index
    %c0_6 = arith.constant 0 : index
    %17 = vector.load %arg2[%c0_5, %c0_6] : memref<8x16xf32, #tpu.memory_space<vmem>>, vector<8x16xf32>
    tpu.vector_store %arg2[%c0_5, %c0_6], %16 {strides = array<i32>} : memref<8x16xf32, #tpu.memory_space<vmem>>, vector<8x16xf32>,
    %c0_7 = arith.constant 0 : index
    %c0_8 = arith.constant 0 : index
    %18 = vector.load %arg3[%c0_7, %c0_8] : memref<8x1xf32, #tpu.memory_space<vmem>>, vector<8x1xf32>
    tpu.vector_store %arg3[%c0_7, %c0_8], %4 {strides = array<i32>} : memref<8x1xf32, #tpu.memory_space<vmem>>, vector<8x1xf32>,
    %cst_9 = arith.constant 9.99999974E-6 : f32
    %19 = vector.broadcast %cst_9 : f32 to vector<8x1xf32>
    %20 = arith.addf %11, %19 : vector<8x1xf32>
    %21 = arith.mulf %20, %14 : vector<8x1xf32>
    %c0_10 = arith.constant 0 : index
    %c0_11 = arith.constant 0 : index
    %22 = vector.load %arg4[%c0_10, %c0_11] : memref<8x1xf32, #tpu.memory_space<vmem>>, vector<8x1xf32>
    tpu.vector_store %arg4[%c0_10, %c0_11], %21 {strides = array<i32>} : memref<8x1xf32, #tpu.memory_space<vmem>>, vector<8x1xf32>,
    return
  }
  func.func @transform_0(%arg0: i32) -> (i32, i32) {
    %c0_i32 = arith.constant 0 : i32
    %c0_i32_0 = arith.constant 0 : i32
    return %arg0, %c0_i32 : i32, i32
  }
  func.func @transform_1(%arg0: i32) -> (i32, i32) {
    %c0_i32 = arith.constant 0 : i32
    %c0_i32_0 = arith.constant 0 : i32
    return %arg0, %c0_i32 : i32, i32
  }
  func.func @transform_2(%arg0: i32) -> (i32, i32) {
    %c0_i32 = arith.constant 0 : i32
    %c0_i32_0 = arith.constant 0 : i32
    return %arg0, %c0_i32 : i32, i32
  }
  func.func @transform_3(%arg0: i32) -> (i32, i32) {
    %c0_i32 = arith.constant 0 : i32
    %c0_i32_0 = arith.constant 0 : i32
    return %arg0, %c0_i32 : i32, i32
  }
}

module attributes {stable_mosaic.version = 11 : i64} {
  func.func @_linear_bias_kernel(%arg0: i32, %arg1: memref<40x4xbf16, #tpu.memory_space<vmem>>, %arg2: memref<4x32xbf16, #tpu.memory_space<vmem>>, %arg3: memref<1x32xf32, #tpu.memory_space<vmem>>, %arg4: memref<40x32xbf16, #tpu.memory_space<vmem>>) attributes {dimension_semantics = [#tpu.dimension_semantics<parallel>], iteration_bounds = array<i64: 1>, scalar_prefetch = 0 : i64, scratch_operands = 0 : i64, tpu.core_type = #tpu.core_type<tc>, window_params = [{transform_indices = @transform_0, window_bounds = array<i64: 40, 4>}, {pipeline_mode = #tpu.pipeline_mode<synchronous>, transform_indices = @transform_1, window_bounds = array<i64: 4, 32>}, {pipeline_mode = #tpu.pipeline_mode<synchronous>, transform_indices = @transform_2, window_bounds = array<i64: 1, 32>}, {transform_indices = @transform_3, window_bounds = array<i64: 40, 32>}]} {
    %c0 = arith.constant 0 : index
    %c0_0 = arith.constant 0 : index
    %0 = vector.load %arg1[%c0, %c0_0] : memref<40x4xbf16, #tpu.memory_space<vmem>>, vector<40x4xbf16>
    %c0_1 = arith.constant 0 : index
    %c0_2 = arith.constant 0 : index
    %1 = vector.load %arg2[%c0_1, %c0_2] : memref<4x32xbf16, #tpu.memory_space<vmem>>, vector<4x32xbf16>
    %cst = arith.constant dense<0.000000e+00> : vector<40x32xf32>
    %2 = tpu.matmul %0, %1, %cst {dimension_numbers = #tpu.dot_dimension_numbers<[1], [0], [0], [1], [0, 0, 1, 1], [], []>} : vector<40x4xbf16>, vector<4x32xbf16>, vector<40x32xf32> -> vector<40x32xf32>
    %c0_3 = arith.constant 0 : index
    %c0_4 = arith.constant 0 : index
    %3 = vector.load %arg3[%c0_3, %c0_4] : memref<1x32xf32, #tpu.memory_space<vmem>>, vector<1x32xf32>
    %4 = vector.broadcast %3 : vector<1x32xf32> to vector<40x32xf32>
    %5 = arith.addf %2, %4 : vector<40x32xf32>
    %6 = arith.truncf %5 : vector<40x32xf32> to vector<40x32xbf16>
    %c0_5 = arith.constant 0 : index
    %c0_6 = arith.constant 0 : index
    %7 = vector.load %arg4[%c0_5, %c0_6] : memref<40x32xbf16, #tpu.memory_space<vmem>>, vector<40x32xbf16>
    tpu.vector_store %arg4[%c0_5, %c0_6], %6 {strides = array<i32>} : memref<40x32xbf16, #tpu.memory_space<vmem>>, vector<40x32xbf16>,
    return
  }
  func.func @transform_0(%arg0: i32) -> (i32, i32) {
    %c0_i32 = arith.constant 0 : i32
    %c0_i32_0 = arith.constant 0 : i32
    return %arg0, %c0_i32 : i32, i32
  }
  func.func @transform_1(%arg0: i32) -> (i32, i32) {
    %c0_i32 = arith.constant 0 : i32
    %c0_i32_0 = arith.constant 0 : i32
    %c0_i32_1 = arith.constant 0 : i32
    return %c0_i32, %c0_i32_0 : i32, i32
  }
  func.func @transform_2(%arg0: i32) -> (i32, i32) {
    %c0_i32 = arith.constant 0 : i32
    %c0_i32_0 = arith.constant 0 : i32
    %c0_i32_1 = arith.constant 0 : i32
    return %c0_i32, %c0_i32_0 : i32, i32
  }
  func.func @transform_3(%arg0: i32) -> (i32, i32) {
    %c0_i32 = arith.constant 0 : i32
    %c0_i32_0 = arith.constant 0 : i32
    return %arg0, %c0_i32 : i32, i32
  }
}

module attributes {stable_mosaic.version = 11 : i64} {
  func.func @_ln_ffn_ln_kernel(%arg0: i32, %arg1: memref<42x32xbf16, #tpu.memory_space<vmem>>, %arg2: memref<1x32xf32, #tpu.memory_space<vmem>>, %arg3: memref<1x32xf32, #tpu.memory_space<vmem>>, %arg4: memref<32x32xbf16, #tpu.memory_space<vmem>>, %arg5: memref<1x32xf32, #tpu.memory_space<vmem>>, %arg6: memref<32x32xbf16, #tpu.memory_space<vmem>>, %arg7: memref<1x32xf32, #tpu.memory_space<vmem>>, %arg8: memref<1x32xf32, #tpu.memory_space<vmem>>, %arg9: memref<1x32xf32, #tpu.memory_space<vmem>>, %arg10: memref<42x32xbf16, #tpu.memory_space<vmem>>) attributes {dimension_semantics = [#tpu.dimension_semantics<parallel>], iteration_bounds = array<i64: 1>, scalar_prefetch = 0 : i64, scratch_operands = 0 : i64, tpu.core_type = #tpu.core_type<tc>, window_params = [{transform_indices = @transform_0, window_bounds = array<i64: 42, 32>}, {pipeline_mode = #tpu.pipeline_mode<synchronous>, transform_indices = @transform_1, window_bounds = array<i64: 1, 32>}, {pipeline_mode = #tpu.pipeline_mode<synchronous>, transform_indices = @transform_2, window_bounds = array<i64: 1, 32>}, {pipeline_mode = #tpu.pipeline_mode<synchronous>, transform_indices = @transform_3, window_bounds = array<i64: 32, 32>}, {pipeline_mode = #tpu.pipeline_mode<synchronous>, transform_indices = @transform_4, window_bounds = array<i64: 1, 32>}, {pipeline_mode = #tpu.pipeline_mode<synchronous>, transform_indices = @transform_5, window_bounds = array<i64: 32, 32>}, {pipeline_mode = #tpu.pipeline_mode<synchronous>, transform_indices = @transform_6, window_bounds = array<i64: 1, 32>}, {pipeline_mode = #tpu.pipeline_mode<synchronous>, transform_indices = @transform_7, window_bounds = array<i64: 1, 32>}, {pipeline_mode = #tpu.pipeline_mode<synchronous>, transform_indices = @transform_8, window_bounds = array<i64: 1, 32>}, {transform_indices = @transform_9, window_bounds = array<i64: 42, 32>}]} {
    %c0 = arith.constant 0 : index
    %c0_0 = arith.constant 0 : index
    %0 = vector.load %arg1[%c0, %c0_0] : memref<42x32xbf16, #tpu.memory_space<vmem>>, vector<42x32xbf16>
    %1 = arith.extf %0 : vector<42x32xbf16> to vector<42x32xf32>
    %c0_1 = arith.constant 0 : index
    %c0_2 = arith.constant 0 : index
    %2 = vector.load %arg2[%c0_1, %c0_2] : memref<1x32xf32, #tpu.memory_space<vmem>>, vector<1x32xf32>
    %c0_3 = arith.constant 0 : index
    %c0_4 = arith.constant 0 : index
    %3 = vector.load %arg3[%c0_3, %c0_4] : memref<1x32xf32, #tpu.memory_space<vmem>>, vector<1x32xf32>
    %cst = arith.constant dense<0.000000e+00> : vector<42xf32>
    %4 = vector.multi_reduction <add>, %1, %cst [1] : vector<42x32xf32> to vector<42xf32>
    %5 = vector.shape_cast %4 : vector<42xf32> to vector<42x1xf32>
    %cst_5 = arith.constant 3.200000e+01 : f32
    %6 = vector.broadcast %cst_5 : f32 to vector<42x1xf32>
    %7 = arith.divf %5, %6 : vector<42x1xf32>
    %8 = vector.broadcast %7 : vector<42x1xf32> to vector<42x32xf32>
    %9 = arith.subf %1, %8 : vector<42x32xf32>
    %10 = arith.mulf %9, %9 : vector<42x32xf32>
    %cst_6 = arith.constant dense<0.000000e+00> : vector<42xf32>
    %11 = vector.multi_reduction <add>, %10, %cst_6 [1] : vector<42x32xf32> to vector<42xf32>
    %12 = vector.shape_cast %11 : vector<42xf32> to vector<42x1xf32>
    %cst_7 = arith.constant 3.200000e+01 : f32
    %13 = vector.broadcast %cst_7 : f32 to vector<42x1xf32>
    %14 = arith.divf %12, %13 : vector<42x1xf32>
    %15 = vector.broadcast %7 : vector<42x1xf32> to vector<42x32xf32>
    %16 = arith.subf %1, %15 : vector<42x32xf32>
    %cst_8 = arith.constant 9.99999974E-6 : f32
    %17 = vector.broadcast %cst_8 : f32 to vector<42x1xf32>
    %18 = arith.addf %14, %17 : vector<42x1xf32>
    %19 = math.rsqrt %18 : vector<42x1xf32>
    %20 = vector.broadcast %19 : vector<42x1xf32> to vector<42x32xf32>
    %21 = arith.mulf %16, %20 : vector<42x32xf32>
    %22 = vector.broadcast %2 : vector<1x32xf32> to vector<42x32xf32>
    %23 = arith.mulf %21, %22 : vector<42x32xf32>
    %24 = vector.broadcast %3 : vector<1x32xf32> to vector<42x32xf32>
    %25 = arith.addf %23, %24 : vector<42x32xf32>
    %26 = arith.truncf %25 : vector<42x32xf32> to vector<42x32xbf16>
    %c0_9 = arith.constant 0 : index
    %c0_10 = arith.constant 0 : index
    %27 = vector.load %arg4[%c0_9, %c0_10] : memref<32x32xbf16, #tpu.memory_space<vmem>>, vector<32x32xbf16>
    %cst_11 = arith.constant dense<0.000000e+00> : vector<42x32xf32>
    %28 = tpu.matmul %26, %27, %cst_11 {dimension_numbers = #tpu.dot_dimension_numbers<[1], [0], [0], [1], [0, 0, 1, 1], [], []>} : vector<42x32xbf16>, vector<32x32xbf16>, vector<42x32xf32> -> vector<42x32xf32>
    %c0_12 = arith.constant 0 : index
    %c0_13 = arith.constant 0 : index
    %29 = vector.load %arg5[%c0_12, %c0_13] : memref<1x32xf32, #tpu.memory_space<vmem>>, vector<1x32xf32>
    %30 = vector.broadcast %29 : vector<1x32xf32> to vector<42x32xf32>
    %31 = arith.addf %28, %30 : vector<42x32xf32>
    %cst_14 = arith.constant 5.000000e-01 : f32
    %32 = vector.broadcast %cst_14 : f32 to vector<42x32xf32>
    %33 = arith.mulf %32, %31 : vector<42x32xf32>
    %cst_15 = arith.constant 0.707106769 : f32
    %34 = vector.broadcast %cst_15 : f32 to vector<42x32xf32>
    %35 = arith.mulf %31, %34 : vector<42x32xf32>
    %cst_16 = arith.constant 0.000000e+00 : f32
    %36 = vector.broadcast %cst_16 : f32 to vector<42x32xf32>
    %37 = arith.cmpf oge, %35, %36 : vector<42x32xf32>
    %cst_17 = arith.constant 1.000000e+00 : f32
    %cst_18 = arith.constant -1.000000e+00 : f32
    %38 = vector.broadcast %cst_17 : f32 to vector<42x32xf32>
    %39 = vector.broadcast %cst_18 : f32 to vector<42x32xf32>
    %40 = arith.select %37, %38, %39 : vector<42x32xi1>, vector<42x32xf32>
    %41 = math.absf %35 : vector<42x32xf32>
    %cst_19 = arith.constant 0.327591091 : f32
    %42 = vector.broadcast %cst_19 : f32 to vector<42x32xf32>
    %43 = arith.mulf %42, %41 : vector<42x32xf32>
    %cst_20 = arith.constant 1.000000e+00 : f32
    %44 = vector.broadcast %cst_20 : f32 to vector<42x32xf32>
    %45 = arith.addf %44, %43 : vector<42x32xf32>
    %cst_21 = arith.constant 1.000000e+00 : f32
    %46 = vector.broadcast %cst_21 : f32 to vector<42x32xf32>
    %47 = arith.divf %46, %45 : vector<42x32xf32>
    %cst_22 = arith.constant 1.06140542 : f32
    %48 = vector.broadcast %cst_22 : f32 to vector<42x32xf32>
    %49 = arith.mulf %48, %47 : vector<42x32xf32>
    %cst_23 = arith.constant -1.45315206 : f32
    %50 = vector.broadcast %cst_23 : f32 to vector<42x32xf32>
    %51 = arith.addf %49, %50 : vector<42x32xf32>
    %52 = arith.mulf %51, %47 : vector<42x32xf32>
    %cst_24 = arith.constant 1.42141378 : f32
    %53 = vector.broadcast %cst_24 : f32 to vector<42x32xf32>
    %54 = arith.addf %52, %53 : vector<42x32xf32>
    %55 = arith.mulf %54, %47 : vector<42x32xf32>
    %cst_25 = arith.constant -0.284496725 : f32
    %56 = vector.broadcast %cst_25 : f32 to vector<42x32xf32>
    %57 = arith.addf %55, %56 : vector<42x32xf32>
    %58 = arith.mulf %57, %47 : vector<42x32xf32>
    %cst_26 = arith.constant 0.254829586 : f32
    %59 = vector.broadcast %cst_26 : f32 to vector<42x32xf32>
    %60 = arith.addf %58, %59 : vector<42x32xf32>
    %61 = arith.mulf %60, %47 : vector<42x32xf32>
    %cst_27 = arith.constant 0.000000e+00 : f32
    %62 = vector.broadcast %cst_27 : f32 to vector<42x32xf32>
    %63 = arith.subf %62, %41 : vector<42x32xf32>
    %64 = arith.mulf %63, %41 : vector<42x32xf32>
    %65 = math.exp %64 : vector<42x32xf32>
    %66 = arith.mulf %61, %65 : vector<42x32xf32>
    %cst_28 = arith.constant 1.000000e+00 : f32
    %67 = vector.broadcast %cst_28 : f32 to vector<42x32xf32>
    %68 = arith.subf %67, %66 : vector<42x32xf32>
    %69 = arith.mulf %40, %68 : vector<42x32xf32>
    %cst_29 = arith.constant 1.000000e+00 : f32
    %70 = vector.broadcast %cst_29 : f32 to vector<42x32xf32>
    %71 = arith.addf %70, %69 : vector<42x32xf32>
    %72 = arith.mulf %33, %71 : vector<42x32xf32>
    %73 = arith.truncf %72 : vector<42x32xf32> to vector<42x32xbf16>
    %c0_30 = arith.constant 0 : index
    %c0_31 = arith.constant 0 : index
    %74 = vector.load %arg6[%c0_30, %c0_31] : memref<32x32xbf16, #tpu.memory_space<vmem>>, vector<32x32xbf16>
    %cst_32 = arith.constant dense<0.000000e+00> : vector<42x32xf32>
    %75 = tpu.matmul %73, %74, %cst_32 {dimension_numbers = #tpu.dot_dimension_numbers<[1], [0], [0], [1], [0, 0, 1, 1], [], []>} : vector<42x32xbf16>, vector<32x32xbf16>, vector<42x32xf32> -> vector<42x32xf32>
    %c0_33 = arith.constant 0 : index
    %c0_34 = arith.constant 0 : index
    %76 = vector.load %arg7[%c0_33, %c0_34] : memref<1x32xf32, #tpu.memory_space<vmem>>, vector<1x32xf32>
    %77 = vector.broadcast %76 : vector<1x32xf32> to vector<42x32xf32>
    %78 = arith.addf %75, %77 : vector<42x32xf32>
    %79 = arith.addf %25, %78 : vector<42x32xf32>
    %c0_35 = arith.constant 0 : index
    %c0_36 = arith.constant 0 : index
    %80 = vector.load %arg8[%c0_35, %c0_36] : memref<1x32xf32, #tpu.memory_space<vmem>>, vector<1x32xf32>
    %c0_37 = arith.constant 0 : index
    %c0_38 = arith.constant 0 : index
    %81 = vector.load %arg9[%c0_37, %c0_38] : memref<1x32xf32, #tpu.memory_space<vmem>>, vector<1x32xf32>
    %cst_39 = arith.constant dense<0.000000e+00> : vector<42xf32>
    %82 = vector.multi_reduction <add>, %79, %cst_39 [1] : vector<42x32xf32> to vector<42xf32>
    %83 = vector.shape_cast %82 : vector<42xf32> to vector<42x1xf32>
    %cst_40 = arith.constant 3.200000e+01 : f32
    %84 = vector.broadcast %cst_40 : f32 to vector<42x1xf32>
    %85 = arith.divf %83, %84 : vector<42x1xf32>
    %86 = vector.broadcast %85 : vector<42x1xf32> to vector<42x32xf32>
    %87 = arith.subf %79, %86 : vector<42x32xf32>
    %88 = arith.mulf %87, %87 : vector<42x32xf32>
    %cst_41 = arith.constant dense<0.000000e+00> : vector<42xf32>
    %89 = vector.multi_reduction <add>, %88, %cst_41 [1] : vector<42x32xf32> to vector<42xf32>
    %90 = vector.shape_cast %89 : vector<42xf32> to vector<42x1xf32>
    %cst_42 = arith.constant 3.200000e+01 : f32
    %91 = vector.broadcast %cst_42 : f32 to vector<42x1xf32>
    %92 = arith.divf %90, %91 : vector<42x1xf32>
    %93 = vector.broadcast %85 : vector<42x1xf32> to vector<42x32xf32>
    %94 = arith.subf %79, %93 : vector<42x32xf32>
    %cst_43 = arith.constant 9.99999974E-6 : f32
    %95 = vector.broadcast %cst_43 : f32 to vector<42x1xf32>
    %96 = arith.addf %92, %95 : vector<42x1xf32>
    %97 = math.rsqrt %96 : vector<42x1xf32>
    %98 = vector.broadcast %97 : vector<42x1xf32> to vector<42x32xf32>
    %99 = arith.mulf %94, %98 : vector<42x32xf32>
    %100 = vector.broadcast %80 : vector<1x32xf32> to vector<42x32xf32>
    %101 = arith.mulf %99, %100 : vector<42x32xf32>
    %102 = vector.broadcast %81 : vector<1x32xf32> to vector<42x32xf32>
    %103 = arith.addf %101, %102 : vector<42x32xf32>
    %104 = arith.truncf %103 : vector<42x32xf32> to vector<42x32xbf16>
    %c0_44 = arith.constant 0 : index
    %c0_45 = arith.constant 0 : index
    %105 = vector.load %arg10[%c0_44, %c0_45] : memref<42x32xbf16, #tpu.memory_space<vmem>>, vector<42x32xbf16>
    tpu.vector_store %arg10[%c0_44, %c0_45], %104 {strides = array<i32>} : memref<42x32xbf16, #tpu.memory_space<vmem>>, vector<42x32xbf16>,
    return
  }
  func.func @transform_0(%arg0: i32) -> (i32, i32) {
    %c0_i32 = arith.constant 0 : i32
    %c0_i32_0 = arith.constant 0 : i32
    return %arg0, %c0_i32 : i32, i32
  }
  func.func @transform_1(%arg0: i32) -> (i32, i32) {
    %c0_i32 = arith.constant 0 : i32
    %c0_i32_0 = arith.constant 0 : i32
    %c0_i32_1 = arith.constant 0 : i32
    return %c0_i32, %c0_i32_0 : i32, i32
  }
  func.func @transform_2(%arg0: i32) -> (i32, i32) {
    %c0_i32 = arith.constant 0 : i32
    %c0_i32_0 = arith.constant 0 : i32
    %c0_i32_1 = arith.constant 0 : i32
    return %c0_i32, %c0_i32_0 : i32, i32
  }
  func.func @transform_3(%arg0: i32) -> (i32, i32) {
    %c0_i32 = arith.constant 0 : i32
    %c0_i32_0 = arith.constant 0 : i32
    %c0_i32_1 = arith.constant 0 : i32
    return %c0_i32, %c0_i32_0 : i32, i32
  }
  func.func @transform_4(%arg0: i32) -> (i32, i32) {
    %c0_i32 = arith.constant 0 : i32
    %c0_i32_0 = arith.constant 0 : i32
    %c0_i32_1 = arith.constant 0 : i32
    return %c0_i32, %c0_i32_0 : i32, i32
  }
  func.func @transform_5(%arg0: i32) -> (i32, i32) {
    %c0_i32 = arith.constant 0 : i32
    %c0_i32_0 = arith.constant 0 : i32
    %c0_i32_1 = arith.constant 0 : i32
    return %c0_i32, %c0_i32_0 : i32, i32
  }
  func.func @transform_6(%arg0: i32) -> (i32, i32) {
    %c0_i32 = arith.constant 0 : i32
    %c0_i32_0 = arith.constant 0 : i32
    %c0_i32_1 = arith.constant 0 : i32
    return %c0_i32, %c0_i32_0 : i32, i32
  }
  func.func @transform_7(%arg0: i32) -> (i32, i32) {
    %c0_i32 = arith.constant 0 : i32
    %c0_i32_0 = arith.constant 0 : i32
    %c0_i32_1 = arith.constant 0 : i32
    return %c0_i32, %c0_i32_0 : i32, i32
  }
  func.func @transform_8(%arg0: i32) -> (i32, i32) {
    %c0_i32 = arith.constant 0 : i32
    %c0_i32_0 = arith.constant 0 : i32
    %c0_i32_1 = arith.constant 0 : i32
    return %c0_i32, %c0_i32_0 : i32, i32
  }
  func.func @transform_9(%arg0: i32) -> (i32, i32) {
    %c0_i32 = arith.constant 0 : i32
    %c0_i32_0 = arith.constant 0 : i32
    return %arg0, %c0_i32 : i32, i32
  }
}

module attributes {stable_mosaic.version = 11 : i64} {
  func.func @_layernorm_kernel(%arg0: i32, %arg1: memref<42x32xbf16, #tpu.memory_space<vmem>>, %arg2: memref<1x32xf32, #tpu.memory_space<vmem>>, %arg3: memref<1x32xf32, #tpu.memory_space<vmem>>, %arg4: memref<42x32xbf16, #tpu.memory_space<vmem>>) attributes {dimension_semantics = [#tpu.dimension_semantics<parallel>], iteration_bounds = array<i64: 1>, scalar_prefetch = 0 : i64, scratch_operands = 0 : i64, tpu.core_type = #tpu.core_type<tc>, window_params = [{transform_indices = @transform_0, window_bounds = array<i64: 42, 32>}, {pipeline_mode = #tpu.pipeline_mode<synchronous>, transform_indices = @transform_1, window_bounds = array<i64: 1, 32>}, {pipeline_mode = #tpu.pipeline_mode<synchronous>, transform_indices = @transform_2, window_bounds = array<i64: 1, 32>}, {transform_indices = @transform_3, window_bounds = array<i64: 42, 32>}]} {
    %c0 = arith.constant 0 : index
    %c0_0 = arith.constant 0 : index
    %0 = vector.load %arg1[%c0, %c0_0] : memref<42x32xbf16, #tpu.memory_space<vmem>>, vector<42x32xbf16>
    %1 = arith.extf %0 : vector<42x32xbf16> to vector<42x32xf32>
    %c0_1 = arith.constant 0 : index
    %c0_2 = arith.constant 0 : index
    %2 = vector.load %arg2[%c0_1, %c0_2] : memref<1x32xf32, #tpu.memory_space<vmem>>, vector<1x32xf32>
    %c0_3 = arith.constant 0 : index
    %c0_4 = arith.constant 0 : index
    %3 = vector.load %arg3[%c0_3, %c0_4] : memref<1x32xf32, #tpu.memory_space<vmem>>, vector<1x32xf32>
    %cst = arith.constant dense<0.000000e+00> : vector<42xf32>
    %4 = vector.multi_reduction <add>, %1, %cst [1] : vector<42x32xf32> to vector<42xf32>
    %5 = vector.shape_cast %4 : vector<42xf32> to vector<42x1xf32>
    %cst_5 = arith.constant 3.200000e+01 : f32
    %6 = vector.broadcast %cst_5 : f32 to vector<42x1xf32>
    %7 = arith.divf %5, %6 : vector<42x1xf32>
    %8 = vector.broadcast %7 : vector<42x1xf32> to vector<42x32xf32>
    %9 = arith.subf %1, %8 : vector<42x32xf32>
    %10 = arith.mulf %9, %9 : vector<42x32xf32>
    %cst_6 = arith.constant dense<0.000000e+00> : vector<42xf32>
    %11 = vector.multi_reduction <add>, %10, %cst_6 [1] : vector<42x32xf32> to vector<42xf32>
    %12 = vector.shape_cast %11 : vector<42xf32> to vector<42x1xf32>
    %cst_7 = arith.constant 3.200000e+01 : f32
    %13 = vector.broadcast %cst_7 : f32 to vector<42x1xf32>
    %14 = arith.divf %12, %13 : vector<42x1xf32>
    %15 = vector.broadcast %7 : vector<42x1xf32> to vector<42x32xf32>
    %16 = arith.subf %1, %15 : vector<42x32xf32>
    %cst_8 = arith.constant 9.99999974E-6 : f32
    %17 = vector.broadcast %cst_8 : f32 to vector<42x1xf32>
    %18 = arith.addf %14, %17 : vector<42x1xf32>
    %19 = math.rsqrt %18 : vector<42x1xf32>
    %20 = vector.broadcast %19 : vector<42x1xf32> to vector<42x32xf32>
    %21 = arith.mulf %16, %20 : vector<42x32xf32>
    %22 = vector.broadcast %2 : vector<1x32xf32> to vector<42x32xf32>
    %23 = arith.mulf %21, %22 : vector<42x32xf32>
    %24 = vector.broadcast %3 : vector<1x32xf32> to vector<42x32xf32>
    %25 = arith.addf %23, %24 : vector<42x32xf32>
    %26 = arith.truncf %25 : vector<42x32xf32> to vector<42x32xbf16>
    %c0_9 = arith.constant 0 : index
    %c0_10 = arith.constant 0 : index
    %27 = vector.load %arg4[%c0_9, %c0_10] : memref<42x32xbf16, #tpu.memory_space<vmem>>, vector<42x32xbf16>
    tpu.vector_store %arg4[%c0_9, %c0_10], %26 {strides = array<i32>} : memref<42x32xbf16, #tpu.memory_space<vmem>>, vector<42x32xbf16>,
    return
  }
  func.func @transform_0(%arg0: i32) -> (i32, i32) {
    %c0_i32 = arith.constant 0 : i32
    %c0_i32_0 = arith.constant 0 : i32
    return %arg0, %c0_i32 : i32, i32
  }
  func.func @transform_1(%arg0: i32) -> (i32, i32) {
    %c0_i32 = arith.constant 0 : i32
    %c0_i32_0 = arith.constant 0 : i32
    %c0_i32_1 = arith.constant 0 : i32
    return %c0_i32, %c0_i32_0 : i32, i32
  }
  func.func @transform_2(%arg0: i32) -> (i32, i32) {
    %c0_i32 = arith.constant 0 : i32
    %c0_i32_0 = arith.constant 0 : i32
    %c0_i32_1 = arith.constant 0 : i32
    return %c0_i32, %c0_i32_0 : i32, i32
  }
  func.func @transform_3(%arg0: i32) -> (i32, i32) {
    %c0_i32 = arith.constant 0 : i32
    %c0_i32_0 = arith.constant 0 : i32
    return %arg0, %c0_i32 : i32, i32
  }
}

module attributes {stable_mosaic.version = 11 : i64} {
  func.func @_bimamba_kernel(%arg0: i32, %arg1: memref<21x2x32xbf16, #tpu.memory_space<vmem>>, %arg2: memref<32x128xbf16, #tpu.memory_space<vmem>>, %arg3: memref<1x64xf32, #tpu.memory_space<vmem>>, %arg4: memref<1x64xf32, #tpu.memory_space<vmem>>, %arg5: memref<1x64xf32, #tpu.memory_space<vmem>>, %arg6: memref<64x36xbf16, #tpu.memory_space<vmem>>, %arg7: memref<4x64xbf16, #tpu.memory_space<vmem>>, %arg8: memref<1x64xf32, #tpu.memory_space<vmem>>, %arg9: memref<8x64xf32, #tpu.memory_space<vmem>>, %arg10: memref<1x64xf32, #tpu.memory_space<vmem>>, %arg11: memref<64x32xbf16, #tpu.memory_space<vmem>>, %arg12: memref<21x2x32xbf16, #tpu.memory_space<vmem>>, %arg13: memref<21x2x8x32xf32, #tpu.memory_space<vmem>>, %arg14: memref<21x2x8x32xf32, #tpu.memory_space<vmem>>, %arg15: memref<21x2x8x32xf32, #tpu.memory_space<vmem>>, %arg16: memref<21x2x8x32xf32, #tpu.memory_space<vmem>>, %arg17: memref<21x2x8x32xf32, #tpu.memory_space<vmem>>, %arg18: memref<21x2x8x32xf32, #tpu.memory_space<vmem>>) attributes {dimension_semantics = [#tpu.dimension_semantics<parallel>], iteration_bounds = array<i64: 1>, scalar_prefetch = 0 : i64, scratch_operands = 6 : i64, tpu.core_type = #tpu.core_type<tc>, window_params = [{transform_indices = @transform_0, window_bounds = array<i64: 21, 2, 32>}, {pipeline_mode = #tpu.pipeline_mode<synchronous>, transform_indices = @transform_1, window_bounds = array<i64: 32, 128>}, {pipeline_mode = #tpu.pipeline_mode<synchronous>, transform_indices = @transform_2, window_bounds = array<i64: 1, 64>}, {pipeline_mode = #tpu.pipeline_mode<synchronous>, transform_indices = @transform_3, window_bounds = array<i64: 1, 64>}, {pipeline_mode = #tpu.pipeline_mode<synchronous>, transform_indices = @transform_4, window_bounds = array<i64: 1, 64>}, {pipeline_mode = #tpu.pipeline_mode<synchronous>, transform_indices = @transform_5, window_bounds = array<i64: 64, 36>}, {pipeline_mode = #tpu.pipeline_mode<synchronous>, transform_indices = @transform_6, window_bounds = array<i64: 4, 64>}, {pipeline_mode = #tpu.pipeline_mode<synchronous>, transform_indices = @transform_7, window_bounds = array<i64: 1, 64>}, {pipeline_mode = #tpu.pipeline_mode<synchronous>, transform_indices = @transform_8, window_bounds = array<i64: 8, 64>}, {pipeline_mode = #tpu.pipeline_mode<synchronous>, transform_indices = @transform_9, window_bounds = array<i64: 1, 64>}, {pipeline_mode = #tpu.pipeline_mode<synchronous>, transform_indices = @transform_10, window_bounds = array<i64: 64, 32>}, {transform_indices = @transform_11, window_bounds = array<i64: 21, 2, 32>}]} {
    %c0 = arith.constant 0 : index
    %c0_0 = arith.constant 0 : index
    %c0_1 = arith.constant 0 : index
    %0 = vector.load %arg1[%c0, %c0_0, %c0_1] : memref<21x2x32xbf16, #tpu.memory_space<vmem>>, vector<21x2x32xbf16>
    %1 = vector.shape_cast %0 : vector<21x2x32xbf16> to vector<42x32xbf16>
    %c0_2 = arith.constant 0 : index
    %c0_3 = arith.constant 0 : index
    %2 = vector.load %arg2[%c0_2, %c0_3] : memref<32x128xbf16, #tpu.memory_space<vmem>>, vector<32x128xbf16>
    %cst = arith.constant dense<0.000000e+00> : vector<42x128xf32>
    %3 = tpu.matmul %1, %2, %cst {dimension_numbers = #tpu.dot_dimension_numbers<[1], [0], [0], [1], [0, 0, 1, 1], [], []>} : vector<42x32xbf16>, vector<32x128xbf16>, vector<42x128xf32> -> vector<42x128xf32>
    %4 = vector.extract_strided_slice %3 {offsets = [0, 0], sizes = [42, 64], strides = [1, 1]} : vector<42x128xf32> to vector<42x64xf32>
    %5 = vector.extract_strided_slice %3 {offsets = [0, 64], sizes = [42, 64], strides = [1, 1]} : vector<42x128xf32> to vector<42x64xf32>
    %6 = tpu.iota {dimensions = array<i32: 0>} : vector<42x1xi32>
    %7 = tpu.iota {dimensions = array<i32: 1>} : vector<42x64xi32>
    %c2_i32 = arith.constant 2 : i32
    %8 = vector.broadcast %c2_i32 : i32 to vector<42x1xi32>
    %9 = arith.cmpi slt, %6, %8 : vector<42x1xi32>
    %c2_i32_4 = arith.constant 2 : i32
    %10 = tpu.dynamic_rotate %4 by %c2_i32_4 dim 0 : vector<42x64xf32>, i32 -> vector<42x64xf32>
    %cst_5 = arith.constant 0.000000e+00 : f32
    %11 = vector.shape_cast %9 : vector<42x1xi1> to vector<42x1xi1>
    %12 = vector.broadcast %11 : vector<42x1xi1> to vector<42x64xi1>
    %13 = vector.broadcast %cst_5 : f32 to vector<42x64xf32>
    %14 = arith.select %12, %13, %10 : vector<42x64xi1>, vector<42x64xf32>
    %c40_i32 = arith.constant 40 : i32
    %15 = vector.broadcast %c40_i32 : i32 to vector<42x1xi32>
    %16 = arith.cmpi sge, %6, %15 : vector<42x1xi32>
    %c40_i32_6 = arith.constant 40 : i32
    %17 = tpu.dynamic_rotate %4 by %c40_i32_6 dim 0 : vector<42x64xf32>, i32 -> vector<42x64xf32>
    %cst_7 = arith.constant 0.000000e+00 : f32
    %18 = vector.shape_cast %16 : vector<42x1xi1> to vector<42x1xi1>
    %19 = vector.broadcast %18 : vector<42x1xi1> to vector<42x64xi1>
    %20 = vector.broadcast %cst_7 : f32 to vector<42x64xf32>
    %21 = arith.select %19, %20, %17 : vector<42x64xi1>, vector<42x64xf32>
    %c32_i32 = arith.constant 32 : i32
    %22 = vector.broadcast %c32_i32 : i32 to vector<42x64xi32>
    %23 = arith.cmpi slt, %7, %22 : vector<42x64xi32>
    %24 = arith.select %23, %14, %21 : vector<42x64xi1>, vector<42x64xf32>
    %c0_8 = arith.constant 0 : index
    %c0_9 = arith.constant 0 : index
    %25 = vector.load %arg3[%c0_8, %c0_9] : memref<1x64xf32, #tpu.memory_space<vmem>>, vector<1x64xf32>
    %26 = vector.broadcast %25 : vector<1x64xf32> to vector<42x64xf32>
    %27 = arith.mulf %4, %26 : vector<42x64xf32>
    %c0_10 = arith.constant 0 : index
    %c0_11 = arith.constant 0 : index
    %28 = vector.load %arg4[%c0_10, %c0_11] : memref<1x64xf32, #tpu.memory_space<vmem>>, vector<1x64xf32>
    %29 = vector.broadcast %28 : vector<1x64xf32> to vector<42x64xf32>
    %30 = arith.mulf %24, %29 : vector<42x64xf32>
    %31 = arith.addf %27, %30 : vector<42x64xf32>
    %c0_12 = arith.constant 0 : index
    %c0_13 = arith.constant 0 : index
    %32 = vector.load %arg5[%c0_12, %c0_13] : memref<1x64xf32, #tpu.memory_space<vmem>>, vector<1x64xf32>
    %33 = vector.broadcast %32 : vector<1x64xf32> to vector<42x64xf32>
    %34 = arith.addf %31, %33 : vector<42x64xf32>
    %cst_14 = arith.constant 0.000000e+00 : f32
    %35 = vector.broadcast %cst_14 : f32 to vector<42x64xf32>
    %36 = arith.subf %35, %34 : vector<42x64xf32>
    %37 = math.exp %36 : vector<42x64xf32>
    %cst_15 = arith.constant 1.000000e+00 : f32
    %38 = vector.broadcast %cst_15 : f32 to vector<42x64xf32>
    %39 = arith.addf %38, %37 : vector<42x64xf32>
    %cst_16 = arith.constant 1.000000e+00 : f32
    %40 = vector.broadcast %cst_16 : f32 to vector<42x64xf32>
    %41 = arith.divf %40, %39 : vector<42x64xf32>
    %42 = arith.mulf %34, %41 : vector<42x64xf32>
    %43 = arith.truncf %42 : vector<42x64xf32> to vector<42x64xbf16>
    %c0_17 = arith.constant 0 : index
    %c0_18 = arith.constant 0 : index
    %44 = vector.load %arg6[%c0_17, %c0_18] : memref<64x36xbf16, #tpu.memory_space<vmem>>, vector<64x36xbf16>
    %cst_19 = arith.constant dense<0.000000e+00> : vector<42x36xf32>
    %45 = tpu.matmul %43, %44, %cst_19 {dimension_numbers = #tpu.dot_dimension_numbers<[1], [0], [0], [1], [0, 0, 1, 1], [], []>} : vector<42x64xbf16>, vector<64x36xbf16>, vector<42x36xf32> -> vector<42x36xf32>
    %46 = vector.extract_strided_slice %45 {offsets = [0, 0], sizes = [42, 4], strides = [1, 1]} : vector<42x36xf32> to vector<42x4xf32>
    %47 = arith.truncf %46 : vector<42x4xf32> to vector<42x4xbf16>
    %c0_20 = arith.constant 0 : index
    %c0_21 = arith.constant 0 : index
    %48 = vector.load %arg7[%c0_20, %c0_21] : memref<4x64xbf16, #tpu.memory_space<vmem>>, vector<4x64xbf16>
    %cst_22 = arith.constant dense<0.000000e+00> : vector<42x64xf32>
    %49 = tpu.matmul %47, %48, %cst_22 {dimension_numbers = #tpu.dot_dimension_numbers<[1], [0], [0], [1], [0, 0, 1, 1], [], []>} : vector<42x4xbf16>, vector<4x64xbf16>, vector<42x64xf32> -> vector<42x64xf32>
    %c0_23 = arith.constant 0 : index
    %c0_24 = arith.constant 0 : index
    %50 = vector.load %arg8[%c0_23, %c0_24] : memref<1x64xf32, #tpu.memory_space<vmem>>, vector<1x64xf32>
    %51 = vector.broadcast %50 : vector<1x64xf32> to vector<42x64xf32>
    %52 = arith.addf %49, %51 : vector<42x64xf32>
    %cst_25 = arith.constant 0.000000e+00 : f32
    %53 = vector.broadcast %cst_25 : f32 to vector<42x64xf32>
    %54 = arith.maximumf %52, %53 : vector<42x64xf32>
    %55 = math.absf %52 : vector<42x64xf32>
    %cst_26 = arith.constant 0.000000e+00 : f32
    %56 = vector.broadcast %cst_26 : f32 to vector<42x64xf32>
    %57 = arith.subf %56, %55 : vector<42x64xf32>
    %58 = math.exp %57 : vector<42x64xf32>
    %cst_27 = arith.constant 1.000000e+00 : f32
    %59 = vector.broadcast %cst_27 : f32 to vector<42x64xf32>
    %60 = arith.addf %59, %58 : vector<42x64xf32>
    %61 = math.log %60 : vector<42x64xf32>
    %62 = arith.addf %54, %61 : vector<42x64xf32>
    %63 = arith.mulf %62, %42 : vector<42x64xf32>
    %c0_28 = arith.constant 0 : index
    %c0_29 = arith.constant 0 : index
    %64 = vector.load %arg9[%c0_28, %c0_29] : memref<8x64xf32, #tpu.memory_space<vmem>>, vector<8x64xf32>
    %65 = vector.shape_cast %62 : vector<42x64xf32> to vector<42x1x64xf32>
    %66 = vector.shape_cast %64 : vector<8x64xf32> to vector<1x8x64xf32>
    %67 = vector.broadcast %65 : vector<42x1x64xf32> to vector<42x8x64xf32>
    %68 = vector.broadcast %66 : vector<1x8x64xf32> to vector<42x8x64xf32>
    %69 = arith.mulf %67, %68 : vector<42x8x64xf32>
    %70 = math.exp %69 : vector<42x8x64xf32>
    %71 = vector.extract_strided_slice %45 {offsets = [0, 4], sizes = [42, 8], strides = [1, 1]} : vector<42x36xf32> to vector<42x8xf32>
    %72 = vector.shape_cast %71 : vector<42x8xf32> to vector<42x8x1xf32>
    %73 = vector.extract_strided_slice %45 {offsets = [0, 12], sizes = [42, 8], strides = [1, 1]} : vector<42x36xf32> to vector<42x8xf32>
    %74 = vector.shape_cast %73 : vector<42x8xf32> to vector<42x8x1xf32>
    %75 = vector.extract_strided_slice %45 {offsets = [0, 20], sizes = [42, 8], strides = [1, 1]} : vector<42x36xf32> to vector<42x8xf32>
    %76 = vector.shape_cast %75 : vector<42x8xf32> to vector<42x8x1xf32>
    %77 = vector.extract_strided_slice %45 {offsets = [0, 28], sizes = [42, 8], strides = [1, 1]} : vector<42x36xf32> to vector<42x8xf32>
    %78 = vector.shape_cast %77 : vector<42x8xf32> to vector<42x8x1xf32>
    %79 = vector.extract_strided_slice %70 {offsets = [0, 0, 0], sizes = [42, 8, 32], strides = [1, 1, 1]} : vector<42x8x64xf32> to vector<42x8x32xf32>
    %80 = vector.shape_cast %79 : vector<42x8x32xf32> to vector<21x2x8x32xf32>
    %c0_30 = arith.constant 0 : index
    %c0_31 = arith.constant 0 : index
    %c0_32 = arith.constant 0 : index
    %c0_33 = arith.constant 0 : index
    %81 = vector.load %arg13[%c0_30, %c0_31, %c0_32, %c0_33] : memref<21x2x8x32xf32, #tpu.memory_space<vmem>>, vector<21x2x8x32xf32>
    tpu.vector_store %arg13[%c0_30, %c0_31, %c0_32, %c0_33], %80 {strides = array<i32>} : memref<21x2x8x32xf32, #tpu.memory_space<vmem>>, vector<21x2x8x32xf32>,
    %82 = vector.extract_strided_slice %70 {offsets = [0, 0, 32], sizes = [42, 8, 32], strides = [1, 1, 1]} : vector<42x8x64xf32> to vector<42x8x32xf32>
    %83 = vector.shape_cast %82 : vector<42x8x32xf32> to vector<21x2x8x32xf32>
    %c0_34 = arith.constant 0 : index
    %c0_35 = arith.constant 0 : index
    %c0_36 = arith.constant 0 : index
    %c0_37 = arith.constant 0 : index
    %84 = vector.load %arg14[%c0_34, %c0_35, %c0_36, %c0_37] : memref<21x2x8x32xf32, #tpu.memory_space<vmem>>, vector<21x2x8x32xf32>
    tpu.vector_store %arg14[%c0_34, %c0_35, %c0_36, %c0_37], %83 {strides = array<i32>} : memref<21x2x8x32xf32, #tpu.memory_space<vmem>>, vector<21x2x8x32xf32>,
    %85 = vector.extract_strided_slice %63 {offsets = [0, 0], sizes = [42, 32], strides = [1, 1]} : vector<42x64xf32> to vector<42x32xf32>
    %86 = vector.shape_cast %85 : vector<42x32xf32> to vector<42x1x32xf32>
    %87 = vector.broadcast %72 : vector<42x8x1xf32> to vector<42x8x32xf32>
    %88 = vector.broadcast %86 : vector<42x1x32xf32> to vector<42x8x32xf32>
    %89 = arith.mulf %87, %88 : vector<42x8x32xf32>
    %90 = vector.shape_cast %89 : vector<42x8x32xf32> to vector<21x2x8x32xf32>
    %c0_38 = arith.constant 0 : index
    %c0_39 = arith.constant 0 : index
    %c0_40 = arith.constant 0 : index
    %c0_41 = arith.constant 0 : index
    %91 = vector.load %arg15[%c0_38, %c0_39, %c0_40, %c0_41] : memref<21x2x8x32xf32, #tpu.memory_space<vmem>>, vector<21x2x8x32xf32>
    tpu.vector_store %arg15[%c0_38, %c0_39, %c0_40, %c0_41], %90 {strides = array<i32>} : memref<21x2x8x32xf32, #tpu.memory_space<vmem>>, vector<21x2x8x32xf32>,
    %92 = vector.extract_strided_slice %63 {offsets = [0, 32], sizes = [42, 32], strides = [1, 1]} : vector<42x64xf32> to vector<42x32xf32>
    %93 = vector.shape_cast %92 : vector<42x32xf32> to vector<42x1x32xf32>
    %94 = vector.broadcast %76 : vector<42x8x1xf32> to vector<42x8x32xf32>
    %95 = vector.broadcast %93 : vector<42x1x32xf32> to vector<42x8x32xf32>
    %96 = arith.mulf %94, %95 : vector<42x8x32xf32>
    %97 = vector.shape_cast %96 : vector<42x8x32xf32> to vector<21x2x8x32xf32>
    %c0_42 = arith.constant 0 : index
    %c0_43 = arith.constant 0 : index
    %c0_44 = arith.constant 0 : index
    %c0_45 = arith.constant 0 : index
    %98 = vector.load %arg16[%c0_42, %c0_43, %c0_44, %c0_45] : memref<21x2x8x32xf32, #tpu.memory_space<vmem>>, vector<21x2x8x32xf32>
    tpu.vector_store %arg16[%c0_42, %c0_43, %c0_44, %c0_45], %97 {strides = array<i32>} : memref<21x2x8x32xf32, #tpu.memory_space<vmem>>, vector<21x2x8x32xf32>,
    %cst_46 = arith.constant 0.000000e+00 : f32
    %99 = vector.broadcast %cst_46 : f32 to vector<2x8x32xf32>
    %c0_i32 = arith.constant 0 : i32
    %c21_i32 = arith.constant 21 : i32
    %100 = arith.addi %c0_i32, %c21_i32 : i32
    %c1_i32 = arith.constant 1 : i32
    %101:2 = scf.for %arg19 = %c0_i32 to %100 step %c1_i32 iter_args(%arg20 = %99, %arg21 = %99) -> (vector<2x8x32xf32>, vector<2x8x32xf32>)  : i32 {
      %c20_i32 = arith.constant 20 : i32
      %147 = arith.subi %c20_i32, %arg19 : i32
      %148 = arith.index_cast %arg19 : i32 to index
      %c0_71 = arith.constant 0 : index
      %c0_72 = arith.constant 0 : index
      %c0_73 = arith.constant 0 : index
      %149 = vector.load %arg13[%148, %c0_71, %c0_72, %c0_73] : memref<21x2x8x32xf32, #tpu.memory_space<vmem>>, vector<1x2x8x32xf32>
      %150 = vector.shape_cast %149 : vector<1x2x8x32xf32> to vector<2x8x32xf32>
      %151 = arith.mulf %150, %arg20 : vector<2x8x32xf32>
      %152 = arith.index_cast %arg19 : i32 to index
      %c0_74 = arith.constant 0 : index
      %c0_75 = arith.constant 0 : index
      %c0_76 = arith.constant 0 : index
      %153 = vector.load %arg15[%152, %c0_74, %c0_75, %c0_76] : memref<21x2x8x32xf32, #tpu.memory_space<vmem>>, vector<1x2x8x32xf32>
      %154 = vector.shape_cast %153 : vector<1x2x8x32xf32> to vector<2x8x32xf32>
      %155 = arith.addf %151, %154 : vector<2x8x32xf32>
      %156 = arith.index_cast %147 : i32 to index
      %c0_77 = arith.constant 0 : index
      %c0_78 = arith.constant 0 : index
      %c0_79 = arith.constant 0 : index
      %157 = vector.load %arg14[%156, %c0_77, %c0_78, %c0_79] : memref<21x2x8x32xf32, #tpu.memory_space<vmem>>, vector<1x2x8x32xf32>
      %158 = vector.shape_cast %157 : vector<1x2x8x32xf32> to vector<2x8x32xf32>
      %159 = arith.mulf %158, %arg21 : vector<2x8x32xf32>
      %160 = arith.index_cast %147 : i32 to index
      %c0_80 = arith.constant 0 : index
      %c0_81 = arith.constant 0 : index
      %c0_82 = arith.constant 0 : index
      %161 = vector.load %arg16[%160, %c0_80, %c0_81, %c0_82] : memref<21x2x8x32xf32, #tpu.memory_space<vmem>>, vector<1x2x8x32xf32>
      %162 = vector.shape_cast %161 : vector<1x2x8x32xf32> to vector<2x8x32xf32>
      %163 = arith.addf %159, %162 : vector<2x8x32xf32>
      %164 = arith.index_cast %arg19 : i32 to index
      %c0_83 = arith.constant 0 : index
      %c0_84 = arith.constant 0 : index
      %c0_85 = arith.constant 0 : index
      %165 = vector.load %arg17[%164, %c0_83, %c0_84, %c0_85] : memref<21x2x8x32xf32, #tpu.memory_space<vmem>>, vector<1x2x8x32xf32>
      %166 = vector.shape_cast %165 : vector<1x2x8x32xf32> to vector<2x8x32xf32>
      %167 = vector.shape_cast %155 : vector<2x8x32xf32> to vector<1x2x8x32xf32>
      tpu.vector_store %arg17[%164, %c0_83, %c0_84, %c0_85], %167 {strides = array<i32>} : memref<21x2x8x32xf32, #tpu.memory_space<vmem>>, vector<1x2x8x32xf32>,
      %168 = arith.index_cast %147 : i32 to index
      %c0_86 = arith.constant 0 : index
      %c0_87 = arith.constant 0 : index
      %c0_88 = arith.constant 0 : index
      %169 = vector.load %arg18[%168, %c0_86, %c0_87, %c0_88] : memref<21x2x8x32xf32, #tpu.memory_space<vmem>>, vector<1x2x8x32xf32>
      %170 = vector.shape_cast %169 : vector<1x2x8x32xf32> to vector<2x8x32xf32>
      %171 = vector.shape_cast %163 : vector<2x8x32xf32> to vector<1x2x8x32xf32>
      tpu.vector_store %arg18[%168, %c0_86, %c0_87, %c0_88], %171 {strides = array<i32>} : memref<21x2x8x32xf32, #tpu.memory_space<vmem>>, vector<1x2x8x32xf32>,
      scf.yield %155, %163 : vector<2x8x32xf32>, vector<2x8x32xf32>
    }
    %c21_i32_47 = arith.constant 21 : i32
    %c0_48 = arith.constant 0 : index
    %c0_49 = arith.constant 0 : index
    %c0_50 = arith.constant 0 : index
    %c0_51 = arith.constant 0 : index
    %102 = vector.load %arg17[%c0_48, %c0_49, %c0_50, %c0_51] : memref<21x2x8x32xf32, #tpu.memory_space<vmem>>, vector<21x2x8x32xf32>
    %103 = vector.shape_cast %102 : vector<21x2x8x32xf32> to vector<42x8x32xf32>
    %104 = vector.broadcast %74 : vector<42x8x1xf32> to vector<42x8x32xf32>
    %105 = arith.mulf %103, %104 : vector<42x8x32xf32>
    %cst_52 = arith.constant dense<0.000000e+00> : vector<42x32xf32>
    %106 = vector.multi_reduction <add>, %105, %cst_52 [1] : vector<42x8x32xf32> to vector<42x32xf32>
    %c0_53 = arith.constant 0 : index
    %c0_54 = arith.constant 0 : index
    %c0_55 = arith.constant 0 : index
    %c0_56 = arith.constant 0 : index
    %107 = vector.load %arg18[%c0_53, %c0_54, %c0_55, %c0_56] : memref<21x2x8x32xf32, #tpu.memory_space<vmem>>, vector<21x2x8x32xf32>
    %108 = vector.shape_cast %107 : vector<21x2x8x32xf32> to vector<42x8x32xf32>
    %109 = vector.broadcast %78 : vector<42x8x1xf32> to vector<42x8x32xf32>
    %110 = arith.mulf %108, %109 : vector<42x8x32xf32>
    %cst_57 = arith.constant dense<0.000000e+00> : vector<42x32xf32>
    %111 = vector.multi_reduction <add>, %110, %cst_57 [1] : vector<42x8x32xf32> to vector<42x32xf32>
    %cst_58 = arith.constant 0.000000e+00 : f32
    %112 = vector.broadcast %cst_58 : f32 to vector<42x64xf32>
    %113 = arith.subf %112, %5 : vector<42x64xf32>
    %114 = math.exp %113 : vector<42x64xf32>
    %cst_59 = arith.constant 1.000000e+00 : f32
    %115 = vector.broadcast %cst_59 : f32 to vector<42x64xf32>
    %116 = arith.addf %115, %114 : vector<42x64xf32>
    %cst_60 = arith.constant 1.000000e+00 : f32
    %117 = vector.broadcast %cst_60 : f32 to vector<42x64xf32>
    %118 = arith.divf %117, %116 : vector<42x64xf32>
    %119 = arith.mulf %5, %118 : vector<42x64xf32>
    %c0_61 = arith.constant 0 : index
    %c0_62 = arith.constant 0 : index
    %120 = vector.load %arg10[%c0_61, %c0_62] : memref<1x64xf32, #tpu.memory_space<vmem>>, vector<1x64xf32>
    %121 = vector.extract_strided_slice %42 {offsets = [0, 0], sizes = [42, 32], strides = [1, 1]} : vector<42x64xf32> to vector<42x32xf32>
    %122 = vector.extract_strided_slice %120 {offsets = [0, 0], sizes = [1, 32], strides = [1, 1]} : vector<1x64xf32> to vector<1x32xf32>
    %123 = vector.broadcast %122 : vector<1x32xf32> to vector<42x32xf32>
    %124 = arith.mulf %121, %123 : vector<42x32xf32>
    %125 = arith.addf %106, %124 : vector<42x32xf32>
    %126 = vector.extract_strided_slice %119 {offsets = [0, 0], sizes = [42, 32], strides = [1, 1]} : vector<42x64xf32> to vector<42x32xf32>
    %127 = arith.mulf %125, %126 : vector<42x32xf32>
    %128 = vector.extract_strided_slice %42 {offsets = [0, 32], sizes = [42, 32], strides = [1, 1]} : vector<42x64xf32> to vector<42x32xf32>
    %129 = vector.extract_strided_slice %120 {offsets = [0, 32], sizes = [1, 32], strides = [1, 1]} : vector<1x64xf32> to vector<1x32xf32>
    %130 = vector.broadcast %129 : vector<1x32xf32> to vector<42x32xf32>
    %131 = arith.mulf %128, %130 : vector<42x32xf32>
    %132 = arith.addf %111, %131 : vector<42x32xf32>
    %133 = vector.extract_strided_slice %119 {offsets = [0, 32], sizes = [42, 32], strides = [1, 1]} : vector<42x64xf32> to vector<42x32xf32>
    %134 = arith.mulf %132, %133 : vector<42x32xf32>
    %135 = arith.truncf %127 : vector<42x32xf32> to vector<42x32xbf16>
    %c0_63 = arith.constant 0 : index
    %c0_64 = arith.constant 0 : index
    %136 = vector.load %arg11[%c0_63, %c0_64] : memref<64x32xbf16, #tpu.memory_space<vmem>>, vector<32x32xbf16>
    %cst_65 = arith.constant dense<0.000000e+00> : vector<42x32xf32>
    %137 = tpu.matmul %135, %136, %cst_65 {dimension_numbers = #tpu.dot_dimension_numbers<[1], [0], [0], [1], [0, 0, 1, 1], [], []>} : vector<42x32xbf16>, vector<32x32xbf16>, vector<42x32xf32> -> vector<42x32xf32>
    %138 = arith.truncf %134 : vector<42x32xf32> to vector<42x32xbf16>
    %c32 = arith.constant 32 : index
    %c0_66 = arith.constant 0 : index
    %139 = vector.load %arg11[%c32, %c0_66] : memref<64x32xbf16, #tpu.memory_space<vmem>>, vector<32x32xbf16>
    %cst_67 = arith.constant dense<0.000000e+00> : vector<42x32xf32>
    %140 = tpu.matmul %138, %139, %cst_67 {dimension_numbers = #tpu.dot_dimension_numbers<[1], [0], [0], [1], [0, 0, 1, 1], [], []>} : vector<42x32xbf16>, vector<32x32xbf16>, vector<42x32xf32> -> vector<42x32xf32>
    %141 = arith.addf %137, %140 : vector<42x32xf32>
    %142 = arith.extf %1 : vector<42x32xbf16> to vector<42x32xf32>
    %143 = arith.addf %142, %141 : vector<42x32xf32>
    %144 = vector.shape_cast %143 : vector<42x32xf32> to vector<21x2x32xf32>
    %145 = arith.truncf %144 : vector<21x2x32xf32> to vector<21x2x32xbf16>
    %c0_68 = arith.constant 0 : index
    %c0_69 = arith.constant 0 : index
    %c0_70 = arith.constant 0 : index
    %146 = vector.load %arg12[%c0_68, %c0_69, %c0_70] : memref<21x2x32xbf16, #tpu.memory_space<vmem>>, vector<21x2x32xbf16>
    tpu.vector_store %arg12[%c0_68, %c0_69, %c0_70], %145 {strides = array<i32>} : memref<21x2x32xbf16, #tpu.memory_space<vmem>>, vector<21x2x32xbf16>,
    return
  }
  func.func @transform_0(%arg0: i32) -> (i32, i32, i32) {
    %c0_i32 = arith.constant 0 : i32
    %c0_i32_0 = arith.constant 0 : i32
    %c0_i32_1 = arith.constant 0 : i32
    return %c0_i32, %arg0, %c0_i32_0 : i32, i32, i32
  }
  func.func @transform_1(%arg0: i32) -> (i32, i32) {
    %c0_i32 = arith.constant 0 : i32
    %c0_i32_0 = arith.constant 0 : i32
    %c0_i32_1 = arith.constant 0 : i32
    return %c0_i32, %c0_i32_0 : i32, i32
  }
  func.func @transform_2(%arg0: i32) -> (i32, i32) {
    %c0_i32 = arith.constant 0 : i32
    %c0_i32_0 = arith.constant 0 : i32
    %c0_i32_1 = arith.constant 0 : i32
    return %c0_i32, %c0_i32_0 : i32, i32
  }
  func.func @transform_3(%arg0: i32) -> (i32, i32) {
    %c0_i32 = arith.constant 0 : i32
    %c0_i32_0 = arith.constant 0 : i32
    %c0_i32_1 = arith.constant 0 : i32
    return %c0_i32, %c0_i32_0 : i32, i32
  }
  func.func @transform_4(%arg0: i32) -> (i32, i32) {
    %c0_i32 = arith.constant 0 : i32
    %c0_i32_0 = arith.constant 0 : i32
    %c0_i32_1 = arith.constant 0 : i32
    return %c0_i32, %c0_i32_0 : i32, i32
  }
  func.func @transform_5(%arg0: i32) -> (i32, i32) {
    %c0_i32 = arith.constant 0 : i32
    %c0_i32_0 = arith.constant 0 : i32
    %c0_i32_1 = arith.constant 0 : i32
    return %c0_i32, %c0_i32_0 : i32, i32
  }
  func.func @transform_6(%arg0: i32) -> (i32, i32) {
    %c0_i32 = arith.constant 0 : i32
    %c0_i32_0 = arith.constant 0 : i32
    %c0_i32_1 = arith.constant 0 : i32
    return %c0_i32, %c0_i32_0 : i32, i32
  }
  func.func @transform_7(%arg0: i32) -> (i32, i32) {
    %c0_i32 = arith.constant 0 : i32
    %c0_i32_0 = arith.constant 0 : i32
    %c0_i32_1 = arith.constant 0 : i32
    return %c0_i32, %c0_i32_0 : i32, i32
  }
  func.func @transform_8(%arg0: i32) -> (i32, i32) {
    %c0_i32 = arith.constant 0 : i32
    %c0_i32_0 = arith.constant 0 : i32
    %c0_i32_1 = arith.constant 0 : i32
    return %c0_i32, %c0_i32_0 : i32, i32
  }
  func.func @transform_9(%arg0: i32) -> (i32, i32) {
    %c0_i32 = arith.constant 0 : i32
    %c0_i32_0 = arith.constant 0 : i32
    %c0_i32_1 = arith.constant 0 : i32
    return %c0_i32, %c0_i32_0 : i32, i32
  }
  func.func @transform_10(%arg0: i32) -> (i32, i32) {
    %c0_i32 = arith.constant 0 : i32
    %c0_i32_0 = arith.constant 0 : i32
    %c0_i32_1 = arith.constant 0 : i32
    return %c0_i32, %c0_i32_0 : i32, i32
  }
  func.func @transform_11(%arg0: i32) -> (i32, i32, i32) {
    %c0_i32 = arith.constant 0 : i32
    %c0_i32_0 = arith.constant 0 : i32
    %c0_i32_1 = arith.constant 0 : i32
    return %c0_i32, %arg0, %c0_i32_0 : i32, i32, i32
  }
}

module attributes {stable_mosaic.version = 11 : i64} {
  func.func @_gate_head_kernel(%arg0: i32, %arg1: memref<8x160xbf16, #tpu.memory_space<vmem>>, %arg2: memref<160x160xbf16, #tpu.memory_space<vmem>>, %arg3: memref<1x160xf32, #tpu.memory_space<vmem>>, %arg4: memref<160x32xbf16, #tpu.memory_space<vmem>>, %arg5: memref<1x32xf32, #tpu.memory_space<vmem>>, %arg6: memref<8x32xbf16, #tpu.memory_space<vmem>>) attributes {dimension_semantics = [#tpu.dimension_semantics<parallel>], iteration_bounds = array<i64: 1>, scalar_prefetch = 0 : i64, scratch_operands = 0 : i64, tpu.core_type = #tpu.core_type<tc>, window_params = [{transform_indices = @transform_0, window_bounds = array<i64: 8, 160>}, {pipeline_mode = #tpu.pipeline_mode<synchronous>, transform_indices = @transform_1, window_bounds = array<i64: 160, 160>}, {pipeline_mode = #tpu.pipeline_mode<synchronous>, transform_indices = @transform_2, window_bounds = array<i64: 1, 160>}, {pipeline_mode = #tpu.pipeline_mode<synchronous>, transform_indices = @transform_3, window_bounds = array<i64: 160, 32>}, {pipeline_mode = #tpu.pipeline_mode<synchronous>, transform_indices = @transform_4, window_bounds = array<i64: 1, 32>}, {transform_indices = @transform_5, window_bounds = array<i64: 8, 32>}]} {
    %c0 = arith.constant 0 : index
    %c0_0 = arith.constant 0 : index
    %0 = vector.load %arg1[%c0, %c0_0] : memref<8x160xbf16, #tpu.memory_space<vmem>>, vector<8x160xbf16>
    %1 = arith.extf %0 : vector<8x160xbf16> to vector<8x160xf32>
    %c0_1 = arith.constant 0 : index
    %c0_2 = arith.constant 0 : index
    %2 = vector.load %arg2[%c0_1, %c0_2] : memref<160x160xbf16, #tpu.memory_space<vmem>>, vector<160x160xbf16>
    %cst = arith.constant dense<0.000000e+00> : vector<8x160xf32>
    %3 = tpu.matmul %0, %2, %cst {dimension_numbers = #tpu.dot_dimension_numbers<[1], [0], [0], [1], [0, 0, 1, 1], [], []>} : vector<8x160xbf16>, vector<160x160xbf16>, vector<8x160xf32> -> vector<8x160xf32>
    %c0_3 = arith.constant 0 : index
    %c0_4 = arith.constant 0 : index
    %4 = vector.load %arg3[%c0_3, %c0_4] : memref<1x160xf32, #tpu.memory_space<vmem>>, vector<1x160xf32>
    %5 = vector.broadcast %4 : vector<1x160xf32> to vector<8x160xf32>
    %6 = arith.addf %3, %5 : vector<8x160xf32>
    %cst_5 = arith.constant 0.000000e+00 : f32
    %7 = vector.broadcast %cst_5 : f32 to vector<8x160xf32>
    %8 = arith.subf %7, %6 : vector<8x160xf32>
    %9 = math.exp %8 : vector<8x160xf32>
    %cst_6 = arith.constant 1.000000e+00 : f32
    %10 = vector.broadcast %cst_6 : f32 to vector<8x160xf32>
    %11 = arith.addf %10, %9 : vector<8x160xf32>
    %cst_7 = arith.constant 1.000000e+00 : f32
    %12 = vector.broadcast %cst_7 : f32 to vector<8x160xf32>
    %13 = arith.divf %12, %11 : vector<8x160xf32>
    %14 = arith.mulf %6, %13 : vector<8x160xf32>
    %15 = arith.mulf %1, %14 : vector<8x160xf32>
    %16 = arith.truncf %15 : vector<8x160xf32> to vector<8x160xbf16>
    %c0_8 = arith.constant 0 : index
    %c0_9 = arith.constant 0 : index
    %17 = vector.load %arg4[%c0_8, %c0_9] : memref<160x32xbf16, #tpu.memory_space<vmem>>, vector<160x32xbf16>
    %cst_10 = arith.constant dense<0.000000e+00> : vector<8x32xf32>
    %18 = tpu.matmul %16, %17, %cst_10 {dimension_numbers = #tpu.dot_dimension_numbers<[1], [0], [0], [1], [0, 0, 1, 1], [], []>} : vector<8x160xbf16>, vector<160x32xbf16>, vector<8x32xf32> -> vector<8x32xf32>
    %c0_11 = arith.constant 0 : index
    %c0_12 = arith.constant 0 : index
    %19 = vector.load %arg5[%c0_11, %c0_12] : memref<1x32xf32, #tpu.memory_space<vmem>>, vector<1x32xf32>
    %20 = vector.broadcast %19 : vector<1x32xf32> to vector<8x32xf32>
    %21 = arith.addf %18, %20 : vector<8x32xf32>
    %22 = arith.truncf %21 : vector<8x32xf32> to vector<8x32xbf16>
    %c0_13 = arith.constant 0 : index
    %c0_14 = arith.constant 0 : index
    %23 = vector.load %arg6[%c0_13, %c0_14] : memref<8x32xbf16, #tpu.memory_space<vmem>>, vector<8x32xbf16>
    tpu.vector_store %arg6[%c0_13, %c0_14], %22 {strides = array<i32>} : memref<8x32xbf16, #tpu.memory_space<vmem>>, vector<8x32xbf16>,
    return
  }
  func.func @transform_0(%arg0: i32) -> (i32, i32) {
    %c0_i32 = arith.constant 0 : i32
    %c0_i32_0 = arith.constant 0 : i32
    return %arg0, %c0_i32 : i32, i32
  }
  func.func @transform_1(%arg0: i32) -> (i32, i32) {
    %c0_i32 = arith.constant 0 : i32
    %c0_i32_0 = arith.constant 0 : i32
    %c0_i32_1 = arith.constant 0 : i32
    return %c0_i32, %c0_i32_0 : i32, i32
  }
  func.func @transform_2(%arg0: i32) -> (i32, i32) {
    %c0_i32 = arith.constant 0 : i32
    %c0_i32_0 = arith.constant 0 : i32
    %c0_i32_1 = arith.constant 0 : i32
    return %c0_i32, %c0_i32_0 : i32, i32
  }
  func.func @transform_3(%arg0: i32) -> (i32, i32) {
    %c0_i32 = arith.constant 0 : i32
    %c0_i32_0 = arith.constant 0 : i32
    %c0_i32_1 = arith.constant 0 : i32
    return %c0_i32, %c0_i32_0 : i32, i32
  }
  func.func @transform_4(%arg0: i32) -> (i32, i32) {
    %c0_i32 = arith.constant 0 : i32
    %c0_i32_0 = arith.constant 0 : i32
    %c0_i32_1 = arith.constant 0 : i32
    return %c0_i32, %c0_i32_0 : i32, i32
  }
  func.func @transform_5(%arg0: i32) -> (i32, i32) {
    %c0_i32 = arith.constant 0 : i32
    %c0_i32_0 = arith.constant 0 : i32
    return %arg0, %c0_i32 : i32, i32
  }
}

module attributes {stable_mosaic.version = 11 : i64} {
  func.func @_bimamba_kernel(%arg0: i32, %arg1: memref<5x2x32xbf16, #tpu.memory_space<vmem>>, %arg2: memref<32x128xbf16, #tpu.memory_space<vmem>>, %arg3: memref<1x64xf32, #tpu.memory_space<vmem>>, %arg4: memref<1x64xf32, #tpu.memory_space<vmem>>, %arg5: memref<1x64xf32, #tpu.memory_space<vmem>>, %arg6: memref<64x36xbf16, #tpu.memory_space<vmem>>, %arg7: memref<4x64xbf16, #tpu.memory_space<vmem>>, %arg8: memref<1x64xf32, #tpu.memory_space<vmem>>, %arg9: memref<8x64xf32, #tpu.memory_space<vmem>>, %arg10: memref<1x64xf32, #tpu.memory_space<vmem>>, %arg11: memref<64x32xbf16, #tpu.memory_space<vmem>>, %arg12: memref<5x2x32xbf16, #tpu.memory_space<vmem>>, %arg13: memref<5x2x8x32xf32, #tpu.memory_space<vmem>>, %arg14: memref<5x2x8x32xf32, #tpu.memory_space<vmem>>, %arg15: memref<5x2x8x32xf32, #tpu.memory_space<vmem>>, %arg16: memref<5x2x8x32xf32, #tpu.memory_space<vmem>>, %arg17: memref<5x2x8x32xf32, #tpu.memory_space<vmem>>, %arg18: memref<5x2x8x32xf32, #tpu.memory_space<vmem>>) attributes {dimension_semantics = [#tpu.dimension_semantics<parallel>], iteration_bounds = array<i64: 1>, scalar_prefetch = 0 : i64, scratch_operands = 6 : i64, tpu.core_type = #tpu.core_type<tc>, window_params = [{transform_indices = @transform_0, window_bounds = array<i64: 5, 2, 32>}, {pipeline_mode = #tpu.pipeline_mode<synchronous>, transform_indices = @transform_1, window_bounds = array<i64: 32, 128>}, {pipeline_mode = #tpu.pipeline_mode<synchronous>, transform_indices = @transform_2, window_bounds = array<i64: 1, 64>}, {pipeline_mode = #tpu.pipeline_mode<synchronous>, transform_indices = @transform_3, window_bounds = array<i64: 1, 64>}, {pipeline_mode = #tpu.pipeline_mode<synchronous>, transform_indices = @transform_4, window_bounds = array<i64: 1, 64>}, {pipeline_mode = #tpu.pipeline_mode<synchronous>, transform_indices = @transform_5, window_bounds = array<i64: 64, 36>}, {pipeline_mode = #tpu.pipeline_mode<synchronous>, transform_indices = @transform_6, window_bounds = array<i64: 4, 64>}, {pipeline_mode = #tpu.pipeline_mode<synchronous>, transform_indices = @transform_7, window_bounds = array<i64: 1, 64>}, {pipeline_mode = #tpu.pipeline_mode<synchronous>, transform_indices = @transform_8, window_bounds = array<i64: 8, 64>}, {pipeline_mode = #tpu.pipeline_mode<synchronous>, transform_indices = @transform_9, window_bounds = array<i64: 1, 64>}, {pipeline_mode = #tpu.pipeline_mode<synchronous>, transform_indices = @transform_10, window_bounds = array<i64: 64, 32>}, {transform_indices = @transform_11, window_bounds = array<i64: 5, 2, 32>}]} {
    %c0 = arith.constant 0 : index
    %c0_0 = arith.constant 0 : index
    %c0_1 = arith.constant 0 : index
    %0 = vector.load %arg1[%c0, %c0_0, %c0_1] : memref<5x2x32xbf16, #tpu.memory_space<vmem>>, vector<5x2x32xbf16>
    %1 = vector.shape_cast %0 : vector<5x2x32xbf16> to vector<10x32xbf16>
    %c0_2 = arith.constant 0 : index
    %c0_3 = arith.constant 0 : index
    %2 = vector.load %arg2[%c0_2, %c0_3] : memref<32x128xbf16, #tpu.memory_space<vmem>>, vector<32x128xbf16>
    %cst = arith.constant dense<0.000000e+00> : vector<10x128xf32>
    %3 = tpu.matmul %1, %2, %cst {dimension_numbers = #tpu.dot_dimension_numbers<[1], [0], [0], [1], [0, 0, 1, 1], [], []>} : vector<10x32xbf16>, vector<32x128xbf16>, vector<10x128xf32> -> vector<10x128xf32>
    %4 = vector.extract_strided_slice %3 {offsets = [0, 0], sizes = [10, 64], strides = [1, 1]} : vector<10x128xf32> to vector<10x64xf32>
    %5 = vector.extract_strided_slice %3 {offsets = [0, 64], sizes = [10, 64], strides = [1, 1]} : vector<10x128xf32> to vector<10x64xf32>
    %6 = tpu.iota {dimensions = array<i32: 0>} : vector<10x1xi32>
    %7 = tpu.iota {dimensions = array<i32: 1>} : vector<10x64xi32>
    %c2_i32 = arith.constant 2 : i32
    %8 = vector.broadcast %c2_i32 : i32 to vector<10x1xi32>
    %9 = arith.cmpi slt, %6, %8 : vector<10x1xi32>
    %c2_i32_4 = arith.constant 2 : i32
    %10 = tpu.dynamic_rotate %4 by %c2_i32_4 dim 0 : vector<10x64xf32>, i32 -> vector<10x64xf32>
    %cst_5 = arith.constant 0.000000e+00 : f32
    %11 = vector.shape_cast %9 : vector<10x1xi1> to vector<10x1xi1>
    %12 = vector.broadcast %11 : vector<10x1xi1> to vector<10x64xi1>
    %13 = vector.broadcast %cst_5 : f32 to vector<10x64xf32>
    %14 = arith.select %12, %13, %10 : vector<10x64xi1>, vector<10x64xf32>
    %c8_i32 = arith.constant 8 : i32
    %15 = vector.broadcast %c8_i32 : i32 to vector<10x1xi32>
    %16 = arith.cmpi sge, %6, %15 : vector<10x1xi32>
    %c8_i32_6 = arith.constant 8 : i32
    %17 = tpu.dynamic_rotate %4 by %c8_i32_6 dim 0 : vector<10x64xf32>, i32 -> vector<10x64xf32>
    %cst_7 = arith.constant 0.000000e+00 : f32
    %18 = vector.shape_cast %16 : vector<10x1xi1> to vector<10x1xi1>
    %19 = vector.broadcast %18 : vector<10x1xi1> to vector<10x64xi1>
    %20 = vector.broadcast %cst_7 : f32 to vector<10x64xf32>
    %21 = arith.select %19, %20, %17 : vector<10x64xi1>, vector<10x64xf32>
    %c32_i32 = arith.constant 32 : i32
    %22 = vector.broadcast %c32_i32 : i32 to vector<10x64xi32>
    %23 = arith.cmpi slt, %7, %22 : vector<10x64xi32>
    %24 = arith.select %23, %14, %21 : vector<10x64xi1>, vector<10x64xf32>
    %c0_8 = arith.constant 0 : index
    %c0_9 = arith.constant 0 : index
    %25 = vector.load %arg3[%c0_8, %c0_9] : memref<1x64xf32, #tpu.memory_space<vmem>>, vector<1x64xf32>
    %26 = vector.broadcast %25 : vector<1x64xf32> to vector<10x64xf32>
    %27 = arith.mulf %4, %26 : vector<10x64xf32>
    %c0_10 = arith.constant 0 : index
    %c0_11 = arith.constant 0 : index
    %28 = vector.load %arg4[%c0_10, %c0_11] : memref<1x64xf32, #tpu.memory_space<vmem>>, vector<1x64xf32>
    %29 = vector.broadcast %28 : vector<1x64xf32> to vector<10x64xf32>
    %30 = arith.mulf %24, %29 : vector<10x64xf32>
    %31 = arith.addf %27, %30 : vector<10x64xf32>
    %c0_12 = arith.constant 0 : index
    %c0_13 = arith.constant 0 : index
    %32 = vector.load %arg5[%c0_12, %c0_13] : memref<1x64xf32, #tpu.memory_space<vmem>>, vector<1x64xf32>
    %33 = vector.broadcast %32 : vector<1x64xf32> to vector<10x64xf32>
    %34 = arith.addf %31, %33 : vector<10x64xf32>
    %cst_14 = arith.constant 0.000000e+00 : f32
    %35 = vector.broadcast %cst_14 : f32 to vector<10x64xf32>
    %36 = arith.subf %35, %34 : vector<10x64xf32>
    %37 = math.exp %36 : vector<10x64xf32>
    %cst_15 = arith.constant 1.000000e+00 : f32
    %38 = vector.broadcast %cst_15 : f32 to vector<10x64xf32>
    %39 = arith.addf %38, %37 : vector<10x64xf32>
    %cst_16 = arith.constant 1.000000e+00 : f32
    %40 = vector.broadcast %cst_16 : f32 to vector<10x64xf32>
    %41 = arith.divf %40, %39 : vector<10x64xf32>
    %42 = arith.mulf %34, %41 : vector<10x64xf32>
    %43 = arith.truncf %42 : vector<10x64xf32> to vector<10x64xbf16>
    %c0_17 = arith.constant 0 : index
    %c0_18 = arith.constant 0 : index
    %44 = vector.load %arg6[%c0_17, %c0_18] : memref<64x36xbf16, #tpu.memory_space<vmem>>, vector<64x36xbf16>
    %cst_19 = arith.constant dense<0.000000e+00> : vector<10x36xf32>
    %45 = tpu.matmul %43, %44, %cst_19 {dimension_numbers = #tpu.dot_dimension_numbers<[1], [0], [0], [1], [0, 0, 1, 1], [], []>} : vector<10x64xbf16>, vector<64x36xbf16>, vector<10x36xf32> -> vector<10x36xf32>
    %46 = vector.extract_strided_slice %45 {offsets = [0, 0], sizes = [10, 4], strides = [1, 1]} : vector<10x36xf32> to vector<10x4xf32>
    %47 = arith.truncf %46 : vector<10x4xf32> to vector<10x4xbf16>
    %c0_20 = arith.constant 0 : index
    %c0_21 = arith.constant 0 : index
    %48 = vector.load %arg7[%c0_20, %c0_21] : memref<4x64xbf16, #tpu.memory_space<vmem>>, vector<4x64xbf16>
    %cst_22 = arith.constant dense<0.000000e+00> : vector<10x64xf32>
    %49 = tpu.matmul %47, %48, %cst_22 {dimension_numbers = #tpu.dot_dimension_numbers<[1], [0], [0], [1], [0, 0, 1, 1], [], []>} : vector<10x4xbf16>, vector<4x64xbf16>, vector<10x64xf32> -> vector<10x64xf32>
    %c0_23 = arith.constant 0 : index
    %c0_24 = arith.constant 0 : index
    %50 = vector.load %arg8[%c0_23, %c0_24] : memref<1x64xf32, #tpu.memory_space<vmem>>, vector<1x64xf32>
    %51 = vector.broadcast %50 : vector<1x64xf32> to vector<10x64xf32>
    %52 = arith.addf %49, %51 : vector<10x64xf32>
    %cst_25 = arith.constant 0.000000e+00 : f32
    %53 = vector.broadcast %cst_25 : f32 to vector<10x64xf32>
    %54 = arith.maximumf %52, %53 : vector<10x64xf32>
    %55 = math.absf %52 : vector<10x64xf32>
    %cst_26 = arith.constant 0.000000e+00 : f32
    %56 = vector.broadcast %cst_26 : f32 to vector<10x64xf32>
    %57 = arith.subf %56, %55 : vector<10x64xf32>
    %58 = math.exp %57 : vector<10x64xf32>
    %cst_27 = arith.constant 1.000000e+00 : f32
    %59 = vector.broadcast %cst_27 : f32 to vector<10x64xf32>
    %60 = arith.addf %59, %58 : vector<10x64xf32>
    %61 = math.log %60 : vector<10x64xf32>
    %62 = arith.addf %54, %61 : vector<10x64xf32>
    %63 = arith.mulf %62, %42 : vector<10x64xf32>
    %c0_28 = arith.constant 0 : index
    %c0_29 = arith.constant 0 : index
    %64 = vector.load %arg9[%c0_28, %c0_29] : memref<8x64xf32, #tpu.memory_space<vmem>>, vector<8x64xf32>
    %65 = vector.shape_cast %62 : vector<10x64xf32> to vector<10x1x64xf32>
    %66 = vector.shape_cast %64 : vector<8x64xf32> to vector<1x8x64xf32>
    %67 = vector.broadcast %65 : vector<10x1x64xf32> to vector<10x8x64xf32>
    %68 = vector.broadcast %66 : vector<1x8x64xf32> to vector<10x8x64xf32>
    %69 = arith.mulf %67, %68 : vector<10x8x64xf32>
    %70 = math.exp %69 : vector<10x8x64xf32>
    %71 = vector.extract_strided_slice %45 {offsets = [0, 4], sizes = [10, 8], strides = [1, 1]} : vector<10x36xf32> to vector<10x8xf32>
    %72 = vector.shape_cast %71 : vector<10x8xf32> to vector<10x8x1xf32>
    %73 = vector.extract_strided_slice %45 {offsets = [0, 12], sizes = [10, 8], strides = [1, 1]} : vector<10x36xf32> to vector<10x8xf32>
    %74 = vector.shape_cast %73 : vector<10x8xf32> to vector<10x8x1xf32>
    %75 = vector.extract_strided_slice %45 {offsets = [0, 20], sizes = [10, 8], strides = [1, 1]} : vector<10x36xf32> to vector<10x8xf32>
    %76 = vector.shape_cast %75 : vector<10x8xf32> to vector<10x8x1xf32>
    %77 = vector.extract_strided_slice %45 {offsets = [0, 28], sizes = [10, 8], strides = [1, 1]} : vector<10x36xf32> to vector<10x8xf32>
    %78 = vector.shape_cast %77 : vector<10x8xf32> to vector<10x8x1xf32>
    %79 = vector.extract_strided_slice %70 {offsets = [0, 0, 0], sizes = [10, 8, 32], strides = [1, 1, 1]} : vector<10x8x64xf32> to vector<10x8x32xf32>
    %80 = vector.shape_cast %79 : vector<10x8x32xf32> to vector<5x2x8x32xf32>
    %c0_30 = arith.constant 0 : index
    %c0_31 = arith.constant 0 : index
    %c0_32 = arith.constant 0 : index
    %c0_33 = arith.constant 0 : index
    %81 = vector.load %arg13[%c0_30, %c0_31, %c0_32, %c0_33] : memref<5x2x8x32xf32, #tpu.memory_space<vmem>>, vector<5x2x8x32xf32>
    tpu.vector_store %arg13[%c0_30, %c0_31, %c0_32, %c0_33], %80 {strides = array<i32>} : memref<5x2x8x32xf32, #tpu.memory_space<vmem>>, vector<5x2x8x32xf32>,
    %82 = vector.extract_strided_slice %70 {offsets = [0, 0, 32], sizes = [10, 8, 32], strides = [1, 1, 1]} : vector<10x8x64xf32> to vector<10x8x32xf32>
    %83 = vector.shape_cast %82 : vector<10x8x32xf32> to vector<5x2x8x32xf32>
    %c0_34 = arith.constant 0 : index
    %c0_35 = arith.constant 0 : index
    %c0_36 = arith.constant 0 : index
    %c0_37 = arith.constant 0 : index
    %84 = vector.load %arg14[%c0_34, %c0_35, %c0_36, %c0_37] : memref<5x2x8x32xf32, #tpu.memory_space<vmem>>, vector<5x2x8x32xf32>
    tpu.vector_store %arg14[%c0_34, %c0_35, %c0_36, %c0_37], %83 {strides = array<i32>} : memref<5x2x8x32xf32, #tpu.memory_space<vmem>>, vector<5x2x8x32xf32>,
    %85 = vector.extract_strided_slice %63 {offsets = [0, 0], sizes = [10, 32], strides = [1, 1]} : vector<10x64xf32> to vector<10x32xf32>
    %86 = vector.shape_cast %85 : vector<10x32xf32> to vector<10x1x32xf32>
    %87 = vector.broadcast %72 : vector<10x8x1xf32> to vector<10x8x32xf32>
    %88 = vector.broadcast %86 : vector<10x1x32xf32> to vector<10x8x32xf32>
    %89 = arith.mulf %87, %88 : vector<10x8x32xf32>
    %90 = vector.shape_cast %89 : vector<10x8x32xf32> to vector<5x2x8x32xf32>
    %c0_38 = arith.constant 0 : index
    %c0_39 = arith.constant 0 : index
    %c0_40 = arith.constant 0 : index
    %c0_41 = arith.constant 0 : index
    %91 = vector.load %arg15[%c0_38, %c0_39, %c0_40, %c0_41] : memref<5x2x8x32xf32, #tpu.memory_space<vmem>>, vector<5x2x8x32xf32>
    tpu.vector_store %arg15[%c0_38, %c0_39, %c0_40, %c0_41], %90 {strides = array<i32>} : memref<5x2x8x32xf32, #tpu.memory_space<vmem>>, vector<5x2x8x32xf32>,
    %92 = vector.extract_strided_slice %63 {offsets = [0, 32], sizes = [10, 32], strides = [1, 1]} : vector<10x64xf32> to vector<10x32xf32>
    %93 = vector.shape_cast %92 : vector<10x32xf32> to vector<10x1x32xf32>
    %94 = vector.broadcast %76 : vector<10x8x1xf32> to vector<10x8x32xf32>
    %95 = vector.broadcast %93 : vector<10x1x32xf32> to vector<10x8x32xf32>
    %96 = arith.mulf %94, %95 : vector<10x8x32xf32>
    %97 = vector.shape_cast %96 : vector<10x8x32xf32> to vector<5x2x8x32xf32>
    %c0_42 = arith.constant 0 : index
    %c0_43 = arith.constant 0 : index
    %c0_44 = arith.constant 0 : index
    %c0_45 = arith.constant 0 : index
    %98 = vector.load %arg16[%c0_42, %c0_43, %c0_44, %c0_45] : memref<5x2x8x32xf32, #tpu.memory_space<vmem>>, vector<5x2x8x32xf32>
    tpu.vector_store %arg16[%c0_42, %c0_43, %c0_44, %c0_45], %97 {strides = array<i32>} : memref<5x2x8x32xf32, #tpu.memory_space<vmem>>, vector<5x2x8x32xf32>,
    %cst_46 = arith.constant 0.000000e+00 : f32
    %99 = vector.broadcast %cst_46 : f32 to vector<2x8x32xf32>
    %c0_i32 = arith.constant 0 : i32
    %c5_i32 = arith.constant 5 : i32
    %100 = arith.addi %c0_i32, %c5_i32 : i32
    %c1_i32 = arith.constant 1 : i32
    %101:2 = scf.for %arg19 = %c0_i32 to %100 step %c1_i32 iter_args(%arg20 = %99, %arg21 = %99) -> (vector<2x8x32xf32>, vector<2x8x32xf32>)  : i32 {
      %c4_i32 = arith.constant 4 : i32
      %147 = arith.subi %c4_i32, %arg19 : i32
      %148 = arith.index_cast %arg19 : i32 to index
      %c0_71 = arith.constant 0 : index
      %c0_72 = arith.constant 0 : index
      %c0_73 = arith.constant 0 : index
      %149 = vector.load %arg13[%148, %c0_71, %c0_72, %c0_73] : memref<5x2x8x32xf32, #tpu.memory_space<vmem>>, vector<1x2x8x32xf32>
      %150 = vector.shape_cast %149 : vector<1x2x8x32xf32> to vector<2x8x32xf32>
      %151 = arith.mulf %150, %arg20 : vector<2x8x32xf32>
      %152 = arith.index_cast %arg19 : i32 to index
      %c0_74 = arith.constant 0 : index
      %c0_75 = arith.constant 0 : index
      %c0_76 = arith.constant 0 : index
      %153 = vector.load %arg15[%152, %c0_74, %c0_75, %c0_76] : memref<5x2x8x32xf32, #tpu.memory_space<vmem>>, vector<1x2x8x32xf32>
      %154 = vector.shape_cast %153 : vector<1x2x8x32xf32> to vector<2x8x32xf32>
      %155 = arith.addf %151, %154 : vector<2x8x32xf32>
      %156 = arith.index_cast %147 : i32 to index
      %c0_77 = arith.constant 0 : index
      %c0_78 = arith.constant 0 : index
      %c0_79 = arith.constant 0 : index
      %157 = vector.load %arg14[%156, %c0_77, %c0_78, %c0_79] : memref<5x2x8x32xf32, #tpu.memory_space<vmem>>, vector<1x2x8x32xf32>
      %158 = vector.shape_cast %157 : vector<1x2x8x32xf32> to vector<2x8x32xf32>
      %159 = arith.mulf %158, %arg21 : vector<2x8x32xf32>
      %160 = arith.index_cast %147 : i32 to index
      %c0_80 = arith.constant 0 : index
      %c0_81 = arith.constant 0 : index
      %c0_82 = arith.constant 0 : index
      %161 = vector.load %arg16[%160, %c0_80, %c0_81, %c0_82] : memref<5x2x8x32xf32, #tpu.memory_space<vmem>>, vector<1x2x8x32xf32>
      %162 = vector.shape_cast %161 : vector<1x2x8x32xf32> to vector<2x8x32xf32>
      %163 = arith.addf %159, %162 : vector<2x8x32xf32>
      %164 = arith.index_cast %arg19 : i32 to index
      %c0_83 = arith.constant 0 : index
      %c0_84 = arith.constant 0 : index
      %c0_85 = arith.constant 0 : index
      %165 = vector.load %arg17[%164, %c0_83, %c0_84, %c0_85] : memref<5x2x8x32xf32, #tpu.memory_space<vmem>>, vector<1x2x8x32xf32>
      %166 = vector.shape_cast %165 : vector<1x2x8x32xf32> to vector<2x8x32xf32>
      %167 = vector.shape_cast %155 : vector<2x8x32xf32> to vector<1x2x8x32xf32>
      tpu.vector_store %arg17[%164, %c0_83, %c0_84, %c0_85], %167 {strides = array<i32>} : memref<5x2x8x32xf32, #tpu.memory_space<vmem>>, vector<1x2x8x32xf32>,
      %168 = arith.index_cast %147 : i32 to index
      %c0_86 = arith.constant 0 : index
      %c0_87 = arith.constant 0 : index
      %c0_88 = arith.constant 0 : index
      %169 = vector.load %arg18[%168, %c0_86, %c0_87, %c0_88] : memref<5x2x8x32xf32, #tpu.memory_space<vmem>>, vector<1x2x8x32xf32>
      %170 = vector.shape_cast %169 : vector<1x2x8x32xf32> to vector<2x8x32xf32>
      %171 = vector.shape_cast %163 : vector<2x8x32xf32> to vector<1x2x8x32xf32>
      tpu.vector_store %arg18[%168, %c0_86, %c0_87, %c0_88], %171 {strides = array<i32>} : memref<5x2x8x32xf32, #tpu.memory_space<vmem>>, vector<1x2x8x32xf32>,
      scf.yield %155, %163 : vector<2x8x32xf32>, vector<2x8x32xf32>
    }
    %c5_i32_47 = arith.constant 5 : i32
    %c0_48 = arith.constant 0 : index
    %c0_49 = arith.constant 0 : index
    %c0_50 = arith.constant 0 : index
    %c0_51 = arith.constant 0 : index
    %102 = vector.load %arg17[%c0_48, %c0_49, %c0_50, %c0_51] : memref<5x2x8x32xf32, #tpu.memory_space<vmem>>, vector<5x2x8x32xf32>
    %103 = vector.shape_cast %102 : vector<5x2x8x32xf32> to vector<10x8x32xf32>
    %104 = vector.broadcast %74 : vector<10x8x1xf32> to vector<10x8x32xf32>
    %105 = arith.mulf %103, %104 : vector<10x8x32xf32>
    %cst_52 = arith.constant dense<0.000000e+00> : vector<10x32xf32>
    %106 = vector.multi_reduction <add>, %105, %cst_52 [1] : vector<10x8x32xf32> to vector<10x32xf32>
    %c0_53 = arith.constant 0 : index
    %c0_54 = arith.constant 0 : index
    %c0_55 = arith.constant 0 : index
    %c0_56 = arith.constant 0 : index
    %107 = vector.load %arg18[%c0_53, %c0_54, %c0_55, %c0_56] : memref<5x2x8x32xf32, #tpu.memory_space<vmem>>, vector<5x2x8x32xf32>
    %108 = vector.shape_cast %107 : vector<5x2x8x32xf32> to vector<10x8x32xf32>
    %109 = vector.broadcast %78 : vector<10x8x1xf32> to vector<10x8x32xf32>
    %110 = arith.mulf %108, %109 : vector<10x8x32xf32>
    %cst_57 = arith.constant dense<0.000000e+00> : vector<10x32xf32>
    %111 = vector.multi_reduction <add>, %110, %cst_57 [1] : vector<10x8x32xf32> to vector<10x32xf32>
    %cst_58 = arith.constant 0.000000e+00 : f32
    %112 = vector.broadcast %cst_58 : f32 to vector<10x64xf32>
    %113 = arith.subf %112, %5 : vector<10x64xf32>
    %114 = math.exp %113 : vector<10x64xf32>
    %cst_59 = arith.constant 1.000000e+00 : f32
    %115 = vector.broadcast %cst_59 : f32 to vector<10x64xf32>
    %116 = arith.addf %115, %114 : vector<10x64xf32>
    %cst_60 = arith.constant 1.000000e+00 : f32
    %117 = vector.broadcast %cst_60 : f32 to vector<10x64xf32>
    %118 = arith.divf %117, %116 : vector<10x64xf32>
    %119 = arith.mulf %5, %118 : vector<10x64xf32>
    %c0_61 = arith.constant 0 : index
    %c0_62 = arith.constant 0 : index
    %120 = vector.load %arg10[%c0_61, %c0_62] : memref<1x64xf32, #tpu.memory_space<vmem>>, vector<1x64xf32>
    %121 = vector.extract_strided_slice %42 {offsets = [0, 0], sizes = [10, 32], strides = [1, 1]} : vector<10x64xf32> to vector<10x32xf32>
    %122 = vector.extract_strided_slice %120 {offsets = [0, 0], sizes = [1, 32], strides = [1, 1]} : vector<1x64xf32> to vector<1x32xf32>
    %123 = vector.broadcast %122 : vector<1x32xf32> to vector<10x32xf32>
    %124 = arith.mulf %121, %123 : vector<10x32xf32>
    %125 = arith.addf %106, %124 : vector<10x32xf32>
    %126 = vector.extract_strided_slice %119 {offsets = [0, 0], sizes = [10, 32], strides = [1, 1]} : vector<10x64xf32> to vector<10x32xf32>
    %127 = arith.mulf %125, %126 : vector<10x32xf32>
    %128 = vector.extract_strided_slice %42 {offsets = [0, 32], sizes = [10, 32], strides = [1, 1]} : vector<10x64xf32> to vector<10x32xf32>
    %129 = vector.extract_strided_slice %120 {offsets = [0, 32], sizes = [1, 32], strides = [1, 1]} : vector<1x64xf32> to vector<1x32xf32>
    %130 = vector.broadcast %129 : vector<1x32xf32> to vector<10x32xf32>
    %131 = arith.mulf %128, %130 : vector<10x32xf32>
    %132 = arith.addf %111, %131 : vector<10x32xf32>
    %133 = vector.extract_strided_slice %119 {offsets = [0, 32], sizes = [10, 32], strides = [1, 1]} : vector<10x64xf32> to vector<10x32xf32>
    %134 = arith.mulf %132, %133 : vector<10x32xf32>
    %135 = arith.truncf %127 : vector<10x32xf32> to vector<10x32xbf16>
    %c0_63 = arith.constant 0 : index
    %c0_64 = arith.constant 0 : index
    %136 = vector.load %arg11[%c0_63, %c0_64] : memref<64x32xbf16, #tpu.memory_space<vmem>>, vector<32x32xbf16>
    %cst_65 = arith.constant dense<0.000000e+00> : vector<10x32xf32>
    %137 = tpu.matmul %135, %136, %cst_65 {dimension_numbers = #tpu.dot_dimension_numbers<[1], [0], [0], [1], [0, 0, 1, 1], [], []>} : vector<10x32xbf16>, vector<32x32xbf16>, vector<10x32xf32> -> vector<10x32xf32>
    %138 = arith.truncf %134 : vector<10x32xf32> to vector<10x32xbf16>
    %c32 = arith.constant 32 : index
    %c0_66 = arith.constant 0 : index
    %139 = vector.load %arg11[%c32, %c0_66] : memref<64x32xbf16, #tpu.memory_space<vmem>>, vector<32x32xbf16>
    %cst_67 = arith.constant dense<0.000000e+00> : vector<10x32xf32>
    %140 = tpu.matmul %138, %139, %cst_67 {dimension_numbers = #tpu.dot_dimension_numbers<[1], [0], [0], [1], [0, 0, 1, 1], [], []>} : vector<10x32xbf16>, vector<32x32xbf16>, vector<10x32xf32> -> vector<10x32xf32>
    %141 = arith.addf %137, %140 : vector<10x32xf32>
    %142 = arith.extf %1 : vector<10x32xbf16> to vector<10x32xf32>
    %143 = arith.addf %142, %141 : vector<10x32xf32>
    %144 = vector.shape_cast %143 : vector<10x32xf32> to vector<5x2x32xf32>
    %145 = arith.truncf %144 : vector<5x2x32xf32> to vector<5x2x32xbf16>
    %c0_68 = arith.constant 0 : index
    %c0_69 = arith.constant 0 : index
    %c0_70 = arith.constant 0 : index
    %146 = vector.load %arg12[%c0_68, %c0_69, %c0_70] : memref<5x2x32xbf16, #tpu.memory_space<vmem>>, vector<5x2x32xbf16>
    tpu.vector_store %arg12[%c0_68, %c0_69, %c0_70], %145 {strides = array<i32>} : memref<5x2x32xbf16, #tpu.memory_space<vmem>>, vector<5x2x32xbf16>,
    return
  }
  func.func @transform_0(%arg0: i32) -> (i32, i32, i32) {
    %c0_i32 = arith.constant 0 : i32
    %c0_i32_0 = arith.constant 0 : i32
    %c0_i32_1 = arith.constant 0 : i32
    return %c0_i32, %arg0, %c0_i32_0 : i32, i32, i32
  }
  func.func @transform_1(%arg0: i32) -> (i32, i32) {
    %c0_i32 = arith.constant 0 : i32
    %c0_i32_0 = arith.constant 0 : i32
    %c0_i32_1 = arith.constant 0 : i32
    return %c0_i32, %c0_i32_0 : i32, i32
  }
  func.func @transform_2(%arg0: i32) -> (i32, i32) {
    %c0_i32 = arith.constant 0 : i32
    %c0_i32_0 = arith.constant 0 : i32
    %c0_i32_1 = arith.constant 0 : i32
    return %c0_i32, %c0_i32_0 : i32, i32
  }
  func.func @transform_3(%arg0: i32) -> (i32, i32) {
    %c0_i32 = arith.constant 0 : i32
    %c0_i32_0 = arith.constant 0 : i32
    %c0_i32_1 = arith.constant 0 : i32
    return %c0_i32, %c0_i32_0 : i32, i32
  }
  func.func @transform_4(%arg0: i32) -> (i32, i32) {
    %c0_i32 = arith.constant 0 : i32
    %c0_i32_0 = arith.constant 0 : i32
    %c0_i32_1 = arith.constant 0 : i32
    return %c0_i32, %c0_i32_0 : i32, i32
  }
  func.func @transform_5(%arg0: i32) -> (i32, i32) {
    %c0_i32 = arith.constant 0 : i32
    %c0_i32_0 = arith.constant 0 : i32
    %c0_i32_1 = arith.constant 0 : i32
    return %c0_i32, %c0_i32_0 : i32, i32
  }
  func.func @transform_6(%arg0: i32) -> (i32, i32) {
    %c0_i32 = arith.constant 0 : i32
    %c0_i32_0 = arith.constant 0 : i32
    %c0_i32_1 = arith.constant 0 : i32
    return %c0_i32, %c0_i32_0 : i32, i32
  }
  func.func @transform_7(%arg0: i32) -> (i32, i32) {
    %c0_i32 = arith.constant 0 : i32
    %c0_i32_0 = arith.constant 0 : i32
    %c0_i32_1 = arith.constant 0 : i32
    return %c0_i32, %c0_i32_0 : i32, i32
  }
  func.func @transform_8(%arg0: i32) -> (i32, i32) {
    %c0_i32 = arith.constant 0 : i32
    %c0_i32_0 = arith.constant 0 : i32
    %c0_i32_1 = arith.constant 0 : i32
    return %c0_i32, %c0_i32_0 : i32, i32
  }
  func.func @transform_9(%arg0: i32) -> (i32, i32) {
    %c0_i32 = arith.constant 0 : i32
    %c0_i32_0 = arith.constant 0 : i32
    %c0_i32_1 = arith.constant 0 : i32
    return %c0_i32, %c0_i32_0 : i32, i32
  }
  func.func @transform_10(%arg0: i32) -> (i32, i32) {
    %c0_i32 = arith.constant 0 : i32
    %c0_i32_0 = arith.constant 0 : i32
    %c0_i32_1 = arith.constant 0 : i32
    return %c0_i32, %c0_i32_0 : i32, i32
  }
  func.func @transform_11(%arg0: i32) -> (i32, i32, i32) {
    %c0_i32 = arith.constant 0 : i32
    %c0_i32_0 = arith.constant 0 : i32
    %c0_i32_1 = arith.constant 0 : i32
    return %c0_i32, %arg0, %c0_i32_0 : i32, i32, i32
  }
}

module attributes {stable_mosaic.version = 11 : i64} {
  func.func @_layernorm_kernel(%arg0: i32, %arg1: memref<10x32xbf16, #tpu.memory_space<vmem>>, %arg2: memref<1x32xf32, #tpu.memory_space<vmem>>, %arg3: memref<1x32xf32, #tpu.memory_space<vmem>>, %arg4: memref<10x32xbf16, #tpu.memory_space<vmem>>) attributes {dimension_semantics = [#tpu.dimension_semantics<parallel>], iteration_bounds = array<i64: 1>, scalar_prefetch = 0 : i64, scratch_operands = 0 : i64, tpu.core_type = #tpu.core_type<tc>, window_params = [{transform_indices = @transform_0, window_bounds = array<i64: 10, 32>}, {pipeline_mode = #tpu.pipeline_mode<synchronous>, transform_indices = @transform_1, window_bounds = array<i64: 1, 32>}, {pipeline_mode = #tpu.pipeline_mode<synchronous>, transform_indices = @transform_2, window_bounds = array<i64: 1, 32>}, {transform_indices = @transform_3, window_bounds = array<i64: 10, 32>}]} {
    %c0 = arith.constant 0 : index
    %c0_0 = arith.constant 0 : index
    %0 = vector.load %arg1[%c0, %c0_0] : memref<10x32xbf16, #tpu.memory_space<vmem>>, vector<10x32xbf16>
    %1 = arith.extf %0 : vector<10x32xbf16> to vector<10x32xf32>
    %c0_1 = arith.constant 0 : index
    %c0_2 = arith.constant 0 : index
    %2 = vector.load %arg2[%c0_1, %c0_2] : memref<1x32xf32, #tpu.memory_space<vmem>>, vector<1x32xf32>
    %c0_3 = arith.constant 0 : index
    %c0_4 = arith.constant 0 : index
    %3 = vector.load %arg3[%c0_3, %c0_4] : memref<1x32xf32, #tpu.memory_space<vmem>>, vector<1x32xf32>
    %cst = arith.constant dense<0.000000e+00> : vector<10xf32>
    %4 = vector.multi_reduction <add>, %1, %cst [1] : vector<10x32xf32> to vector<10xf32>
    %5 = vector.shape_cast %4 : vector<10xf32> to vector<10x1xf32>
    %cst_5 = arith.constant 3.200000e+01 : f32
    %6 = vector.broadcast %cst_5 : f32 to vector<10x1xf32>
    %7 = arith.divf %5, %6 : vector<10x1xf32>
    %8 = vector.broadcast %7 : vector<10x1xf32> to vector<10x32xf32>
    %9 = arith.subf %1, %8 : vector<10x32xf32>
    %10 = arith.mulf %9, %9 : vector<10x32xf32>
    %cst_6 = arith.constant dense<0.000000e+00> : vector<10xf32>
    %11 = vector.multi_reduction <add>, %10, %cst_6 [1] : vector<10x32xf32> to vector<10xf32>
    %12 = vector.shape_cast %11 : vector<10xf32> to vector<10x1xf32>
    %cst_7 = arith.constant 3.200000e+01 : f32
    %13 = vector.broadcast %cst_7 : f32 to vector<10x1xf32>
    %14 = arith.divf %12, %13 : vector<10x1xf32>
    %15 = vector.broadcast %7 : vector<10x1xf32> to vector<10x32xf32>
    %16 = arith.subf %1, %15 : vector<10x32xf32>
    %cst_8 = arith.constant 9.99999974E-6 : f32
    %17 = vector.broadcast %cst_8 : f32 to vector<10x1xf32>
    %18 = arith.addf %14, %17 : vector<10x1xf32>
    %19 = math.rsqrt %18 : vector<10x1xf32>
    %20 = vector.broadcast %19 : vector<10x1xf32> to vector<10x32xf32>
    %21 = arith.mulf %16, %20 : vector<10x32xf32>
    %22 = vector.broadcast %2 : vector<1x32xf32> to vector<10x32xf32>
    %23 = arith.mulf %21, %22 : vector<10x32xf32>
    %24 = vector.broadcast %3 : vector<1x32xf32> to vector<10x32xf32>
    %25 = arith.addf %23, %24 : vector<10x32xf32>
    %26 = arith.truncf %25 : vector<10x32xf32> to vector<10x32xbf16>
    %c0_9 = arith.constant 0 : index
    %c0_10 = arith.constant 0 : index
    %27 = vector.load %arg4[%c0_9, %c0_10] : memref<10x32xbf16, #tpu.memory_space<vmem>>, vector<10x32xbf16>
    tpu.vector_store %arg4[%c0_9, %c0_10], %26 {strides = array<i32>} : memref<10x32xbf16, #tpu.memory_space<vmem>>, vector<10x32xbf16>,
    return
  }
  func.func @transform_0(%arg0: i32) -> (i32, i32) {
    %c0_i32 = arith.constant 0 : i32
    %c0_i32_0 = arith.constant 0 : i32
    return %arg0, %c0_i32 : i32, i32
  }
  func.func @transform_1(%arg0: i32) -> (i32, i32) {
    %c0_i32 = arith.constant 0 : i32
    %c0_i32_0 = arith.constant 0 : i32
    %c0_i32_1 = arith.constant 0 : i32
    return %c0_i32, %c0_i32_0 : i32, i32
  }
  func.func @transform_2(%arg0: i32) -> (i32, i32) {
    %c0_i32 = arith.constant 0 : i32
    %c0_i32_0 = arith.constant 0 : i32
    %c0_i32_1 = arith.constant 0 : i32
    return %c0_i32, %c0_i32_0 : i32, i32
  }
  func.func @transform_3(%arg0: i32) -> (i32, i32) {
    %c0_i32 = arith.constant 0 : i32
    %c0_i32_0 = arith.constant 0 : i32
    return %arg0, %c0_i32 : i32, i32
  }
}

module attributes {stable_mosaic.version = 11 : i64} {
  func.func @_ln_ffn_ln_kernel(%arg0: i32, %arg1: memref<10x32xbf16, #tpu.memory_space<vmem>>, %arg2: memref<1x32xf32, #tpu.memory_space<vmem>>, %arg3: memref<1x32xf32, #tpu.memory_space<vmem>>, %arg4: memref<32x32xbf16, #tpu.memory_space<vmem>>, %arg5: memref<1x32xf32, #tpu.memory_space<vmem>>, %arg6: memref<32x32xbf16, #tpu.memory_space<vmem>>, %arg7: memref<1x32xf32, #tpu.memory_space<vmem>>, %arg8: memref<1x32xf32, #tpu.memory_space<vmem>>, %arg9: memref<1x32xf32, #tpu.memory_space<vmem>>, %arg10: memref<10x32xbf16, #tpu.memory_space<vmem>>) attributes {dimension_semantics = [#tpu.dimension_semantics<parallel>], iteration_bounds = array<i64: 1>, scalar_prefetch = 0 : i64, scratch_operands = 0 : i64, tpu.core_type = #tpu.core_type<tc>, window_params = [{transform_indices = @transform_0, window_bounds = array<i64: 10, 32>}, {pipeline_mode = #tpu.pipeline_mode<synchronous>, transform_indices = @transform_1, window_bounds = array<i64: 1, 32>}, {pipeline_mode = #tpu.pipeline_mode<synchronous>, transform_indices = @transform_2, window_bounds = array<i64: 1, 32>}, {pipeline_mode = #tpu.pipeline_mode<synchronous>, transform_indices = @transform_3, window_bounds = array<i64: 32, 32>}, {pipeline_mode = #tpu.pipeline_mode<synchronous>, transform_indices = @transform_4, window_bounds = array<i64: 1, 32>}, {pipeline_mode = #tpu.pipeline_mode<synchronous>, transform_indices = @transform_5, window_bounds = array<i64: 32, 32>}, {pipeline_mode = #tpu.pipeline_mode<synchronous>, transform_indices = @transform_6, window_bounds = array<i64: 1, 32>}, {pipeline_mode = #tpu.pipeline_mode<synchronous>, transform_indices = @transform_7, window_bounds = array<i64: 1, 32>}, {pipeline_mode = #tpu.pipeline_mode<synchronous>, transform_indices = @transform_8, window_bounds = array<i64: 1, 32>}, {transform_indices = @transform_9, window_bounds = array<i64: 10, 32>}]} {
    %c0 = arith.constant 0 : index
    %c0_0 = arith.constant 0 : index
    %0 = vector.load %arg1[%c0, %c0_0] : memref<10x32xbf16, #tpu.memory_space<vmem>>, vector<10x32xbf16>
    %1 = arith.extf %0 : vector<10x32xbf16> to vector<10x32xf32>
    %c0_1 = arith.constant 0 : index
    %c0_2 = arith.constant 0 : index
    %2 = vector.load %arg2[%c0_1, %c0_2] : memref<1x32xf32, #tpu.memory_space<vmem>>, vector<1x32xf32>
    %c0_3 = arith.constant 0 : index
    %c0_4 = arith.constant 0 : index
    %3 = vector.load %arg3[%c0_3, %c0_4] : memref<1x32xf32, #tpu.memory_space<vmem>>, vector<1x32xf32>
    %cst = arith.constant dense<0.000000e+00> : vector<10xf32>
    %4 = vector.multi_reduction <add>, %1, %cst [1] : vector<10x32xf32> to vector<10xf32>
    %5 = vector.shape_cast %4 : vector<10xf32> to vector<10x1xf32>
    %cst_5 = arith.constant 3.200000e+01 : f32
    %6 = vector.broadcast %cst_5 : f32 to vector<10x1xf32>
    %7 = arith.divf %5, %6 : vector<10x1xf32>
    %8 = vector.broadcast %7 : vector<10x1xf32> to vector<10x32xf32>
    %9 = arith.subf %1, %8 : vector<10x32xf32>
    %10 = arith.mulf %9, %9 : vector<10x32xf32>
    %cst_6 = arith.constant dense<0.000000e+00> : vector<10xf32>
    %11 = vector.multi_reduction <add>, %10, %cst_6 [1] : vector<10x32xf32> to vector<10xf32>
    %12 = vector.shape_cast %11 : vector<10xf32> to vector<10x1xf32>
    %cst_7 = arith.constant 3.200000e+01 : f32
    %13 = vector.broadcast %cst_7 : f32 to vector<10x1xf32>
    %14 = arith.divf %12, %13 : vector<10x1xf32>
    %15 = vector.broadcast %7 : vector<10x1xf32> to vector<10x32xf32>
    %16 = arith.subf %1, %15 : vector<10x32xf32>
    %cst_8 = arith.constant 9.99999974E-6 : f32
    %17 = vector.broadcast %cst_8 : f32 to vector<10x1xf32>
    %18 = arith.addf %14, %17 : vector<10x1xf32>
    %19 = math.rsqrt %18 : vector<10x1xf32>
    %20 = vector.broadcast %19 : vector<10x1xf32> to vector<10x32xf32>
    %21 = arith.mulf %16, %20 : vector<10x32xf32>
    %22 = vector.broadcast %2 : vector<1x32xf32> to vector<10x32xf32>
    %23 = arith.mulf %21, %22 : vector<10x32xf32>
    %24 = vector.broadcast %3 : vector<1x32xf32> to vector<10x32xf32>
    %25 = arith.addf %23, %24 : vector<10x32xf32>
    %26 = arith.truncf %25 : vector<10x32xf32> to vector<10x32xbf16>
    %c0_9 = arith.constant 0 : index
    %c0_10 = arith.constant 0 : index
    %27 = vector.load %arg4[%c0_9, %c0_10] : memref<32x32xbf16, #tpu.memory_space<vmem>>, vector<32x32xbf16>
    %cst_11 = arith.constant dense<0.000000e+00> : vector<10x32xf32>
    %28 = tpu.matmul %26, %27, %cst_11 {dimension_numbers = #tpu.dot_dimension_numbers<[1], [0], [0], [1], [0, 0, 1, 1], [], []>} : vector<10x32xbf16>, vector<32x32xbf16>, vector<10x32xf32> -> vector<10x32xf32>
    %c0_12 = arith.constant 0 : index
    %c0_13 = arith.constant 0 : index
    %29 = vector.load %arg5[%c0_12, %c0_13] : memref<1x32xf32, #tpu.memory_space<vmem>>, vector<1x32xf32>
    %30 = vector.broadcast %29 : vector<1x32xf32> to vector<10x32xf32>
    %31 = arith.addf %28, %30 : vector<10x32xf32>
    %cst_14 = arith.constant 5.000000e-01 : f32
    %32 = vector.broadcast %cst_14 : f32 to vector<10x32xf32>
    %33 = arith.mulf %32, %31 : vector<10x32xf32>
    %cst_15 = arith.constant 0.707106769 : f32
    %34 = vector.broadcast %cst_15 : f32 to vector<10x32xf32>
    %35 = arith.mulf %31, %34 : vector<10x32xf32>
    %cst_16 = arith.constant 0.000000e+00 : f32
    %36 = vector.broadcast %cst_16 : f32 to vector<10x32xf32>
    %37 = arith.cmpf oge, %35, %36 : vector<10x32xf32>
    %cst_17 = arith.constant 1.000000e+00 : f32
    %cst_18 = arith.constant -1.000000e+00 : f32
    %38 = vector.broadcast %cst_17 : f32 to vector<10x32xf32>
    %39 = vector.broadcast %cst_18 : f32 to vector<10x32xf32>
    %40 = arith.select %37, %38, %39 : vector<10x32xi1>, vector<10x32xf32>
    %41 = math.absf %35 : vector<10x32xf32>
    %cst_19 = arith.constant 0.327591091 : f32
    %42 = vector.broadcast %cst_19 : f32 to vector<10x32xf32>
    %43 = arith.mulf %42, %41 : vector<10x32xf32>
    %cst_20 = arith.constant 1.000000e+00 : f32
    %44 = vector.broadcast %cst_20 : f32 to vector<10x32xf32>
    %45 = arith.addf %44, %43 : vector<10x32xf32>
    %cst_21 = arith.constant 1.000000e+00 : f32
    %46 = vector.broadcast %cst_21 : f32 to vector<10x32xf32>
    %47 = arith.divf %46, %45 : vector<10x32xf32>
    %cst_22 = arith.constant 1.06140542 : f32
    %48 = vector.broadcast %cst_22 : f32 to vector<10x32xf32>
    %49 = arith.mulf %48, %47 : vector<10x32xf32>
    %cst_23 = arith.constant -1.45315206 : f32
    %50 = vector.broadcast %cst_23 : f32 to vector<10x32xf32>
    %51 = arith.addf %49, %50 : vector<10x32xf32>
    %52 = arith.mulf %51, %47 : vector<10x32xf32>
    %cst_24 = arith.constant 1.42141378 : f32
    %53 = vector.broadcast %cst_24 : f32 to vector<10x32xf32>
    %54 = arith.addf %52, %53 : vector<10x32xf32>
    %55 = arith.mulf %54, %47 : vector<10x32xf32>
    %cst_25 = arith.constant -0.284496725 : f32
    %56 = vector.broadcast %cst_25 : f32 to vector<10x32xf32>
    %57 = arith.addf %55, %56 : vector<10x32xf32>
    %58 = arith.mulf %57, %47 : vector<10x32xf32>
    %cst_26 = arith.constant 0.254829586 : f32
    %59 = vector.broadcast %cst_26 : f32 to vector<10x32xf32>
    %60 = arith.addf %58, %59 : vector<10x32xf32>
    %61 = arith.mulf %60, %47 : vector<10x32xf32>
    %cst_27 = arith.constant 0.000000e+00 : f32
    %62 = vector.broadcast %cst_27 : f32 to vector<10x32xf32>
    %63 = arith.subf %62, %41 : vector<10x32xf32>
    %64 = arith.mulf %63, %41 : vector<10x32xf32>
    %65 = math.exp %64 : vector<10x32xf32>
    %66 = arith.mulf %61, %65 : vector<10x32xf32>
    %cst_28 = arith.constant 1.000000e+00 : f32
    %67 = vector.broadcast %cst_28 : f32 to vector<10x32xf32>
    %68 = arith.subf %67, %66 : vector<10x32xf32>
    %69 = arith.mulf %40, %68 : vector<10x32xf32>
    %cst_29 = arith.constant 1.000000e+00 : f32
    %70 = vector.broadcast %cst_29 : f32 to vector<10x32xf32>
    %71 = arith.addf %70, %69 : vector<10x32xf32>
    %72 = arith.mulf %33, %71 : vector<10x32xf32>
    %73 = arith.truncf %72 : vector<10x32xf32> to vector<10x32xbf16>
    %c0_30 = arith.constant 0 : index
    %c0_31 = arith.constant 0 : index
    %74 = vector.load %arg6[%c0_30, %c0_31] : memref<32x32xbf16, #tpu.memory_space<vmem>>, vector<32x32xbf16>
    %cst_32 = arith.constant dense<0.000000e+00> : vector<10x32xf32>
    %75 = tpu.matmul %73, %74, %cst_32 {dimension_numbers = #tpu.dot_dimension_numbers<[1], [0], [0], [1], [0, 0, 1, 1], [], []>} : vector<10x32xbf16>, vector<32x32xbf16>, vector<10x32xf32> -> vector<10x32xf32>
    %c0_33 = arith.constant 0 : index
    %c0_34 = arith.constant 0 : index
    %76 = vector.load %arg7[%c0_33, %c0_34] : memref<1x32xf32, #tpu.memory_space<vmem>>, vector<1x32xf32>
    %77 = vector.broadcast %76 : vector<1x32xf32> to vector<10x32xf32>
    %78 = arith.addf %75, %77 : vector<10x32xf32>
    %79 = arith.addf %25, %78 : vector<10x32xf32>
    %c0_35 = arith.constant 0 : index
    %c0_36 = arith.constant 0 : index
    %80 = vector.load %arg8[%c0_35, %c0_36] : memref<1x32xf32, #tpu.memory_space<vmem>>, vector<1x32xf32>
    %c0_37 = arith.constant 0 : index
    %c0_38 = arith.constant 0 : index
    %81 = vector.load %arg9[%c0_37, %c0_38] : memref<1x32xf32, #tpu.memory_space<vmem>>, vector<1x32xf32>
    %cst_39 = arith.constant dense<0.000000e+00> : vector<10xf32>
    %82 = vector.multi_reduction <add>, %79, %cst_39 [1] : vector<10x32xf32> to vector<10xf32>
    %83 = vector.shape_cast %82 : vector<10xf32> to vector<10x1xf32>
    %cst_40 = arith.constant 3.200000e+01 : f32
    %84 = vector.broadcast %cst_40 : f32 to vector<10x1xf32>
    %85 = arith.divf %83, %84 : vector<10x1xf32>
    %86 = vector.broadcast %85 : vector<10x1xf32> to vector<10x32xf32>
    %87 = arith.subf %79, %86 : vector<10x32xf32>
    %88 = arith.mulf %87, %87 : vector<10x32xf32>
    %cst_41 = arith.constant dense<0.000000e+00> : vector<10xf32>
    %89 = vector.multi_reduction <add>, %88, %cst_41 [1] : vector<10x32xf32> to vector<10xf32>
    %90 = vector.shape_cast %89 : vector<10xf32> to vector<10x1xf32>
    %cst_42 = arith.constant 3.200000e+01 : f32
    %91 = vector.broadcast %cst_42 : f32 to vector<10x1xf32>
    %92 = arith.divf %90, %91 : vector<10x1xf32>
    %93 = vector.broadcast %85 : vector<10x1xf32> to vector<10x32xf32>
    %94 = arith.subf %79, %93 : vector<10x32xf32>
    %cst_43 = arith.constant 9.99999974E-6 : f32
    %95 = vector.broadcast %cst_43 : f32 to vector<10x1xf32>
    %96 = arith.addf %92, %95 : vector<10x1xf32>
    %97 = math.rsqrt %96 : vector<10x1xf32>
    %98 = vector.broadcast %97 : vector<10x1xf32> to vector<10x32xf32>
    %99 = arith.mulf %94, %98 : vector<10x32xf32>
    %100 = vector.broadcast %80 : vector<1x32xf32> to vector<10x32xf32>
    %101 = arith.mulf %99, %100 : vector<10x32xf32>
    %102 = vector.broadcast %81 : vector<1x32xf32> to vector<10x32xf32>
    %103 = arith.addf %101, %102 : vector<10x32xf32>
    %104 = arith.truncf %103 : vector<10x32xf32> to vector<10x32xbf16>
    %c0_44 = arith.constant 0 : index
    %c0_45 = arith.constant 0 : index
    %105 = vector.load %arg10[%c0_44, %c0_45] : memref<10x32xbf16, #tpu.memory_space<vmem>>, vector<10x32xbf16>
    tpu.vector_store %arg10[%c0_44, %c0_45], %104 {strides = array<i32>} : memref<10x32xbf16, #tpu.memory_space<vmem>>, vector<10x32xbf16>,
    return
  }
  func.func @transform_0(%arg0: i32) -> (i32, i32) {
    %c0_i32 = arith.constant 0 : i32
    %c0_i32_0 = arith.constant 0 : i32
    return %arg0, %c0_i32 : i32, i32
  }
  func.func @transform_1(%arg0: i32) -> (i32, i32) {
    %c0_i32 = arith.constant 0 : i32
    %c0_i32_0 = arith.constant 0 : i32
    %c0_i32_1 = arith.constant 0 : i32
    return %c0_i32, %c0_i32_0 : i32, i32
  }
  func.func @transform_2(%arg0: i32) -> (i32, i32) {
    %c0_i32 = arith.constant 0 : i32
    %c0_i32_0 = arith.constant 0 : i32
    %c0_i32_1 = arith.constant 0 : i32
    return %c0_i32, %c0_i32_0 : i32, i32
  }
  func.func @transform_3(%arg0: i32) -> (i32, i32) {
    %c0_i32 = arith.constant 0 : i32
    %c0_i32_0 = arith.constant 0 : i32
    %c0_i32_1 = arith.constant 0 : i32
    return %c0_i32, %c0_i32_0 : i32, i32
  }
  func.func @transform_4(%arg0: i32) -> (i32, i32) {
    %c0_i32 = arith.constant 0 : i32
    %c0_i32_0 = arith.constant 0 : i32
    %c0_i32_1 = arith.constant 0 : i32
    return %c0_i32, %c0_i32_0 : i32, i32
  }
  func.func @transform_5(%arg0: i32) -> (i32, i32) {
    %c0_i32 = arith.constant 0 : i32
    %c0_i32_0 = arith.constant 0 : i32
    %c0_i32_1 = arith.constant 0 : i32
    return %c0_i32, %c0_i32_0 : i32, i32
  }
  func.func @transform_6(%arg0: i32) -> (i32, i32) {
    %c0_i32 = arith.constant 0 : i32
    %c0_i32_0 = arith.constant 0 : i32
    %c0_i32_1 = arith.constant 0 : i32
    return %c0_i32, %c0_i32_0 : i32, i32
  }
  func.func @transform_7(%arg0: i32) -> (i32, i32) {
    %c0_i32 = arith.constant 0 : i32
    %c0_i32_0 = arith.constant 0 : i32
    %c0_i32_1 = arith.constant 0 : i32
    return %c0_i32, %c0_i32_0 : i32, i32
  }
  func.func @transform_8(%arg0: i32) -> (i32, i32) {
    %c0_i32 = arith.constant 0 : i32
    %c0_i32_0 = arith.constant 0 : i32
    %c0_i32_1 = arith.constant 0 : i32
    return %c0_i32, %c0_i32_0 : i32, i32
  }
  func.func @transform_9(%arg0: i32) -> (i32, i32) {
    %c0_i32 = arith.constant 0 : i32
    %c0_i32_0 = arith.constant 0 : i32
    return %arg0, %c0_i32 : i32, i32
  }
}

</mosaic_0001>

<llo_original>
// kernel: _lambda_.9
$region0: #{_lambda_.9}
  #allocation0 [shape = 'u32[]', space=smem, size = 0x4, offset = 0x4, fixed_abs, tag = 'smem constant byte address 0x4 - core index']
  #allocation1 [shape = 'u32[144,128]{1,0:T(1,128)}', space=vmem, size = 0x12000, scoped, tag = 'internal scratch']
  %s0 = inlined_call_operand.vmem [shape: f32[8,16], index: 0, kind: input, shape index: {}]
  %s1 = inlined_call_operand.vmem [shape: f32[8,16], index: 1, kind: output, shape index: {0}]
  %s2 = inlined_call_operand.vmem [shape: f32[8,1], index: 2, kind: output, shape index: {1}]
  %s3 = inlined_call_operand.vmem [shape: f32[8,1], index: 3, kind: output, shape index: {2}]
  %4 = xla_tuple %s1, %s2, %s3
  %s5 = sld [smem:[#allocation0]]
  $region30: #{_lambda_.9} parent=0
    _
  %s7 = ssub.s32 1, %s5
  %s8 = scalar_select 0, %s7, %s5
  // Predicated region
  $region2: #{_lambda_.9} parent=0 // pred_check
    _
  $region3: #{_lambda_.9} parent=0 // pred_check_branch
    %10 = sbr.rel (0) target = $region5
  $region4: #{_lambda_.9} parent=0 // pred_region
    _
  $region5: #{_lambda_.9} parent=0 // pred_fallthru
    _
  %v11 = vld [vmem:[%s0] sm:$0xff]
  %vm12 = vcmask 130048
  %v13 = vsel %vm12, %v11, 0.0
  %14 = vadd.xlane.f32.xlu0 %v13
  %v15 = vpop.xlane.xlu0 %14
  %v16 = vrcp.pop 16.0
  %v17 = vmul.f32 %v15, %v16
  %v18 = vsub.f32 %v11, %v17
  %v19 = vmul.f32 %v18, %v18
  %v20 = vsel %vm12, %v19, 0.0
  %21 = vadd.xlane.f32.xlu0 %v20
  %v22 = vpop.xlane.xlu0 %21
  %v23 = vmul.f32 %v22, %v16
  %v24 = vadd.f32 %v23, 1e-05
  %v25 = vrsqrt.pop %v24
  %v26 = vmul.f32 %v18, %v25
  %27 = vst.msk [vmem:[%s1] sm:$0xff] %vm12, %v26
  %vm28 = vcmask 7168
  %29 = vst.msk [vmem:[%s2] sm:$0xff] %vm28, %v17
  %v30 = vmul.f32 %v24, %v25
  %31 = vst.msk [vmem:[%s3] sm:$0xff] %vm28, %v30
  // Predicated region
  $region6: #{_lambda_.9} parent=0 // pred_check
    _
  $region7: #{_lambda_.9} parent=0 // pred_check_branch
    %33 = sbr.rel (0) target = $region9
  $region8: #{_lambda_.9} parent=0 // pred_region
    _
  $region9: #{_lambda_.9} parent=0 // pred_fallthru
    _
  // Predicated region
  $region10: #{_lambda_.9} parent=0 // pred_check
    _
  $region11: #{_lambda_.9} parent=0 // pred_check_branch
    %35 = sbr.rel (0) target = $region13
  $region12: #{_lambda_.9} parent=0 // pred_region
    _
  $region13: #{_lambda_.9} parent=0 // pred_fallthru
    _
  // Predicated region
  $region14: #{_lambda_.9} parent=0 // pred_check
    _
  $region15: #{_lambda_.9} parent=0 // pred_check_branch
    %37 = sbr.rel (0) target = $region17
  $region16: #{_lambda_.9} parent=0 // pred_region
    _
  $region17: #{_lambda_.9} parent=0 // pred_fallthru
    _
  // Predicated region
  $region18: #{_lambda_.9} parent=0 // pred_check
    _
  $region19: #{_lambda_.9} parent=0 // pred_check_branch
    %39 = sbr.rel (0) target = $region21
  $region20: #{_lambda_.9} parent=0 // pred_region
    _
  $region21: #{_lambda_.9} parent=0 // pred_fallthru
    _
  // Predicated region
  $region22: #{_lambda_.9} parent=0 // pred_check
    _
  $region23: #{_lambda_.9} parent=0 // pred_check_branch
    %41 = sbr.rel (0) target = $region25
  $region24: #{_lambda_.9} parent=0 // pred_region
    _
  $region25: #{_lambda_.9} parent=0 // pred_fallthru
    _
  // Predicated region
  $region26: #{_lambda_.9} parent=0 // pred_check
    _
  $region27: #{_lambda_.9} parent=0 // pred_check_branch
    %43 = sbr.rel (0) target = $region29
  $region28: #{_lambda_.9} parent=0 // pred_region
    _
  $region29: #{_lambda_.9} parent=0 // pred_fallthru
    _

// kernel: _lambda_.10
$region0: #{_lambda_.10}
  #allocation0 [shape = 'u32[]', space=smem, size = 0x4, offset = 0x4, fixed_abs, tag = 'smem constant byte address 0x4 - core index']
  #allocation1 [shape = 'u32[144,128]{1,0:T(1,128)}', space=vmem, size = 0x12000, scoped, tag = 'internal scratch']
  %s0 = inlined_call_operand.vmem [shape: bf16[40,4], index: 0, kind: input, shape index: {}]
  %s1 = inlined_call_operand.vmem [shape: bf16[4,32], index: 1, kind: input, shape index: {}]
  %s2 = inlined_call_operand.vmem [shape: f32[1,32], index: 2, kind: input, shape index: {}]
  %s3 = inlined_call_operand.vmem [shape: bf16[40,32], index: 3, kind: output, shape index: {}]
  %s4 = sld [smem:[#allocation0]]
  $region22: #{_lambda_.10} parent=0
    _
  %s6 = ssub.s32 1, %s4
  %s7 = scalar_select 0, %s6, %s4
  // Predicated region
  $region2: #{_lambda_.10} parent=0 // pred_check
    _
  $region3: #{_lambda_.10} parent=0 // pred_check_branch
    %9 = sbr.rel (0) target = $region5
  $region4: #{_lambda_.10} parent=0 // pred_region
    _
  $region5: #{_lambda_.10} parent=0 // pred_fallthru
    _
  // Predicated region
  $region6: #{_lambda_.10} parent=0 // pred_check
    _
  $region7: #{_lambda_.10} parent=0 // pred_check_branch
    %11 = sbr.rel (0) target = $region9
  $region8: #{_lambda_.10} parent=0 // pred_region
    _
  $region9: #{_lambda_.10} parent=0 // pred_fallthru
    _
  // Predicated region
  $region10: #{_lambda_.10} parent=0 // pred_check
    _
  $region11: #{_lambda_.10} parent=0 // pred_check_branch
    %13 = sbr.rel (0) target = $region13
  $region12: #{_lambda_.10} parent=0 // pred_region
    _
  $region13: #{_lambda_.10} parent=0 // pred_fallthru
    _
  %v15 = vld [vmem:[%s0] sm:$0xf]
  %v16 = vld [vmem:[%s0 + $0x4] sm:$0xf]
  %v17 = vld [vmem:[%s0 + $0x8] sm:$0xf]
  %v18 = vld [vmem:[%s0 + $0xc] sm:$0xf]
  %v19 = vld [vmem:[%s0 + $0x10] sm:$0xf]
  %v20 = vld [vmem:[%s1] sm:$0x3]
  %v21 = vld [vmem:[%s2] sm:$0x1]
  %v23 = vlaneseq
  %v24 = vshrl.u32 %v23, 7
  %v25 = vsub.s32 0, %v24
  %v26 = vrot.slane %v21, %v25
  %v33 = vunpack.c.l.b16 %v15
  %v34 = vunpack.c.l.b16 %v16
  %v35 = vunpack.c.l.b16 %v17
  %v36 = vunpack.c.l.b16 %v18
  %v37 = vunpack.c.l.b16 %v19
  %v38 = vpack.c.b16 %v34, %v33
  %v39 = vpack.c.b16 %v36, %v35
  %v40 = vpack.c.b16 %v37, %v37
  %vm41 = vcmask 31744
  %v43 = vsel %vm41, %v38, 0
  %v46 = vsel %vm41, %v39, 0
  %v49 = vsel %vm41, %v40, 0
  %vm51 = vcmask 1041408
  %v53 = vsel %vm51, %v20, 0
  %55 = vmatprep.subr.bf16.mxu0 0
  %56 = vmatpush1.bf16.msra.mxu0 %v53
  %57 = vmatprep.subr.bf16.mxu0 0
  %58 = vmatpush1.bf16.msra.mxu0 0
  %59 = vmatprep.subr.bf16.mxu0 0
  %60 = vmatpush1.bf16.msra.mxu0 0
  %61 = vmatprep.subr.bf16.mxu0 0
  %62 = vmatpush1.bf16.msra.mxu0 0
  %63 = vmatprep.subr.bf16.mxu0 0
  %64 = vmatpush1.bf16.msra.mxu0 0
  %65 = vmatprep.subr.bf16.mxu0 0
  %66 = vmatpush1.bf16.msra.mxu0 0
  %67 = vmatprep.subr.bf16.mxu0 0
  %68 = vmatpush1.bf16.msra.mxu0 0
  %69 = vmatprep.subr.bf16.mxu0 0
  %70 = vmatpush1.bf16.msra.mxu0 0
  %71 = vmatprep.subr.bf16.mxu0 0
  %72 = vmatpush1.bf16.msra.mxu0 0
  %73 = vmatprep.subr.bf16.mxu0 0
  %74 = vmatpush1.bf16.msra.mxu0 0
  %75 = vmatprep.subr.bf16.mxu0 0
  %76 = vmatpush1.bf16.msra.mxu0 0
  %77 = vmatprep.subr.bf16.mxu0 0
  %78 = vmatpush1.bf16.msra.mxu0 0
  %79 = vmatprep.subr.bf16.mxu0 0
  %80 = vmatpush1.bf16.msra.mxu0 0
  %81 = vmatprep.subr.bf16.mxu0 0
  %82 = vmatpush1.bf16.msra.mxu0 0
  %83 = vmatprep.subr.bf16.mxu0 0
  %84 = vmatpush1.bf16.msra.mxu0 0
  %85 = vmatprep.subr.bf16.mxu0 0
  %86 = vmatpush1.bf16.msra.mxu0 0
  %87 = vmatprep.mubr.bf16.mxu0 0
  %88 = vmatmul.mubr.bf16.gmra.mrb[0].mxu0 %v43
  %v89 = vpop.f32.mrb[0].mxu0
  %v90 = vadd.f32 %v26, %v89
  %v91 = vpop.f32.mrb[0].mxu0
  %v92 = vpop.f32.mrb[0].mxu0
  %v93 = vadd.f32 %v26, %v92
  %v94 = vpop.f32.mrb[0].mxu0
  %95 = vmatprep.mubr.bf16.mxu0 0
  %96 = vmatmul.mubr.bf16.gmra.mrb[0].mxu0 %v46
  %v97 = vpop.f32.mrb[0].mxu0
  %v98 = vadd.f32 %v26, %v97
  %v99 = vpop.f32.mrb[0].mxu0
  %v100 = vpop.f32.mrb[0].mxu0
  %v101 = vadd.f32 %v26, %v100
  %v102 = vpop.f32.mrb[0].mxu0
  %103 = vmatprep.mubr.bf16.mxu0 0
  %104 = vmatmul.mubr.bf16.gmra.mrb[0].mxu0 %v49
  %v105 = vpop.f32.mrb[0].mxu0
  %v106 = vadd.f32 %v26, %v105
  %v107 = vpop.f32.mrb[0].mxu0
  %v108 = vpop.f32.mrb[0].mxu0
  %v109 = vpop.f32.mrb[0].mxu0
  %110 = vdwg.mxu0
  %v111 = vpack.c.bf16 %v93, %v90
  %v112 = vpack.c.bf16 %v101, %v98
  %v113 = vpack.c.bf16 %v106, %v106
  %v117 = vunpack.c.l.b16 %v111
  %v118 = vunpack.c.h.b16 %v111
  %v119 = vunpack.c.l.b16 %v112
  %v120 = vunpack.c.h.b16 %v112
  %v121 = vunpack.c.l.b16 %v113
  %v122 = vpack.c.b16 %v117, %v117
  %v123 = vpack.c.b16 %v118, %v118
  %v124 = vpack.c.b16 %v119, %v119
  %v125 = vpack.c.b16 %v120, %v120
  %v126 = vpack.c.b16 %v121, %v121
  %vm132 = vcmask 257024
  %133 = vst.msk [vmem:[%s3] sm:$0xf] %vm132, %v122
  %134 = vst.msk [vmem:[%s3 + $0x4] sm:$0xf] %vm132, %v123
  %135 = vst.msk [vmem:[%s3 + $0x8] sm:$0xf] %vm132, %v124
  %136 = vst.msk [vmem:[%s3 + $0xc] sm:$0xf] %vm132, %v125
  %137 = vst.msk [vmem:[%s3 + $0x10] sm:$0xf] %vm132, %v126
  // Predicated region
  $region14: #{_lambda_.10} parent=0 // pred_check
    _
  $region15: #{_lambda_.10} parent=0 // pred_check_branch
    %139 = sbr.rel (0) target = $region17
  $region16: #{_lambda_.10} parent=0 // pred_region
    _
  $region17: #{_lambda_.10} parent=0 // pred_fallthru
    _
  // Predicated region
  $region18: #{_lambda_.10} parent=0 // pred_check
    _
  $region19: #{_lambda_.10} parent=0 // pred_check_branch
    %141 = sbr.rel (0) target = $region21
  $region20: #{_lambda_.10} parent=0 // pred_region
    _
  $region21: #{_lambda_.10} parent=0 // pred_fallthru
    _

// kernel: _lambda_.13
$region0: #{_lambda_.13}
  #allocation0 [shape = 'u32[]', space=smem, size = 0x4, offset = 0x4, fixed_abs, tag = 'smem constant byte address 0x4 - core index']
  #allocation1 [shape = 'u32[144,128]{1,0:T(1,128)}', space=vmem, size = 0x12000, scoped, tag = 'internal scratch']
  %s0 = inlined_call_operand.vmem [shape: bf16[42,32], index: 0, kind: input, shape index: {}]
  %s1 = inlined_call_operand.vmem [shape: f32[1,32], index: 1, kind: input, shape index: {}]
  %s2 = inlined_call_operand.vmem [shape: f32[1,32], index: 2, kind: input, shape index: {}]
  %s3 = inlined_call_operand.vmem [shape: bf16[42,32], index: 3, kind: output, shape index: {}]
  %s4 = sld [smem:[#allocation0]]
  $region22: #{_lambda_.13} parent=0
    _
  %s6 = ssub.s32 1, %s4
  %s7 = scalar_select 0, %s6, %s4
  // Predicated region
  $region2: #{_lambda_.13} parent=0 // pred_check
    _
  $region3: #{_lambda_.13} parent=0 // pred_check_branch
    %9 = sbr.rel (0) target = $region5
  $region4: #{_lambda_.13} parent=0 // pred_region
    _
  $region5: #{_lambda_.13} parent=0 // pred_fallthru
    _
  // Predicated region
  $region6: #{_lambda_.13} parent=0 // pred_check
    _
  $region7: #{_lambda_.13} parent=0 // pred_check_branch
    %11 = sbr.rel (0) target = $region9
  $region8: #{_lambda_.13} parent=0 // pred_region
    _
  $region9: #{_lambda_.13} parent=0 // pred_fallthru
    _
  // Predicated region
  $region10: #{_lambda_.13} parent=0 // pred_check
    _
  $region11: #{_lambda_.13} parent=0 // pred_check_branch
    %13 = sbr.rel (0) target = $region13
  $region12: #{_lambda_.13} parent=0 // pred_region
    _
  $region13: #{_lambda_.13} parent=0 // pred_fallthru
    _
  %v14 = vld [vmem:[%s0] sm:$0xf]
  %v15 = vld [vmem:[%s0 + $0x4] sm:$0xf]
  %v16 = vld [vmem:[%s0 + $0x8] sm:$0xf]
  %v17 = vld [vmem:[%s0 + $0xc] sm:$0xf]
  %v18 = vld [vmem:[%s0 + $0x10] sm:$0xf]
  %v19 = vld [vmem:[%s0 + $0x14] sm:$0x1]
  %v20 = vunpack.c.l.bf16 %v14
  %v21 = vunpack.c.l.bf16 %v15
  %v22 = vunpack.c.l.bf16 %v16
  %v23 = vunpack.c.l.bf16 %v17
  %v24 = vunpack.c.l.bf16 %v18
  %v25 = vunpack.c.l.bf16 %v19
  %v26 = vld [vmem:[%s1] sm:$0x1]
  %v27 = vld [vmem:[%s2] sm:$0x1]
  %vm28 = vcmask 261120
  %v29 = vsel %vm28, %v20, 0.0
  %30 = vadd.xlane.f32.xlu0 %v29
  %v31 = vpop.xlane.xlu0 %30
  %v32 = vsel %vm28, %v21, 0.0
  %33 = vadd.xlane.f32.xlu0 %v32
  %v34 = vpop.xlane.xlu0 %33
  %v35 = vsel %vm28, %v22, 0.0
  %36 = vadd.xlane.f32.xlu0 %v35
  %v37 = vpop.xlane.xlu0 %36
  %v38 = vsel %vm28, %v23, 0.0
  %39 = vadd.xlane.f32.xlu0 %v38
  %v40 = vpop.xlane.xlu0 %39
  %v41 = vsel %vm28, %v24, 0.0
  %42 = vadd.xlane.f32.xlu0 %v41
  %v43 = vpop.xlane.xlu0 %42
  %vm44 = vcmask 254976
  %v45 = vsel %vm44, %v25, 0.0
  %46 = vadd.xlane.f32.xlu0 %v45
  %v47 = vpop.xlane.xlu0 %46
  %v48 = vrcp.pop 32.0
  %v49 = vmul.f32 %v31, %v48
  %v50 = vmul.f32 %v34, %v48
  %v51 = vmul.f32 %v37, %v48
  %v52 = vmul.f32 %v40, %v48
  %v53 = vmul.f32 %v43, %v48
  %v54 = vmul.f32 %v47, %v48
  %v55 = vsub.f32 %v20, %v49
  %v56 = vsub.f32 %v21, %v50
  %v57 = vsub.f32 %v22, %v51
  %v58 = vsub.f32 %v23, %v52
  %v59 = vsub.f32 %v24, %v53
  %v60 = vsub.f32 %v25, %v54
  %v61 = vmul.f32 %v55, %v55
  %v62 = vmul.f32 %v56, %v56
  %v63 = vmul.f32 %v57, %v57
  %v64 = vmul.f32 %v58, %v58
  %v65 = vmul.f32 %v59, %v59
  %v66 = vmul.f32 %v60, %v60
  %v67 = vsel %vm28, %v61, 0.0
  %68 = vadd.xlane.f32.xlu0 %v67
  %v69 = vpop.xlane.xlu0 %68
  %v70 = vsel %vm28, %v62, 0.0
  %71 = vadd.xlane.f32.xlu0 %v70
  %v72 = vpop.xlane.xlu0 %71
  %v73 = vsel %vm28, %v63, 0.0
  %74 = vadd.xlane.f32.xlu0 %v73
  %v75 = vpop.xlane.xlu0 %74
  %v76 = vsel %vm28, %v64, 0.0
  %77 = vadd.xlane.f32.xlu0 %v76
  %v78 = vpop.xlane.xlu0 %77
  %v79 = vsel %vm28, %v65, 0.0
  %80 = vadd.xlane.f32.xlu0 %v79
  %v81 = vpop.xlane.xlu0 %80
  %v82 = vsel %vm44, %v66, 0.0
  %83 = vadd.xlane.f32.xlu0 %v82
  %v84 = vpop.xlane.xlu0 %83
  %v85 = vmul.f32 %v69, %v48
  %v86 = vmul.f32 %v72, %v48
  %v87 = vmul.f32 %v75, %v48
  %v88 = vmul.f32 %v78, %v48
  %v89 = vmul.f32 %v81, %v48
  %v90 = vmul.f32 %v84, %v48
  %v91 = vadd.f32 %v85, 1e-05
  %v92 = vadd.f32 %v86, 1e-05
  %v93 = vadd.f32 %v87, 1e-05
  %v94 = vadd.f32 %v88, 1e-05
  %v95 = vadd.f32 %v89, 1e-05
  %v96 = vadd.f32 %v90, 1e-05
  %v97 = vrsqrt.pop %v91
  %v98 = vrsqrt.pop %v92
  %v99 = vrsqrt.pop %v93
  %v100 = vrsqrt.pop %v94
  %v101 = vrsqrt.pop %v95
  %v102 = vrsqrt.pop %v96
  %v103 = vmul.f32 %v55, %v97
  %v104 = vmul.f32 %v56, %v98
  %v105 = vmul.f32 %v57, %v99
  %v106 = vmul.f32 %v58, %v100
  %v107 = vmul.f32 %v59, %v101
  %v108 = vmul.f32 %v60, %v102
  %v110 = vlaneseq
  %v111 = vshrl.u32 %v110, 7
  %v112 = vsub.s32 0, %v111
  %v113 = vrot.slane %v26, %v112
  %v115 = vmul.f32 %v103, %v113
  %v116 = vmul.f32 %v104, %v113
  %v117 = vmul.f32 %v105, %v113
  %v118 = vmul.f32 %v106, %v113
  %v119 = vmul.f32 %v107, %v113
  %v120 = vmul.f32 %v108, %v113
  %v122 = vlaneseq
  %v123 = vshrl.u32 %v122, 7
  %v124 = vsub.s32 0, %v123
  %v125 = vrot.slane %v27, %v124
  %v127 = vadd.f32 %v115, %v125
  %v128 = vadd.f32 %v116, %v125
  %v129 = vadd.f32 %v117, %v125
  %v130 = vadd.f32 %v118, %v125
  %v131 = vadd.f32 %v119, %v125
  %v132 = vadd.f32 %v120, %v125
  %v133 = vpack.c.bf16 %v128, %v127
  %v134 = vpack.c.bf16 %v130, %v129
  %v135 = vpack.c.bf16 %v132, %v131
  %v139 = vunpack.c.l.b16 %v133
  %v140 = vunpack.c.h.b16 %v133
  %v141 = vunpack.c.l.b16 %v134
  %v142 = vunpack.c.h.b16 %v134
  %v143 = vunpack.c.l.b16 %v135
  %v144 = vunpack.c.h.b16 %v135
  %v145 = vpack.c.b16 %v139, %v139
  %v146 = vpack.c.b16 %v140, %v140
  %v147 = vpack.c.b16 %v141, %v141
  %v148 = vpack.c.b16 %v142, %v142
  %v149 = vpack.c.b16 %v143, %v143
  %v150 = vpack.c.b16 %v144, %v144
  %vm157 = vcmask 257024
  %158 = vst.msk [vmem:[%s3] sm:$0xf] %vm157, %v145
  %159 = vst.msk [vmem:[%s3 + $0x4] sm:$0xf] %vm157, %v146
  %160 = vst.msk [vmem:[%s3 + $0x8] sm:$0xf] %vm157, %v147
  %161 = vst.msk [vmem:[%s3 + $0xc] sm:$0xf] %vm157, %v148
  %162 = vst.msk [vmem:[%s3 + $0x10] sm:$0xf] %vm157, %v149
  %vm163 = vcmask 253952
  %164 = vst.msk [vmem:[%s3 + $0x14] sm:$0x1] %vm163, %v150
  // Predicated region
  $region14: #{_lambda_.13} parent=0 // pred_check
    _
  $region15: #{_lambda_.13} parent=0 // pred_check_branch
    %166 = sbr.rel (0) target = $region17
  $region16: #{_lambda_.13} parent=0 // pred_region
    _
  $region17: #{_lambda_.13} parent=0 // pred_fallthru
    _
  // Predicated region
  $region18: #{_lambda_.13} parent=0 // pred_check
    _
  $region19: #{_lambda_.13} parent=0 // pred_check_branch
    %168 = sbr.rel (0) target = $region21
  $region20: #{_lambda_.13} parent=0 // pred_region
    _
  $region21: #{_lambda_.13} parent=0 // pred_fallthru
    _

// kernel: _lambda_.12
$region0: #{_lambda_.12}
  #allocation0 [shape = 'u32[]', space=smem, size = 0x4, offset = 0x4, fixed_abs, tag = 'smem constant byte address 0x4 - core index']
  #allocation1 [shape = 'u32[144,128]{1,0:T(1,128)}', space=vmem, size = 0x12000, scoped, tag = 'internal scratch']
  %s0 = inlined_call_operand.vmem [shape: bf16[42,32], index: 0, kind: input, shape index: {}]
  %s1 = inlined_call_operand.vmem [shape: f32[1,32], index: 1, kind: input, shape index: {}]
  %s2 = inlined_call_operand.vmem [shape: f32[1,32], index: 2, kind: input, shape index: {}]
  %s3 = inlined_call_operand.vmem [shape: bf16[32,32], index: 3, kind: input, shape index: {}]
  %s4 = inlined_call_operand.vmem [shape: f32[1,32], index: 4, kind: input, shape index: {}]
  %s5 = inlined_call_operand.vmem [shape: bf16[32,32], index: 5, kind: input, shape index: {}]
  %s6 = inlined_call_operand.vmem [shape: f32[1,32], index: 6, kind: input, shape index: {}]
  %s7 = inlined_call_operand.vmem [shape: f32[1,32], index: 7, kind: input, shape index: {}]
  %s8 = inlined_call_operand.vmem [shape: f32[1,32], index: 8, kind: input, shape index: {}]
  %s9 = inlined_call_operand.vmem [shape: bf16[42,32], index: 9, kind: output, shape index: {}]
  %s10 = sld [smem:[#allocation0]]
  $region46: #{_lambda_.12} parent=0
    _
  %s12 = ssub.s32 1, %s10
  %s13 = scalar_select 0, %s12, %s10
  // Predicated region
  $region2: #{_lambda_.12} parent=0 // pred_check
    _
  $region3: #{_lambda_.12} parent=0 // pred_check_branch
    %15 = sbr.rel (0) target = $region5
  $region4: #{_lambda_.12} parent=0 // pred_region
    _
  $region5: #{_lambda_.12} parent=0 // pred_fallthru
    _
  // Predicated region
  $region6: #{_lambda_.12} parent=0 // pred_check
    _
  $region7: #{_lambda_.12} parent=0 // pred_check_branch
    %17 = sbr.rel (0) target = $region9
  $region8: #{_lambda_.12} parent=0 // pred_region
    _
  $region9: #{_lambda_.12} parent=0 // pred_fallthru
    _
  // Predicated region
  $region10: #{_lambda_.12} parent=0 // pred_check
    _
  $region11: #{_lambda_.12} parent=0 // pred_check_branch
    %19 = sbr.rel (0) target = $region13
  $region12: #{_lambda_.12} parent=0 // pred_region
    _
  $region13: #{_lambda_.12} parent=0 // pred_fallthru
    _
  // Predicated region
  $region14: #{_lambda_.12} parent=0 // pred_check
    _
  $region15: #{_lambda_.12} parent=0 // pred_check_branch
    %21 = sbr.rel (0) target = $region17
  $region16: #{_lambda_.12} parent=0 // pred_region
    _
  $region17: #{_lambda_.12} parent=0 // pred_fallthru
    _
  // Predicated region
  $region18: #{_lambda_.12} parent=0 // pred_check
    _
  $region19: #{_lambda_.12} parent=0 // pred_check_branch
    %23 = sbr.rel (0) target = $region21
  $region20: #{_lambda_.12} parent=0 // pred_region
    _
  $region21: #{_lambda_.12} parent=0 // pred_fallthru
    _
  // Predicated region
  $region22: #{_lambda_.12} parent=0 // pred_check
    _
  $region23: #{_lambda_.12} parent=0 // pred_check_branch
    %25 = sbr.rel (0) target = $region25
  $region24: #{_lambda_.12} parent=0 // pred_region
    _
  $region25: #{_lambda_.12} parent=0 // pred_fallthru
    _
  // Predicated region
  $region26: #{_lambda_.12} parent=0 // pred_check
    _
  $region27: #{_lambda_.12} parent=0 // pred_check_branch
    %27 = sbr.rel (0) target = $region29
  $region28: #{_lambda_.12} parent=0 // pred_region
    _
  $region29: #{_lambda_.12} parent=0 // pred_fallthru
    _
  // Predicated region
  $region30: #{_lambda_.12} parent=0 // pred_check
    _
  $region31: #{_lambda_.12} parent=0 // pred_check_branch
    %29 = sbr.rel (0) target = $region33
  $region32: #{_lambda_.12} parent=0 // pred_region
    _
  $region33: #{_lambda_.12} parent=0 // pred_fallthru
    _
  // Predicated region
  $region34: #{_lambda_.12} parent=0 // pred_check
    _
  $region35: #{_lambda_.12} parent=0 // pred_check_branch
    %31 = sbr.rel (0) target = $region37
  $region36: #{_lambda_.12} parent=0 // pred_region
    _
  $region37: #{_lambda_.12} parent=0 // pred_fallthru
    _
  %v33 = vld [vmem:[%s0] sm:$0xf]
  %v34 = vld [vmem:[%s0 + $0x4] sm:$0xf]
  %v35 = vld [vmem:[%s0 + $0x8] sm:$0xf]
  %v36 = vld [vmem:[%s0 + $0xc] sm:$0xf]
  %v37 = vld [vmem:[%s0 + $0x10] sm:$0xf]
  %v38 = vld [vmem:[%s0 + $0x14] sm:$0x1]
  %v39 = vunpack.c.l.bf16 %v33
  %v40 = vunpack.c.l.bf16 %v34
  %v41 = vunpack.c.l.bf16 %v35
  %v42 = vunpack.c.l.bf16 %v36
  %v43 = vunpack.c.l.bf16 %v37
  %v44 = vunpack.c.l.bf16 %v38
  %v45 = vld [vmem:[%s1] sm:$0x1]
  %v46 = vld [vmem:[%s2] sm:$0x1]
  %vm47 = vcmask 261120
  %v48 = vsel %vm47, %v39, 0.0
  %49 = vadd.xlane.f32.xlu0 %v48
  %v50 = vpop.xlane.xlu0 %49
  %v51 = vsel %vm47, %v40, 0.0
  %52 = vadd.xlane.f32.xlu0 %v51
  %v53 = vpop.xlane.xlu0 %52
  %v54 = vsel %vm47, %v41, 0.0
  %55 = vadd.xlane.f32.xlu0 %v54
  %v56 = vpop.xlane.xlu0 %55
  %v57 = vsel %vm47, %v42, 0.0
  %58 = vadd.xlane.f32.xlu0 %v57
  %v59 = vpop.xlane.xlu0 %58
  %v60 = vsel %vm47, %v43, 0.0
  %61 = vadd.xlane.f32.xlu0 %v60
  %v62 = vpop.xlane.xlu0 %61
  %vm63 = vcmask 254976
  %v64 = vsel %vm63, %v44, 0.0
  %65 = vadd.xlane.f32.xlu0 %v64
  %v66 = vpop.xlane.xlu0 %65
  %v67 = vrcp.pop 32.0
  %v68 = vmul.f32 %v50, %v67
  %v69 = vmul.f32 %v53, %v67
  %v70 = vmul.f32 %v56, %v67
  %v71 = vmul.f32 %v59, %v67
  %v72 = vmul.f32 %v62, %v67
  %v73 = vmul.f32 %v66, %v67
  %v74 = vsub.f32 %v39, %v68
  %v75 = vsub.f32 %v40, %v69
  %v76 = vsub.f32 %v41, %v70
  %v77 = vsub.f32 %v42, %v71
  %v78 = vsub.f32 %v43, %v72
  %v79 = vsub.f32 %v44, %v73
  %v80 = vmul.f32 %v74, %v74
  %v81 = vmul.f32 %v75, %v75
  %v82 = vmul.f32 %v76, %v76
  %v83 = vmul.f32 %v77, %v77
  %v84 = vmul.f32 %v78, %v78
  %v85 = vmul.f32 %v79, %v79
  %v86 = vsel %vm47, %v80, 0.0
  %87 = vadd.xlane.f32.xlu0 %v86
  %v88 = vpop.xlane.xlu0 %87
  %v89 = vsel %vm47, %v81, 0.0
  %90 = vadd.xlane.f32.xlu0 %v89
  %v91 = vpop.xlane.xlu0 %90
  %v92 = vsel %vm47, %v82, 0.0
  %93 = vadd.xlane.f32.xlu0 %v92
  %v94 = vpop.xlane.xlu0 %93
  %v95 = vsel %vm47, %v83, 0.0
  %96 = vadd.xlane.f32.xlu0 %v95
  %v97 = vpop.xlane.xlu0 %96
  %v98 = vsel %vm47, %v84, 0.0
  %99 = vadd.xlane.f32.xlu0 %v98
  %v100 = vpop.xlane.xlu0 %99
  %v101 = vsel %vm63, %v85, 0.0
  %102 = vadd.xlane.f32.xlu0 %v101
  %v103 = vpop.xlane.xlu0 %102
  %v104 = vmul.f32 %v88, %v67
  %v105 = vmul.f32 %v91, %v67
  %v106 = vmul.f32 %v94, %v67
  %v107 = vmul.f32 %v97, %v67
  %v108 = vmul.f32 %v100, %v67
  %v109 = vmul.f32 %v103, %v67
  %v110 = vadd.f32 %v104, 1e-05
  %v111 = vadd.f32 %v105, 1e-05
  %v112 = vadd.f32 %v106, 1e-05
  %v113 = vadd.f32 %v107, 1e-05
  %v114 = vadd.f32 %v108, 1e-05
  %v115 = vadd.f32 %v109, 1e-05
  %v116 = vrsqrt.pop %v110
  %v117 = vrsqrt.pop %v111
  %v118 = vrsqrt.pop %v112
  %v119 = vrsqrt.pop %v113
  %v120 = vrsqrt.pop %v114
  %v121 = vrsqrt.pop %v115
  %v122 = vmul.f32 %v74, %v116
  %v123 = vmul.f32 %v75, %v117
  %v124 = vmul.f32 %v76, %v118
  %v125 = vmul.f32 %v77, %v119
  %v126 = vmul.f32 %v78, %v120
  %v127 = vmul.f32 %v79, %v121
  %v129 = vlaneseq
  %v130 = vshrl.u32 %v129, 7
  %v131 = vsub.s32 0, %v130
  %v132 = vrot.slane %v45, %v131
  %v134 = vmul.f32 %v122, %v132
  %v135 = vmul.f32 %v123, %v132
  %v136 = vmul.f32 %v124, %v132
  %v137 = vmul.f32 %v125, %v132
  %v138 = vmul.f32 %v126, %v132
  %v139 = vmul.f32 %v127, %v132
  %v141 = vlaneseq
  %v142 = vshrl.u32 %v141, 7
  %v143 = vsub.s32 0, %v142
  %v144 = vrot.slane %v46, %v143
  %v146 = vadd.f32 %v134, %v144
  %v147 = vadd.f32 %v135, %v144
  %v148 = vadd.f32 %v136, %v144
  %v149 = vadd.f32 %v137, %v144
  %v150 = vadd.f32 %v138, %v144
  %v151 = vadd.f32 %v139, %v144
  %v152 = vpack.c.bf16 %v147, %v146
  %v153 = vpack.c.bf16 %v149, %v148
  %v154 = vpack.c.bf16 %v151, %v150
  %v155 = vld [vmem:[%s3] sm:$0xf]
  %v156 = vld [vmem:[%s3 + $0x4] sm:$0xf]
  %v157 = vld [vmem:[%s3 + $0x8] sm:$0xf]
  %v158 = vld [vmem:[%s3 + $0xc] sm:$0xf]
  %v159 = vld [vmem:[%s4] sm:$0x1]
  %v161 = vlaneseq
  %v162 = vshrl.u32 %v161, 7
  %v163 = vsub.s32 0, %v162
  %v164 = vrot.slane %v159, %v163
  %v170 = vunpack.c.l.b16 %v155
  %v171 = vunpack.c.l.b16 %v156
  %v172 = vunpack.c.l.b16 %v157
  %v173 = vunpack.c.l.b16 %v158
  %v174 = vpack.c.b16 %v171, %v170
  %v175 = vpack.c.b16 %v173, %v172
  %v179 = vsel %vm47, %v152, 0
  %v182 = vsel %vm47, %v153, 0
  %v185 = vsel %vm47, %v154, 0
  %187 = vmatprep.subr.bf16.mxu0 0
  %188 = vmatpush1.bf16.msra.mxu0 %v174
  %189 = vmatprep.subr.bf16.mxu0 0
  %190 = vmatpush1.bf16.msra.mxu0 %v175
  %191 = vmatprep.subr.bf16.mxu0 0
  %192 = vmatpush1.bf16.msra.mxu0 0
  %193 = vmatprep.subr.bf16.mxu0 0
  %194 = vmatpush1.bf16.msra.mxu0 0
  %195 = vmatprep.subr.bf16.mxu0 0
  %196 = vmatpush1.bf16.msra.mxu0 0
  %197 = vmatprep.subr.bf16.mxu0 0
  %198 = vmatpush1.bf16.msra.mxu0 0
  %199 = vmatprep.subr.bf16.mxu0 0
  %200 = vmatpush1.bf16.msra.mxu0 0
  %201 = vmatprep.subr.bf16.mxu0 0
  %202 = vmatpush1.bf16.msra.mxu0 0
  %203 = vmatprep.subr.bf16.mxu0 0
  %204 = vmatpush1.bf16.msra.mxu0 0
  %205 = vmatprep.subr.bf16.mxu0 0
  %206 = vmatpush1.bf16.msra.mxu0 0
  %207 = vmatprep.subr.bf16.mxu0 0
  %208 = vmatpush1.bf16.msra.mxu0 0
  %209 = vmatprep.subr.bf16.mxu0 0
  %210 = vmatpush1.bf16.msra.mxu0 0
  %211 = vmatprep.subr.bf16.mxu0 0
  %212 = vmatpush1.bf16.msra.mxu0 0
  %213 = vmatprep.subr.bf16.mxu0 0
  %214 = vmatpush1.bf16.msra.mxu0 0
  %215 = vmatprep.subr.bf16.mxu0 0
  %216 = vmatpush1.bf16.msra.mxu0 0
  %217 = vmatprep.subr.bf16.mxu0 0
  %218 = vmatpush1.bf16.msra.mxu0 0
  %219 = vmatprep.mubr.bf16.mxu0 0
  %220 = vmatmul.mubr.bf16.gmra.mrb[0].mxu0 %v179
  %v221 = vpop.f32.mrb[0].mxu0
  %v222 = vadd.f32 %v164, %v221
  %v223 = vpop.f32.mrb[0].mxu0
  %v224 = vpop.f32.mrb[0].mxu0
  %v225 = vadd.f32 %v164, %v224
  %v226 = vpop.f32.mrb[0].mxu0
  %227 = vmatprep.mubr.bf16.mxu0 0
  %228 = vmatmul.mubr.bf16.gmra.mrb[0].mxu0 %v182
  %v229 = vpop.f32.mrb[0].mxu0
  %v230 = vadd.f32 %v164, %v229
  %v231 = vpop.f32.mrb[0].mxu0
  %v232 = vpop.f32.mrb[0].mxu0
  %v233 = vadd.f32 %v164, %v232
  %v234 = vpop.f32.mrb[0].mxu0
  %235 = vmatprep.mubr.bf16.mxu0 0
  %236 = vmatmul.mubr.bf16.gmra.mrb[0].mxu0 %v185
  %v237 = vpop.f32.mrb[0].mxu0
  %v238 = vadd.f32 %v164, %v237
  %v239 = vpop.f32.mrb[0].mxu0
  %v240 = vpop.f32.mrb[0].mxu0
  %v241 = vadd.f32 %v164, %v240
  %v242 = vpop.f32.mrb[0].mxu0
  %243 = vdwg.mxu0
  %v244 = vmul.f32 %v222, 0.5
  %v245 = vmul.f32 %v225, 0.5
  %v246 = vmul.f32 %v230, 0.5
  %v247 = vmul.f32 %v233, 0.5
  %v248 = vmul.f32 %v238, 0.5
  %v249 = vmul.f32 %v241, 0.5
  %v250 = vmul.f32 %v222, 0.70710677
  %v251 = vmul.f32 %v225, 0.70710677
  %v252 = vmul.f32 %v230, 0.70710677
  %v253 = vmul.f32 %v233, 0.70710677
  %v254 = vmul.f32 %v238, 0.70710677
  %v255 = vmul.f32 %v241, 0.70710677
  %vm256 = vcmp.ge.f32.partialorder %v250, 0.0
  %vm257 = vcmp.ge.f32.partialorder %v251, 0.0
  %vm258 = vcmp.ge.f32.partialorder %v252, 0.0
  %vm259 = vcmp.ge.f32.partialorder %v253, 0.0
  %vm260 = vcmp.ge.f32.partialorder %v254, 0.0
  %vm261 = vcmp.ge.f32.partialorder %v255, 0.0
  %v262 = vsel %vm256, 1.0, -1.0
  %v263 = vsel %vm257, 1.0, -1.0
  %v264 = vsel %vm258, 1.0, -1.0
  %v265 = vsel %vm259, 1.0, -1.0
  %v266 = vsel %vm260, 1.0, -1.0
  %v267 = vsel %vm261, 1.0, -1.0
  %v268 = vand.u32 2147483647, %v250
  %v269 = vand.u32 2147483647, %v251
  %v270 = vand.u32 2147483647, %v252
  %v271 = vand.u32 2147483647, %v253
  %v272 = vand.u32 2147483647, %v254
  %v273 = vand.u32 2147483647, %v255
  %v274 = vmul.f32 %v268, 0.3275911
  %v275 = vmul.f32 %v269, 0.3275911
  %v276 = vmul.f32 %v270, 0.3275911
  %v277 = vmul.f32 %v271, 0.3275911
  %v278 = vmul.f32 %v272, 0.3275911
  %v279 = vmul.f32 %v273, 0.3275911
  %v280 = vadd.f32 %v274, 1.0
  %v281 = vadd.f32 %v275, 1.0
  %v282 = vadd.f32 %v276, 1.0
  %v283 = vadd.f32 %v277, 1.0
  %v284 = vadd.f32 %v278, 1.0
  %v285 = vadd.f32 %v279, 1.0
  %v286 = vrcp.pop %v280
  %v287 = vmul.f32 1.0, %v286
  %v288 = vrcp.pop %v281
  %v289 = vmul.f32 1.0, %v288
  %v290 = vrcp.pop %v282
  %v291 = vmul.f32 1.0, %v290
  %v292 = vrcp.pop %v283
  %v293 = vmul.f32 1.0, %v292
  %v294 = vrcp.pop %v284
  %v295 = vmul.f32 1.0, %v294
  %v296 = vrcp.pop %v285
  %v297 = vmul.f32 1.0, %v296
  %v298 = vmul.f32 %v287, 1.0614054
  %v299 = vmul.f32 %v289, 1.0614054
  %v300 = vmul.f32 %v291, 1.0614054
  %v301 = vmul.f32 %v293, 1.0614054
  %v302 = vmul.f32 %v295, 1.0614054
  %v303 = vmul.f32 %v297, 1.0614054
  %v304 = vadd.f32 %v298, -1.4531521
  %v305 = vadd.f32 %v299, -1.4531521
  %v306 = vadd.f32 %v300, -1.4531521
  %v307 = vadd.f32 %v301, -1.4531521
  %v308 = vadd.f32 %v302, -1.4531521
  %v309 = vadd.f32 %v303, -1.4531521
  %v310 = vmul.f32 %v304, %v287
  %v311 = vmul.f32 %v305, %v289
  %v312 = vmul.f32 %v306, %v291
  %v313 = vmul.f32 %v307, %v293
  %v314 = vmul.f32 %v308, %v295
  %v315 = vmul.f32 %v309, %v297
  %v316 = vadd.f32 %v310, 1.4214138
  %v317 = vadd.f32 %v311, 1.4214138
  %v318 = vadd.f32 %v312, 1.4214138
  %v319 = vadd.f32 %v313, 1.4214138
  %v320 = vadd.f32 %v314, 1.4214138
  %v321 = vadd.f32 %v315, 1.4214138
  %v322 = vmul.f32 %v316, %v287
  %v323 = vmul.f32 %v317, %v289
  %v324 = vmul.f32 %v318, %v291
  %v325 = vmul.f32 %v319, %v293
  %v326 = vmul.f32 %v320, %v295
  %v327 = vmul.f32 %v321, %v297
  %v328 = vadd.f32 %v322, -0.28449672
  %v329 = vadd.f32 %v323, -0.28449672
  %v330 = vadd.f32 %v324, -0.28449672
  %v331 = vadd.f32 %v325, -0.28449672
  %v332 = vadd.f32 %v326, -0.28449672
  %v333 = vadd.f32 %v327, -0.28449672
  %v334 = vmul.f32 %v328, %v287
  %v335 = vmul.f32 %v329, %v289
  %v336 = vmul.f32 %v330, %v291
  %v337 = vmul.f32 %v331, %v293
  %v338 = vmul.f32 %v332, %v295
  %v339 = vmul.f32 %v333, %v297
  %v340 = vadd.f32 %v334, 0.2548296
  %v341 = vadd.f32 %v335, 0.2548296
  %v342 = vadd.f32 %v336, 0.2548296
  %v343 = vadd.f32 %v337, 0.2548296
  %v344 = vadd.f32 %v338, 0.2548296
  %v345 = vadd.f32 %v339, 0.2548296
  %v346 = vmul.f32 %v340, %v287
  %v347 = vmul.f32 %v341, %v289
  %v348 = vmul.f32 %v342, %v291
  %v349 = vmul.f32 %v343, %v293
  %v350 = vmul.f32 %v344, %v295
  %v351 = vmul.f32 %v345, %v297
  %v352 = vsub.f32 0.0, %v268
  %v353 = vsub.f32 0.0, %v269
  %v354 = vsub.f32 0.0, %v270
  %v355 = vsub.f32 0.0, %v271
  %v356 = vsub.f32 0.0, %v272
  %v357 = vsub.f32 0.0, %v273
  %v358 = vmul.f32 %v352, %v268
  %v359 = vmul.f32 %v353, %v269
  %v360 = vmul.f32 %v354, %v270
  %v361 = vmul.f32 %v355, %v271
  %v362 = vmul.f32 %v356, %v272
  %v363 = vmul.f32 %v357, %v273
  %v364 = vmul.f32 %v358, 1.442695
  %v365 = vpow.pop %v364
  %v366 = vmul.f32 %v359, 1.442695
  %v367 = vpow.pop %v366
  %v368 = vmul.f32 %v360, 1.442695
  %v369 = vpow.pop %v368
  %v370 = vmul.f32 %v361, 1.442695
  %v371 = vpow.pop %v370
  %v372 = vmul.f32 %v362, 1.442695
  %v373 = vpow.pop %v372
  %v374 = vmul.f32 %v363, 1.442695
  %v375 = vpow.pop %v374
  %v376 = vmul.f32 %v346, %v365
  %v377 = vmul.f32 %v347, %v367
  %v378 = vmul.f32 %v348, %v369
  %v379 = vmul.f32 %v349, %v371
  %v380 = vmul.f32 %v350, %v373
  %v381 = vmul.f32 %v351, %v375
  %v382 = vsub.f32 1.0, %v376
  %v383 = vsub.f32 1.0, %v377
  %v384 = vsub.f32 1.0, %v378
  %v385 = vsub.f32 1.0, %v379
  %v386 = vsub.f32 1.0, %v380
  %v387 = vsub.f32 1.0, %v381
  %v388 = vmul.f32 %v262, %v382
  %v389 = vmul.f32 %v263, %v383
  %v390 = vmul.f32 %v264, %v384
  %v391 = vmul.f32 %v265, %v385
  %v392 = vmul.f32 %v266, %v386
  %v393 = vmul.f32 %v267, %v387
  %v394 = vadd.f32 %v388, 1.0
  %v395 = vadd.f32 %v389, 1.0
  %v396 = vadd.f32 %v390, 1.0
  %v397 = vadd.f32 %v391, 1.0
  %v398 = vadd.f32 %v392, 1.0
  %v399 = vadd.f32 %v393, 1.0
  %v400 = vmul.f32 %v244, %v394
  %v401 = vmul.f32 %v245, %v395
  %v402 = vmul.f32 %v246, %v396
  %v403 = vmul.f32 %v247, %v397
  %v404 = vmul.f32 %v248, %v398
  %v405 = vmul.f32 %v249, %v399
  %v406 = vpack.c.bf16 %v401, %v400
  %v407 = vpack.c.bf16 %v403, %v402
  %v408 = vpack.c.bf16 %v405, %v404
  %v409 = vld [vmem:[%s5] sm:$0xf]
  %v410 = vld [vmem:[%s5 + $0x4] sm:$0xf]
  %v411 = vld [vmem:[%s5 + $0x8] sm:$0xf]
  %v412 = vld [vmem:[%s5 + $0xc] sm:$0xf]
  %v413 = vld [vmem:[%s6] sm:$0x1]
  %v415 = vlaneseq
  %v416 = vshrl.u32 %v415, 7
  %v417 = vsub.s32 0, %v416
  %v418 = vrot.slane %v413, %v417
  %v424 = vunpack.c.l.b16 %v409
  %v425 = vunpack.c.l.b16 %v410
  %v426 = vunpack.c.l.b16 %v411
  %v427 = vunpack.c.l.b16 %v412
  %v428 = vpack.c.b16 %v425, %v424
  %v429 = vpack.c.b16 %v427, %v426
  %v433 = vsel %vm47, %v406, 0
  %v436 = vsel %vm47, %v407, 0
  %v439 = vsel %vm47, %v408, 0
  %441 = vmatprep.subr.bf16.mxu0 0
  %442 = vmatpush1.bf16.msra.mxu0 %v428
  %443 = vmatprep.subr.bf16.mxu0 0
  %444 = vmatpush1.bf16.msra.mxu0 %v429
  %445 = vmatprep.subr.bf16.mxu0 0
  %446 = vmatpush1.bf16.msra.mxu0 0
  %447 = vmatprep.subr.bf16.mxu0 0
  %448 = vmatpush1.bf16.msra.mxu0 0
  %449 = vmatprep.subr.bf16.mxu0 0
  %450 = vmatpush1.bf16.msra.mxu0 0
  %451 = vmatprep.subr.bf16.mxu0 0
  %452 = vmatpush1.bf16.msra.mxu0 0
  %453 = vmatprep.subr.bf16.mxu0 0
  %454 = vmatpush1.bf16.msra.mxu0 0
  %455 = vmatprep.subr.bf16.mxu0 0
  %456 = vmatpush1.bf16.msra.mxu0 0
  %457 = vmatprep.subr.bf16.mxu0 0
  %458 = vmatpush1.bf16.msra.mxu0 0
  %459 = vmatprep.subr.bf16.mxu0 0
  %460 = vmatpush1.bf16.msra.mxu0 0
  %461 = vmatprep.subr.bf16.mxu0 0
  %462 = vmatpush1.bf16.msra.mxu0 0
  %463 = vmatprep.subr.bf16.mxu0 0
  %464 = vmatpush1.bf16.msra.mxu0 0
  %465 = vmatprep.subr.bf16.mxu0 0
  %466 = vmatpush1.bf16.msra.mxu0 0
  %467 = vmatprep.subr.bf16.mxu0 0
  %468 = vmatpush1.bf16.msra.mxu0 0
  %469 = vmatprep.subr.bf16.mxu0 0
  %470 = vmatpush1.bf16.msra.mxu0 0
  %471 = vmatprep.subr.bf16.mxu0 0
  %472 = vmatpush1.bf16.msra.mxu0 0
  %473 = vmatprep.mubr.bf16.mxu0 0
  %474 = vmatmul.mubr.bf16.gmra.mrb[0].mxu0 %v433
  %v475 = vpop.f32.mrb[0].mxu0
  %v476 = vadd.f32 %v418, %v475
  %v477 = vpop.f32.mrb[0].mxu0
  %v478 = vpop.f32.mrb[0].mxu0
  %v479 = vadd.f32 %v418, %v478
  %v480 = vpop.f32.mrb[0].mxu0
  %481 = vmatprep.mubr.bf16.mxu0 0
  %482 = vmatmul.mubr.bf16.gmra.mrb[0].mxu0 %v436
  %v483 = vpop.f32.mrb[0].mxu0
  %v484 = vadd.f32 %v418, %v483
  %v485 = vpop.f32.mrb[0].mxu0
  %v486 = vpop.f32.mrb[0].mxu0
  %v487 = vadd.f32 %v418, %v486
  %v488 = vpop.f32.mrb[0].mxu0
  %489 = vmatprep.mubr.bf16.mxu0 0
  %490 = vmatmul.mubr.bf16.gmra.mrb[0].mxu0 %v439
  %v491 = vpop.f32.mrb[0].mxu0
  %v492 = vadd.f32 %v418, %v491
  %v493 = vpop.f32.mrb[0].mxu0
  %v494 = vpop.f32.mrb[0].mxu0
  %v495 = vadd.f32 %v418, %v494
  %v496 = vpop.f32.mrb[0].mxu0
  %497 = vdwg.mxu0
  %v498 = vadd.f32 %v146, %v476
  %v499 = vadd.f32 %v147, %v479
  %v500 = vadd.f32 %v148, %v484
  %v501 = vadd.f32 %v149, %v487
  %v502 = vadd.f32 %v150, %v492
  %v503 = vadd.f32 %v151, %v495
  %v504 = vld [vmem:[%s7] sm:$0x1]
  %v505 = vld [vmem:[%s8] sm:$0x1]
  %v506 = vsel %vm47, %v498, 0.0
  %507 = vadd.xlane.f32.xlu0 %v506
  %v508 = vpop.xlane.xlu0 %507
  %v509 = vsel %vm47, %v499, 0.0
  %510 = vadd.xlane.f32.xlu0 %v509
  %v511 = vpop.xlane.xlu0 %510
  %v512 = vsel %vm47, %v500, 0.0
  %513 = vadd.xlane.f32.xlu0 %v512
  %v514 = vpop.xlane.xlu0 %513
  %v515 = vsel %vm47, %v501, 0.0
  %516 = vadd.xlane.f32.xlu0 %v515
  %v517 = vpop.xlane.xlu0 %516
  %v518 = vsel %vm47, %v502, 0.0
  %519 = vadd.xlane.f32.xlu0 %v518
  %v520 = vpop.xlane.xlu0 %519
  %v521 = vsel %vm63, %v503, 0.0
  %522 = vadd.xlane.f32.xlu0 %v521
  %v523 = vpop.xlane.xlu0 %522
  %v524 = vmul.f32 %v508, %v67
  %v525 = vmul.f32 %v511, %v67
  %v526 = vmul.f32 %v514, %v67
  %v527 = vmul.f32 %v517, %v67
  %v528 = vmul.f32 %v520, %v67
  %v529 = vmul.f32 %v523, %v67
  %v530 = vsub.f32 %v498, %v524
  %v531 = vsub.f32 %v499, %v525
  %v532 = vsub.f32 %v500, %v526
  %v533 = vsub.f32 %v501, %v527
  %v534 = vsub.f32 %v502, %v528
  %v535 = vsub.f32 %v503, %v529
  %v536 = vmul.f32 %v530, %v530
  %v537 = vmul.f32 %v531, %v531
  %v538 = vmul.f32 %v532, %v532
  %v539 = vmul.f32 %v533, %v533
  %v540 = vmul.f32 %v534, %v534
  %v541 = vmul.f32 %v535, %v535
  %v542 = vsel %vm47, %v536, 0.0
  %543 = vadd.xlane.f32.xlu0 %v542
  %v544 = vpop.xlane.xlu0 %543
  %v545 = vsel %vm47, %v537, 0.0
  %546 = vadd.xlane.f32.xlu0 %v545
  %v547 = vpop.xlane.xlu0 %546
  %v548 = vsel %vm47, %v538, 0.0
  %549 = vadd.xlane.f32.xlu0 %v548
  %v550 = vpop.xlane.xlu0 %549
  %v551 = vsel %vm47, %v539, 0.0
  %552 = vadd.xlane.f32.xlu0 %v551
  %v553 = vpop.xlane.xlu0 %552
  %v554 = vsel %vm47, %v540, 0.0
  %555 = vadd.xlane.f32.xlu0 %v554
  %v556 = vpop.xlane.xlu0 %555
  %v557 = vsel %vm63, %v541, 0.0
  %558 = vadd.xlane.f32.xlu0 %v557
  %v559 = vpop.xlane.xlu0 %558
  %v560 = vmul.f32 %v544, %v67
  %v561 = vmul.f32 %v547, %v67
  %v562 = vmul.f32 %v550, %v67
  %v563 = vmul.f32 %v553, %v67
  %v564 = vmul.f32 %v556, %v67
  %v565 = vmul.f32 %v559, %v67
  %v566 = vadd.f32 %v560, 1e-05
  %v567 = vadd.f32 %v561, 1e-05
  %v568 = vadd.f32 %v562, 1e-05
  %v569 = vadd.f32 %v563, 1e-05
  %v570 = vadd.f32 %v564, 1e-05
  %v571 = vadd.f32 %v565, 1e-05
  %v572 = vrsqrt.pop %v566
  %v573 = vrsqrt.pop %v567
  %v574 = vrsqrt.pop %v568
  %v575 = vrsqrt.pop %v569
  %v576 = vrsqrt.pop %v570
  %v577 = vrsqrt.pop %v571
  %v578 = vmul.f32 %v530, %v572
  %v579 = vmul.f32 %v531, %v573
  %v580 = vmul.f32 %v532, %v574
  %v581 = vmul.f32 %v533, %v575
  %v582 = vmul.f32 %v534, %v576
  %v583 = vmul.f32 %v535, %v577
  %v585 = vlaneseq
  %v586 = vshrl.u32 %v585, 7
  %v587 = vsub.s32 0, %v586
  %v588 = vrot.slane %v504, %v587
  %v590 = vmul.f32 %v578, %v588
  %v591 = vmul.f32 %v579, %v588
  %v592 = vmul.f32 %v580, %v588
  %v593 = vmul.f32 %v581, %v588
  %v594 = vmul.f32 %v582, %v588
  %v595 = vmul.f32 %v583, %v588
  %v597 = vlaneseq
  %v598 = vshrl.u32 %v597, 7
  %v599 = vsub.s32 0, %v598
  %v600 = vrot.slane %v505, %v599
  %v602 = vadd.f32 %v590, %v600
  %v603 = vadd.f32 %v591, %v600
  %v604 = vadd.f32 %v592, %v600
  %v605 = vadd.f32 %v593, %v600
  %v606 = vadd.f32 %v594, %v600
  %v607 = vadd.f32 %v595, %v600
  %v608 = vpack.c.bf16 %v603, %v602
  %v609 = vpack.c.bf16 %v605, %v604
  %v610 = vpack.c.bf16 %v607, %v606
  %v614 = vunpack.c.l.b16 %v608
  %v615 = vunpack.c.h.b16 %v608
  %v616 = vunpack.c.l.b16 %v609
  %v617 = vunpack.c.h.b16 %v609
  %v618 = vunpack.c.l.b16 %v610
  %v619 = vunpack.c.h.b16 %v610
  %v620 = vpack.c.b16 %v614, %v614
  %v621 = vpack.c.b16 %v615, %v615
  %v622 = vpack.c.b16 %v616, %v616
  %v623 = vpack.c.b16 %v617, %v617
  %v624 = vpack.c.b16 %v618, %v618
  %v625 = vpack.c.b16 %v619, %v619
  %vm632 = vcmask 257024
  %633 = vst.msk [vmem:[%s9] sm:$0xf] %vm632, %v620
  %634 = vst.msk [vmem:[%s9 + $0x4] sm:$0xf] %vm632, %v621
  %635 = vst.msk [vmem:[%s9 + $0x8] sm:$0xf] %vm632, %v622
  %636 = vst.msk [vmem:[%s9 + $0xc] sm:$0xf] %vm632, %v623
  %637 = vst.msk [vmem:[%s9 + $0x10] sm:$0xf] %vm632, %v624
  %vm638 = vcmask 253952
  %639 = vst.msk [vmem:[%s9 + $0x14] sm:$0x1] %vm638, %v625
  // Predicated region
  $region38: #{_lambda_.12} parent=0 // pred_check
    _
  $region39: #{_lambda_.12} parent=0 // pred_check_branch
    %641 = sbr.rel (0) target = $region41
  $region40: #{_lambda_.12} parent=0 // pred_region
    _
  $region41: #{_lambda_.12} parent=0 // pred_fallthru
    _
  // Predicated region
  $region42: #{_lambda_.12} parent=0 // pred_check
    _
  $region43: #{_lambda_.12} parent=0 // pred_check_branch
    %643 = sbr.rel (0) target = $region45
  $region44: #{_lambda_.12} parent=0 // pred_region
    _
  $region45: #{_lambda_.12} parent=0 // pred_fallthru
    _

// kernel: _lambda_.14
$region0: #{_lambda_.14}
  #allocation0 [shape = 'u32[]', space=smem, size = 0x4, offset = 0x4, fixed_abs, tag = 'smem constant byte address 0x4 - core index']
  #allocation1 [shape = 'u32[144,128]{1,0:T(1,128)}', space=vmem, size = 0x12000, scoped, tag = 'internal scratch']
  %s0 = inlined_call_operand.vmem [shape: bf16[8,160], index: 0, kind: input, shape index: {}]
  %s1 = inlined_call_operand.vmem [shape: bf16[160,160], index: 1, kind: input, shape index: {}]
  %s2 = inlined_call_operand.vmem [shape: f32[1,160], index: 2, kind: input, shape index: {}]
  %s3 = inlined_call_operand.vmem [shape: bf16[160,32], index: 3, kind: input, shape index: {}]
  %s4 = inlined_call_operand.vmem [shape: f32[1,32], index: 4, kind: input, shape index: {}]
  %s5 = inlined_call_operand.vmem [shape: bf16[8,32], index: 5, kind: output, shape index: {}]
  %s6 = sld [smem:[#allocation0]]
  $region30: #{_lambda_.14} parent=0
    _
  %s8 = ssub.s32 1, %s6
  %s9 = scalar_select 0, %s8, %s6
  // Predicated region
  $region2: #{_lambda_.14} parent=0 // pred_check
    _
  $region3: #{_lambda_.14} parent=0 // pred_check_branch
    %11 = sbr.rel (0) target = $region5
  $region4: #{_lambda_.14} parent=0 // pred_region
    _
  $region5: #{_lambda_.14} parent=0 // pred_fallthru
    _
  // Predicated region
  $region6: #{_lambda_.14} parent=0 // pred_check
    _
  $region7: #{_lambda_.14} parent=0 // pred_check_branch
    %13 = sbr.rel (0) target = $region9
  $region8: #{_lambda_.14} parent=0 // pred_region
    _
  $region9: #{_lambda_.14} parent=0 // pred_fallthru
    _
  // Predicated region
  $region10: #{_lambda_.14} parent=0 // pred_check
    _
  $region11: #{_lambda_.14} parent=0 // pred_check_branch
    %15 = sbr.rel (0) target = $region13
  $region12: #{_lambda_.14} parent=0 // pred_region
    _
  $region13: #{_lambda_.14} parent=0 // pred_fallthru
    _
  // Predicated region
  $region14: #{_lambda_.14} parent=0 // pred_check
    _
  $region15: #{_lambda_.14} parent=0 // pred_check_branch
    %17 = sbr.rel (0) target = $region17
  $region16: #{_lambda_.14} parent=0 // pred_region
    _
  $region17: #{_lambda_.14} parent=0 // pred_fallthru
    _
  // Predicated region
  $region18: #{_lambda_.14} parent=0 // pred_check
    _
  $region19: #{_lambda_.14} parent=0 // pred_check_branch
    %19 = sbr.rel (0) target = $region21
  $region20: #{_lambda_.14} parent=0 // pred_region
    _
  $region21: #{_lambda_.14} parent=0 // pred_fallthru
    _
  %v21 = vld [vmem:[%s0] sm:$0xff]
  %v22 = vunpack.c.l.bf16 %v21
  %v23 = vunpack.c.h.bf16 %v21
  %v24 = vld [vmem:[%s1] sm:$0xff]
  %v25 = vld [vmem:[%s1 + $0x8] sm:$0xff]
  %v26 = vld [vmem:[%s1 + $0x10] sm:$0xff]
  %v27 = vld [vmem:[%s1 + $0x18] sm:$0xff]
  %v28 = vld [vmem:[%s1 + $0x20] sm:$0xff]
  %v29 = vld [vmem:[%s1 + $0x28] sm:$0xff]
  %v30 = vld [vmem:[%s1 + $0x30] sm:$0xff]
  %v31 = vld [vmem:[%s1 + $0x38] sm:$0xff]
  %v32 = vld [vmem:[%s1 + $0x40] sm:$0xff]
  %v33 = vld [vmem:[%s1 + $0x48] sm:$0xff]
  %v34 = vld [vmem:[%s1 + $0x50] sm:$0xff]
  %v35 = vld [vmem:[%s1 + $0x58] sm:$0xff]
  %v36 = vld [vmem:[%s1 + $0x60] sm:$0xff]
  %v37 = vld [vmem:[%s1 + $0x68] sm:$0xff]
  %v38 = vld [vmem:[%s1 + $0x70] sm:$0xff]
  %v39 = vld [vmem:[%s1 + $0x78] sm:$0xff]
  %v40 = vld [vmem:[%s1 + $0x80] sm:$0xff]
  %v41 = vld [vmem:[%s1 + $0x88] sm:$0xff]
  %v42 = vld [vmem:[%s1 + $0x90] sm:$0xff]
  %v43 = vld [vmem:[%s1 + $0x98] sm:$0xff]
  %v44 = vld [vmem:[%s2] sm:$0x3]
  %v46 = vlaneseq
  %v47 = vshrl.u32 %v46, 7
  %v48 = vsub.s32 0, %v47
  %v49 = vrot.slane %v44, %v48
  %v50 = vlaneseq
  %v51 = vshrl.u32 %v50, 7
  %v52 = vsub.s32 1, %v51
  %v53 = vrot.slane %v44, %v52
  %v57 = vunpack.c.l.b16 %v21
  %v58 = vunpack.c.h.b16 %v21
  %v59 = vpack.c.b16 %v57, %v57
  %v60 = vpack.c.b16 %v58, %v58
  %v82 = vunpack.c.l.b16 %v24
  %v83 = vunpack.c.h.b16 %v24
  %v84 = vunpack.c.l.b16 %v25
  %v85 = vunpack.c.h.b16 %v25
  %v86 = vunpack.c.l.b16 %v26
  %v87 = vunpack.c.h.b16 %v26
  %v88 = vunpack.c.l.b16 %v27
  %v89 = vunpack.c.h.b16 %v27
  %v90 = vunpack.c.l.b16 %v28
  %v91 = vunpack.c.h.b16 %v28
  %v92 = vunpack.c.l.b16 %v29
  %v93 = vunpack.c.h.b16 %v29
  %v94 = vunpack.c.l.b16 %v30
  %v95 = vunpack.c.h.b16 %v30
  %v96 = vunpack.c.l.b16 %v31
  %v97 = vunpack.c.h.b16 %v31
  %v98 = vunpack.c.l.b16 %v32
  %v99 = vunpack.c.h.b16 %v32
  %v100 = vunpack.c.l.b16 %v33
  %v101 = vunpack.c.h.b16 %v33
  %v102 = vunpack.c.l.b16 %v34
  %v103 = vunpack.c.h.b16 %v34
  %v104 = vunpack.c.l.b16 %v35
  %v105 = vunpack.c.h.b16 %v35
  %v106 = vunpack.c.l.b16 %v36
  %v107 = vunpack.c.h.b16 %v36
  %v108 = vunpack.c.l.b16 %v37
  %v109 = vunpack.c.h.b16 %v37
  %v110 = vunpack.c.l.b16 %v38
  %v111 = vunpack.c.h.b16 %v38
  %v112 = vunpack.c.l.b16 %v39
  %v113 = vunpack.c.h.b16 %v39
  %v114 = vunpack.c.l.b16 %v40
  %v115 = vunpack.c.h.b16 %v40
  %v116 = vunpack.c.l.b16 %v41
  %v117 = vunpack.c.h.b16 %v41
  %v118 = vunpack.c.l.b16 %v42
  %v119 = vunpack.c.h.b16 %v42
  %v120 = vunpack.c.l.b16 %v43
  %v121 = vunpack.c.h.b16 %v43
  %v122 = vpack.c.b16 %v84, %v82
  %v123 = vpack.c.b16 %v85, %v83
  %v124 = vpack.c.b16 %v88, %v86
  %v125 = vpack.c.b16 %v89, %v87
  %v126 = vpack.c.b16 %v92, %v90
  %v127 = vpack.c.b16 %v93, %v91
  %v128 = vpack.c.b16 %v96, %v94
  %v129 = vpack.c.b16 %v97, %v95
  %v130 = vpack.c.b16 %v100, %v98
  %v131 = vpack.c.b16 %v101, %v99
  %v132 = vpack.c.b16 %v104, %v102
  %v133 = vpack.c.b16 %v105, %v103
  %v134 = vpack.c.b16 %v108, %v106
  %v135 = vpack.c.b16 %v109, %v107
  %v136 = vpack.c.b16 %v112, %v110
  %v137 = vpack.c.b16 %v113, %v111
  %v138 = vpack.c.b16 %v116, %v114
  %v139 = vpack.c.b16 %v117, %v115
  %v140 = vpack.c.b16 %v120, %v118
  %v141 = vpack.c.b16 %v121, %v119
  %vm162 = vcmask 261120
  %v164 = vsel %vm162, %v60, 0
  %166 = vmatprep.subr.bf16.mxu0 %v123
  %167 = vmatpush1.bf16.msra.mxu0 %v122
  %168 = vmatprep.subr.bf16.mxu0 %v125
  %169 = vmatpush1.bf16.msra.mxu0 %v124
  %170 = vmatprep.subr.bf16.mxu0 %v127
  %171 = vmatpush1.bf16.msra.mxu0 %v126
  %172 = vmatprep.subr.bf16.mxu0 %v129
  %173 = vmatpush1.bf16.msra.mxu0 %v128
  %174 = vmatprep.subr.bf16.mxu0 %v131
  %175 = vmatpush1.bf16.msra.mxu0 %v130
  %176 = vmatprep.subr.bf16.mxu0 %v133
  %177 = vmatpush1.bf16.msra.mxu0 %v132
  %178 = vmatprep.subr.bf16.mxu0 %v135
  %179 = vmatpush1.bf16.msra.mxu0 %v134
  %180 = vmatprep.subr.bf16.mxu0 %v137
  %181 = vmatpush1.bf16.msra.mxu0 %v136
  %182 = vmatprep.subr.bf16.mxu0 %v139
  %183 = vmatpush1.bf16.msra.mxu0 %v138
  %184 = vmatprep.subr.bf16.mxu0 %v141
  %185 = vmatpush1.bf16.msra.mxu0 %v140
  %186 = vmatprep.subr.bf16.mxu0 0
  %187 = vmatpush1.bf16.msra.mxu0 0
  %188 = vmatprep.subr.bf16.mxu0 0
  %189 = vmatpush1.bf16.msra.mxu0 0
  %190 = vmatprep.subr.bf16.mxu0 0
  %191 = vmatpush1.bf16.msra.mxu0 0
  %192 = vmatprep.subr.bf16.mxu0 0
  %193 = vmatpush1.bf16.msra.mxu0 0
  %194 = vmatprep.subr.bf16.mxu0 0
  %195 = vmatpush1.bf16.msra.mxu0 0
  %196 = vmatprep.subr.bf16.mxu0 0
  %197 = vmatpush1.bf16.msra.mxu0 0
  %198 = vmatprep.mubr.bf16.mxu0 %v164
  %199 = vmatmul.mubr.bf16.gmra.mrb[0].mxu0 %v59
  %v200 = vpop.f32.mrb[0].mxu0
  %v201 = vadd.f32 %v49, %v200
  %v202 = vpop.f32.mrb[0].mxu0
  %v203 = vadd.f32 %v53, %v202
  %v204 = vpop.f32.mrb[0].mxu0
  %v205 = vpop.f32.mrb[0].mxu0
  %206 = vdwg.mxu0
  %v207 = vsub.f32 0.0, %v201
  %v208 = vsub.f32 0.0, %v203
  %v209 = vmul.f32 %v207, 1.442695
  %v210 = vpow.pop %v209
  %v211 = vmul.f32 %v208, 1.442695
  %v212 = vpow.pop %v211
  %v213 = vadd.f32 %v210, 1.0
  %v214 = vadd.f32 %v212, 1.0
  %v215 = vrcp.pop %v213
  %v216 = vmul.f32 1.0, %v215
  %v217 = vrcp.pop %v214
  %v218 = vmul.f32 1.0, %v217
  %v219 = vmul.f32 %v201, %v216
  %v220 = vmul.f32 %v203, %v218
  %v221 = vmul.f32 %v22, %v219
  %v222 = vmul.f32 %v23, %v220
  %v223 = vpack.c.bf16 %v221, %v221
  %v224 = vpack.c.bf16 %v222, %v222
  %v225 = vld [vmem:[%s3] sm:$0xf]
  %v226 = vld [vmem:[%s3 + $0x4] sm:$0xf]
  %v227 = vld [vmem:[%s3 + $0x8] sm:$0xf]
  %v228 = vld [vmem:[%s3 + $0xc] sm:$0xf]
  %v229 = vld [vmem:[%s3 + $0x10] sm:$0xf]
  %v230 = vld [vmem:[%s3 + $0x14] sm:$0xf]
  %v231 = vld [vmem:[%s3 + $0x18] sm:$0xf]
  %v232 = vld [vmem:[%s3 + $0x1c] sm:$0xf]
  %v233 = vld [vmem:[%s3 + $0x20] sm:$0xf]
  %v234 = vld [vmem:[%s3 + $0x24] sm:$0xf]
  %v235 = vld [vmem:[%s3 + $0x28] sm:$0xf]
  %v236 = vld [vmem:[%s3 + $0x2c] sm:$0xf]
  %v237 = vld [vmem:[%s3 + $0x30] sm:$0xf]
  %v238 = vld [vmem:[%s3 + $0x34] sm:$0xf]
  %v239 = vld [vmem:[%s3 + $0x38] sm:$0xf]
  %v240 = vld [vmem:[%s3 + $0x3c] sm:$0xf]
  %v241 = vld [vmem:[%s3 + $0x40] sm:$0xf]
  %v242 = vld [vmem:[%s3 + $0x44] sm:$0xf]
  %v243 = vld [vmem:[%s3 + $0x48] sm:$0xf]
  %v244 = vld [vmem:[%s3 + $0x4c] sm:$0xf]
  %v245 = vld [vmem:[%s4] sm:$0x1]
  %v247 = vlaneseq
  %v248 = vshrl.u32 %v247, 7
  %v249 = vsub.s32 0, %v248
  %v250 = vrot.slane %v245, %v249
  %v272 = vunpack.c.l.b16 %v225
  %v273 = vunpack.c.l.b16 %v226
  %v274 = vunpack.c.l.b16 %v227
  %v275 = vunpack.c.l.b16 %v228
  %v276 = vunpack.c.l.b16 %v229
  %v277 = vunpack.c.l.b16 %v230
  %v278 = vunpack.c.l.b16 %v231
  %v279 = vunpack.c.l.b16 %v232
  %v280 = vunpack.c.l.b16 %v233
  %v281 = vunpack.c.l.b16 %v234
  %v282 = vunpack.c.l.b16 %v235
  %v283 = vunpack.c.l.b16 %v236
  %v284 = vunpack.c.l.b16 %v237
  %v285 = vunpack.c.l.b16 %v238
  %v286 = vunpack.c.l.b16 %v239
  %v287 = vunpack.c.l.b16 %v240
  %v288 = vunpack.c.l.b16 %v241
  %v289 = vunpack.c.l.b16 %v242
  %v290 = vunpack.c.l.b16 %v243
  %v291 = vunpack.c.l.b16 %v244
  %v292 = vpack.c.b16 %v273, %v272
  %v293 = vpack.c.b16 %v275, %v274
  %v294 = vpack.c.b16 %v277, %v276
  %v295 = vpack.c.b16 %v279, %v278
  %v296 = vpack.c.b16 %v281, %v280
  %v297 = vpack.c.b16 %v283, %v282
  %v298 = vpack.c.b16 %v285, %v284
  %v299 = vpack.c.b16 %v287, %v286
  %v300 = vpack.c.b16 %v289, %v288
  %v301 = vpack.c.b16 %v291, %v290
  %v313 = vsel %vm162, %v224, 0
  %315 = vmatprep.subr.bf16.mxu0 0
  %316 = vmatpush1.bf16.msra.mxu0 %v292
  %317 = vmatprep.subr.bf16.mxu0 0
  %318 = vmatpush1.bf16.msra.mxu0 %v293
  %319 = vmatprep.subr.bf16.mxu0 0
  %320 = vmatpush1.bf16.msra.mxu0 %v294
  %321 = vmatprep.subr.bf16.mxu0 0
  %322 = vmatpush1.bf16.msra.mxu0 %v295
  %323 = vmatprep.subr.bf16.mxu0 0
  %324 = vmatpush1.bf16.msra.mxu0 %v296
  %325 = vmatprep.subr.bf16.mxu0 0
  %326 = vmatpush1.bf16.msra.mxu0 %v297
  %327 = vmatprep.subr.bf16.mxu0 0
  %328 = vmatpush1.bf16.msra.mxu0 %v298
  %329 = vmatprep.subr.bf16.mxu0 0
  %330 = vmatpush1.bf16.msra.mxu0 %v299
  %331 = vmatprep.subr.bf16.mxu0 0
  %332 = vmatpush1.bf16.msra.mxu0 %v300
  %333 = vmatprep.subr.bf16.mxu0 0
  %334 = vmatpush1.bf16.msra.mxu0 %v301
  %335 = vmatprep.subr.bf16.mxu0 0
  %336 = vmatpush1.bf16.msra.mxu0 0
  %337 = vmatprep.subr.bf16.mxu0 0
  %338 = vmatpush1.bf16.msra.mxu0 0
  %339 = vmatprep.subr.bf16.mxu0 0
  %340 = vmatpush1.bf16.msra.mxu0 0
  %341 = vmatprep.subr.bf16.mxu0 0
  %342 = vmatpush1.bf16.msra.mxu0 0
  %343 = vmatprep.subr.bf16.mxu0 0
  %344 = vmatpush1.bf16.msra.mxu0 0
  %345 = vmatprep.subr.bf16.mxu0 0
  %346 = vmatpush1.bf16.msra.mxu0 0
  %347 = vmatprep.mubr.bf16.mxu0 %v313
  %348 = vmatmul.mubr.bf16.gmra.mrb[0].mxu0 %v223
  %v349 = vpop.f32.mrb[0].mxu0
  %v350 = vadd.f32 %v250, %v349
  %v351 = vpop.f32.mrb[0].mxu0
  %v352 = vpop.f32.mrb[0].mxu0
  %v353 = vpop.f32.mrb[0].mxu0
  %354 = vdwg.mxu0
  %v355 = vpack.c.bf16 %v350, %v350
  %vm356 = vcmask 257024
  %357 = vst.msk [vmem:[%s5] sm:$0xf] %vm356, %v355
  // Predicated region
  $region22: #{_lambda_.14} parent=0 // pred_check
    _
  $region23: #{_lambda_.14} parent=0 // pred_check_branch
    %359 = sbr.rel (0) target = $region25
  $region24: #{_lambda_.14} parent=0 // pred_region
    _
  $region25: #{_lambda_.14} parent=0 // pred_fallthru
    _
  // Predicated region
  $region26: #{_lambda_.14} parent=0 // pred_check
    _
  $region27: #{_lambda_.14} parent=0 // pred_check_branch
    %361 = sbr.rel (0) target = $region29
  $region28: #{_lambda_.14} parent=0 // pred_region
    _
  $region29: #{_lambda_.14} parent=0 // pred_fallthru
    _

// kernel: _lambda_.17
$region0: #{_lambda_.17}
  #allocation0 [shape = 'u32[]', space=smem, size = 0x4, offset = 0x4, fixed_abs, tag = 'smem constant byte address 0x4 - core index']
  #allocation1 [shape = 'u32[144,128]{1,0:T(1,128)}', space=vmem, size = 0x12000, scoped, tag = 'internal scratch']
  %s0 = inlined_call_operand.vmem [shape: bf16[10,32], index: 0, kind: input, shape index: {}]
  %s1 = inlined_call_operand.vmem [shape: f32[1,32], index: 1, kind: input, shape index: {}]
  %s2 = inlined_call_operand.vmem [shape: f32[1,32], index: 2, kind: input, shape index: {}]
  %s3 = inlined_call_operand.vmem [shape: bf16[10,32], index: 3, kind: output, shape index: {}]
  %s4 = sld [smem:[#allocation0]]
  $region22: #{_lambda_.17} parent=0
    _
  %s6 = ssub.s32 1, %s4
  %s7 = scalar_select 0, %s6, %s4
  // Predicated region
  $region2: #{_lambda_.17} parent=0 // pred_check
    _
  $region3: #{_lambda_.17} parent=0 // pred_check_branch
    %9 = sbr.rel (0) target = $region5
  $region4: #{_lambda_.17} parent=0 // pred_region
    _
  $region5: #{_lambda_.17} parent=0 // pred_fallthru
    _
  // Predicated region
  $region6: #{_lambda_.17} parent=0 // pred_check
    _
  $region7: #{_lambda_.17} parent=0 // pred_check_branch
    %11 = sbr.rel (0) target = $region9
  $region8: #{_lambda_.17} parent=0 // pred_region
    _
  $region9: #{_lambda_.17} parent=0 // pred_fallthru
    _
  // Predicated region
  $region10: #{_lambda_.17} parent=0 // pred_check
    _
  $region11: #{_lambda_.17} parent=0 // pred_check_branch
    %13 = sbr.rel (0) target = $region13
  $region12: #{_lambda_.17} parent=0 // pred_region
    _
  $region13: #{_lambda_.17} parent=0 // pred_fallthru
    _
  %v14 = vld [vmem:[%s0] sm:$0xf]
  %v15 = vld [vmem:[%s0 + $0x4] sm:$0x1]
  %v16 = vunpack.c.l.bf16 %v14
  %v17 = vunpack.c.l.bf16 %v15
  %v18 = vld [vmem:[%s1] sm:$0x1]
  %v19 = vld [vmem:[%s2] sm:$0x1]
  %vm20 = vcmask 261120
  %v21 = vsel %vm20, %v16, 0.0
  %22 = vadd.xlane.f32.xlu0 %v21
  %v23 = vpop.xlane.xlu0 %22
  %vm24 = vcmask 254976
  %v25 = vsel %vm24, %v17, 0.0
  %26 = vadd.xlane.f32.xlu0 %v25
  %v27 = vpop.xlane.xlu0 %26
  %v28 = vrcp.pop 32.0
  %v29 = vmul.f32 %v23, %v28
  %v30 = vmul.f32 %v27, %v28
  %v31 = vsub.f32 %v16, %v29
  %v32 = vsub.f32 %v17, %v30
  %v33 = vmul.f32 %v31, %v31
  %v34 = vmul.f32 %v32, %v32
  %v35 = vsel %vm20, %v33, 0.0
  %36 = vadd.xlane.f32.xlu0 %v35
  %v37 = vpop.xlane.xlu0 %36
  %v38 = vsel %vm24, %v34, 0.0
  %39 = vadd.xlane.f32.xlu0 %v38
  %v40 = vpop.xlane.xlu0 %39
  %v41 = vmul.f32 %v37, %v28
  %v42 = vmul.f32 %v40, %v28
  %v43 = vadd.f32 %v41, 1e-05
  %v44 = vadd.f32 %v42, 1e-05
  %v45 = vrsqrt.pop %v43
  %v46 = vrsqrt.pop %v44
  %v47 = vmul.f32 %v31, %v45
  %v48 = vmul.f32 %v32, %v46
  %v50 = vlaneseq
  %v51 = vshrl.u32 %v50, 7
  %v52 = vsub.s32 0, %v51
  %v53 = vrot.slane %v18, %v52
  %v55 = vmul.f32 %v47, %v53
  %v56 = vmul.f32 %v48, %v53
  %v58 = vlaneseq
  %v59 = vshrl.u32 %v58, 7
  %v60 = vsub.s32 0, %v59
  %v61 = vrot.slane %v19, %v60
  %v63 = vadd.f32 %v55, %v61
  %v64 = vadd.f32 %v56, %v61
  %v65 = vpack.c.bf16 %v64, %v63
  %v67 = vunpack.c.l.b16 %v65
  %v68 = vunpack.c.h.b16 %v65
  %v69 = vpack.c.b16 %v67, %v67
  %v70 = vpack.c.b16 %v68, %v68
  %vm73 = vcmask 257024
  %74 = vst.msk [vmem:[%s3] sm:$0xf] %vm73, %v69
  %vm75 = vcmask 253952
  %76 = vst.msk [vmem:[%s3 + $0x4] sm:$0x1] %vm75, %v70
  // Predicated region
  $region14: #{_lambda_.17} parent=0 // pred_check
    _
  $region15: #{_lambda_.17} parent=0 // pred_check_branch
    %78 = sbr.rel (0) target = $region17
  $region16: #{_lambda_.17} parent=0 // pred_region
    _
  $region17: #{_lambda_.17} parent=0 // pred_fallthru
    _
  // Predicated region
  $region18: #{_lambda_.17} parent=0 // pred_check
    _
  $region19: #{_lambda_.17} parent=0 // pred_check_branch
    %80 = sbr.rel (0) target = $region21
  $region20: #{_lambda_.17} parent=0 // pred_region
    _
  $region21: #{_lambda_.17} parent=0 // pred_fallthru
    _

// kernel: _lambda_.15
$region0: #{_lambda_.15}
  #allocation0 [shape = 'u32[]', space=smem, size = 0x4, offset = 0x4, fixed_abs, tag = 'smem constant byte address 0x4 - core index']
  #allocation1 [shape = 'u32[144,128]{1,0:T(1,128)}', space=vmem, size = 0x12000, scoped, tag = 'internal scratch']
  #allocation2 [shape = 'f32[5,2,8,32]{3,2,1,0:T(8,128)}', space=vmem, size = 0xa000, scoped, tag = 'scratch operand']
  #allocation3 [shape = 'f32[5,2,8,32]{3,2,1,0:T(8,128)}', space=vmem, size = 0xa000, scoped, tag = 'scratch operand']
  #allocation4 [shape = 'f32[5,2,8,32]{3,2,1,0:T(8,128)}', space=vmem, size = 0xa000, scoped, tag = 'scratch operand']
  #allocation5 [shape = 'f32[5,2,8,32]{3,2,1,0:T(8,128)}', space=vmem, size = 0xa000, scoped, tag = 'scratch operand']
  #allocation6 [shape = 'f32[5,2,8,32]{3,2,1,0:T(8,128)}', space=vmem, size = 0xa000, scoped, tag = 'scratch operand']
  #allocation7 [shape = 'f32[5,2,8,32]{3,2,1,0:T(8,128)}', space=vmem, size = 0xa000, scoped, tag = 'scratch operand']
  %s0 = inlined_call_operand.vmem [shape: bf16[5,2,32], index: 0, kind: input, shape index: {}]
  %s1 = inlined_call_operand.vmem [shape: bf16[32,128], index: 1, kind: input, shape index: {}]
  %s2 = inlined_call_operand.vmem [shape: f32[1,64], index: 2, kind: input, shape index: {}]
  %s3 = inlined_call_operand.vmem [shape: f32[1,64], index: 3, kind: input, shape index: {}]
  %s4 = inlined_call_operand.vmem [shape: f32[1,64], index: 4, kind: input, shape index: {}]
  %s5 = inlined_call_operand.vmem [shape: bf16[64,36], index: 5, kind: input, shape index: {}]
  %s6 = inlined_call_operand.vmem [shape: bf16[4,64], index: 6, kind: input, shape index: {}]
  %s7 = inlined_call_operand.vmem [shape: f32[1,64], index: 7, kind: input, shape index: {}]
  %s8 = inlined_call_operand.vmem [shape: f32[8,64], index: 8, kind: input, shape index: {}]
  %s9 = inlined_call_operand.vmem [shape: f32[1,64], index: 9, kind: input, shape index: {}]
  %s10 = inlined_call_operand.vmem [shape: bf16[64,32], index: 10, kind: input, shape index: {}]
  %s11 = inlined_call_operand.vmem [shape: bf16[5,2,32], index: 11, kind: output, shape index: {}]
  %s12 = sld [smem:[#allocation0]]
  $region61: #{_lambda_.15} parent=0
    _
  %s14 = ssub.s32 1, %s12
  %s15 = scalar_select 0, %s14, %s12
  // Predicated region
  $region2: #{_lambda_.15} parent=0 // pred_check
    _
  $region3: #{_lambda_.15} parent=0 // pred_check_branch
    %17 = sbr.rel (0) target = $region5
  $region4: #{_lambda_.15} parent=0 // pred_region
    _
  $region5: #{_lambda_.15} parent=0 // pred_fallthru
    _
  // Predicated region
  $region6: #{_lambda_.15} parent=0 // pred_check
    _
  $region7: #{_lambda_.15} parent=0 // pred_check_branch
    %19 = sbr.rel (0) target = $region9
  $region8: #{_lambda_.15} parent=0 // pred_region
    _
  $region9: #{_lambda_.15} parent=0 // pred_fallthru
    _
  // Predicated region
  $region10: #{_lambda_.15} parent=0 // pred_check
    _
  $region11: #{_lambda_.15} parent=0 // pred_check_branch
    %21 = sbr.rel (0) target = $region13
  $region12: #{_lambda_.15} parent=0 // pred_region
    _
  $region13: #{_lambda_.15} parent=0 // pred_fallthru
    _
  // Predicated region
  $region14: #{_lambda_.15} parent=0 // pred_check
    _
  $region15: #{_lambda_.15} parent=0 // pred_check_branch
    %23 = sbr.rel (0) target = $region17
  $region16: #{_lambda_.15} parent=0 // pred_region
    _
  $region17: #{_lambda_.15} parent=0 // pred_fallthru
    _
  // Predicated region
  $region18: #{_lambda_.15} parent=0 // pred_check
    _
  $region19: #{_lambda_.15} parent=0 // pred_check_branch
    %25 = sbr.rel (0) target = $region21
  $region20: #{_lambda_.15} parent=0 // pred_region
    _
  $region21: #{_lambda_.15} parent=0 // pred_fallthru
    _
  // Predicated region
  $region22: #{_lambda_.15} parent=0 // pred_check
    _
  $region23: #{_lambda_.15} parent=0 // pred_check_branch
    %27 = sbr.rel (0) target = $region25
  $region24: #{_lambda_.15} parent=0 // pred_region
    _
  $region25: #{_lambda_.15} parent=0 // pred_fallthru
    _
  // Predicated region
  $region26: #{_lambda_.15} parent=0 // pred_check
    _
  $region27: #{_lambda_.15} parent=0 // pred_check_branch
    %29 = sbr.rel (0) target = $region29
  $region28: #{_lambda_.15} parent=0 // pred_region
    _
  $region29: #{_lambda_.15} parent=0 // pred_fallthru
    _
  // Predicated region
  $region30: #{_lambda_.15} parent=0 // pred_check
    _
  $region31: #{_lambda_.15} parent=0 // pred_check_branch
    %31 = sbr.rel (0) target = $region33
  $region32: #{_lambda_.15} parent=0 // pred_region
    _
  $region33: #{_lambda_.15} parent=0 // pred_fallthru
    _
  // Predicated region
  $region34: #{_lambda_.15} parent=0 // pred_check
    _
  $region35: #{_lambda_.15} parent=0 // pred_check_branch
    %33 = sbr.rel (0) target = $region37
  $region36: #{_lambda_.15} parent=0 // pred_region
    _
  $region37: #{_lambda_.15} parent=0 // pred_fallthru
    _
  // Predicated region
  $region38: #{_lambda_.15} parent=0 // pred_check
    _
  $region39: #{_lambda_.15} parent=0 // pred_check_branch
    %35 = sbr.rel (0) target = $region41
  $region40: #{_lambda_.15} parent=0 // pred_region
    _
  $region41: #{_lambda_.15} parent=0 // pred_fallthru
    _
  // Predicated region
  $region42: #{_lambda_.15} parent=0 // pred_check
    _
  $region43: #{_lambda_.15} parent=0 // pred_check_branch
    %37 = sbr.rel (0) target = $region45
  $region44: #{_lambda_.15} parent=0 // pred_region
    _
  $region45: #{_lambda_.15} parent=0 // pred_fallthru
    _
  %v39 = vld [vmem:[%s0] sm:$0x1]
  %v40 = vld [vmem:[%s0 + $0x1] sm:$0x1]
  %v41 = vld [vmem:[%s0 + $0x2] sm:$0x1]
  %v42 = vld [vmem:[%s0 + $0x3] sm:$0x1]
  %v43 = vld [vmem:[%s0 + $0x4] sm:$0x1]
  %v44 = vld [vmem:[%s1] sm:$0xf]
  %v45 = vld [vmem:[%s1 + $0x4] sm:$0xf]
  %v46 = vld [vmem:[%s1 + $0x8] sm:$0xf]
  %v47 = vld [vmem:[%s1 + $0xc] sm:$0xf]
  %v53 = vcombine.low %v39, %v40
  %v54 = vcombine.low %v41, %v42
  %v56 = vunpack.c.l.s4 1966171168
  %v57 = vunpack.c.0.s8 %v56
  %v58 = vlaneseq
  %v59 = vshrl.u32 %v58, 7
  %v60 = vsub.s32 %v57, %v59
  %v61 = vrot.slane %v53, %v60
  %v63 = vunpack.c.l.s4 1966171168
  %v64 = vunpack.c.0.s8 %v63
  %v65 = vlaneseq
  %v66 = vshrl.u32 %v65, 7
  %v67 = vsub.s32 %v64, %v66
  %v68 = vrot.slane %v54, %v67
  %v70 = vunpack.c.l.s4 1966171168
  %v71 = vunpack.c.0.s8 %v70
  %v72 = vlaneseq
  %v73 = vshrl.u32 %v72, 7
  %v74 = vsub.s32 %v71, %v73
  %v75 = vrot.slane %v43, %v74
  %v76 = vcombine.low %v61, %v68
  %v78 = vunpack.c.l.s4 1966171168
  %v79 = vunpack.c.0.s8 %v78
  %v80 = vlaneseq
  %v81 = vshrl.u32 %v80, 7
  %v82 = vsub.s32 %v79, %v81
  %v83 = vrot.slane %v76, %v82
  %v85 = vunpack.c.l.s4 1966171168
  %v86 = vunpack.c.0.s8 %v85
  %v87 = vlaneseq
  %v88 = vshrl.u32 %v87, 7
  %v89 = vsub.s32 %v86, %v88
  %v90 = vrot.slane %v75, %v89
  %v91 = vcombine.low %v83, %v90
  %v96 = vunpack.c.l.b16 %v44
  %v97 = vunpack.c.l.b16 %v45
  %v98 = vunpack.c.l.b16 %v46
  %v99 = vunpack.c.l.b16 %v47
  %v100 = vpack.c.b16 %v97, %v96
  %v101 = vpack.c.b16 %v99, %v98
  %vm104 = vcmask 261120
  %v106 = vsel %vm104, %v91, 0
  %108 = vmatprep.subr.bf16.mxu0 0
  %109 = vmatpush1.bf16.msra.mxu0 %v100
  %110 = vmatprep.subr.bf16.mxu0 0
  %111 = vmatpush1.bf16.msra.mxu0 %v101
  %112 = vmatprep.subr.bf16.mxu0 0
  %113 = vmatpush1.bf16.msra.mxu0 0
  %114 = vmatprep.subr.bf16.mxu0 0
  %115 = vmatpush1.bf16.msra.mxu0 0
  %116 = vmatprep.subr.bf16.mxu0 0
  %117 = vmatpush1.bf16.msra.mxu0 0
  %118 = vmatprep.subr.bf16.mxu0 0
  %119 = vmatpush1.bf16.msra.mxu0 0
  %120 = vmatprep.subr.bf16.mxu0 0
  %121 = vmatpush1.bf16.msra.mxu0 0
  %122 = vmatprep.subr.bf16.mxu0 0
  %123 = vmatpush1.bf16.msra.mxu0 0
  %124 = vmatprep.subr.bf16.mxu0 0
  %125 = vmatpush1.bf16.msra.mxu0 0
  %126 = vmatprep.subr.bf16.mxu0 0
  %127 = vmatpush1.bf16.msra.mxu0 0
  %128 = vmatprep.subr.bf16.mxu0 0
  %129 = vmatpush1.bf16.msra.mxu0 0
  %130 = vmatprep.subr.bf16.mxu0 0
  %131 = vmatpush1.bf16.msra.mxu0 0
  %132 = vmatprep.subr.bf16.mxu0 0
  %133 = vmatpush1.bf16.msra.mxu0 0
  %134 = vmatprep.subr.bf16.mxu0 0
  %135 = vmatpush1.bf16.msra.mxu0 0
  %136 = vmatprep.subr.bf16.mxu0 0
  %137 = vmatpush1.bf16.msra.mxu0 0
  %138 = vmatprep.subr.bf16.mxu0 0
  %139 = vmatpush1.bf16.msra.mxu0 0
  %140 = vmatprep.mubr.bf16.mxu0 0
  %141 = vmatmul.mubr.bf16.gmra.mrb[0].mxu0 %v106
  %v142 = vpop.f32.mrb[0].mxu0
  %v143 = vadd.f32 0.0, %v142
  %v144 = vpop.f32.mrb[0].mxu0
  %v145 = vpop.f32.mrb[0].mxu0
  %v146 = vadd.f32 0.0, %v145
  %v147 = vpop.f32.mrb[0].mxu0
  %148 = vdwg.mxu0
  %v149 = vlaneseq
  %v150 = vshrl.u32 %v149, 7
  %v151 = vadd.s32 %v150, 8
  %v152 = vlaneseq
  %v153 = vand.u32 %v152, 127
  %vm154 = vcmp.lt.s32.totalorder %v150, 2
  %vm155 = vcmp.lt.s32.totalorder %v151, 2
  %vm156 = vcmask 1047554
  %v157 = vrot.slane %v143, 6
  %v158 = vsel %vm156, %v157, %v146
  %v159 = vrot.slane %v158, 6
  %v160 = vsel %vm156, %v159, %v157
  %v161 = vsel %vm154, 1, 0
  %v162 = vsel %vm155, 1, 0
  %vm163 = vcmp.eq.s32.totalorder %v161, 1
  %vm164 = vcmp.eq.s32.totalorder %v162, 1
  %v165 = vsel %vm163, 0.0, %v158
  %v166 = vsel %vm164, 0.0, %v160
  %vm167 = vcmp.ge.s32.totalorder %v150, 8
  %vm168 = vcmp.ge.s32.totalorder %v151, 8
  %v169 = vsel %vm167, 1, 0
  %v170 = vsel %vm168, 1, 0
  %vm171 = vcmp.eq.s32.totalorder %v169, 1
  %vm172 = vcmp.eq.s32.totalorder %v170, 1
  %vm175 = vcmask 1045504
  %v176 = vrot.slane %v143, 2
  %v177 = vrot.slane %v158, 2
  %v178 = vsel %vm175, %v176, %v177
  %v181 = vsel %vm171, 0.0, %v178
  %v182 = vsel %vm172, 0.0, %v177
  %vm183 = vcmp.lt.s32.totalorder %v153, 32
  %v184 = vsel %vm183, %v165, %v181
  %v185 = vsel %vm183, %v166, %v182
  %v186 = vld [vmem:[%s2] sm:$0x1]
  %v188 = vlaneseq
  %v189 = vshrl.u32 %v188, 7
  %v190 = vsub.s32 0, %v189
  %v191 = vrot.slane %v186, %v190
  %v193 = vmul.f32 %v143, %v191
  %v194 = vmul.f32 %v146, %v191
  %v195 = vld [vmem:[%s3] sm:$0x1]
  %v197 = vlaneseq
  %v198 = vshrl.u32 %v197, 7
  %v199 = vsub.s32 0, %v198
  %v200 = vrot.slane %v195, %v199
  %v202 = vmul.f32 %v184, %v200
  %v203 = vmul.f32 %v185, %v200
  %v204 = vadd.f32 %v193, %v202
  %v205 = vadd.f32 %v194, %v203
  %v206 = vld [vmem:[%s4] sm:$0x1]
  %v208 = vlaneseq
  %v209 = vshrl.u32 %v208, 7
  %v210 = vsub.s32 0, %v209
  %v211 = vrot.slane %v206, %v210
  %v213 = vadd.f32 %v204, %v211
  %v214 = vadd.f32 %v205, %v211
  %v215 = vsub.f32 0.0, %v213
  %v216 = vsub.f32 0.0, %v214
  %v217 = vmul.f32 %v215, 1.442695
  %v218 = vpow.pop %v217
  %v219 = vmul.f32 %v216, 1.442695
  %v220 = vpow.pop %v219
  %v221 = vadd.f32 %v218, 1.0
  %v222 = vadd.f32 %v220, 1.0
  %v223 = vrcp.pop %v221
  %v224 = vmul.f32 1.0, %v223
  %v225 = vrcp.pop %v222
  %v226 = vmul.f32 1.0, %v225
  %v227 = vmul.f32 %v213, %v224
  %v228 = vmul.f32 %v214, %v226
  %v229 = vpack.c.bf16 %v228, %v227
  %v230 = vld [vmem:[%s5] sm:$0xf]
  %v231 = vld [vmem:[%s5 + $0x4] sm:$0xf]
  %v232 = vld [vmem:[%s5 + $0x8] sm:$0xf]
  %v233 = vld [vmem:[%s5 + $0xc] sm:$0xf]
  %v234 = vld [vmem:[%s5 + $0x10] sm:$0xf]
  %v235 = vld [vmem:[%s5 + $0x14] sm:$0xf]
  %v236 = vld [vmem:[%s5 + $0x18] sm:$0xf]
  %v237 = vld [vmem:[%s5 + $0x1c] sm:$0xf]
  %v246 = vunpack.c.l.b16 %v230
  %v247 = vunpack.c.l.b16 %v231
  %v248 = vunpack.c.l.b16 %v232
  %v249 = vunpack.c.l.b16 %v233
  %v250 = vunpack.c.l.b16 %v234
  %v251 = vunpack.c.l.b16 %v235
  %v252 = vunpack.c.l.b16 %v236
  %v253 = vunpack.c.l.b16 %v237
  %v254 = vpack.c.b16 %v247, %v246
  %v255 = vpack.c.b16 %v249, %v248
  %v256 = vpack.c.b16 %v251, %v250
  %v257 = vpack.c.b16 %v253, %v252
  %vm262 = vcmask 523264
  %v264 = vsel %vm262, %v229, 0
  %266 = vmatprep.subr.bf16.mxu0 0
  %267 = vmatpush1.bf16.msra.mxu0 %v254
  %268 = vmatprep.subr.bf16.mxu0 0
  %269 = vmatpush1.bf16.msra.mxu0 %v255
  %270 = vmatprep.subr.bf16.mxu0 0
  %271 = vmatpush1.bf16.msra.mxu0 %v256
  %272 = vmatprep.subr.bf16.mxu0 0
  %273 = vmatpush1.bf16.msra.mxu0 %v257
  %274 = vmatprep.subr.bf16.mxu0 0
  %275 = vmatpush1.bf16.msra.mxu0 0
  %276 = vmatprep.subr.bf16.mxu0 0
  %277 = vmatpush1.bf16.msra.mxu0 0
  %278 = vmatprep.subr.bf16.mxu0 0
  %279 = vmatpush1.bf16.msra.mxu0 0
  %280 = vmatprep.subr.bf16.mxu0 0
  %281 = vmatpush1.bf16.msra.mxu0 0
  %282 = vmatprep.subr.bf16.mxu0 0
  %283 = vmatpush1.bf16.msra.mxu0 0
  %284 = vmatprep.subr.bf16.mxu0 0
  %285 = vmatpush1.bf16.msra.mxu0 0
  %286 = vmatprep.subr.bf16.mxu0 0
  %287 = vmatpush1.bf16.msra.mxu0 0
  %288 = vmatprep.subr.bf16.mxu0 0
  %289 = vmatpush1.bf16.msra.mxu0 0
  %290 = vmatprep.subr.bf16.mxu0 0
  %291 = vmatpush1.bf16.msra.mxu0 0
  %292 = vmatprep.subr.bf16.mxu0 0
  %293 = vmatpush1.bf16.msra.mxu0 0
  %294 = vmatprep.subr.bf16.mxu0 0
  %295 = vmatpush1.bf16.msra.mxu0 0
  %296 = vmatprep.subr.bf16.mxu0 0
  %297 = vmatpush1.bf16.msra.mxu0 0
  %298 = vmatprep.mubr.bf16.mxu0 0
  %299 = vmatmul.mubr.bf16.gmra.mrb[0].mxu0 %v264
  %v300 = vpop.f32.mrb[0].mxu0
  %v301 = vadd.f32 0.0, %v300
  %v302 = vpop.f32.mrb[0].mxu0
  %v303 = vpop.f32.mrb[0].mxu0
  %v304 = vadd.f32 0.0, %v303
  %v305 = vpop.f32.mrb[0].mxu0
  %306 = vdwg.mxu0
  %v307 = vpack.c.bf16 %v304, %v301
  %v308 = vld [vmem:[%s6] sm:$0x3]
  %v309 = vld [vmem:[%s7] sm:$0x1]
  %v311 = vlaneseq
  %v312 = vshrl.u32 %v311, 7
  %v313 = vsub.s32 0, %v312
  %v314 = vrot.slane %v309, %v313
  %vm316 = vcmask 31744
  %v318 = vsel %vm316, %v307, 0
  %vm320 = vcmask 1041408
  %v322 = vsel %vm320, %v308, 0
  %324 = vmatprep.subr.bf16.mxu0 0
  %325 = vmatpush1.bf16.msra.mxu0 %v322
  %326 = vmatprep.subr.bf16.mxu0 0
  %327 = vmatpush1.bf16.msra.mxu0 0
  %328 = vmatprep.subr.bf16.mxu0 0
  %329 = vmatpush1.bf16.msra.mxu0 0
  %330 = vmatprep.subr.bf16.mxu0 0
  %331 = vmatpush1.bf16.msra.mxu0 0
  %332 = vmatprep.subr.bf16.mxu0 0
  %333 = vmatpush1.bf16.msra.mxu0 0
  %334 = vmatprep.subr.bf16.mxu0 0
  %335 = vmatpush1.bf16.msra.mxu0 0
  %336 = vmatprep.subr.bf16.mxu0 0
  %337 = vmatpush1.bf16.msra.mxu0 0
  %338 = vmatprep.subr.bf16.mxu0 0
  %339 = vmatpush1.bf16.msra.mxu0 0
  %340 = vmatprep.subr.bf16.mxu0 0
  %341 = vmatpush1.bf16.msra.mxu0 0
  %342 = vmatprep.subr.bf16.mxu0 0
  %343 = vmatpush1.bf16.msra.mxu0 0
  %344 = vmatprep.subr.bf16.mxu0 0
  %345 = vmatpush1.bf16.msra.mxu0 0
  %346 = vmatprep.subr.bf16.mxu0 0
  %347 = vmatpush1.bf16.msra.mxu0 0
  %348 = vmatprep.subr.bf16.mxu0 0
  %349 = vmatpush1.bf16.msra.mxu0 0
  %350 = vmatprep.subr.bf16.mxu0 0
  %351 = vmatpush1.bf16.msra.mxu0 0
  %352 = vmatprep.subr.bf16.mxu0 0
  %353 = vmatpush1.bf16.msra.mxu0 0
  %354 = vmatprep.subr.bf16.mxu0 0
  %355 = vmatpush1.bf16.msra.mxu0 0
  %356 = vmatprep.mubr.bf16.mxu0 0
  %357 = vmatmul.mubr.bf16.gmra.mrb[0].mxu0 %v318
  %v358 = vpop.f32.mrb[0].mxu0
  %v359 = vadd.f32 %v314, %v358
  %v360 = vpop.f32.mrb[0].mxu0
  %v361 = vpop.f32.mrb[0].mxu0
  %v362 = vadd.f32 %v314, %v361
  %v363 = vpop.f32.mrb[0].mxu0
  %364 = vdwg.mxu0
  %v365 = vmax.f32 %v359, 0.0
  %v366 = vmax.f32 %v362, 0.0
  %v367 = vand.u32 2147483647, %v359
  %v368 = vand.u32 2147483647, %v362
  %v369 = vsub.f32 0.0, %v367
  %v370 = vsub.f32 0.0, %v368
  %v371 = vmul.f32 %v369, 1.442695
  %v372 = vpow.pop %v371
  %v373 = vmul.f32 %v370, 1.442695
  %v374 = vpow.pop %v373
  %v375 = vadd.f32 %v372, 1.0
  %v376 = vadd.f32 %v374, 1.0
  %v377 = vlog2.pop %v375
  %v378 = vmul.f32 %v377, 0.6931472
  %v379 = vlog2.pop %v376
  %v380 = vmul.f32 %v379, 0.6931472
  %v381 = vadd.f32 %v365, %v378
  %v382 = vadd.f32 %v366, %v380
  %v383 = vmul.f32 %v381, %v227
  %v384 = vmul.f32 %v382, %v228
  %v385 = vld [vmem:[%s8] sm:$0xff]
  %v388 = vcombine.high %v381, %v381
  %v390 = vunpack.c.l.s4 1966171168
  %v391 = vunpack.c.0.s8 %v390
  %v392 = vlaneseq
  %v393 = vshrl.u32 %v392, 7
  %v394 = vsub.s32 %v391, %v393
  %v395 = vrot.slane %v381, %v394
  %v397 = vunpack.c.l.s4 1966171168
  %v398 = vunpack.c.0.s8 %v397
  %v399 = vlaneseq
  %v400 = vshrl.u32 %v399, 7
  %v401 = vsub.s32 %v398, %v400
  %v402 = vrot.slane %v388, %v401
  %v403 = vcombine.high %v395, %v395
  %v404 = vcombine.high %v402, %v402
  %v406 = vunpack.c.l.s4 1966171168
  %v407 = vunpack.c.0.s8 %v406
  %v408 = vlaneseq
  %v409 = vshrl.u32 %v408, 7
  %v410 = vsub.s32 %v407, %v409
  %v411 = vrot.slane %v395, %v410
  %v413 = vunpack.c.l.s4 1966171168
  %v414 = vunpack.c.0.s8 %v413
  %v415 = vlaneseq
  %v416 = vshrl.u32 %v415, 7
  %v417 = vsub.s32 %v414, %v416
  %v418 = vrot.slane %v402, %v417
  %v420 = vunpack.c.l.s4 1966171168
  %v421 = vunpack.c.0.s8 %v420
  %v422 = vlaneseq
  %v423 = vshrl.u32 %v422, 7
  %v424 = vsub.s32 %v421, %v423
  %v425 = vrot.slane %v403, %v424
  %v427 = vunpack.c.l.s4 1966171168
  %v428 = vunpack.c.0.s8 %v427
  %v429 = vlaneseq
  %v430 = vshrl.u32 %v429, 7
  %v431 = vsub.s32 %v428, %v430
  %v432 = vrot.slane %v404, %v431
  %v433 = vcombine.high %v411, %v411
  %v434 = vcombine.high %v418, %v418
  %v435 = vcombine.high %v425, %v425
  %v436 = vcombine.high %v432, %v432
  %v438 = vunpack.c.l.s4 1966171168
  %v439 = vunpack.c.0.s8 %v438
  %v440 = vlaneseq
  %v441 = vshrl.u32 %v440, 7
  %v442 = vsub.s32 %v439, %v441
  %v443 = vrot.slane %v382, %v442
  %v444 = vcombine.high %v443, %v443
  %v446 = vunpack.c.l.s4 1966171168
  %v447 = vunpack.c.0.s8 %v446
  %v448 = vlaneseq
  %v449 = vshrl.u32 %v448, 7
  %v450 = vsub.s32 %v447, %v449
  %v451 = vrot.slane %v443, %v450
  %v453 = vunpack.c.l.s4 1966171168
  %v454 = vunpack.c.0.s8 %v453
  %v455 = vlaneseq
  %v456 = vshrl.u32 %v455, 7
  %v457 = vsub.s32 %v454, %v456
  %v458 = vrot.slane %v444, %v457
  %v459 = vlaneseq
  %v460 = vshrl.u32 %v459, 7
  %v461 = vsub.s32 0, %v460
  %v462 = vrot.slane %v411, %v461
  %v463 = vlaneseq
  %v464 = vshrl.u32 %v463, 7
  %v465 = vsub.s32 0, %v464
  %v466 = vrot.slane %v425, %v465
  %v467 = vlaneseq
  %v468 = vshrl.u32 %v467, 7
  %v469 = vsub.s32 0, %v468
  %v470 = vrot.slane %v433, %v469
  %v471 = vlaneseq
  %v472 = vshrl.u32 %v471, 7
  %v473 = vsub.s32 0, %v472
  %v474 = vrot.slane %v435, %v473
  %v475 = vlaneseq
  %v476 = vshrl.u32 %v475, 7
  %v477 = vsub.s32 0, %v476
  %v478 = vrot.slane %v418, %v477
  %v479 = vlaneseq
  %v480 = vshrl.u32 %v479, 7
  %v481 = vsub.s32 0, %v480
  %v482 = vrot.slane %v432, %v481
  %v483 = vlaneseq
  %v484 = vshrl.u32 %v483, 7
  %v485 = vsub.s32 0, %v484
  %v486 = vrot.slane %v434, %v485
  %v487 = vlaneseq
  %v488 = vshrl.u32 %v487, 7
  %v489 = vsub.s32 0, %v488
  %v490 = vrot.slane %v436, %v489
  %v491 = vlaneseq
  %v492 = vshrl.u32 %v491, 7
  %v493 = vsub.s32 0, %v492
  %v494 = vrot.slane %v451, %v493
  %v495 = vlaneseq
  %v496 = vshrl.u32 %v495, 7
  %v497 = vsub.s32 0, %v496
  %v498 = vrot.slane %v458, %v497
  %v509 = vmul.f32 %v462, %v385
  %v510 = vmul.f32 %v466, %v385
  %v511 = vmul.f32 %v470, %v385
  %v512 = vmul.f32 %v474, %v385
  %v513 = vmul.f32 %v478, %v385
  %v514 = vmul.f32 %v482, %v385
  %v515 = vmul.f32 %v486, %v385
  %v516 = vmul.f32 %v490, %v385
  %v517 = vmul.f32 %v494, %v385
  %v518 = vmul.f32 %v498, %v385
  %v519 = vmul.f32 %v509, 1.442695
  %v520 = vpow.pop %v519
  %v521 = vmul.f32 %v510, 1.442695
  %v522 = vpow.pop %v521
  %v523 = vmul.f32 %v511, 1.442695
  %v524 = vpow.pop %v523
  %v525 = vmul.f32 %v512, 1.442695
  %v526 = vpow.pop %v525
  %v527 = vmul.f32 %v513, 1.442695
  %v528 = vpow.pop %v527
  %v529 = vmul.f32 %v514, 1.442695
  %v530 = vpow.pop %v529
  %v531 = vmul.f32 %v515, 1.442695
  %v532 = vpow.pop %v531
  %v533 = vmul.f32 %v516, 1.442695
  %v534 = vpow.pop %v533
  %v535 = vmul.f32 %v517, 1.442695
  %v536 = vpow.pop %v535
  %v537 = vmul.f32 %v518, 1.442695
  %v538 = vpow.pop %v537
  %v539 = vlaneseq
  %v540 = vshrl.u32 %v539, 7
  %v541 = vsub.s32 0, %v540
  %v542 = vrot.slane %v301, %v541
  %s544 = sor.u32 256, 4
  %545 = vbcast.lane.b32.xlu0 %v542, %s544
  %v546 = vpop.permute.xlu0 %545
  %v547 = vlaneseq
  %v548 = vshrl.u32 %v547, 7
  %v549 = vsub.s32 1, %v548
  %v550 = vrot.slane %v301, %v549
  %s552 = sor.u32 256, 4
  %553 = vbcast.lane.b32.xlu0 %v550, %s552
  %v554 = vpop.permute.xlu0 %553
  %v555 = vlaneseq
  %v556 = vshrl.u32 %v555, 7
  %v557 = vsub.s32 2, %v556
  %v558 = vrot.slane %v301, %v557
  %s560 = sor.u32 256, 4
  %561 = vbcast.lane.b32.xlu0 %v558, %s560
  %v562 = vpop.permute.xlu0 %561
  %v563 = vlaneseq
  %v564 = vshrl.u32 %v563, 7
  %v565 = vsub.s32 3, %v564
  %v566 = vrot.slane %v301, %v565
  %s568 = sor.u32 256, 4
  %569 = vbcast.lane.b32.xlu0 %v566, %s568
  %v570 = vpop.permute.xlu0 %569
  %v571 = vlaneseq
  %v572 = vshrl.u32 %v571, 7
  %v573 = vsub.s32 4, %v572
  %v574 = vrot.slane %v301, %v573
  %s576 = sor.u32 256, 4
  %577 = vbcast.lane.b32.xlu0 %v574, %s576
  %v578 = vpop.permute.xlu0 %577
  %v579 = vlaneseq
  %v580 = vshrl.u32 %v579, 7
  %v581 = vsub.s32 5, %v580
  %v582 = vrot.slane %v301, %v581
  %s584 = sor.u32 256, 4
  %585 = vbcast.lane.b32.xlu0 %v582, %s584
  %v586 = vpop.permute.xlu0 %585
  %v587 = vlaneseq
  %v588 = vshrl.u32 %v587, 7
  %v589 = vsub.s32 6, %v588
  %v590 = vrot.slane %v301, %v589
  %s592 = sor.u32 256, 4
  %593 = vbcast.lane.b32.xlu0 %v590, %s592
  %v594 = vpop.permute.xlu0 %593
  %v595 = vlaneseq
  %v596 = vshrl.u32 %v595, 7
  %v597 = vsub.s32 7, %v596
  %v598 = vrot.slane %v301, %v597
  %s600 = sor.u32 256, 4
  %601 = vbcast.lane.b32.xlu0 %v598, %s600
  %v602 = vpop.permute.xlu0 %601
  %v603 = vlaneseq
  %v604 = vshrl.u32 %v603, 7
  %v605 = vsub.s32 0, %v604
  %v606 = vrot.slane %v304, %v605
  %s608 = sor.u32 256, 4
  %609 = vbcast.lane.b32.xlu0 %v606, %s608
  %v610 = vpop.permute.xlu0 %609
  %v611 = vlaneseq
  %v612 = vshrl.u32 %v611, 7
  %v613 = vsub.s32 1, %v612
  %v614 = vrot.slane %v304, %v613
  %s616 = sor.u32 256, 4
  %617 = vbcast.lane.b32.xlu0 %v614, %s616
  %v618 = vpop.permute.xlu0 %617
  %s620 = sor.u32 256, 12
  %621 = vbcast.lane.b32.xlu0 %v542, %s620
  %v622 = vpop.permute.xlu0 %621
  %s624 = sor.u32 256, 12
  %625 = vbcast.lane.b32.xlu0 %v550, %s624
  %v626 = vpop.permute.xlu0 %625
  %s628 = sor.u32 256, 12
  %629 = vbcast.lane.b32.xlu0 %v558, %s628
  %v630 = vpop.permute.xlu0 %629
  %s632 = sor.u32 256, 12
  %633 = vbcast.lane.b32.xlu0 %v566, %s632
  %v634 = vpop.permute.xlu0 %633
  %s636 = sor.u32 256, 12
  %637 = vbcast.lane.b32.xlu0 %v574, %s636
  %v638 = vpop.permute.xlu0 %637
  %s640 = sor.u32 256, 12
  %641 = vbcast.lane.b32.xlu0 %v582, %s640
  %v642 = vpop.permute.xlu0 %641
  %s644 = sor.u32 256, 12
  %645 = vbcast.lane.b32.xlu0 %v590, %s644
  %v646 = vpop.permute.xlu0 %645
  %s648 = sor.u32 256, 12
  %649 = vbcast.lane.b32.xlu0 %v598, %s648
  %v650 = vpop.permute.xlu0 %649
  %s652 = sor.u32 256, 12
  %653 = vbcast.lane.b32.xlu0 %v606, %s652
  %v654 = vpop.permute.xlu0 %653
  %s656 = sor.u32 256, 12
  %657 = vbcast.lane.b32.xlu0 %v614, %s656
  %v658 = vpop.permute.xlu0 %657
  %s660 = sor.u32 256, 20
  %661 = vbcast.lane.b32.xlu0 %v542, %s660
  %v662 = vpop.permute.xlu0 %661
  %s664 = sor.u32 256, 20
  %665 = vbcast.lane.b32.xlu0 %v550, %s664
  %v666 = vpop.permute.xlu0 %665
  %s668 = sor.u32 256, 20
  %669 = vbcast.lane.b32.xlu0 %v558, %s668
  %v670 = vpop.permute.xlu0 %669
  %s672 = sor.u32 256, 20
  %673 = vbcast.lane.b32.xlu0 %v566, %s672
  %v674 = vpop.permute.xlu0 %673
  %s676 = sor.u32 256, 20
  %677 = vbcast.lane.b32.xlu0 %v574, %s676
  %v678 = vpop.permute.xlu0 %677
  %s680 = sor.u32 256, 20
  %681 = vbcast.lane.b32.xlu0 %v582, %s680
  %v682 = vpop.permute.xlu0 %681
  %s684 = sor.u32 256, 20
  %685 = vbcast.lane.b32.xlu0 %v590, %s684
  %v686 = vpop.permute.xlu0 %685
  %s688 = sor.u32 256, 20
  %689 = vbcast.lane.b32.xlu0 %v598, %s688
  %v690 = vpop.permute.xlu0 %689
  %s692 = sor.u32 256, 20
  %693 = vbcast.lane.b32.xlu0 %v606, %s692
  %v694 = vpop.permute.xlu0 %693
  %s696 = sor.u32 256, 20
  %697 = vbcast.lane.b32.xlu0 %v614, %s696
  %v698 = vpop.permute.xlu0 %697
  %s700 = sor.u32 256, 28
  %701 = vbcast.lane.b32.xlu0 %v542, %s700
  %v702 = vpop.permute.xlu0 %701
  %s704 = sor.u32 256, 28
  %705 = vbcast.lane.b32.xlu0 %v550, %s704
  %v706 = vpop.permute.xlu0 %705
  %s708 = sor.u32 256, 28
  %709 = vbcast.lane.b32.xlu0 %v558, %s708
  %v710 = vpop.permute.xlu0 %709
  %s712 = sor.u32 256, 28
  %713 = vbcast.lane.b32.xlu0 %v566, %s712
  %v714 = vpop.permute.xlu0 %713
  %s716 = sor.u32 256, 28
  %717 = vbcast.lane.b32.xlu0 %v574, %s716
  %v718 = vpop.permute.xlu0 %717
  %s720 = sor.u32 256, 28
  %721 = vbcast.lane.b32.xlu0 %v582, %s720
  %v722 = vpop.permute.xlu0 %721
  %s724 = sor.u32 256, 28
  %725 = vbcast.lane.b32.xlu0 %v590, %s724
  %v726 = vpop.permute.xlu0 %725
  %s728 = sor.u32 256, 28
  %729 = vbcast.lane.b32.xlu0 %v598, %s728
  %v730 = vpop.permute.xlu0 %729
  %s732 = sor.u32 256, 28
  %733 = vbcast.lane.b32.xlu0 %v606, %s732
  %v734 = vpop.permute.xlu0 %733
  %s736 = sor.u32 256, 28
  %737 = vbcast.lane.b32.xlu0 %v614, %s736
  %v738 = vpop.permute.xlu0 %737
  %739 = vst.msk [vmem:[#allocation2] sm:$0xff] %vm104, %v520
  %740 = vst.msk [vmem:[#allocation2 + $0x8] sm:$0xff] %vm104, %v522
  %741 = vst.msk [vmem:[#allocation2 + $0x10] sm:$0xff] %vm104, %v524
  %742 = vst.msk [vmem:[#allocation2 + $0x18] sm:$0xff] %vm104, %v526
  %743 = vst.msk [vmem:[#allocation2 + $0x20] sm:$0xff] %vm104, %v528
  %744 = vst.msk [vmem:[#allocation2 + $0x28] sm:$0xff] %vm104, %v530
  %745 = vst.msk [vmem:[#allocation2 + $0x30] sm:$0xff] %vm104, %v532
  %746 = vst.msk [vmem:[#allocation2 + $0x38] sm:$0xff] %vm104, %v534
  %747 = vst.msk [vmem:[#allocation2 + $0x40] sm:$0xff] %vm104, %v536
  %748 = vst.msk [vmem:[#allocation2 + $0x48] sm:$0xff] %vm104, %v538
  %759 = vrot.lane.b32.xlu0 %v520, 96
  %v760 = vpop.permute.xlu0 %759
  %761 = vrot.lane.b32.xlu0 %v522, 96
  %v762 = vpop.permute.xlu0 %761
  %763 = vrot.lane.b32.xlu0 %v524, 96
  %v764 = vpop.permute.xlu0 %763
  %765 = vrot.lane.b32.xlu0 %v526, 96
  %v766 = vpop.permute.xlu0 %765
  %767 = vrot.lane.b32.xlu0 %v528, 96
  %v768 = vpop.permute.xlu0 %767
  %769 = vrot.lane.b32.xlu0 %v530, 96
  %v770 = vpop.permute.xlu0 %769
  %771 = vrot.lane.b32.xlu0 %v532, 96
  %v772 = vpop.permute.xlu0 %771
  %773 = vrot.lane.b32.xlu0 %v534, 96
  %v774 = vpop.permute.xlu0 %773
  %775 = vrot.lane.b32.xlu0 %v536, 96
  %v776 = vpop.permute.xlu0 %775
  %777 = vrot.lane.b32.xlu0 %v538, 96
  %v778 = vpop.permute.xlu0 %777
  %789 = vst.msk [vmem:[#allocation3] sm:$0xff] %vm104, %v760
  %790 = vst.msk [vmem:[#allocation3 + $0x8] sm:$0xff] %vm104, %v762
  %791 = vst.msk [vmem:[#allocation3 + $0x10] sm:$0xff] %vm104, %v764
  %792 = vst.msk [vmem:[#allocation3 + $0x18] sm:$0xff] %vm104, %v766
  %793 = vst.msk [vmem:[#allocation3 + $0x20] sm:$0xff] %vm104, %v768
  %794 = vst.msk [vmem:[#allocation3 + $0x28] sm:$0xff] %vm104, %v770
  %795 = vst.msk [vmem:[#allocation3 + $0x30] sm:$0xff] %vm104, %v772
  %796 = vst.msk [vmem:[#allocation3 + $0x38] sm:$0xff] %vm104, %v774
  %797 = vst.msk [vmem:[#allocation3 + $0x40] sm:$0xff] %vm104, %v776
  %798 = vst.msk [vmem:[#allocation3 + $0x48] sm:$0xff] %vm104, %v778
  %v801 = vcombine.high %v383, %v383
  %v803 = vunpack.c.l.s4 1966171168
  %v804 = vunpack.c.0.s8 %v803
  %v805 = vlaneseq
  %v806 = vshrl.u32 %v805, 7
  %v807 = vsub.s32 %v804, %v806
  %v808 = vrot.slane %v383, %v807
  %v810 = vunpack.c.l.s4 1966171168
  %v811 = vunpack.c.0.s8 %v810
  %v812 = vlaneseq
  %v813 = vshrl.u32 %v812, 7
  %v814 = vsub.s32 %v811, %v813
  %v815 = vrot.slane %v801, %v814
  %v816 = vcombine.high %v808, %v808
  %v817 = vcombine.high %v815, %v815
  %v819 = vunpack.c.l.s4 1966171168
  %v820 = vunpack.c.0.s8 %v819
  %v821 = vlaneseq
  %v822 = vshrl.u32 %v821, 7
  %v823 = vsub.s32 %v820, %v822
  %v824 = vrot.slane %v808, %v823
  %v826 = vunpack.c.l.s4 1966171168
  %v827 = vunpack.c.0.s8 %v826
  %v828 = vlaneseq
  %v829 = vshrl.u32 %v828, 7
  %v830 = vsub.s32 %v827, %v829
  %v831 = vrot.slane %v815, %v830
  %v833 = vunpack.c.l.s4 1966171168
  %v834 = vunpack.c.0.s8 %v833
  %v835 = vlaneseq
  %v836 = vshrl.u32 %v835, 7
  %v837 = vsub.s32 %v834, %v836
  %v838 = vrot.slane %v816, %v837
  %v840 = vunpack.c.l.s4 1966171168
  %v841 = vunpack.c.0.s8 %v840
  %v842 = vlaneseq
  %v843 = vshrl.u32 %v842, 7
  %v844 = vsub.s32 %v841, %v843
  %v845 = vrot.slane %v817, %v844
  %v846 = vcombine.high %v824, %v824
  %v847 = vcombine.high %v831, %v831
  %v848 = vcombine.high %v838, %v838
  %v849 = vcombine.high %v845, %v845
  %v851 = vunpack.c.l.s4 1966171168
  %v852 = vunpack.c.0.s8 %v851
  %v853 = vlaneseq
  %v854 = vshrl.u32 %v853, 7
  %v855 = vsub.s32 %v852, %v854
  %v856 = vrot.slane %v384, %v855
  %v857 = vcombine.high %v856, %v856
  %v859 = vunpack.c.l.s4 1966171168
  %v860 = vunpack.c.0.s8 %v859
  %v861 = vlaneseq
  %v862 = vshrl.u32 %v861, 7
  %v863 = vsub.s32 %v860, %v862
  %v864 = vrot.slane %v856, %v863
  %v866 = vunpack.c.l.s4 1966171168
  %v867 = vunpack.c.0.s8 %v866
  %v868 = vlaneseq
  %v869 = vshrl.u32 %v868, 7
  %v870 = vsub.s32 %v867, %v869
  %v871 = vrot.slane %v857, %v870
  %v872 = vlaneseq
  %v873 = vshrl.u32 %v872, 7
  %v874 = vsub.s32 0, %v873
  %v875 = vrot.slane %v824, %v874
  %v876 = vlaneseq
  %v877 = vshrl.u32 %v876, 7
  %v878 = vsub.s32 0, %v877
  %v879 = vrot.slane %v838, %v878
  %v880 = vlaneseq
  %v881 = vshrl.u32 %v880, 7
  %v882 = vsub.s32 0, %v881
  %v883 = vrot.slane %v846, %v882
  %v884 = vlaneseq
  %v885 = vshrl.u32 %v884, 7
  %v886 = vsub.s32 0, %v885
  %v887 = vrot.slane %v848, %v886
  %v888 = vlaneseq
  %v889 = vshrl.u32 %v888, 7
  %v890 = vsub.s32 0, %v889
  %v891 = vrot.slane %v831, %v890
  %v892 = vlaneseq
  %v893 = vshrl.u32 %v892, 7
  %v894 = vsub.s32 0, %v893
  %v895 = vrot.slane %v845, %v894
  %v896 = vlaneseq
  %v897 = vshrl.u32 %v896, 7
  %v898 = vsub.s32 0, %v897
  %v899 = vrot.slane %v847, %v898
  %v900 = vlaneseq
  %v901 = vshrl.u32 %v900, 7
  %v902 = vsub.s32 0, %v901
  %v903 = vrot.slane %v849, %v902
  %v904 = vlaneseq
  %v905 = vshrl.u32 %v904, 7
  %v906 = vsub.s32 0, %v905
  %v907 = vrot.slane %v864, %v906
  %v908 = vlaneseq
  %v909 = vshrl.u32 %v908, 7
  %v910 = vsub.s32 0, %v909
  %v911 = vrot.slane %v871, %v910
  %v922 = vmul.f32 %v546, %v875
  %v923 = vmul.f32 %v554, %v879
  %v924 = vmul.f32 %v562, %v883
  %v925 = vmul.f32 %v570, %v887
  %v926 = vmul.f32 %v578, %v891
  %v927 = vmul.f32 %v586, %v895
  %v928 = vmul.f32 %v594, %v899
  %v929 = vmul.f32 %v602, %v903
  %v930 = vmul.f32 %v610, %v907
  %v931 = vmul.f32 %v618, %v911
  %932 = vst.msk [vmem:[#allocation4] sm:$0xff] %vm104, %v922
  %933 = vst.msk [vmem:[#allocation4 + $0x8] sm:$0xff] %vm104, %v923
  %934 = vst.msk [vmem:[#allocation4 + $0x10] sm:$0xff] %vm104, %v924
  %935 = vst.msk [vmem:[#allocation4 + $0x18] sm:$0xff] %vm104, %v925
  %936 = vst.msk [vmem:[#allocation4 + $0x20] sm:$0xff] %vm104, %v926
  %937 = vst.msk [vmem:[#allocation4 + $0x28] sm:$0xff] %vm104, %v927
  %938 = vst.msk [vmem:[#allocation4 + $0x30] sm:$0xff] %vm104, %v928
  %939 = vst.msk [vmem:[#allocation4 + $0x38] sm:$0xff] %vm104, %v929
  %940 = vst.msk [vmem:[#allocation4 + $0x40] sm:$0xff] %vm104, %v930
  %941 = vst.msk [vmem:[#allocation4 + $0x48] sm:$0xff] %vm104, %v931
  %v942 = vmul.f32 %v662, %v875
  %v943 = vmul.f32 %v666, %v879
  %v944 = vmul.f32 %v670, %v883
  %v945 = vmul.f32 %v674, %v887
  %v946 = vmul.f32 %v678, %v891
  %v947 = vmul.f32 %v682, %v895
  %v948 = vmul.f32 %v686, %v899
  %v949 = vmul.f32 %v690, %v903
  %v950 = vmul.f32 %v694, %v907
  %v951 = vmul.f32 %v698, %v911
  %962 = vrot.lane.b32.xlu0 %v942, 96
  %v963 = vpop.permute.xlu0 %962
  %964 = vrot.lane.b32.xlu0 %v943, 96
  %v965 = vpop.permute.xlu0 %964
  %966 = vrot.lane.b32.xlu0 %v944, 96
  %v967 = vpop.permute.xlu0 %966
  %968 = vrot.lane.b32.xlu0 %v945, 96
  %v969 = vpop.permute.xlu0 %968
  %970 = vrot.lane.b32.xlu0 %v946, 96
  %v971 = vpop.permute.xlu0 %970
  %972 = vrot.lane.b32.xlu0 %v947, 96
  %v973 = vpop.permute.xlu0 %972
  %974 = vrot.lane.b32.xlu0 %v948, 96
  %v975 = vpop.permute.xlu0 %974
  %976 = vrot.lane.b32.xlu0 %v949, 96
  %v977 = vpop.permute.xlu0 %976
  %978 = vrot.lane.b32.xlu0 %v950, 96
  %v979 = vpop.permute.xlu0 %978
  %980 = vrot.lane.b32.xlu0 %v951, 96
  %v981 = vpop.permute.xlu0 %980
  %992 = vst.msk [vmem:[#allocation5] sm:$0xff] %vm104, %v963
  %993 = vst.msk [vmem:[#allocation5 + $0x8] sm:$0xff] %vm104, %v965
  %994 = vst.msk [vmem:[#allocation5 + $0x10] sm:$0xff] %vm104, %v967
  %995 = vst.msk [vmem:[#allocation5 + $0x18] sm:$0xff] %vm104, %v969
  %996 = vst.msk [vmem:[#allocation5 + $0x20] sm:$0xff] %vm104, %v971
  %997 = vst.msk [vmem:[#allocation5 + $0x28] sm:$0xff] %vm104, %v973
  %998 = vst.msk [vmem:[#allocation5 + $0x30] sm:$0xff] %vm104, %v975
  %999 = vst.msk [vmem:[#allocation5 + $0x38] sm:$0xff] %vm104, %v977
  %1000 = vst.msk [vmem:[#allocation5 + $0x40] sm:$0xff] %vm104, %v979
  %1001 = vst.msk [vmem:[#allocation5 + $0x48] sm:$0xff] %vm104, %v981
  loop: start=0, step=1, limit=5
  $region46: #{_lambda_.15} parent=0 // loop_pre_header
    _
  $region47: #{_lambda_.15} parent=0 // loop_header
    %s1003 = sphi 0, %s1007
    %p1004 = scmp.ge.s32.totalorder %s1003, 5
    %v1008 = vphi 0.0, %v1022
    %v1009 = vphi 0.0, %v1023
    %v1010 = vphi 0.0, %v1033
    %v1011 = vphi 0.0, %v1034
  $region48: #{_lambda_.15} parent=0 // loop_header_branch
    %1006 = sbr.rel (%p1004) target = $region52
  $region49: #{_lambda_.15} parent=0 // loop_body
    %s1012 = ssub.s32 4, %s1003
    %s1013 = smul.u32 %s1003, 16
    %s1014 = scalar_lea.vmem [#allocation2], %s1013
    %v1015 = vld [vmem:[%s1014] sm:$0xff]
    %v1016 = vld [vmem:[%s1014 + $0x8] sm:$0xff]
    %v1017 = vmul.f32 %v1015, %v1008
    %v1018 = vmul.f32 %v1016, %v1009
    %s1019 = scalar_lea.vmem [#allocation4], %s1013
    %v1020 = vld [vmem:[%s1019] sm:$0xff]
    %v1021 = vld [vmem:[%s1019 + $0x8] sm:$0xff]
    %v1022 = vadd.f32 %v1017, %v1020
    %v1023 = vadd.f32 %v1018, %v1021
    %s1024 = smul.u32 %s1012, 16
    %s1025 = scalar_lea.vmem [#allocation3], %s1024
    %v1026 = vld [vmem:[%s1025] sm:$0xff]
    %v1027 = vld [vmem:[%s1025 + $0x8] sm:$0xff]
    %v1028 = vmul.f32 %v1026, %v1010
    %v1029 = vmul.f32 %v1027, %v1011
    %s1030 = scalar_lea.vmem [#allocation5], %s1024
    %v1031 = vld [vmem:[%s1030] sm:$0xff]
    %v1032 = vld [vmem:[%s1030 + $0x8] sm:$0xff]
    %v1033 = vadd.f32 %v1028, %v1031
    %v1034 = vadd.f32 %v1029, %v1032
    %s1035 = scalar_lea.vmem [#allocation6], %s1013
    %1036 = vst.msk [vmem:[%s1035] sm:$0xff] %vm104, %v1022
    %1037 = vst.msk [vmem:[%s1035 + $0x8] sm:$0xff] %vm104, %v1023
    %s1038 = scalar_lea.vmem [#allocation7], %s1024
    %1039 = vst.msk [vmem:[%s1038] sm:$0xff] %vm104, %v1033
    %1040 = vst.msk [vmem:[%s1038 + $0x8] sm:$0xff] %vm104, %v1034
  $region50: #{_lambda_.15} parent=0 // loop_footer
    %s1007 = sadd.s32 1, %s1003
  $region51: #{_lambda_.15} parent=0 // loop_footer_branch
    %1002 = sbr.rel target = $region47
  $region52: #{_lambda_.15} parent=0 // loop_exit
    _
  %v1041 = vld [vmem:[#allocation6] sm:$0xff]
  %v1042 = vld [vmem:[#allocation6 + $0x8] sm:$0xff]
  %v1043 = vld [vmem:[#allocation6 + $0x10] sm:$0xff]
  %v1044 = vld [vmem:[#allocation6 + $0x18] sm:$0xff]
  %v1045 = vld [vmem:[#allocation6 + $0x20] sm:$0xff]
  %v1046 = vld [vmem:[#allocation6 + $0x28] sm:$0xff]
  %v1047 = vld [vmem:[#allocation6 + $0x30] sm:$0xff]
  %v1048 = vld [vmem:[#allocation6 + $0x38] sm:$0xff]
  %v1049 = vld [vmem:[#allocation6 + $0x40] sm:$0xff]
  %v1050 = vld [vmem:[#allocation6 + $0x48] sm:$0xff]
  %v1051 = vmul.f32 %v1041, %v622
  %v1052 = vmul.f32 %v1042, %v626
  %v1053 = vmul.f32 %v1043, %v630
  %v1054 = vmul.f32 %v1044, %v634
  %v1055 = vmul.f32 %v1045, %v638
  %v1056 = vmul.f32 %v1046, %v642
  %v1057 = vmul.f32 %v1047, %v646
  %v1058 = vmul.f32 %v1048, %v650
  %v1059 = vmul.f32 %v1049, %v654
  %v1060 = vmul.f32 %v1050, %v658
  %v1061 = vsel %vm104, %v1051, 0.0
  %v1062 = vrot.slane %v1061, 4
  %v1063 = vadd.f32 %v1061, %v1062
  %v1064 = vrot.slane %v1063, 2
  %v1065 = vadd.f32 %v1063, %v1064
  %v1066 = vrot.slane %v1065, 1
  %v1067 = vadd.f32 %v1065, %v1066
  %v1068 = vsel %vm104, %v1052, 0.0
  %v1069 = vrot.slane %v1068, 4
  %v1070 = vadd.f32 %v1068, %v1069
  %v1071 = vrot.slane %v1070, 2
  %v1072 = vadd.f32 %v1070, %v1071
  %v1073 = vrot.slane %v1072, 1
  %v1074 = vadd.f32 %v1072, %v1073
  %v1075 = vsel %vm104, %v1053, 0.0
  %v1076 = vrot.slane %v1075, 4
  %v1077 = vadd.f32 %v1075, %v1076
  %v1078 = vrot.slane %v1077, 2
  %v1079 = vadd.f32 %v1077, %v1078
  %v1080 = vrot.slane %v1079, 1
  %v1081 = vadd.f32 %v1079, %v1080
  %v1082 = vsel %vm104, %v1054, 0.0
  %v1083 = vrot.slane %v1082, 4
  %v1084 = vadd.f32 %v1082, %v1083
  %v1085 = vrot.slane %v1084, 2
  %v1086 = vadd.f32 %v1084, %v1085
  %v1087 = vrot.slane %v1086, 1
  %v1088 = vadd.f32 %v1086, %v1087
  %v1089 = vsel %vm104, %v1055, 0.0
  %v1090 = vrot.slane %v1089, 4
  %v1091 = vadd.f32 %v1089, %v1090
  %v1092 = vrot.slane %v1091, 2
  %v1093 = vadd.f32 %v1091, %v1092
  %v1094 = vrot.slane %v1093, 1
  %v1095 = vadd.f32 %v1093, %v1094
  %v1096 = vsel %vm104, %v1056, 0.0
  %v1097 = vrot.slane %v1096, 4
  %v1098 = vadd.f32 %v1096, %v1097
  %v1099 = vrot.slane %v1098, 2
  %v1100 = vadd.f32 %v1098, %v1099
  %v1101 = vrot.slane %v1100, 1
  %v1102 = vadd.f32 %v1100, %v1101
  %v1103 = vsel %vm104, %v1057, 0.0
  %v1104 = vrot.slane %v1103, 4
  %v1105 = vadd.f32 %v1103, %v1104
  %v1106 = vrot.slane %v1105, 2
  %v1107 = vadd.f32 %v1105, %v1106
  %v1108 = vrot.slane %v1107, 1
  %v1109 = vadd.f32 %v1107, %v1108
  %v1110 = vsel %vm104, %v1058, 0.0
  %v1111 = vrot.slane %v1110, 4
  %v1112 = vadd.f32 %v1110, %v1111
  %v1113 = vrot.slane %v1112, 2
  %v1114 = vadd.f32 %v1112, %v1113
  %v1115 = vrot.slane %v1114, 1
  %v1116 = vadd.f32 %v1114, %v1115
  %v1117 = vsel %vm104, %v1059, 0.0
  %v1118 = vrot.slane %v1117, 4
  %v1119 = vadd.f32 %v1117, %v1118
  %v1120 = vrot.slane %v1119, 2
  %v1121 = vadd.f32 %v1119, %v1120
  %v1122 = vrot.slane %v1121, 1
  %v1123 = vadd.f32 %v1121, %v1122
  %v1124 = vsel %vm104, %v1060, 0.0
  %v1125 = vrot.slane %v1124, 4
  %v1126 = vadd.f32 %v1124, %v1125
  %v1127 = vrot.slane %v1126, 2
  %v1128 = vadd.f32 %v1126, %v1127
  %v1129 = vrot.slane %v1128, 1
  %v1130 = vadd.f32 %v1128, %v1129
  %v1131 = vld [vmem:[#allocation7] sm:$0xff]
  %v1132 = vld [vmem:[#allocation7 + $0x8] sm:$0xff]
  %v1133 = vld [vmem:[#allocation7 + $0x10] sm:$0xff]
  %v1134 = vld [vmem:[#allocation7 + $0x18] sm:$0xff]
  %v1135 = vld [vmem:[#allocation7 + $0x20] sm:$0xff]
  %v1136 = vld [vmem:[#allocation7 + $0x28] sm:$0xff]
  %v1137 = vld [vmem:[#allocation7 + $0x30] sm:$0xff]
  %v1138 = vld [vmem:[#allocation7 + $0x38] sm:$0xff]
  %v1139 = vld [vmem:[#allocation7 + $0x40] sm:$0xff]
  %v1140 = vld [vmem:[#allocation7 + $0x48] sm:$0xff]
  %v1141 = vmul.f32 %v1131, %v702
  %v1142 = vmul.f32 %v1132, %v706
  %v1143 = vmul.f32 %v1133, %v710
  %v1144 = vmul.f32 %v1134, %v714
  %v1145 = vmul.f32 %v1135, %v718
  %v1146 = vmul.f32 %v1136, %v722
  %v1147 = vmul.f32 %v1137, %v726
  %v1148 = vmul.f32 %v1138, %v730
  %v1149 = vmul.f32 %v1139, %v734
  %v1150 = vmul.f32 %v1140, %v738
  %v1151 = vsel %vm104, %v1141, 0.0
  %v1152 = vrot.slane %v1151, 4
  %v1153 = vadd.f32 %v1151, %v1152
  %v1154 = vrot.slane %v1153, 2
  %v1155 = vadd.f32 %v1153, %v1154
  %v1156 = vrot.slane %v1155, 1
  %v1157 = vadd.f32 %v1155, %v1156
  %v1158 = vsel %vm104, %v1142, 0.0
  %v1159 = vrot.slane %v1158, 4
  %v1160 = vadd.f32 %v1158, %v1159
  %v1161 = vrot.slane %v1160, 2
  %v1162 = vadd.f32 %v1160, %v1161
  %v1163 = vrot.slane %v1162, 1
  %v1164 = vadd.f32 %v1162, %v1163
  %v1165 = vsel %vm104, %v1143, 0.0
  %v1166 = vrot.slane %v1165, 4
  %v1167 = vadd.f32 %v1165, %v1166
  %v1168 = vrot.slane %v1167, 2
  %v1169 = vadd.f32 %v1167, %v1168
  %v1170 = vrot.slane %v1169, 1
  %v1171 = vadd.f32 %v1169, %v1170
  %v1172 = vsel %vm104, %v1144, 0.0
  %v1173 = vrot.slane %v1172, 4
  %v1174 = vadd.f32 %v1172, %v1173
  %v1175 = vrot.slane %v1174, 2
  %v1176 = vadd.f32 %v1174, %v1175
  %v1177 = vrot.slane %v1176, 1
  %v1178 = vadd.f32 %v1176, %v1177
  %v1179 = vsel %vm104, %v1145, 0.0
  %v1180 = vrot.slane %v1179, 4
  %v1181 = vadd.f32 %v1179, %v1180
  %v1182 = vrot.slane %v1181, 2
  %v1183 = vadd.f32 %v1181, %v1182
  %v1184 = vrot.slane %v1183, 1
  %v1185 = vadd.f32 %v1183, %v1184
  %v1186 = vsel %vm104, %v1146, 0.0
  %v1187 = vrot.slane %v1186, 4
  %v1188 = vadd.f32 %v1186, %v1187
  %v1189 = vrot.slane %v1188, 2
  %v1190 = vadd.f32 %v1188, %v1189
  %v1191 = vrot.slane %v1190, 1
  %v1192 = vadd.f32 %v1190, %v1191
  %v1193 = vsel %vm104, %v1147, 0.0
  %v1194 = vrot.slane %v1193, 4
  %v1195 = vadd.f32 %v1193, %v1194
  %v1196 = vrot.slane %v1195, 2
  %v1197 = vadd.f32 %v1195, %v1196
  %v1198 = vrot.slane %v1197, 1
  %v1199 = vadd.f32 %v1197, %v1198
  %v1200 = vsel %vm104, %v1148, 0.0
  %v1201 = vrot.slane %v1200, 4
  %v1202 = vadd.f32 %v1200, %v1201
  %v1203 = vrot.slane %v1202, 2
  %v1204 = vadd.f32 %v1202, %v1203
  %v1205 = vrot.slane %v1204, 1
  %v1206 = vadd.f32 %v1204, %v1205
  %v1207 = vsel %vm104, %v1149, 0.0
  %v1208 = vrot.slane %v1207, 4
  %v1209 = vadd.f32 %v1207, %v1208
  %v1210 = vrot.slane %v1209, 2
  %v1211 = vadd.f32 %v1209, %v1210
  %v1212 = vrot.slane %v1211, 1
  %v1213 = vadd.f32 %v1211, %v1212
  %v1214 = vsel %vm104, %v1150, 0.0
  %v1215 = vrot.slane %v1214, 4
  %v1216 = vadd.f32 %v1214, %v1215
  %v1217 = vrot.slane %v1216, 2
  %v1218 = vadd.f32 %v1216, %v1217
  %v1219 = vrot.slane %v1218, 1
  %v1220 = vadd.f32 %v1218, %v1219
  %v1221 = vsub.f32 0.0, %v143
  %v1222 = vsub.f32 0.0, %v146
  %v1223 = vmul.f32 %v1221, 1.442695
  %v1224 = vpow.pop %v1223
  %v1225 = vmul.f32 %v1222, 1.442695
  %v1226 = vpow.pop %v1225
  %v1227 = vadd.f32 %v1224, 1.0
  %v1228 = vadd.f32 %v1226, 1.0
  %v1229 = vrcp.pop %v1227
  %v1230 = vmul.f32 1.0, %v1229
  %v1231 = vrcp.pop %v1228
  %v1232 = vmul.f32 1.0, %v1231
  %v1233 = vmul.f32 %v143, %v1230
  %v1234 = vmul.f32 %v146, %v1232
  %v1235 = vld [vmem:[%s9] sm:$0x1]
  %v1237 = vlaneseq
  %v1238 = vshrl.u32 %v1237, 7
  %v1239 = vsub.s32 0, %v1238
  %v1240 = vrot.slane %v1235, %v1239
  %v1242 = vmul.f32 %v227, %v1240
  %v1243 = vmul.f32 %v228, %v1240
  %v1246 = vrot.slane %v1242, 1
  %v1247 = vrot.slane %v1242, 2
  %v1248 = vrot.slane %v1242, 3
  %v1249 = vrot.slane %v1242, 4
  %v1250 = vrot.slane %v1242, 5
  %v1251 = vrot.slane %v1242, 6
  %v1252 = vrot.slane %v1242, 7
  %v1253 = vrot.slane %v1243, 1
  %v1264 = vadd.f32 %v1067, %v1242
  %v1265 = vadd.f32 %v1074, %v1246
  %v1266 = vadd.f32 %v1081, %v1247
  %v1267 = vadd.f32 %v1088, %v1248
  %v1268 = vadd.f32 %v1095, %v1249
  %v1269 = vadd.f32 %v1102, %v1250
  %v1270 = vadd.f32 %v1109, %v1251
  %v1271 = vadd.f32 %v1116, %v1252
  %v1272 = vadd.f32 %v1123, %v1243
  %v1273 = vadd.f32 %v1130, %v1253
  %v1276 = vrot.slane %v1233, 1
  %v1277 = vrot.slane %v1233, 2
  %v1278 = vrot.slane %v1233, 3
  %v1279 = vrot.slane %v1233, 4
  %v1280 = vrot.slane %v1233, 5
  %v1281 = vrot.slane %v1233, 6
  %v1282 = vrot.slane %v1233, 7
  %v1283 = vrot.slane %v1234, 1
  %1284 = vrot.lane.b32.xlu0 %v1233, 64
  %v1285 = vpop.permute.xlu0 %1284
  %1286 = vrot.lane.b32.xlu0 %v1276, 64
  %v1287 = vpop.permute.xlu0 %1286
  %1288 = vrot.lane.b32.xlu0 %v1277, 64
  %v1289 = vpop.permute.xlu0 %1288
  %1290 = vrot.lane.b32.xlu0 %v1278, 64
  %v1291 = vpop.permute.xlu0 %1290
  %1292 = vrot.lane.b32.xlu0 %v1279, 64
  %v1293 = vpop.permute.xlu0 %1292
  %1294 = vrot.lane.b32.xlu0 %v1280, 64
  %v1295 = vpop.permute.xlu0 %1294
  %1296 = vrot.lane.b32.xlu0 %v1281, 64
  %v1297 = vpop.permute.xlu0 %1296
  %1298 = vrot.lane.b32.xlu0 %v1282, 64
  %v1299 = vpop.permute.xlu0 %1298
  %1300 = vrot.lane.b32.xlu0 %v1234, 64
  %v1301 = vpop.permute.xlu0 %1300
  %1302 = vrot.lane.b32.xlu0 %v1283, 64
  %v1303 = vpop.permute.xlu0 %1302
  %v1314 = vmul.f32 %v1264, %v1285
  %v1315 = vmul.f32 %v1265, %v1287
  %v1316 = vmul.f32 %v1266, %v1289
  %v1317 = vmul.f32 %v1267, %v1291
  %v1318 = vmul.f32 %v1268, %v1293
  %v1319 = vmul.f32 %v1269, %v1295
  %v1320 = vmul.f32 %v1270, %v1297
  %v1321 = vmul.f32 %v1271, %v1299
  %v1322 = vmul.f32 %v1272, %v1301
  %v1323 = vmul.f32 %v1273, %v1303
  %1324 = vrot.lane.b32.xlu0 %v1242, 96
  %v1325 = vpop.permute.xlu0 %1324
  %1326 = vrot.lane.b32.xlu0 %v1246, 96
  %v1327 = vpop.permute.xlu0 %1326
  %1328 = vrot.lane.b32.xlu0 %v1247, 96
  %v1329 = vpop.permute.xlu0 %1328
  %1330 = vrot.lane.b32.xlu0 %v1248, 96
  %v1331 = vpop.permute.xlu0 %1330
  %1332 = vrot.lane.b32.xlu0 %v1249, 96
  %v1333 = vpop.permute.xlu0 %1332
  %1334 = vrot.lane.b32.xlu0 %v1250, 96
  %v1335 = vpop.permute.xlu0 %1334
  %1336 = vrot.lane.b32.xlu0 %v1251, 96
  %v1337 = vpop.permute.xlu0 %1336
  %1338 = vrot.lane.b32.xlu0 %v1252, 96
  %v1339 = vpop.permute.xlu0 %1338
  %1340 = vrot.lane.b32.xlu0 %v1243, 96
  %v1341 = vpop.permute.xlu0 %1340
  %1342 = vrot.lane.b32.xlu0 %v1253, 96
  %v1343 = vpop.permute.xlu0 %1342
  %v1354 = vadd.f32 %v1157, %v1325
  %v1355 = vadd.f32 %v1164, %v1327
  %v1356 = vadd.f32 %v1171, %v1329
  %v1357 = vadd.f32 %v1178, %v1331
  %v1358 = vadd.f32 %v1185, %v1333
  %v1359 = vadd.f32 %v1192, %v1335
  %v1360 = vadd.f32 %v1199, %v1337
  %v1361 = vadd.f32 %v1206, %v1339
  %v1362 = vadd.f32 %v1213, %v1341
  %v1363 = vadd.f32 %v1220, %v1343
  %1364 = vrot.lane.b32.xlu0 %v1233, 32
  %v1365 = vpop.permute.xlu0 %1364
  %1366 = vrot.lane.b32.xlu0 %v1276, 32
  %v1367 = vpop.permute.xlu0 %1366
  %1368 = vrot.lane.b32.xlu0 %v1277, 32
  %v1369 = vpop.permute.xlu0 %1368
  %1370 = vrot.lane.b32.xlu0 %v1278, 32
  %v1371 = vpop.permute.xlu0 %1370
  %1372 = vrot.lane.b32.xlu0 %v1279, 32
  %v1373 = vpop.permute.xlu0 %1372
  %1374 = vrot.lane.b32.xlu0 %v1280, 32
  %v1375 = vpop.permute.xlu0 %1374
  %1376 = vrot.lane.b32.xlu0 %v1281, 32
  %v1377 = vpop.permute.xlu0 %1376
  %1378 = vrot.lane.b32.xlu0 %v1282, 32
  %v1379 = vpop.permute.xlu0 %1378
  %1380 = vrot.lane.b32.xlu0 %v1234, 32
  %v1381 = vpop.permute.xlu0 %1380
  %1382 = vrot.lane.b32.xlu0 %v1283, 32
  %v1383 = vpop.permute.xlu0 %1382
  %v1394 = vmul.f32 %v1354, %v1365
  %v1395 = vmul.f32 %v1355, %v1367
  %v1396 = vmul.f32 %v1356, %v1369
  %v1397 = vmul.f32 %v1357, %v1371
  %v1398 = vmul.f32 %v1358, %v1373
  %v1399 = vmul.f32 %v1359, %v1375
  %v1400 = vmul.f32 %v1360, %v1377
  %v1401 = vmul.f32 %v1361, %v1379
  %v1402 = vmul.f32 %v1362, %v1381
  %v1403 = vmul.f32 %v1363, %v1383
  %v1404 = vpack.c.bf16 %v1314, %v1314
  %v1405 = vpack.c.bf16 %v1315, %v1315
  %v1406 = vpack.c.bf16 %v1316, %v1316
  %v1407 = vpack.c.bf16 %v1317, %v1317
  %v1408 = vpack.c.bf16 %v1318, %v1318
  %v1409 = vpack.c.bf16 %v1319, %v1319
  %v1410 = vpack.c.bf16 %v1320, %v1320
  %v1411 = vpack.c.bf16 %v1321, %v1321
  %v1412 = vpack.c.bf16 %v1322, %v1322
  %v1413 = vpack.c.bf16 %v1323, %v1323
  %v1414 = vld [vmem:[%s10] sm:$0xf]
  %v1415 = vld [vmem:[%s10 + $0x4] sm:$0xf]
  %v1416 = vld [vmem:[%s10 + $0x8] sm:$0xf]
  %v1417 = vld [vmem:[%s10 + $0xc] sm:$0xf]
  %v1418 = vpack.c.bf16 %v1394, %v1394
  %v1419 = vpack.c.bf16 %v1395, %v1395
  %v1420 = vpack.c.bf16 %v1396, %v1396
  %v1421 = vpack.c.bf16 %v1397, %v1397
  %v1422 = vpack.c.bf16 %v1398, %v1398
  %v1423 = vpack.c.bf16 %v1399, %v1399
  %v1424 = vpack.c.bf16 %v1400, %v1400
  %v1425 = vpack.c.bf16 %v1401, %v1401
  %v1426 = vpack.c.bf16 %v1402, %v1402
  %v1427 = vpack.c.bf16 %v1403, %v1403
  %v1428 = vld [vmem:[%s10 + $0x10] sm:$0xf]
  %v1429 = vld [vmem:[%s10 + $0x14] sm:$0xf]
  %v1430 = vld [vmem:[%s10 + $0x18] sm:$0xf]
  %v1431 = vld [vmem:[%s10 + $0x1c] sm:$0xf]
  %v1442 = vunpack.c.l.b16 %v1418
  %v1443 = vunpack.c.l.b16 %v1419
  %v1444 = vunpack.c.l.b16 %v1420
  %v1445 = vunpack.c.l.b16 %v1421
  %v1446 = vunpack.c.l.b16 %v1422
  %v1447 = vunpack.c.l.b16 %v1423
  %v1448 = vunpack.c.l.b16 %v1424
  %v1449 = vunpack.c.l.b16 %v1425
  %v1450 = vunpack.c.l.b16 %v1426
  %v1451 = vunpack.c.l.b16 %v1427
  %v1452 = vrot.slane %v1443, 7
  %vm1453 = vcmask 1041409
  %v1454 = vsel %vm1453, %v1452, %v1442
  %v1455 = vrot.slane %v1444, 6
  %vm1456 = vcmask 1042434
  %v1457 = vsel %vm1456, %v1455, %v1454
  %v1458 = vrot.slane %v1445, 5
  %vm1459 = vcmask 1043459
  %v1460 = vsel %vm1459, %v1458, %v1457
  %v1461 = vrot.slane %v1446, 4
  %vm1462 = vcmask 1044484
  %v1463 = vsel %vm1462, %v1461, %v1460
  %v1464 = vrot.slane %v1447, 3
  %vm1465 = vcmask 1045509
  %v1466 = vsel %vm1465, %v1464, %v1463
  %v1467 = vrot.slane %v1448, 2
  %vm1468 = vcmask 1046534
  %v1469 = vsel %vm1468, %v1467, %v1466
  %v1470 = vrot.slane %v1449, 1
  %vm1471 = vcmask 1047559
  %v1472 = vsel %vm1471, %v1470, %v1469
  %v1473 = vrot.slane %v1451, 7
  %v1474 = vsel %vm1453, %v1473, %v1450
  %v1475 = vpack.c.b16 %v1474, %v1472
  %v1480 = vunpack.c.l.b16 %v1428
  %v1481 = vunpack.c.l.b16 %v1429
  %v1482 = vunpack.c.l.b16 %v1430
  %v1483 = vunpack.c.l.b16 %v1431
  %v1484 = vpack.c.b16 %v1481, %v1480
  %v1485 = vpack.c.b16 %v1483, %v1482
  %v1489 = vsel %vm104, %v1475, 0
  %1491 = vmatprep.subr.bf16.mxu0 0
  %1492 = vmatpush1.bf16.msra.mxu0 %v1484
  %1493 = vmatprep.subr.bf16.mxu0 0
  %1494 = vmatpush1.bf16.msra.mxu0 %v1485
  %1495 = vmatprep.subr.bf16.mxu0 0
  %1496 = vmatpush1.bf16.msra.mxu0 0
  %1497 = vmatprep.subr.bf16.mxu0 0
  %1498 = vmatpush1.bf16.msra.mxu0 0
  %1499 = vmatprep.subr.bf16.mxu0 0
  %1500 = vmatpush1.bf16.msra.mxu0 0
  %1501 = vmatprep.subr.bf16.mxu0 0
  %1502 = vmatpush1.bf16.msra.mxu0 0
  %1503 = vmatprep.subr.bf16.mxu0 0
  %1504 = vmatpush1.bf16.msra.mxu0 0
  %1505 = vmatprep.subr.bf16.mxu0 0
  %1506 = vmatpush1.bf16.msra.mxu0 0
  %1507 = vmatprep.subr.bf16.mxu0 0
  %1508 = vmatpush1.bf16.msra.mxu0 0
  %1509 = vmatprep.subr.bf16.mxu0 0
  %1510 = vmatpush1.bf16.msra.mxu0 0
  %1511 = vmatprep.subr.bf16.mxu0 0
  %1512 = vmatpush1.bf16.msra.mxu0 0
  %1513 = vmatprep.subr.bf16.mxu0 0
  %1514 = vmatpush1.bf16.msra.mxu0 0
  %1515 = vmatprep.subr.bf16.mxu0 0
  %1516 = vmatpush1.bf16.msra.mxu0 0
  %1517 = vmatprep.subr.bf16.mxu0 0
  %1518 = vmatpush1.bf16.msra.mxu0 0
  %1519 = vmatprep.subr.bf16.mxu0 0
  %1520 = vmatpush1.bf16.msra.mxu0 0
  %1521 = vmatprep.subr.bf16.mxu0 0
  %1522 = vmatpush1.bf16.msra.mxu0 0
  %1523 = vmatprep.mubr.bf16.mxu0 0
  %1524 = vmatmul.mubr.bf16.gmra.mrb[0].mxu0 %v1489
  %v1525 = vpop.f32.mrb[0].mxu0
  %v1526 = vadd.f32 0.0, %v1525
  %v1527 = vpop.f32.mrb[0].mxu0
  %v1528 = vpop.f32.mrb[0].mxu0
  %v1529 = vadd.f32 0.0, %v1528
  %v1530 = vpop.f32.mrb[0].mxu0
  %1531 = vdwg.mxu0
  %v1542 = vunpack.c.l.b16 %v1404
  %v1543 = vunpack.c.l.b16 %v1405
  %v1544 = vunpack.c.l.b16 %v1406
  %v1545 = vunpack.c.l.b16 %v1407
  %v1546 = vunpack.c.l.b16 %v1408
  %v1547 = vunpack.c.l.b16 %v1409
  %v1548 = vunpack.c.l.b16 %v1410
  %v1549 = vunpack.c.l.b16 %v1411
  %v1550 = vunpack.c.l.b16 %v1412
  %v1551 = vunpack.c.l.b16 %v1413
  %v1552 = vrot.slane %v1543, 7
  %v1553 = vsel %vm1453, %v1552, %v1542
  %v1554 = vrot.slane %v1544, 6
  %v1555 = vsel %vm1456, %v1554, %v1553
  %v1556 = vrot.slane %v1545, 5
  %v1557 = vsel %vm1459, %v1556, %v1555
  %v1558 = vrot.slane %v1546, 4
  %v1559 = vsel %vm1462, %v1558, %v1557
  %v1560 = vrot.slane %v1547, 3
  %v1561 = vsel %vm1465, %v1560, %v1559
  %v1562 = vrot.slane %v1548, 2
  %v1563 = vsel %vm1468, %v1562, %v1561
  %v1564 = vrot.slane %v1549, 1
  %v1565 = vsel %vm1471, %v1564, %v1563
  %v1566 = vrot.slane %v1551, 7
  %v1567 = vsel %vm1453, %v1566, %v1550
  %v1568 = vpack.c.b16 %v1567, %v1565
  %v1573 = vunpack.c.l.b16 %v1414
  %v1574 = vunpack.c.l.b16 %v1415
  %v1575 = vunpack.c.l.b16 %v1416
  %v1576 = vunpack.c.l.b16 %v1417
  %v1577 = vpack.c.b16 %v1574, %v1573
  %v1578 = vpack.c.b16 %v1576, %v1575
  %v1582 = vsel %vm104, %v1568, 0
  %1584 = vmatprep.subr.bf16.mxu0 0
  %1585 = vmatpush1.bf16.msra.mxu0 %v1577
  %1586 = vmatprep.subr.bf16.mxu0 0
  %1587 = vmatpush1.bf16.msra.mxu0 %v1578
  %1588 = vmatprep.subr.bf16.mxu0 0
  %1589 = vmatpush1.bf16.msra.mxu0 0
  %1590 = vmatprep.subr.bf16.mxu0 0
  %1591 = vmatpush1.bf16.msra.mxu0 0
  %1592 = vmatprep.subr.bf16.mxu0 0
  %1593 = vmatpush1.bf16.msra.mxu0 0
  %1594 = vmatprep.subr.bf16.mxu0 0
  %1595 = vmatpush1.bf16.msra.mxu0 0
  %1596 = vmatprep.subr.bf16.mxu0 0
  %1597 = vmatpush1.bf16.msra.mxu0 0
  %1598 = vmatprep.subr.bf16.mxu0 0
  %1599 = vmatpush1.bf16.msra.mxu0 0
  %1600 = vmatprep.subr.bf16.mxu0 0
  %1601 = vmatpush1.bf16.msra.mxu0 0
  %1602 = vmatprep.subr.bf16.mxu0 0
  %1603 = vmatpush1.bf16.msra.mxu0 0
  %1604 = vmatprep.subr.bf16.mxu0 0
  %1605 = vmatpush1.bf16.msra.mxu0 0
  %1606 = vmatprep.subr.bf16.mxu0 0
  %1607 = vmatpush1.bf16.msra.mxu0 0
  %1608 = vmatprep.subr.bf16.mxu0 0
  %1609 = vmatpush1.bf16.msra.mxu0 0
  %1610 = vmatprep.subr.bf16.mxu0 0
  %1611 = vmatpush1.bf16.msra.mxu0 0
  %1612 = vmatprep.subr.bf16.mxu0 0
  %1613 = vmatpush1.bf16.msra.mxu0 0
  %1614 = vmatprep.subr.bf16.mxu0 0
  %1615 = vmatpush1.bf16.msra.mxu0 0
  %1616 = vmatprep.mubr.bf16.mxu0 0
  %1617 = vmatmul.mubr.bf16.gmra.mrb[0].mxu0 %v1582
  %v1618 = vpop.f32.mrb[0].mxu0
  %v1619 = vadd.f32 %v1526, %v1618
  %v1620 = vpop.f32.mrb[0].mxu0
  %v1621 = vpop.f32.mrb[0].mxu0
  %v1622 = vadd.f32 %v1529, %v1621
  %v1623 = vpop.f32.mrb[0].mxu0
  %1624 = vdwg.mxu0
  %v1625 = vunpack.c.l.bf16 %v39
  %v1626 = vunpack.c.l.bf16 %v40
  %v1627 = vunpack.c.l.bf16 %v41
  %v1628 = vunpack.c.l.bf16 %v42
  %v1629 = vunpack.c.l.bf16 %v43
  %v1632 = vcombine.high %v1619, %v1619
  %v1634 = vunpack.c.l.s4 1983009808
  %v1635 = vunpack.c.0.s8 %v1634
  %v1636 = vlaneseq
  %v1637 = vshrl.u32 %v1636, 7
  %v1638 = vsub.s32 %v1635, %v1637
  %v1639 = vrot.slane %v1619, %v1638
  %v1641 = vunpack.c.l.s4 1983009808
  %v1642 = vunpack.c.0.s8 %v1641
  %v1643 = vlaneseq
  %v1644 = vshrl.u32 %v1643, 7
  %v1645 = vsub.s32 %v1642, %v1644
  %v1646 = vrot.slane %v1632, %v1645
  %v1647 = vcombine.high %v1639, %v1639
  %v1648 = vcombine.high %v1646, %v1646
  %v1650 = vunpack.c.l.s4 1983009808
  %v1651 = vunpack.c.0.s8 %v1650
  %v1652 = vlaneseq
  %v1653 = vshrl.u32 %v1652, 7
  %v1654 = vsub.s32 %v1651, %v1653
  %v1655 = vrot.slane %v1622, %v1654
  %v1661 = vadd.f32 %v1625, %v1639
  %v1662 = vadd.f32 %v1626, %v1647
  %v1663 = vadd.f32 %v1627, %v1646
  %v1664 = vadd.f32 %v1628, %v1648
  %v1665 = vadd.f32 %v1629, %v1655
  %v1666 = vpack.c.bf16 %v1661, %v1661
  %v1667 = vpack.c.bf16 %v1662, %v1662
  %v1668 = vpack.c.bf16 %v1663, %v1663
  %v1669 = vpack.c.bf16 %v1664, %v1664
  %v1670 = vpack.c.bf16 %v1665, %v1665
  %vm1671 = vcmask 253952
  %1672 = vst.msk [vmem:[%s11] sm:$0x1] %vm1671, %v1666
  %1673 = vst.msk [vmem:[%s11 + $0x1] sm:$0x1] %vm1671, %v1667
  %1674 = vst.msk [vmem:[%s11 + $0x2] sm:$0x1] %vm1671, %v1668
  %1675 = vst.msk [vmem:[%s11 + $0x3] sm:$0x1] %vm1671, %v1669
  %1676 = vst.msk [vmem:[%s11 + $0x4] sm:$0x1] %vm1671, %v1670
  // Predicated region
  $region53: #{_lambda_.15} parent=0 // pred_check
    _
  $region54: #{_lambda_.15} parent=0 // pred_check_branch
    %1678 = sbr.rel (0) target = $region56
  $region55: #{_lambda_.15} parent=0 // pred_region
    _
  $region56: #{_lambda_.15} parent=0 // pred_fallthru
    _
  // Predicated region
  $region57: #{_lambda_.15} parent=0 // pred_check
    _
  $region58: #{_lambda_.15} parent=0 // pred_check_branch
    %1680 = sbr.rel (0) target = $region60
  $region59: #{_lambda_.15} parent=0 // pred_region
    _
  $region60: #{_lambda_.15} parent=0 // pred_fallthru
    _

// kernel: _lambda_.16
$region0: #{_lambda_.16}
  #allocation0 [shape = 'u32[]', space=smem, size = 0x4, offset = 0x4, fixed_abs, tag = 'smem constant byte address 0x4 - core index']
  #allocation1 [shape = 'u32[144,128]{1,0:T(1,128)}', space=vmem, size = 0x12000, scoped, tag = 'internal scratch']
  %s0 = inlined_call_operand.vmem [shape: bf16[10,32], index: 0, kind: input, shape index: {}]
  %s1 = inlined_call_operand.vmem [shape: f32[1,32], index: 1, kind: input, shape index: {}]
  %s2 = inlined_call_operand.vmem [shape: f32[1,32], index: 2, kind: input, shape index: {}]
  %s3 = inlined_call_operand.vmem [shape: bf16[32,32], index: 3, kind: input, shape index: {}]
  %s4 = inlined_call_operand.vmem [shape: f32[1,32], index: 4, kind: input, shape index: {}]
  %s5 = inlined_call_operand.vmem [shape: bf16[32,32], index: 5, kind: input, shape index: {}]
  %s6 = inlined_call_operand.vmem [shape: f32[1,32], index: 6, kind: input, shape index: {}]
  %s7 = inlined_call_operand.vmem [shape: f32[1,32], index: 7, kind: input, shape index: {}]
  %s8 = inlined_call_operand.vmem [shape: f32[1,32], index: 8, kind: input, shape index: {}]
  %s9 = inlined_call_operand.vmem [shape: bf16[10,32], index: 9, kind: output, shape index: {}]
  %s10 = sld [smem:[#allocation0]]
  $region46: #{_lambda_.16} parent=0
    _
  %s12 = ssub.s32 1, %s10
  %s13 = scalar_select 0, %s12, %s10
  // Predicated region
  $region2: #{_lambda_.16} parent=0 // pred_check
    _
  $region3: #{_lambda_.16} parent=0 // pred_check_branch
    %15 = sbr.rel (0) target = $region5
  $region4: #{_lambda_.16} parent=0 // pred_region
    _
  $region5: #{_lambda_.16} parent=0 // pred_fallthru
    _
  // Predicated region
  $region6: #{_lambda_.16} parent=0 // pred_check
    _
  $region7: #{_lambda_.16} parent=0 // pred_check_branch
    %17 = sbr.rel (0) target = $region9
  $region8: #{_lambda_.16} parent=0 // pred_region
    _
  $region9: #{_lambda_.16} parent=0 // pred_fallthru
    _
  // Predicated region
  $region10: #{_lambda_.16} parent=0 // pred_check
    _
  $region11: #{_lambda_.16} parent=0 // pred_check_branch
    %19 = sbr.rel (0) target = $region13
  $region12: #{_lambda_.16} parent=0 // pred_region
    _
  $region13: #{_lambda_.16} parent=0 // pred_fallthru
    _
  // Predicated region
  $region14: #{_lambda_.16} parent=0 // pred_check
    _
  $region15: #{_lambda_.16} parent=0 // pred_check_branch
    %21 = sbr.rel (0) target = $region17
  $region16: #{_lambda_.16} parent=0 // pred_region
    _
  $region17: #{_lambda_.16} parent=0 // pred_fallthru
    _
  // Predicated region
  $region18: #{_lambda_.16} parent=0 // pred_check
    _
  $region19: #{_lambda_.16} parent=0 // pred_check_branch
    %23 = sbr.rel (0) target = $region21
  $region20: #{_lambda_.16} parent=0 // pred_region
    _
  $region21: #{_lambda_.16} parent=0 // pred_fallthru
    _
  // Predicated region
  $region22: #{_lambda_.16} parent=0 // pred_check
    _
  $region23: #{_lambda_.16} parent=0 // pred_check_branch
    %25 = sbr.rel (0) target = $region25
  $region24: #{_lambda_.16} parent=0 // pred_region
    _
  $region25: #{_lambda_.16} parent=0 // pred_fallthru
    _
  // Predicated region
  $region26: #{_lambda_.16} parent=0 // pred_check
    _
  $region27: #{_lambda_.16} parent=0 // pred_check_branch
    %27 = sbr.rel (0) target = $region29
  $region28: #{_lambda_.16} parent=0 // pred_region
    _
  $region29: #{_lambda_.16} parent=0 // pred_fallthru
    _
  // Predicated region
  $region30: #{_lambda_.16} parent=0 // pred_check
    _
  $region31: #{_lambda_.16} parent=0 // pred_check_branch
    %29 = sbr.rel (0) target = $region33
  $region32: #{_lambda_.16} parent=0 // pred_region
    _
  $region33: #{_lambda_.16} parent=0 // pred_fallthru
    _
  // Predicated region
  $region34: #{_lambda_.16} parent=0 // pred_check
    _
  $region35: #{_lambda_.16} parent=0 // pred_check_branch
    %31 = sbr.rel (0) target = $region37
  $region36: #{_lambda_.16} parent=0 // pred_region
    _
  $region37: #{_lambda_.16} parent=0 // pred_fallthru
    _
  %v33 = vld [vmem:[%s0] sm:$0xf]
  %v34 = vld [vmem:[%s0 + $0x4] sm:$0x1]
  %v35 = vunpack.c.l.bf16 %v33
  %v36 = vunpack.c.l.bf16 %v34
  %v37 = vld [vmem:[%s1] sm:$0x1]
  %v38 = vld [vmem:[%s2] sm:$0x1]
  %vm39 = vcmask 261120
  %v40 = vsel %vm39, %v35, 0.0
  %41 = vadd.xlane.f32.xlu0 %v40
  %v42 = vpop.xlane.xlu0 %41
  %vm43 = vcmask 254976
  %v44 = vsel %vm43, %v36, 0.0
  %45 = vadd.xlane.f32.xlu0 %v44
  %v46 = vpop.xlane.xlu0 %45
  %v47 = vrcp.pop 32.0
  %v48 = vmul.f32 %v42, %v47
  %v49 = vmul.f32 %v46, %v47
  %v50 = vsub.f32 %v35, %v48
  %v51 = vsub.f32 %v36, %v49
  %v52 = vmul.f32 %v50, %v50
  %v53 = vmul.f32 %v51, %v51
  %v54 = vsel %vm39, %v52, 0.0
  %55 = vadd.xlane.f32.xlu0 %v54
  %v56 = vpop.xlane.xlu0 %55
  %v57 = vsel %vm43, %v53, 0.0
  %58 = vadd.xlane.f32.xlu0 %v57
  %v59 = vpop.xlane.xlu0 %58
  %v60 = vmul.f32 %v56, %v47
  %v61 = vmul.f32 %v59, %v47
  %v62 = vadd.f32 %v60, 1e-05
  %v63 = vadd.f32 %v61, 1e-05
  %v64 = vrsqrt.pop %v62
  %v65 = vrsqrt.pop %v63
  %v66 = vmul.f32 %v50, %v64
  %v67 = vmul.f32 %v51, %v65
  %v69 = vlaneseq
  %v70 = vshrl.u32 %v69, 7
  %v71 = vsub.s32 0, %v70
  %v72 = vrot.slane %v37, %v71
  %v74 = vmul.f32 %v66, %v72
  %v75 = vmul.f32 %v67, %v72
  %v77 = vlaneseq
  %v78 = vshrl.u32 %v77, 7
  %v79 = vsub.s32 0, %v78
  %v80 = vrot.slane %v38, %v79
  %v82 = vadd.f32 %v74, %v80
  %v83 = vadd.f32 %v75, %v80
  %v84 = vpack.c.bf16 %v83, %v82
  %v85 = vld [vmem:[%s3] sm:$0xf]
  %v86 = vld [vmem:[%s3 + $0x4] sm:$0xf]
  %v87 = vld [vmem:[%s3 + $0x8] sm:$0xf]
  %v88 = vld [vmem:[%s3 + $0xc] sm:$0xf]
  %v89 = vld [vmem:[%s4] sm:$0x1]
  %v91 = vlaneseq
  %v92 = vshrl.u32 %v91, 7
  %v93 = vsub.s32 0, %v92
  %v94 = vrot.slane %v89, %v93
  %v100 = vunpack.c.l.b16 %v85
  %v101 = vunpack.c.l.b16 %v86
  %v102 = vunpack.c.l.b16 %v87
  %v103 = vunpack.c.l.b16 %v88
  %v104 = vpack.c.b16 %v101, %v100
  %v105 = vpack.c.b16 %v103, %v102
  %v109 = vsel %vm39, %v84, 0
  %111 = vmatprep.subr.bf16.mxu0 0
  %112 = vmatpush1.bf16.msra.mxu0 %v104
  %113 = vmatprep.subr.bf16.mxu0 0
  %114 = vmatpush1.bf16.msra.mxu0 %v105
  %115 = vmatprep.subr.bf16.mxu0 0
  %116 = vmatpush1.bf16.msra.mxu0 0
  %117 = vmatprep.subr.bf16.mxu0 0
  %118 = vmatpush1.bf16.msra.mxu0 0
  %119 = vmatprep.subr.bf16.mxu0 0
  %120 = vmatpush1.bf16.msra.mxu0 0
  %121 = vmatprep.subr.bf16.mxu0 0
  %122 = vmatpush1.bf16.msra.mxu0 0
  %123 = vmatprep.subr.bf16.mxu0 0
  %124 = vmatpush1.bf16.msra.mxu0 0
  %125 = vmatprep.subr.bf16.mxu0 0
  %126 = vmatpush1.bf16.msra.mxu0 0
  %127 = vmatprep.subr.bf16.mxu0 0
  %128 = vmatpush1.bf16.msra.mxu0 0
  %129 = vmatprep.subr.bf16.mxu0 0
  %130 = vmatpush1.bf16.msra.mxu0 0
  %131 = vmatprep.subr.bf16.mxu0 0
  %132 = vmatpush1.bf16.msra.mxu0 0
  %133 = vmatprep.subr.bf16.mxu0 0
  %134 = vmatpush1.bf16.msra.mxu0 0
  %135 = vmatprep.subr.bf16.mxu0 0
  %136 = vmatpush1.bf16.msra.mxu0 0
  %137 = vmatprep.subr.bf16.mxu0 0
  %138 = vmatpush1.bf16.msra.mxu0 0
  %139 = vmatprep.subr.bf16.mxu0 0
  %140 = vmatpush1.bf16.msra.mxu0 0
  %141 = vmatprep.subr.bf16.mxu0 0
  %142 = vmatpush1.bf16.msra.mxu0 0
  %143 = vmatprep.mubr.bf16.mxu0 0
  %144 = vmatmul.mubr.bf16.gmra.mrb[0].mxu0 %v109
  %v145 = vpop.f32.mrb[0].mxu0
  %v146 = vadd.f32 %v94, %v145
  %v147 = vpop.f32.mrb[0].mxu0
  %v148 = vpop.f32.mrb[0].mxu0
  %v149 = vadd.f32 %v94, %v148
  %v150 = vpop.f32.mrb[0].mxu0
  %151 = vdwg.mxu0
  %v152 = vmul.f32 %v146, 0.5
  %v153 = vmul.f32 %v149, 0.5
  %v154 = vmul.f32 %v146, 0.70710677
  %v155 = vmul.f32 %v149, 0.70710677
  %vm156 = vcmp.ge.f32.partialorder %v154, 0.0
  %vm157 = vcmp.ge.f32.partialorder %v155, 0.0
  %v158 = vsel %vm156, 1.0, -1.0
  %v159 = vsel %vm157, 1.0, -1.0
  %v160 = vand.u32 2147483647, %v154
  %v161 = vand.u32 2147483647, %v155
  %v162 = vmul.f32 %v160, 0.3275911
  %v163 = vmul.f32 %v161, 0.3275911
  %v164 = vadd.f32 %v162, 1.0
  %v165 = vadd.f32 %v163, 1.0
  %v166 = vrcp.pop %v164
  %v167 = vmul.f32 1.0, %v166
  %v168 = vrcp.pop %v165
  %v169 = vmul.f32 1.0, %v168
  %v170 = vmul.f32 %v167, 1.0614054
  %v171 = vmul.f32 %v169, 1.0614054
  %v172 = vadd.f32 %v170, -1.4531521
  %v173 = vadd.f32 %v171, -1.4531521
  %v174 = vmul.f32 %v172, %v167
  %v175 = vmul.f32 %v173, %v169
  %v176 = vadd.f32 %v174, 1.4214138
  %v177 = vadd.f32 %v175, 1.4214138
  %v178 = vmul.f32 %v176, %v167
  %v179 = vmul.f32 %v177, %v169
  %v180 = vadd.f32 %v178, -0.28449672
  %v181 = vadd.f32 %v179, -0.28449672
  %v182 = vmul.f32 %v180, %v167
  %v183 = vmul.f32 %v181, %v169
  %v184 = vadd.f32 %v182, 0.2548296
  %v185 = vadd.f32 %v183, 0.2548296
  %v186 = vmul.f32 %v184, %v167
  %v187 = vmul.f32 %v185, %v169
  %v188 = vsub.f32 0.0, %v160
  %v189 = vsub.f32 0.0, %v161
  %v190 = vmul.f32 %v188, %v160
  %v191 = vmul.f32 %v189, %v161
  %v192 = vmul.f32 %v190, 1.442695
  %v193 = vpow.pop %v192
  %v194 = vmul.f32 %v191, 1.442695
  %v195 = vpow.pop %v194
  %v196 = vmul.f32 %v186, %v193
  %v197 = vmul.f32 %v187, %v195
  %v198 = vsub.f32 1.0, %v196
  %v199 = vsub.f32 1.0, %v197
  %v200 = vmul.f32 %v158, %v198
  %v201 = vmul.f32 %v159, %v199
  %v202 = vadd.f32 %v200, 1.0
  %v203 = vadd.f32 %v201, 1.0
  %v204 = vmul.f32 %v152, %v202
  %v205 = vmul.f32 %v153, %v203
  %v206 = vpack.c.bf16 %v205, %v204
  %v207 = vld [vmem:[%s5] sm:$0xf]
  %v208 = vld [vmem:[%s5 + $0x4] sm:$0xf]
  %v209 = vld [vmem:[%s5 + $0x8] sm:$0xf]
  %v210 = vld [vmem:[%s5 + $0xc] sm:$0xf]
  %v211 = vld [vmem:[%s6] sm:$0x1]
  %v213 = vlaneseq
  %v214 = vshrl.u32 %v213, 7
  %v215 = vsub.s32 0, %v214
  %v216 = vrot.slane %v211, %v215
  %v222 = vunpack.c.l.b16 %v207
  %v223 = vunpack.c.l.b16 %v208
  %v224 = vunpack.c.l.b16 %v209
  %v225 = vunpack.c.l.b16 %v210
  %v226 = vpack.c.b16 %v223, %v222
  %v227 = vpack.c.b16 %v225, %v224
  %v231 = vsel %vm39, %v206, 0
  %233 = vmatprep.subr.bf16.mxu0 0
  %234 = vmatpush1.bf16.msra.mxu0 %v226
  %235 = vmatprep.subr.bf16.mxu0 0
  %236 = vmatpush1.bf16.msra.mxu0 %v227
  %237 = vmatprep.subr.bf16.mxu0 0
  %238 = vmatpush1.bf16.msra.mxu0 0
  %239 = vmatprep.subr.bf16.mxu0 0
  %240 = vmatpush1.bf16.msra.mxu0 0
  %241 = vmatprep.subr.bf16.mxu0 0
  %242 = vmatpush1.bf16.msra.mxu0 0
  %243 = vmatprep.subr.bf16.mxu0 0
  %244 = vmatpush1.bf16.msra.mxu0 0
  %245 = vmatprep.subr.bf16.mxu0 0
  %246 = vmatpush1.bf16.msra.mxu0 0
  %247 = vmatprep.subr.bf16.mxu0 0
  %248 = vmatpush1.bf16.msra.mxu0 0
  %249 = vmatprep.subr.bf16.mxu0 0
  %250 = vmatpush1.bf16.msra.mxu0 0
  %251 = vmatprep.subr.bf16.mxu0 0
  %252 = vmatpush1.bf16.msra.mxu0 0
  %253 = vmatprep.subr.bf16.mxu0 0
  %254 = vmatpush1.bf16.msra.mxu0 0
  %255 = vmatprep.subr.bf16.mxu0 0
  %256 = vmatpush1.bf16.msra.mxu0 0
  %257 = vmatprep.subr.bf16.mxu0 0
  %258 = vmatpush1.bf16.msra.mxu0 0
  %259 = vmatprep.subr.bf16.mxu0 0
  %260 = vmatpush1.bf16.msra.mxu0 0
  %261 = vmatprep.subr.bf16.mxu0 0
  %262 = vmatpush1.bf16.msra.mxu0 0
  %263 = vmatprep.subr.bf16.mxu0 0
  %264 = vmatpush1.bf16.msra.mxu0 0
  %265 = vmatprep.mubr.bf16.mxu0 0
  %266 = vmatmul.mubr.bf16.gmra.mrb[0].mxu0 %v231
  %v267 = vpop.f32.mrb[0].mxu0
  %v268 = vadd.f32 %v216, %v267
  %v269 = vpop.f32.mrb[0].mxu0
  %v270 = vpop.f32.mrb[0].mxu0
  %v271 = vadd.f32 %v216, %v270
  %v272 = vpop.f32.mrb[0].mxu0
  %273 = vdwg.mxu0
  %v274 = vadd.f32 %v82, %v268
  %v275 = vadd.f32 %v83, %v271
  %v276 = vld [vmem:[%s7] sm:$0x1]
  %v277 = vld [vmem:[%s8] sm:$0x1]
  %v278 = vsel %vm39, %v274, 0.0
  %279 = vadd.xlane.f32.xlu0 %v278
  %v280 = vpop.xlane.xlu0 %279
  %v281 = vsel %vm43, %v275, 0.0
  %282 = vadd.xlane.f32.xlu0 %v281
  %v283 = vpop.xlane.xlu0 %282
  %v284 = vmul.f32 %v280, %v47
  %v285 = vmul.f32 %v283, %v47
  %v286 = vsub.f32 %v274, %v284
  %v287 = vsub.f32 %v275, %v285
  %v288 = vmul.f32 %v286, %v286
  %v289 = vmul.f32 %v287, %v287
  %v290 = vsel %vm39, %v288, 0.0
  %291 = vadd.xlane.f32.xlu0 %v290
  %v292 = vpop.xlane.xlu0 %291
  %v293 = vsel %vm43, %v289, 0.0
  %294 = vadd.xlane.f32.xlu0 %v293
  %v295 = vpop.xlane.xlu0 %294
  %v296 = vmul.f32 %v292, %v47
  %v297 = vmul.f32 %v295, %v47
  %v298 = vadd.f32 %v296, 1e-05
  %v299 = vadd.f32 %v297, 1e-05
  %v300 = vrsqrt.pop %v298
  %v301 = vrsqrt.pop %v299
  %v302 = vmul.f32 %v286, %v300
  %v303 = vmul.f32 %v287, %v301
  %v305 = vlaneseq
  %v306 = vshrl.u32 %v305, 7
  %v307 = vsub.s32 0, %v306
  %v308 = vrot.slane %v276, %v307
  %v310 = vmul.f32 %v302, %v308
  %v311 = vmul.f32 %v303, %v308
  %v313 = vlaneseq
  %v314 = vshrl.u32 %v313, 7
  %v315 = vsub.s32 0, %v314
  %v316 = vrot.slane %v277, %v315
  %v318 = vadd.f32 %v310, %v316
  %v319 = vadd.f32 %v311, %v316
  %v320 = vpack.c.bf16 %v319, %v318
  %v322 = vunpack.c.l.b16 %v320
  %v323 = vunpack.c.h.b16 %v320
  %v324 = vpack.c.b16 %v322, %v322
  %v325 = vpack.c.b16 %v323, %v323
  %vm328 = vcmask 257024
  %329 = vst.msk [vmem:[%s9] sm:$0xf] %vm328, %v324
  %vm330 = vcmask 253952
  %331 = vst.msk [vmem:[%s9 + $0x4] sm:$0x1] %vm330, %v325
  // Predicated region
  $region38: #{_lambda_.16} parent=0 // pred_check
    _
  $region39: #{_lambda_.16} parent=0 // pred_check_branch
    %333 = sbr.rel (0) target = $region41
  $region40: #{_lambda_.16} parent=0 // pred_region
    _
  $region41: #{_lambda_.16} parent=0 // pred_fallthru
    _
  // Predicated region
  $region42: #{_lambda_.16} parent=0 // pred_check
    _
  $region43: #{_lambda_.16} parent=0 // pred_check_branch
    %335 = sbr.rel (0) target = $region45
  $region44: #{_lambda_.16} parent=0 // pred_region
    _
  $region45: #{_lambda_.16} parent=0 // pred_fallthru
    _

// kernel: _lambda_.11
$region0: #{_lambda_.11}
  #allocation0 [shape = 'u32[]', space=smem, size = 0x4, offset = 0x4, fixed_abs, tag = 'smem constant byte address 0x4 - core index']
  #allocation1 [shape = 'u32[144,128]{1,0:T(1,128)}', space=vmem, size = 0x12000, scoped, tag = 'internal scratch']
  #allocation2 [shape = 'f32[21,2,8,32]{3,2,1,0:T(8,128)}', space=vmem, size = 0x2a000, scoped, tag = 'scratch operand']
  #allocation3 [shape = 'f32[21,2,8,32]{3,2,1,0:T(8,128)}', space=vmem, size = 0x2a000, scoped, tag = 'scratch operand']
  #allocation4 [shape = 'f32[21,2,8,32]{3,2,1,0:T(8,128)}', space=vmem, size = 0x2a000, scoped, tag = 'scratch operand']
  #allocation5 [shape = 'f32[21,2,8,32]{3,2,1,0:T(8,128)}', space=vmem, size = 0x2a000, scoped, tag = 'scratch operand']
  #allocation6 [shape = 'f32[21,2,8,32]{3,2,1,0:T(8,128)}', space=vmem, size = 0x2a000, scoped, tag = 'scratch operand']
  #allocation7 [shape = 'f32[21,2,8,32]{3,2,1,0:T(8,128)}', space=vmem, size = 0x2a000, scoped, tag = 'scratch operand']
  %s0 = inlined_call_operand.vmem [shape: bf16[21,2,32], index: 0, kind: input, shape index: {}]
  %s1 = inlined_call_operand.vmem [shape: bf16[32,128], index: 1, kind: input, shape index: {}]
  %s2 = inlined_call_operand.vmem [shape: f32[1,64], index: 2, kind: input, shape index: {}]
  %s3 = inlined_call_operand.vmem [shape: f32[1,64], index: 3, kind: input, shape index: {}]
  %s4 = inlined_call_operand.vmem [shape: f32[1,64], index: 4, kind: input, shape index: {}]
  %s5 = inlined_call_operand.vmem [shape: bf16[64,36], index: 5, kind: input, shape index: {}]
  %s6 = inlined_call_operand.vmem [shape: bf16[4,64], index: 6, kind: input, shape index: {}]
  %s7 = inlined_call_operand.vmem [shape: f32[1,64], index: 7, kind: input, shape index: {}]
  %s8 = inlined_call_operand.vmem [shape: f32[8,64], index: 8, kind: input, shape index: {}]
  %s9 = inlined_call_operand.vmem [shape: f32[1,64], index: 9, kind: input, shape index: {}]
  %s10 = inlined_call_operand.vmem [shape: bf16[64,32], index: 10, kind: input, shape index: {}]
  %s11 = inlined_call_operand.vmem [shape: bf16[21,2,32], index: 11, kind: output, shape index: {}]
  %s12 = sld [smem:[#allocation0]]
  $region61: #{_lambda_.11} parent=0
    _
  %s14 = ssub.s32 1, %s12
  %s15 = scalar_select 0, %s14, %s12
  // Predicated region
  $region2: #{_lambda_.11} parent=0 // pred_check
    _
  $region3: #{_lambda_.11} parent=0 // pred_check_branch
    %17 = sbr.rel (0) target = $region5
  $region4: #{_lambda_.11} parent=0 // pred_region
    _
  $region5: #{_lambda_.11} parent=0 // pred_fallthru
    _
  // Predicated region
  $region6: #{_lambda_.11} parent=0 // pred_check
    _
  $region7: #{_lambda_.11} parent=0 // pred_check_branch
    %19 = sbr.rel (0) target = $region9
  $region8: #{_lambda_.11} parent=0 // pred_region
    _
  $region9: #{_lambda_.11} parent=0 // pred_fallthru
    _
  // Predicated region
  $region10: #{_lambda_.11} parent=0 // pred_check
    _
  $region11: #{_lambda_.11} parent=0 // pred_check_branch
    %21 = sbr.rel (0) target = $region13
  $region12: #{_lambda_.11} parent=0 // pred_region
    _
  $region13: #{_lambda_.11} parent=0 // pred_fallthru
    _
  // Predicated region
  $region14: #{_lambda_.11} parent=0 // pred_check
    _
  $region15: #{_lambda_.11} parent=0 // pred_check_branch
    %23 = sbr.rel (0) target = $region17
  $region16: #{_lambda_.11} parent=0 // pred_region
    _
  $region17: #{_lambda_.11} parent=0 // pred_fallthru
    _
  // Predicated region
  $region18: #{_lambda_.11} parent=0 // pred_check
    _
  $region19: #{_lambda_.11} parent=0 // pred_check_branch
    %25 = sbr.rel (0) target = $region21
  $region20: #{_lambda_.11} parent=0 // pred_region
    _
  $region21: #{_lambda_.11} parent=0 // pred_fallthru
    _
  // Predicated region
  $region22: #{_lambda_.11} parent=0 // pred_check
    _
  $region23: #{_lambda_.11} parent=0 // pred_check_branch
    %27 = sbr.rel (0) target = $region25
  $region24: #{_lambda_.11} parent=0 // pred_region
    _
  $region25: #{_lambda_.11} parent=0 // pred_fallthru
    _
  // Predicated region
  $region26: #{_lambda_.11} parent=0 // pred_check
    _
  $region27: #{_lambda_.11} parent=0 // pred_check_branch
    %29 = sbr.rel (0) target = $region29
  $region28: #{_lambda_.11} parent=0 // pred_region
    _
  $region29: #{_lambda_.11} parent=0 // pred_fallthru
    _
  // Predicated region
  $region30: #{_lambda_.11} parent=0 // pred_check
    _
  $region31: #{_lambda_.11} parent=0 // pred_check_branch
    %31 = sbr.rel (0) target = $region33
  $region32: #{_lambda_.11} parent=0 // pred_region
    _
  $region33: #{_lambda_.11} parent=0 // pred_fallthru
    _
  // Predicated region
  $region34: #{_lambda_.11} parent=0 // pred_check
    _
  $region35: #{_lambda_.11} parent=0 // pred_check_branch
    %33 = sbr.rel (0) target = $region37
  $region36: #{_lambda_.11} parent=0 // pred_region
    _
  $region37: #{_lambda_.11} parent=0 // pred_fallthru
    _
  // Predicated region
  $region38: #{_lambda_.11} parent=0 // pred_check
    _
  $region39: #{_lambda_.11} parent=0 // pred_check_branch
    %35 = sbr.rel (0) target = $region41
  $region40: #{_lambda_.11} parent=0 // pred_region
    _
  $region41: #{_lambda_.11} parent=0 // pred_fallthru
    _
  // Predicated region
  $region42: #{_lambda_.11} parent=0 // pred_check
    _
  $region43: #{_lambda_.11} parent=0 // pred_check_branch
    %37 = sbr.rel (0) target = $region45
  $region44: #{_lambda_.11} parent=0 // pred_region
    _
  $region45: #{_lambda_.11} parent=0 // pred_fallthru
    _
  %v39 = vld [vmem:[%s0] sm:$0x1]
  %v40 = vld [vmem:[%s0 + $0x1] sm:$0x1]
  %v41 = vld [vmem:[%s0 + $0x2] sm:$0x1]
  %v42 = vld [vmem:[%s0 + $0x3] sm:$0x1]
  %v43 = vld [vmem:[%s0 + $0x4] sm:$0x1]
  %v44 = vld [vmem:[%s0 + $0x5] sm:$0x1]
  %v45 = vld [vmem:[%s0 + $0x6] sm:$0x1]
  %v46 = vld [vmem:[%s0 + $0x7] sm:$0x1]
  %v47 = vld [vmem:[%s0 + $0x8] sm:$0x1]
  %v48 = vld [vmem:[%s0 + $0x9] sm:$0x1]
  %v49 = vld [vmem:[%s0 + $0xa] sm:$0x1]
  %v50 = vld [vmem:[%s0 + $0xb] sm:$0x1]
  %v51 = vld [vmem:[%s0 + $0xc] sm:$0x1]
  %v52 = vld [vmem:[%s0 + $0xd] sm:$0x1]
  %v53 = vld [vmem:[%s0 + $0xe] sm:$0x1]
  %v54 = vld [vmem:[%s0 + $0xf] sm:$0x1]
  %v55 = vld [vmem:[%s0 + $0x10] sm:$0x1]
  %v56 = vld [vmem:[%s0 + $0x11] sm:$0x1]
  %v57 = vld [vmem:[%s0 + $0x12] sm:$0x1]
  %v58 = vld [vmem:[%s0 + $0x13] sm:$0x1]
  %v59 = vld [vmem:[%s0 + $0x14] sm:$0x1]
  %v60 = vld [vmem:[%s1] sm:$0xf]
  %v61 = vld [vmem:[%s1 + $0x4] sm:$0xf]
  %v62 = vld [vmem:[%s1 + $0x8] sm:$0xf]
  %v63 = vld [vmem:[%s1 + $0xc] sm:$0xf]
  %v85 = vcombine.low %v39, %v40
  %v86 = vcombine.low %v41, %v42
  %v87 = vcombine.low %v43, %v44
  %v88 = vcombine.low %v45, %v46
  %v90 = vunpack.c.l.s4 1966171168
  %v91 = vunpack.c.0.s8 %v90
  %v92 = vlaneseq
  %v93 = vshrl.u32 %v92, 7
  %v94 = vsub.s32 %v91, %v93
  %v95 = vrot.slane %v85, %v94
  %v97 = vunpack.c.l.s4 1966171168
  %v98 = vunpack.c.0.s8 %v97
  %v99 = vlaneseq
  %v100 = vshrl.u32 %v99, 7
  %v101 = vsub.s32 %v98, %v100
  %v102 = vrot.slane %v86, %v101
  %v104 = vunpack.c.l.s4 1966171168
  %v105 = vunpack.c.0.s8 %v104
  %v106 = vlaneseq
  %v107 = vshrl.u32 %v106, 7
  %v108 = vsub.s32 %v105, %v107
  %v109 = vrot.slane %v87, %v108
  %v111 = vunpack.c.l.s4 1966171168
  %v112 = vunpack.c.0.s8 %v111
  %v113 = vlaneseq
  %v114 = vshrl.u32 %v113, 7
  %v115 = vsub.s32 %v112, %v114
  %v116 = vrot.slane %v88, %v115
  %v117 = vcombine.low %v95, %v102
  %v118 = vcombine.low %v109, %v116
  %v120 = vunpack.c.l.s4 1966171168
  %v121 = vunpack.c.0.s8 %v120
  %v122 = vlaneseq
  %v123 = vshrl.u32 %v122, 7
  %v124 = vsub.s32 %v121, %v123
  %v125 = vrot.slane %v117, %v124
  %v127 = vunpack.c.l.s4 1966171168
  %v128 = vunpack.c.0.s8 %v127
  %v129 = vlaneseq
  %v130 = vshrl.u32 %v129, 7
  %v131 = vsub.s32 %v128, %v130
  %v132 = vrot.slane %v118, %v131
  %v133 = vcombine.low %v125, %v132
  %v134 = vcombine.low %v47, %v48
  %v135 = vcombine.low %v49, %v50
  %v136 = vcombine.low %v51, %v52
  %v137 = vcombine.low %v53, %v54
  %v139 = vunpack.c.l.s4 1966171168
  %v140 = vunpack.c.0.s8 %v139
  %v141 = vlaneseq
  %v142 = vshrl.u32 %v141, 7
  %v143 = vsub.s32 %v140, %v142
  %v144 = vrot.slane %v134, %v143
  %v146 = vunpack.c.l.s4 1966171168
  %v147 = vunpack.c.0.s8 %v146
  %v148 = vlaneseq
  %v149 = vshrl.u32 %v148, 7
  %v150 = vsub.s32 %v147, %v149
  %v151 = vrot.slane %v135, %v150
  %v153 = vunpack.c.l.s4 1966171168
  %v154 = vunpack.c.0.s8 %v153
  %v155 = vlaneseq
  %v156 = vshrl.u32 %v155, 7
  %v157 = vsub.s32 %v154, %v156
  %v158 = vrot.slane %v136, %v157
  %v160 = vunpack.c.l.s4 1966171168
  %v161 = vunpack.c.0.s8 %v160
  %v162 = vlaneseq
  %v163 = vshrl.u32 %v162, 7
  %v164 = vsub.s32 %v161, %v163
  %v165 = vrot.slane %v137, %v164
  %v166 = vcombine.low %v144, %v151
  %v167 = vcombine.low %v158, %v165
  %v169 = vunpack.c.l.s4 1966171168
  %v170 = vunpack.c.0.s8 %v169
  %v171 = vlaneseq
  %v172 = vshrl.u32 %v171, 7
  %v173 = vsub.s32 %v170, %v172
  %v174 = vrot.slane %v166, %v173
  %v176 = vunpack.c.l.s4 1966171168
  %v177 = vunpack.c.0.s8 %v176
  %v178 = vlaneseq
  %v179 = vshrl.u32 %v178, 7
  %v180 = vsub.s32 %v177, %v179
  %v181 = vrot.slane %v167, %v180
  %v182 = vcombine.low %v174, %v181
  %v183 = vcombine.low %v55, %v56
  %v184 = vcombine.low %v57, %v58
  %v186 = vunpack.c.l.s4 1966171168
  %v187 = vunpack.c.0.s8 %v186
  %v188 = vlaneseq
  %v189 = vshrl.u32 %v188, 7
  %v190 = vsub.s32 %v187, %v189
  %v191 = vrot.slane %v183, %v190
  %v193 = vunpack.c.l.s4 1966171168
  %v194 = vunpack.c.0.s8 %v193
  %v195 = vlaneseq
  %v196 = vshrl.u32 %v195, 7
  %v197 = vsub.s32 %v194, %v196
  %v198 = vrot.slane %v184, %v197
  %v200 = vunpack.c.l.s4 1966171168
  %v201 = vunpack.c.0.s8 %v200
  %v202 = vlaneseq
  %v203 = vshrl.u32 %v202, 7
  %v204 = vsub.s32 %v201, %v203
  %v205 = vrot.slane %v59, %v204
  %v206 = vcombine.low %v191, %v198
  %v208 = vunpack.c.l.s4 1966171168
  %v209 = vunpack.c.0.s8 %v208
  %v210 = vlaneseq
  %v211 = vshrl.u32 %v210, 7
  %v212 = vsub.s32 %v209, %v211
  %v213 = vrot.slane %v206, %v212
  %v215 = vunpack.c.l.s4 1966171168
  %v216 = vunpack.c.0.s8 %v215
  %v217 = vlaneseq
  %v218 = vshrl.u32 %v217, 7
  %v219 = vsub.s32 %v216, %v218
  %v220 = vrot.slane %v205, %v219
  %v221 = vcombine.low %v213, %v220
  %v226 = vunpack.c.l.b16 %v60
  %v227 = vunpack.c.l.b16 %v61
  %v228 = vunpack.c.l.b16 %v62
  %v229 = vunpack.c.l.b16 %v63
  %v230 = vpack.c.b16 %v227, %v226
  %v231 = vpack.c.b16 %v229, %v228
  %vm234 = vcmask 261120
  %v236 = vsel %vm234, %v133, 0
  %v239 = vsel %vm234, %v182, 0
  %v242 = vsel %vm234, %v221, 0
  %244 = vmatprep.subr.bf16.mxu0 0
  %245 = vmatpush1.bf16.msra.mxu0 %v230
  %246 = vmatprep.subr.bf16.mxu0 0
  %247 = vmatpush1.bf16.msra.mxu0 %v231
  %248 = vmatprep.subr.bf16.mxu0 0
  %249 = vmatpush1.bf16.msra.mxu0 0
  %250 = vmatprep.subr.bf16.mxu0 0
  %251 = vmatpush1.bf16.msra.mxu0 0
  %252 = vmatprep.subr.bf16.mxu0 0
  %253 = vmatpush1.bf16.msra.mxu0 0
  %254 = vmatprep.subr.bf16.mxu0 0
  %255 = vmatpush1.bf16.msra.mxu0 0
  %256 = vmatprep.subr.bf16.mxu0 0
  %257 = vmatpush1.bf16.msra.mxu0 0
  %258 = vmatprep.subr.bf16.mxu0 0
  %259 = vmatpush1.bf16.msra.mxu0 0
  %260 = vmatprep.subr.bf16.mxu0 0
  %261 = vmatpush1.bf16.msra.mxu0 0
  %262 = vmatprep.subr.bf16.mxu0 0
  %263 = vmatpush1.bf16.msra.mxu0 0
  %264 = vmatprep.subr.bf16.mxu0 0
  %265 = vmatpush1.bf16.msra.mxu0 0
  %266 = vmatprep.subr.bf16.mxu0 0
  %267 = vmatpush1.bf16.msra.mxu0 0
  %268 = vmatprep.subr.bf16.mxu0 0
  %269 = vmatpush1.bf16.msra.mxu0 0
  %270 = vmatprep.subr.bf16.mxu0 0
  %271 = vmatpush1.bf16.msra.mxu0 0
  %272 = vmatprep.subr.bf16.mxu0 0
  %273 = vmatpush1.bf16.msra.mxu0 0
  %274 = vmatprep.subr.bf16.mxu0 0
  %275 = vmatpush1.bf16.msra.mxu0 0
  %276 = vmatprep.mubr.bf16.mxu0 0
  %277 = vmatmul.mubr.bf16.gmra.mrb[0].mxu0 %v236
  %v278 = vpop.f32.mrb[0].mxu0
  %v279 = vadd.f32 0.0, %v278
  %v280 = vpop.f32.mrb[0].mxu0
  %v281 = vpop.f32.mrb[0].mxu0
  %v282 = vadd.f32 0.0, %v281
  %v283 = vpop.f32.mrb[0].mxu0
  %284 = vmatprep.mubr.bf16.mxu0 0
  %285 = vmatmul.mubr.bf16.gmra.mrb[0].mxu0 %v239
  %v286 = vpop.f32.mrb[0].mxu0
  %v287 = vadd.f32 0.0, %v286
  %v288 = vpop.f32.mrb[0].mxu0
  %v289 = vpop.f32.mrb[0].mxu0
  %v290 = vadd.f32 0.0, %v289
  %v291 = vpop.f32.mrb[0].mxu0
  %292 = vmatprep.mubr.bf16.mxu0 0
  %293 = vmatmul.mubr.bf16.gmra.mrb[0].mxu0 %v242
  %v294 = vpop.f32.mrb[0].mxu0
  %v295 = vadd.f32 0.0, %v294
  %v296 = vpop.f32.mrb[0].mxu0
  %v297 = vpop.f32.mrb[0].mxu0
  %v298 = vadd.f32 0.0, %v297
  %v299 = vpop.f32.mrb[0].mxu0
  %300 = vdwg.mxu0
  %v301 = vlaneseq
  %v302 = vshrl.u32 %v301, 7
  %v303 = vadd.s32 %v302, 8
  %v304 = vadd.s32 %v302, 16
  %v305 = vadd.s32 %v302, 24
  %v306 = vadd.s32 %v302, 32
  %v307 = vadd.s32 %v302, 40
  %v308 = vlaneseq
  %v309 = vand.u32 %v308, 127
  %vm310 = vcmp.lt.s32.totalorder %v302, 2
  %vm311 = vcmp.lt.s32.totalorder %v303, 2
  %vm312 = vcmp.lt.s32.totalorder %v304, 2
  %vm313 = vcmp.lt.s32.totalorder %v305, 2
  %vm314 = vcmp.lt.s32.totalorder %v306, 2
  %vm315 = vcmp.lt.s32.totalorder %v307, 2
  %vm316 = vcmask 1047554
  %v317 = vrot.slane %v279, 6
  %v318 = vsel %vm316, %v317, %v298
  %v319 = vrot.slane %v282, 6
  %v320 = vrot.slane %v287, 6
  %v321 = vrot.slane %v290, 6
  %v322 = vrot.slane %v295, 6
  %v323 = vrot.slane %v318, 6
  %v324 = vsel %vm316, %v319, %v317
  %v325 = vsel %vm316, %v320, %v319
  %v326 = vsel %vm316, %v321, %v320
  %v327 = vsel %vm316, %v322, %v321
  %v328 = vsel %vm316, %v323, %v322
  %v329 = vsel %vm310, 1, 0
  %v330 = vsel %vm311, 1, 0
  %v331 = vsel %vm312, 1, 0
  %v332 = vsel %vm313, 1, 0
  %v333 = vsel %vm314, 1, 0
  %v334 = vsel %vm315, 1, 0
  %vm335 = vcmp.eq.s32.totalorder %v329, 1
  %vm336 = vcmp.eq.s32.totalorder %v330, 1
  %vm337 = vcmp.eq.s32.totalorder %v331, 1
  %vm338 = vcmp.eq.s32.totalorder %v332, 1
  %vm339 = vcmp.eq.s32.totalorder %v333, 1
  %vm340 = vcmp.eq.s32.totalorder %v334, 1
  %v341 = vsel %vm335, 0.0, %v318
  %v342 = vsel %vm336, 0.0, %v324
  %v343 = vsel %vm337, 0.0, %v325
  %v344 = vsel %vm338, 0.0, %v326
  %v345 = vsel %vm339, 0.0, %v327
  %v346 = vsel %vm340, 0.0, %v328
  %vm347 = vcmp.ge.s32.totalorder %v302, 40
  %vm348 = vcmp.ge.s32.totalorder %v303, 40
  %vm349 = vcmp.ge.s32.totalorder %v304, 40
  %vm350 = vcmp.ge.s32.totalorder %v305, 40
  %vm351 = vcmp.ge.s32.totalorder %v306, 40
  %vm352 = vcmp.ge.s32.totalorder %v307, 40
  %v353 = vsel %vm347, 1, 0
  %v354 = vsel %vm348, 1, 0
  %v355 = vsel %vm349, 1, 0
  %v356 = vsel %vm350, 1, 0
  %v357 = vsel %vm351, 1, 0
  %v358 = vsel %vm352, 1, 0
  %vm359 = vcmp.eq.s32.totalorder %v353, 1
  %vm360 = vcmp.eq.s32.totalorder %v354, 1
  %vm361 = vcmp.eq.s32.totalorder %v355, 1
  %vm362 = vcmp.eq.s32.totalorder %v356, 1
  %vm363 = vcmp.eq.s32.totalorder %v357, 1
  %vm364 = vcmp.eq.s32.totalorder %v358, 1
  %vm371 = vcmask 1045504
  %v372 = vrot.slane %v279, 2
  %v373 = vrot.slane %v282, 2
  %v374 = vsel %vm371, %v372, %v373
  %v375 = vrot.slane %v287, 2
  %v376 = vsel %vm371, %v373, %v375
  %v377 = vrot.slane %v290, 2
  %v378 = vsel %vm371, %v375, %v377
  %v379 = vrot.slane %v295, 2
  %v380 = vsel %vm371, %v377, %v379
  %v381 = vrot.slane %v318, 2
  %v382 = vsel %vm371, %v379, %v381
  %v389 = vsel %vm359, 0.0, %v374
  %v390 = vsel %vm360, 0.0, %v376
  %v391 = vsel %vm361, 0.0, %v378
  %v392 = vsel %vm362, 0.0, %v380
  %v393 = vsel %vm363, 0.0, %v382
  %v394 = vsel %vm364, 0.0, %v381
  %vm395 = vcmp.lt.s32.totalorder %v309, 32
  %v396 = vsel %vm395, %v341, %v389
  %v397 = vsel %vm395, %v342, %v390
  %v398 = vsel %vm395, %v343, %v391
  %v399 = vsel %vm395, %v344, %v392
  %v400 = vsel %vm395, %v345, %v393
  %v401 = vsel %vm395, %v346, %v394
  %v402 = vld [vmem:[%s2] sm:$0x1]
  %v404 = vlaneseq
  %v405 = vshrl.u32 %v404, 7
  %v406 = vsub.s32 0, %v405
  %v407 = vrot.slane %v402, %v406
  %v409 = vmul.f32 %v279, %v407
  %v410 = vmul.f32 %v282, %v407
  %v411 = vmul.f32 %v287, %v407
  %v412 = vmul.f32 %v290, %v407
  %v413 = vmul.f32 %v295, %v407
  %v414 = vmul.f32 %v298, %v407
  %v415 = vld [vmem:[%s3] sm:$0x1]
  %v417 = vlaneseq
  %v418 = vshrl.u32 %v417, 7
  %v419 = vsub.s32 0, %v418
  %v420 = vrot.slane %v415, %v419
  %v422 = vmul.f32 %v396, %v420
  %v423 = vmul.f32 %v397, %v420
  %v424 = vmul.f32 %v398, %v420
  %v425 = vmul.f32 %v399, %v420
  %v426 = vmul.f32 %v400, %v420
  %v427 = vmul.f32 %v401, %v420
  %v428 = vadd.f32 %v409, %v422
  %v429 = vadd.f32 %v410, %v423
  %v430 = vadd.f32 %v411, %v424
  %v431 = vadd.f32 %v412, %v425
  %v432 = vadd.f32 %v413, %v426
  %v433 = vadd.f32 %v414, %v427
  %v434 = vld [vmem:[%s4] sm:$0x1]
  %v436 = vlaneseq
  %v437 = vshrl.u32 %v436, 7
  %v438 = vsub.s32 0, %v437
  %v439 = vrot.slane %v434, %v438
  %v441 = vadd.f32 %v428, %v439
  %v442 = vadd.f32 %v429, %v439
  %v443 = vadd.f32 %v430, %v439
  %v444 = vadd.f32 %v431, %v439
  %v445 = vadd.f32 %v432, %v439
  %v446 = vadd.f32 %v433, %v439
  %v447 = vsub.f32 0.0, %v441
  %v448 = vsub.f32 0.0, %v442
  %v449 = vsub.f32 0.0, %v443
  %v450 = vsub.f32 0.0, %v444
  %v451 = vsub.f32 0.0, %v445
  %v452 = vsub.f32 0.0, %v446
  %v453 = vmul.f32 %v447, 1.442695
  %v454 = vpow.pop %v453
  %v455 = vmul.f32 %v448, 1.442695
  %v456 = vpow.pop %v455
  %v457 = vmul.f32 %v449, 1.442695
  %v458 = vpow.pop %v457
  %v459 = vmul.f32 %v450, 1.442695
  %v460 = vpow.pop %v459
  %v461 = vmul.f32 %v451, 1.442695
  %v462 = vpow.pop %v461
  %v463 = vmul.f32 %v452, 1.442695
  %v464 = vpow.pop %v463
  %v465 = vadd.f32 %v454, 1.0
  %v466 = vadd.f32 %v456, 1.0
  %v467 = vadd.f32 %v458, 1.0
  %v468 = vadd.f32 %v460, 1.0
  %v469 = vadd.f32 %v462, 1.0
  %v470 = vadd.f32 %v464, 1.0
  %v471 = vrcp.pop %v465
  %v472 = vmul.f32 1.0, %v471
  %v473 = vrcp.pop %v466
  %v474 = vmul.f32 1.0, %v473
  %v475 = vrcp.pop %v467
  %v476 = vmul.f32 1.0, %v475
  %v477 = vrcp.pop %v468
  %v478 = vmul.f32 1.0, %v477
  %v479 = vrcp.pop %v469
  %v480 = vmul.f32 1.0, %v479
  %v481 = vrcp.pop %v470
  %v482 = vmul.f32 1.0, %v481
  %v483 = vmul.f32 %v441, %v472
  %v484 = vmul.f32 %v442, %v474
  %v485 = vmul.f32 %v443, %v476
  %v486 = vmul.f32 %v444, %v478
  %v487 = vmul.f32 %v445, %v480
  %v488 = vmul.f32 %v446, %v482
  %v489 = vpack.c.bf16 %v484, %v483
  %v490 = vpack.c.bf16 %v486, %v485
  %v491 = vpack.c.bf16 %v488, %v487
  %v492 = vld [vmem:[%s5] sm:$0xf]
  %v493 = vld [vmem:[%s5 + $0x4] sm:$0xf]
  %v494 = vld [vmem:[%s5 + $0x8] sm:$0xf]
  %v495 = vld [vmem:[%s5 + $0xc] sm:$0xf]
  %v496 = vld [vmem:[%s5 + $0x10] sm:$0xf]
  %v497 = vld [vmem:[%s5 + $0x14] sm:$0xf]
  %v498 = vld [vmem:[%s5 + $0x18] sm:$0xf]
  %v499 = vld [vmem:[%s5 + $0x1c] sm:$0xf]
  %v508 = vunpack.c.l.b16 %v492
  %v509 = vunpack.c.l.b16 %v493
  %v510 = vunpack.c.l.b16 %v494
  %v511 = vunpack.c.l.b16 %v495
  %v512 = vunpack.c.l.b16 %v496
  %v513 = vunpack.c.l.b16 %v497
  %v514 = vunpack.c.l.b16 %v498
  %v515 = vunpack.c.l.b16 %v499
  %v516 = vpack.c.b16 %v509, %v508
  %v517 = vpack.c.b16 %v511, %v510
  %v518 = vpack.c.b16 %v513, %v512
  %v519 = vpack.c.b16 %v515, %v514
  %vm524 = vcmask 523264
  %v526 = vsel %vm524, %v489, 0
  %v529 = vsel %vm524, %v490, 0
  %v532 = vsel %vm524, %v491, 0
  %534 = vmatprep.subr.bf16.mxu0 0
  %535 = vmatpush1.bf16.msra.mxu0 %v516
  %536 = vmatprep.subr.bf16.mxu0 0
  %537 = vmatpush1.bf16.msra.mxu0 %v517
  %538 = vmatprep.subr.bf16.mxu0 0
  %539 = vmatpush1.bf16.msra.mxu0 %v518
  %540 = vmatprep.subr.bf16.mxu0 0
  %541 = vmatpush1.bf16.msra.mxu0 %v519
  %542 = vmatprep.subr.bf16.mxu0 0
  %543 = vmatpush1.bf16.msra.mxu0 0
  %544 = vmatprep.subr.bf16.mxu0 0
  %545 = vmatpush1.bf16.msra.mxu0 0
  %546 = vmatprep.subr.bf16.mxu0 0
  %547 = vmatpush1.bf16.msra.mxu0 0
  %548 = vmatprep.subr.bf16.mxu0 0
  %549 = vmatpush1.bf16.msra.mxu0 0
  %550 = vmatprep.subr.bf16.mxu0 0
  %551 = vmatpush1.bf16.msra.mxu0 0
  %552 = vmatprep.subr.bf16.mxu0 0
  %553 = vmatpush1.bf16.msra.mxu0 0
  %554 = vmatprep.subr.bf16.mxu0 0
  %555 = vmatpush1.bf16.msra.mxu0 0
  %556 = vmatprep.subr.bf16.mxu0 0
  %557 = vmatpush1.bf16.msra.mxu0 0
  %558 = vmatprep.subr.bf16.mxu0 0
  %559 = vmatpush1.bf16.msra.mxu0 0
  %560 = vmatprep.subr.bf16.mxu0 0
  %561 = vmatpush1.bf16.msra.mxu0 0
  %562 = vmatprep.subr.bf16.mxu0 0
  %563 = vmatpush1.bf16.msra.mxu0 0
  %564 = vmatprep.subr.bf16.mxu0 0
  %565 = vmatpush1.bf16.msra.mxu0 0
  %566 = vmatprep.mubr.bf16.mxu0 0
  %567 = vmatmul.mubr.bf16.gmra.mrb[0].mxu0 %v526
  %v568 = vpop.f32.mrb[0].mxu0
  %v569 = vadd.f32 0.0, %v568
  %v570 = vpop.f32.mrb[0].mxu0
  %v571 = vpop.f32.mrb[0].mxu0
  %v572 = vadd.f32 0.0, %v571
  %v573 = vpop.f32.mrb[0].mxu0
  %574 = vmatprep.mubr.bf16.mxu0 0
  %575 = vmatmul.mubr.bf16.gmra.mrb[0].mxu0 %v529
  %v576 = vpop.f32.mrb[0].mxu0
  %v577 = vadd.f32 0.0, %v576
  %v578 = vpop.f32.mrb[0].mxu0
  %v579 = vpop.f32.mrb[0].mxu0
  %v580 = vadd.f32 0.0, %v579
  %v581 = vpop.f32.mrb[0].mxu0
  %582 = vmatprep.mubr.bf16.mxu0 0
  %583 = vmatmul.mubr.bf16.gmra.mrb[0].mxu0 %v532
  %v584 = vpop.f32.mrb[0].mxu0
  %v585 = vadd.f32 0.0, %v584
  %v586 = vpop.f32.mrb[0].mxu0
  %v587 = vpop.f32.mrb[0].mxu0
  %v588 = vadd.f32 0.0, %v587
  %v589 = vpop.f32.mrb[0].mxu0
  %590 = vdwg.mxu0
  %v591 = vpack.c.bf16 %v572, %v569
  %v592 = vpack.c.bf16 %v580, %v577
  %v593 = vpack.c.bf16 %v588, %v585
  %v594 = vld [vmem:[%s6] sm:$0x3]
  %v595 = vld [vmem:[%s7] sm:$0x1]
  %v597 = vlaneseq
  %v598 = vshrl.u32 %v597, 7
  %v599 = vsub.s32 0, %v598
  %v600 = vrot.slane %v595, %v599
  %vm602 = vcmask 31744
  %v604 = vsel %vm602, %v591, 0
  %v607 = vsel %vm602, %v592, 0
  %v610 = vsel %vm602, %v593, 0
  %vm612 = vcmask 1041408
  %v614 = vsel %vm612, %v594, 0
  %616 = vmatprep.subr.bf16.mxu0 0
  %617 = vmatpush1.bf16.msra.mxu0 %v614
  %618 = vmatprep.subr.bf16.mxu0 0
  %619 = vmatpush1.bf16.msra.mxu0 0
  %620 = vmatprep.subr.bf16.mxu0 0
  %621 = vmatpush1.bf16.msra.mxu0 0
  %622 = vmatprep.subr.bf16.mxu0 0
  %623 = vmatpush1.bf16.msra.mxu0 0
  %624 = vmatprep.subr.bf16.mxu0 0
  %625 = vmatpush1.bf16.msra.mxu0 0
  %626 = vmatprep.subr.bf16.mxu0 0
  %627 = vmatpush1.bf16.msra.mxu0 0
  %628 = vmatprep.subr.bf16.mxu0 0
  %629 = vmatpush1.bf16.msra.mxu0 0
  %630 = vmatprep.subr.bf16.mxu0 0
  %631 = vmatpush1.bf16.msra.mxu0 0
  %632 = vmatprep.subr.bf16.mxu0 0
  %633 = vmatpush1.bf16.msra.mxu0 0
  %634 = vmatprep.subr.bf16.mxu0 0
  %635 = vmatpush1.bf16.msra.mxu0 0
  %636 = vmatprep.subr.bf16.mxu0 0
  %637 = vmatpush1.bf16.msra.mxu0 0
  %638 = vmatprep.subr.bf16.mxu0 0
  %639 = vmatpush1.bf16.msra.mxu0 0
  %640 = vmatprep.subr.bf16.mxu0 0
  %641 = vmatpush1.bf16.msra.mxu0 0
  %642 = vmatprep.subr.bf16.mxu0 0
  %643 = vmatpush1.bf16.msra.mxu0 0
  %644 = vmatprep.subr.bf16.mxu0 0
  %645 = vmatpush1.bf16.msra.mxu0 0
  %646 = vmatprep.subr.bf16.mxu0 0
  %647 = vmatpush1.bf16.msra.mxu0 0
  %648 = vmatprep.mubr.bf16.mxu0 0
  %649 = vmatmul.mubr.bf16.gmra.mrb[0].mxu0 %v604
  %v650 = vpop.f32.mrb[0].mxu0
  %v651 = vadd.f32 %v600, %v650
  %v652 = vpop.f32.mrb[0].mxu0
  %v653 = vpop.f32.mrb[0].mxu0
  %v654 = vadd.f32 %v600, %v653
  %v655 = vpop.f32.mrb[0].mxu0
  %656 = vmatprep.mubr.bf16.mxu0 0
  %657 = vmatmul.mubr.bf16.gmra.mrb[0].mxu0 %v607
  %v658 = vpop.f32.mrb[0].mxu0
  %v659 = vadd.f32 %v600, %v658
  %v660 = vpop.f32.mrb[0].mxu0
  %v661 = vpop.f32.mrb[0].mxu0
  %v662 = vadd.f32 %v600, %v661
  %v663 = vpop.f32.mrb[0].mxu0
  %664 = vmatprep.mubr.bf16.mxu0 0
  %665 = vmatmul.mubr.bf16.gmra.mrb[0].mxu0 %v610
  %v666 = vpop.f32.mrb[0].mxu0
  %v667 = vadd.f32 %v600, %v666
  %v668 = vpop.f32.mrb[0].mxu0
  %v669 = vpop.f32.mrb[0].mxu0
  %v670 = vadd.f32 %v600, %v669
  %v671 = vpop.f32.mrb[0].mxu0
  %672 = vdwg.mxu0
  %v673 = vmax.f32 %v651, 0.0
  %v674 = vmax.f32 %v654, 0.0
  %v675 = vmax.f32 %v659, 0.0
  %v676 = vmax.f32 %v662, 0.0
  %v677 = vmax.f32 %v667, 0.0
  %v678 = vmax.f32 %v670, 0.0
  %v679 = vand.u32 2147483647, %v651
  %v680 = vand.u32 2147483647, %v654
  %v681 = vand.u32 2147483647, %v659
  %v682 = vand.u32 2147483647, %v662
  %v683 = vand.u32 2147483647, %v667
  %v684 = vand.u32 2147483647, %v670
  %v685 = vsub.f32 0.0, %v679
  %v686 = vsub.f32 0.0, %v680
  %v687 = vsub.f32 0.0, %v681
  %v688 = vsub.f32 0.0, %v682
  %v689 = vsub.f32 0.0, %v683
  %v690 = vsub.f32 0.0, %v684
  %v691 = vmul.f32 %v685, 1.442695
  %v692 = vpow.pop %v691
  %v693 = vmul.f32 %v686, 1.442695
  %v694 = vpow.pop %v693
  %v695 = vmul.f32 %v687, 1.442695
  %v696 = vpow.pop %v695
  %v697 = vmul.f32 %v688, 1.442695
  %v698 = vpow.pop %v697
  %v699 = vmul.f32 %v689, 1.442695
  %v700 = vpow.pop %v699
  %v701 = vmul.f32 %v690, 1.442695
  %v702 = vpow.pop %v701
  %v703 = vadd.f32 %v692, 1.0
  %v704 = vadd.f32 %v694, 1.0
  %v705 = vadd.f32 %v696, 1.0
  %v706 = vadd.f32 %v698, 1.0
  %v707 = vadd.f32 %v700, 1.0
  %v708 = vadd.f32 %v702, 1.0
  %v709 = vlog2.pop %v703
  %v710 = vmul.f32 %v709, 0.6931472
  %v711 = vlog2.pop %v704
  %v712 = vmul.f32 %v711, 0.6931472
  %v713 = vlog2.pop %v705
  %v714 = vmul.f32 %v713, 0.6931472
  %v715 = vlog2.pop %v706
  %v716 = vmul.f32 %v715, 0.6931472
  %v717 = vlog2.pop %v707
  %v718 = vmul.f32 %v717, 0.6931472
  %v719 = vlog2.pop %v708
  %v720 = vmul.f32 %v719, 0.6931472
  %v721 = vadd.f32 %v673, %v710
  %v722 = vadd.f32 %v674, %v712
  %v723 = vadd.f32 %v675, %v714
  %v724 = vadd.f32 %v676, %v716
  %v725 = vadd.f32 %v677, %v718
  %v726 = vadd.f32 %v678, %v720
  %v727 = vmul.f32 %v721, %v483
  %v728 = vmul.f32 %v722, %v484
  %v729 = vmul.f32 %v723, %v485
  %v730 = vmul.f32 %v724, %v486
  %v731 = vmul.f32 %v725, %v487
  %v732 = vmul.f32 %v726, %v488
  %v733 = vld [vmem:[%s8] sm:$0xff]
  %v740 = vcombine.high %v721, %v721
  %v742 = vunpack.c.l.s4 1966171168
  %v743 = vunpack.c.0.s8 %v742
  %v744 = vlaneseq
  %v745 = vshrl.u32 %v744, 7
  %v746 = vsub.s32 %v743, %v745
  %v747 = vrot.slane %v721, %v746
  %v749 = vunpack.c.l.s4 1966171168
  %v750 = vunpack.c.0.s8 %v749
  %v751 = vlaneseq
  %v752 = vshrl.u32 %v751, 7
  %v753 = vsub.s32 %v750, %v752
  %v754 = vrot.slane %v740, %v753
  %v755 = vcombine.high %v747, %v747
  %v756 = vcombine.high %v754, %v754
  %v758 = vunpack.c.l.s4 1966171168
  %v759 = vunpack.c.0.s8 %v758
  %v760 = vlaneseq
  %v761 = vshrl.u32 %v760, 7
  %v762 = vsub.s32 %v759, %v761
  %v763 = vrot.slane %v747, %v762
  %v765 = vunpack.c.l.s4 1966171168
  %v766 = vunpack.c.0.s8 %v765
  %v767 = vlaneseq
  %v768 = vshrl.u32 %v767, 7
  %v769 = vsub.s32 %v766, %v768
  %v770 = vrot.slane %v754, %v769
  %v772 = vunpack.c.l.s4 1966171168
  %v773 = vunpack.c.0.s8 %v772
  %v774 = vlaneseq
  %v775 = vshrl.u32 %v774, 7
  %v776 = vsub.s32 %v773, %v775
  %v777 = vrot.slane %v755, %v776
  %v779 = vunpack.c.l.s4 1966171168
  %v780 = vunpack.c.0.s8 %v779
  %v781 = vlaneseq
  %v782 = vshrl.u32 %v781, 7
  %v783 = vsub.s32 %v780, %v782
  %v784 = vrot.slane %v756, %v783
  %v785 = vcombine.high %v763, %v763
  %v786 = vcombine.high %v770, %v770
  %v787 = vcombine.high %v777, %v777
  %v788 = vcombine.high %v784, %v784
  %v789 = vcombine.high %v722, %v722
  %v791 = vunpack.c.l.s4 1966171168
  %v792 = vunpack.c.0.s8 %v791
  %v793 = vlaneseq
  %v794 = vshrl.u32 %v793, 7
  %v795 = vsub.s32 %v792, %v794
  %v796 = vrot.slane %v722, %v795
  %v798 = vunpack.c.l.s4 1966171168
  %v799 = vunpack.c.0.s8 %v798
  %v800 = vlaneseq
  %v801 = vshrl.u32 %v800, 7
  %v802 = vsub.s32 %v799, %v801
  %v803 = vrot.slane %v789, %v802
  %v804 = vcombine.high %v796, %v796
  %v805 = vcombine.high %v803, %v803
  %v807 = vunpack.c.l.s4 1966171168
  %v808 = vunpack.c.0.s8 %v807
  %v809 = vlaneseq
  %v810 = vshrl.u32 %v809, 7
  %v811 = vsub.s32 %v808, %v810
  %v812 = vrot.slane %v796, %v811
  %v814 = vunpack.c.l.s4 1966171168
  %v815 = vunpack.c.0.s8 %v814
  %v816 = vlaneseq
  %v817 = vshrl.u32 %v816, 7
  %v818 = vsub.s32 %v815, %v817
  %v819 = vrot.slane %v803, %v818
  %v821 = vunpack.c.l.s4 1966171168
  %v822 = vunpack.c.0.s8 %v821
  %v823 = vlaneseq
  %v824 = vshrl.u32 %v823, 7
  %v825 = vsub.s32 %v822, %v824
  %v826 = vrot.slane %v804, %v825
  %v828 = vunpack.c.l.s4 1966171168
  %v829 = vunpack.c.0.s8 %v828
  %v830 = vlaneseq
  %v831 = vshrl.u32 %v830, 7
  %v832 = vsub.s32 %v829, %v831
  %v833 = vrot.slane %v805, %v832
  %v834 = vcombine.high %v812, %v812
  %v835 = vcombine.high %v819, %v819
  %v836 = vcombine.high %v826, %v826
  %v837 = vcombine.high %v833, %v833
  %v838 = vcombine.high %v723, %v723
  %v840 = vunpack.c.l.s4 1966171168
  %v841 = vunpack.c.0.s8 %v840
  %v842 = vlaneseq
  %v843 = vshrl.u32 %v842, 7
  %v844 = vsub.s32 %v841, %v843
  %v845 = vrot.slane %v723, %v844
  %v847 = vunpack.c.l.s4 1966171168
  %v848 = vunpack.c.0.s8 %v847
  %v849 = vlaneseq
  %v850 = vshrl.u32 %v849, 7
  %v851 = vsub.s32 %v848, %v850
  %v852 = vrot.slane %v838, %v851
  %v853 = vcombine.high %v845, %v845
  %v854 = vcombine.high %v852, %v852
  %v856 = vunpack.c.l.s4 1966171168
  %v857 = vunpack.c.0.s8 %v856
  %v858 = vlaneseq
  %v859 = vshrl.u32 %v858, 7
  %v860 = vsub.s32 %v857, %v859
  %v861 = vrot.slane %v845, %v860
  %v863 = vunpack.c.l.s4 1966171168
  %v864 = vunpack.c.0.s8 %v863
  %v865 = vlaneseq
  %v866 = vshrl.u32 %v865, 7
  %v867 = vsub.s32 %v864, %v866
  %v868 = vrot.slane %v852, %v867
  %v870 = vunpack.c.l.s4 1966171168
  %v871 = vunpack.c.0.s8 %v870
  %v872 = vlaneseq
  %v873 = vshrl.u32 %v872, 7
  %v874 = vsub.s32 %v871, %v873
  %v875 = vrot.slane %v853, %v874
  %v877 = vunpack.c.l.s4 1966171168
  %v878 = vunpack.c.0.s8 %v877
  %v879 = vlaneseq
  %v880 = vshrl.u32 %v879, 7
  %v881 = vsub.s32 %v878, %v880
  %v882 = vrot.slane %v854, %v881
  %v883 = vcombine.high %v861, %v861
  %v884 = vcombine.high %v868, %v868
  %v885 = vcombine.high %v875, %v875
  %v886 = vcombine.high %v882, %v882
  %v887 = vcombine.high %v724, %v724
  %v889 = vunpack.c.l.s4 1966171168
  %v890 = vunpack.c.0.s8 %v889
  %v891 = vlaneseq
  %v892 = vshrl.u32 %v891, 7
  %v893 = vsub.s32 %v890, %v892
  %v894 = vrot.slane %v724, %v893
  %v896 = vunpack.c.l.s4 1966171168
  %v897 = vunpack.c.0.s8 %v896
  %v898 = vlaneseq
  %v899 = vshrl.u32 %v898, 7
  %v900 = vsub.s32 %v897, %v899
  %v901 = vrot.slane %v887, %v900
  %v902 = vcombine.high %v894, %v894
  %v903 = vcombine.high %v901, %v901
  %v905 = vunpack.c.l.s4 1966171168
  %v906 = vunpack.c.0.s8 %v905
  %v907 = vlaneseq
  %v908 = vshrl.u32 %v907, 7
  %v909 = vsub.s32 %v906, %v908
  %v910 = vrot.slane %v894, %v909
  %v912 = vunpack.c.l.s4 1966171168
  %v913 = vunpack.c.0.s8 %v912
  %v914 = vlaneseq
  %v915 = vshrl.u32 %v914, 7
  %v916 = vsub.s32 %v913, %v915
  %v917 = vrot.slane %v901, %v916
  %v919 = vunpack.c.l.s4 1966171168
  %v920 = vunpack.c.0.s8 %v919
  %v921 = vlaneseq
  %v922 = vshrl.u32 %v921, 7
  %v923 = vsub.s32 %v920, %v922
  %v924 = vrot.slane %v902, %v923
  %v926 = vunpack.c.l.s4 1966171168
  %v927 = vunpack.c.0.s8 %v926
  %v928 = vlaneseq
  %v929 = vshrl.u32 %v928, 7
  %v930 = vsub.s32 %v927, %v929
  %v931 = vrot.slane %v903, %v930
  %v932 = vcombine.high %v910, %v910
  %v933 = vcombine.high %v917, %v917
  %v934 = vcombine.high %v924, %v924
  %v935 = vcombine.high %v931, %v931
  %v936 = vcombine.high %v725, %v725
  %v938 = vunpack.c.l.s4 1966171168
  %v939 = vunpack.c.0.s8 %v938
  %v940 = vlaneseq
  %v941 = vshrl.u32 %v940, 7
  %v942 = vsub.s32 %v939, %v941
  %v943 = vrot.slane %v725, %v942
  %v945 = vunpack.c.l.s4 1966171168
  %v946 = vunpack.c.0.s8 %v945
  %v947 = vlaneseq
  %v948 = vshrl.u32 %v947, 7
  %v949 = vsub.s32 %v946, %v948
  %v950 = vrot.slane %v936, %v949
  %v951 = vcombine.high %v943, %v943
  %v952 = vcombine.high %v950, %v950
  %v954 = vunpack.c.l.s4 1966171168
  %v955 = vunpack.c.0.s8 %v954
  %v956 = vlaneseq
  %v957 = vshrl.u32 %v956, 7
  %v958 = vsub.s32 %v955, %v957
  %v959 = vrot.slane %v943, %v958
  %v961 = vunpack.c.l.s4 1966171168
  %v962 = vunpack.c.0.s8 %v961
  %v963 = vlaneseq
  %v964 = vshrl.u32 %v963, 7
  %v965 = vsub.s32 %v962, %v964
  %v966 = vrot.slane %v950, %v965
  %v968 = vunpack.c.l.s4 1966171168
  %v969 = vunpack.c.0.s8 %v968
  %v970 = vlaneseq
  %v971 = vshrl.u32 %v970, 7
  %v972 = vsub.s32 %v969, %v971
  %v973 = vrot.slane %v951, %v972
  %v975 = vunpack.c.l.s4 1966171168
  %v976 = vunpack.c.0.s8 %v975
  %v977 = vlaneseq
  %v978 = vshrl.u32 %v977, 7
  %v979 = vsub.s32 %v976, %v978
  %v980 = vrot.slane %v952, %v979
  %v981 = vcombine.high %v959, %v959
  %v982 = vcombine.high %v966, %v966
  %v983 = vcombine.high %v973, %v973
  %v984 = vcombine.high %v980, %v980
  %v986 = vunpack.c.l.s4 1966171168
  %v987 = vunpack.c.0.s8 %v986
  %v988 = vlaneseq
  %v989 = vshrl.u32 %v988, 7
  %v990 = vsub.s32 %v987, %v989
  %v991 = vrot.slane %v726, %v990
  %v992 = vcombine.high %v991, %v991
  %v994 = vunpack.c.l.s4 1966171168
  %v995 = vunpack.c.0.s8 %v994
  %v996 = vlaneseq
  %v997 = vshrl.u32 %v996, 7
  %v998 = vsub.s32 %v995, %v997
  %v999 = vrot.slane %v991, %v998
  %v1001 = vunpack.c.l.s4 1966171168
  %v1002 = vunpack.c.0.s8 %v1001
  %v1003 = vlaneseq
  %v1004 = vshrl.u32 %v1003, 7
  %v1005 = vsub.s32 %v1002, %v1004
  %v1006 = vrot.slane %v992, %v1005
  %v1007 = vlaneseq
  %v1008 = vshrl.u32 %v1007, 7
  %v1009 = vsub.s32 0, %v1008
  %v1010 = vrot.slane %v763, %v1009
  %v1011 = vlaneseq
  %v1012 = vshrl.u32 %v1011, 7
  %v1013 = vsub.s32 0, %v1012
  %v1014 = vrot.slane %v777, %v1013
  %v1015 = vlaneseq
  %v1016 = vshrl.u32 %v1015, 7
  %v1017 = vsub.s32 0, %v1016
  %v1018 = vrot.slane %v785, %v1017
  %v1019 = vlaneseq
  %v1020 = vshrl.u32 %v1019, 7
  %v1021 = vsub.s32 0, %v1020
  %v1022 = vrot.slane %v787, %v1021
  %v1023 = vlaneseq
  %v1024 = vshrl.u32 %v1023, 7
  %v1025 = vsub.s32 0, %v1024
  %v1026 = vrot.slane %v770, %v1025
  %v1027 = vlaneseq
  %v1028 = vshrl.u32 %v1027, 7
  %v1029 = vsub.s32 0, %v1028
  %v1030 = vrot.slane %v784, %v1029
  %v1031 = vlaneseq
  %v1032 = vshrl.u32 %v1031, 7
  %v1033 = vsub.s32 0, %v1032
  %v1034 = vrot.slane %v786, %v1033
  %v1035 = vlaneseq
  %v1036 = vshrl.u32 %v1035, 7
  %v1037 = vsub.s32 0, %v1036
  %v1038 = vrot.slane %v788, %v1037
  %v1039 = vlaneseq
  %v1040 = vshrl.u32 %v1039, 7
  %v1041 = vsub.s32 0, %v1040
  %v1042 = vrot.slane %v812, %v1041
  %v1043 = vlaneseq
  %v1044 = vshrl.u32 %v1043, 7
  %v1045 = vsub.s32 0, %v1044
  %v1046 = vrot.slane %v826, %v1045
  %v1047 = vlaneseq
  %v1048 = vshrl.u32 %v1047, 7
  %v1049 = vsub.s32 0, %v1048
  %v1050 = vrot.slane %v834, %v1049
  %v1051 = vlaneseq
  %v1052 = vshrl.u32 %v1051, 7
  %v1053 = vsub.s32 0, %v1052
  %v1054 = vrot.slane %v836, %v1053
  %v1055 = vlaneseq
  %v1056 = vshrl.u32 %v1055, 7
  %v1057 = vsub.s32 0, %v1056
  %v1058 = vrot.slane %v819, %v1057
  %v1059 = vlaneseq
  %v1060 = vshrl.u32 %v1059, 7
  %v1061 = vsub.s32 0, %v1060
  %v1062 = vrot.slane %v833, %v1061
  %v1063 = vlaneseq
  %v1064 = vshrl.u32 %v1063, 7
  %v1065 = vsub.s32 0, %v1064
  %v1066 = vrot.slane %v835, %v1065
  %v1067 = vlaneseq
  %v1068 = vshrl.u32 %v1067, 7
  %v1069 = vsub.s32 0, %v1068
  %v1070 = vrot.slane %v837, %v1069
  %v1071 = vlaneseq
  %v1072 = vshrl.u32 %v1071, 7
  %v1073 = vsub.s32 0, %v1072
  %v1074 = vrot.slane %v861, %v1073
  %v1075 = vlaneseq
  %v1076 = vshrl.u32 %v1075, 7
  %v1077 = vsub.s32 0, %v1076
  %v1078 = vrot.slane %v875, %v1077
  %v1079 = vlaneseq
  %v1080 = vshrl.u32 %v1079, 7
  %v1081 = vsub.s32 0, %v1080
  %v1082 = vrot.slane %v883, %v1081
  %v1083 = vlaneseq
  %v1084 = vshrl.u32 %v1083, 7
  %v1085 = vsub.s32 0, %v1084
  %v1086 = vrot.slane %v885, %v1085
  %v1087 = vlaneseq
  %v1088 = vshrl.u32 %v1087, 7
  %v1089 = vsub.s32 0, %v1088
  %v1090 = vrot.slane %v868, %v1089
  %v1091 = vlaneseq
  %v1092 = vshrl.u32 %v1091, 7
  %v1093 = vsub.s32 0, %v1092
  %v1094 = vrot.slane %v882, %v1093
  %v1095 = vlaneseq
  %v1096 = vshrl.u32 %v1095, 7
  %v1097 = vsub.s32 0, %v1096
  %v1098 = vrot.slane %v884, %v1097
  %v1099 = vlaneseq
  %v1100 = vshrl.u32 %v1099, 7
  %v1101 = vsub.s32 0, %v1100
  %v1102 = vrot.slane %v886, %v1101
  %v1103 = vlaneseq
  %v1104 = vshrl.u32 %v1103, 7
  %v1105 = vsub.s32 0, %v1104
  %v1106 = vrot.slane %v910, %v1105
  %v1107 = vlaneseq
  %v1108 = vshrl.u32 %v1107, 7
  %v1109 = vsub.s32 0, %v1108
  %v1110 = vrot.slane %v924, %v1109
  %v1111 = vlaneseq
  %v1112 = vshrl.u32 %v1111, 7
  %v1113 = vsub.s32 0, %v1112
  %v1114 = vrot.slane %v932, %v1113
  %v1115 = vlaneseq
  %v1116 = vshrl.u32 %v1115, 7
  %v1117 = vsub.s32 0, %v1116
  %v1118 = vrot.slane %v934, %v1117
  %v1119 = vlaneseq
  %v1120 = vshrl.u32 %v1119, 7
  %v1121 = vsub.s32 0, %v1120
  %v1122 = vrot.slane %v917, %v1121
  %v1123 = vlaneseq
  %v1124 = vshrl.u32 %v1123, 7
  %v1125 = vsub.s32 0, %v1124
  %v1126 = vrot.slane %v931, %v1125
  %v1127 = vlaneseq
  %v1128 = vshrl.u32 %v1127, 7
  %v1129 = vsub.s32 0, %v1128
  %v1130 = vrot.slane %v933, %v1129
  %v1131 = vlaneseq
  %v1132 = vshrl.u32 %v1131, 7
  %v1133 = vsub.s32 0, %v1132
  %v1134 = vrot.slane %v935, %v1133
  %v1135 = vlaneseq
  %v1136 = vshrl.u32 %v1135, 7
  %v1137 = vsub.s32 0, %v1136
  %v1138 = vrot.slane %v959, %v1137
  %v1139 = vlaneseq
  %v1140 = vshrl.u32 %v1139, 7
  %v1141 = vsub.s32 0, %v1140
  %v1142 = vrot.slane %v973, %v1141
  %v1143 = vlaneseq
  %v1144 = vshrl.u32 %v1143, 7
  %v1145 = vsub.s32 0, %v1144
  %v1146 = vrot.slane %v981, %v1145
  %v1147 = vlaneseq
  %v1148 = vshrl.u32 %v1147, 7
  %v1149 = vsub.s32 0, %v1148
  %v1150 = vrot.slane %v983, %v1149
  %v1151 = vlaneseq
  %v1152 = vshrl.u32 %v1151, 7
  %v1153 = vsub.s32 0, %v1152
  %v1154 = vrot.slane %v966, %v1153
  %v1155 = vlaneseq
  %v1156 = vshrl.u32 %v1155, 7
  %v1157 = vsub.s32 0, %v1156
  %v1158 = vrot.slane %v980, %v1157
  %v1159 = vlaneseq
  %v1160 = vshrl.u32 %v1159, 7
  %v1161 = vsub.s32 0, %v1160
  %v1162 = vrot.slane %v982, %v1161
  %v1163 = vlaneseq
  %v1164 = vshrl.u32 %v1163, 7
  %v1165 = vsub.s32 0, %v1164
  %v1166 = vrot.slane %v984, %v1165
  %v1167 = vlaneseq
  %v1168 = vshrl.u32 %v1167, 7
  %v1169 = vsub.s32 0, %v1168
  %v1170 = vrot.slane %v999, %v1169
  %v1171 = vlaneseq
  %v1172 = vshrl.u32 %v1171, 7
  %v1173 = vsub.s32 0, %v1172
  %v1174 = vrot.slane %v1006, %v1173
  %v1217 = vmul.f32 %v1010, %v733
  %v1218 = vmul.f32 %v1014, %v733
  %v1219 = vmul.f32 %v1018, %v733
  %v1220 = vmul.f32 %v1022, %v733
  %v1221 = vmul.f32 %v1026, %v733
  %v1222 = vmul.f32 %v1030, %v733
  %v1223 = vmul.f32 %v1034, %v733
  %v1224 = vmul.f32 %v1038, %v733
  %v1225 = vmul.f32 %v1042, %v733
  %v1226 = vmul.f32 %v1046, %v733
  %v1227 = vmul.f32 %v1050, %v733
  %v1228 = vmul.f32 %v1054, %v733
  %v1229 = vmul.f32 %v1058, %v733
  %v1230 = vmul.f32 %v1062, %v733
  %v1231 = vmul.f32 %v1066, %v733
  %v1232 = vmul.f32 %v1070, %v733
  %v1233 = vmul.f32 %v1074, %v733
  %v1234 = vmul.f32 %v1078, %v733
  %v1235 = vmul.f32 %v1082, %v733
  %v1236 = vmul.f32 %v1086, %v733
  %v1237 = vmul.f32 %v1090, %v733
  %v1238 = vmul.f32 %v1094, %v733
  %v1239 = vmul.f32 %v1098, %v733
  %v1240 = vmul.f32 %v1102, %v733
  %v1241 = vmul.f32 %v1106, %v733
  %v1242 = vmul.f32 %v1110, %v733
  %v1243 = vmul.f32 %v1114, %v733
  %v1244 = vmul.f32 %v1118, %v733
  %v1245 = vmul.f32 %v1122, %v733
  %v1246 = vmul.f32 %v1126, %v733
  %v1247 = vmul.f32 %v1130, %v733
  %v1248 = vmul.f32 %v1134, %v733
  %v1249 = vmul.f32 %v1138, %v733
  %v1250 = vmul.f32 %v1142, %v733
  %v1251 = vmul.f32 %v1146, %v733
  %v1252 = vmul.f32 %v1150, %v733
  %v1253 = vmul.f32 %v1154, %v733
  %v1254 = vmul.f32 %v1158, %v733
  %v1255 = vmul.f32 %v1162, %v733
  %v1256 = vmul.f32 %v1166, %v733
  %v1257 = vmul.f32 %v1170, %v733
  %v1258 = vmul.f32 %v1174, %v733
  %v1259 = vmul.f32 %v1217, 1.442695
  %v1260 = vpow.pop %v1259
  %v1261 = vmul.f32 %v1218, 1.442695
  %v1262 = vpow.pop %v1261
  %v1263 = vmul.f32 %v1219, 1.442695
  %v1264 = vpow.pop %v1263
  %v1265 = vmul.f32 %v1220, 1.442695
  %v1266 = vpow.pop %v1265
  %v1267 = vmul.f32 %v1221, 1.442695
  %v1268 = vpow.pop %v1267
  %v1269 = vmul.f32 %v1222, 1.442695
  %v1270 = vpow.pop %v1269
  %v1271 = vmul.f32 %v1223, 1.442695
  %v1272 = vpow.pop %v1271
  %v1273 = vmul.f32 %v1224, 1.442695
  %v1274 = vpow.pop %v1273
  %v1275 = vmul.f32 %v1225, 1.442695
  %v1276 = vpow.pop %v1275
  %v1277 = vmul.f32 %v1226, 1.442695
  %v1278 = vpow.pop %v1277
  %v1279 = vmul.f32 %v1227, 1.442695
  %v1280 = vpow.pop %v1279
  %v1281 = vmul.f32 %v1228, 1.442695
  %v1282 = vpow.pop %v1281
  %v1283 = vmul.f32 %v1229, 1.442695
  %v1284 = vpow.pop %v1283
  %v1285 = vmul.f32 %v1230, 1.442695
  %v1286 = vpow.pop %v1285
  %v1287 = vmul.f32 %v1231, 1.442695
  %v1288 = vpow.pop %v1287
  %v1289 = vmul.f32 %v1232, 1.442695
  %v1290 = vpow.pop %v1289
  %v1291 = vmul.f32 %v1233, 1.442695
  %v1292 = vpow.pop %v1291
  %v1293 = vmul.f32 %v1234, 1.442695
  %v1294 = vpow.pop %v1293
  %v1295 = vmul.f32 %v1235, 1.442695
  %v1296 = vpow.pop %v1295
  %v1297 = vmul.f32 %v1236, 1.442695
  %v1298 = vpow.pop %v1297
  %v1299 = vmul.f32 %v1237, 1.442695
  %v1300 = vpow.pop %v1299
  %v1301 = vmul.f32 %v1238, 1.442695
  %v1302 = vpow.pop %v1301
  %v1303 = vmul.f32 %v1239, 1.442695
  %v1304 = vpow.pop %v1303
  %v1305 = vmul.f32 %v1240, 1.442695
  %v1306 = vpow.pop %v1305
  %v1307 = vmul.f32 %v1241, 1.442695
  %v1308 = vpow.pop %v1307
  %v1309 = vmul.f32 %v1242, 1.442695
  %v1310 = vpow.pop %v1309
  %v1311 = vmul.f32 %v1243, 1.442695
  %v1312 = vpow.pop %v1311
  %v1313 = vmul.f32 %v1244, 1.442695
  %v1314 = vpow.pop %v1313
  %v1315 = vmul.f32 %v1245, 1.442695
  %v1316 = vpow.pop %v1315
  %v1317 = vmul.f32 %v1246, 1.442695
  %v1318 = vpow.pop %v1317
  %v1319 = vmul.f32 %v1247, 1.442695
  %v1320 = vpow.pop %v1319
  %v1321 = vmul.f32 %v1248, 1.442695
  %v1322 = vpow.pop %v1321
  %v1323 = vmul.f32 %v1249, 1.442695
  %v1324 = vpow.pop %v1323
  %v1325 = vmul.f32 %v1250, 1.442695
  %v1326 = vpow.pop %v1325
  %v1327 = vmul.f32 %v1251, 1.442695
  %v1328 = vpow.pop %v1327
  %v1329 = vmul.f32 %v1252, 1.442695
  %v1330 = vpow.pop %v1329
  %v1331 = vmul.f32 %v1253, 1.442695
  %v1332 = vpow.pop %v1331
  %v1333 = vmul.f32 %v1254, 1.442695
  %v1334 = vpow.pop %v1333
  %v1335 = vmul.f32 %v1255, 1.442695
  %v1336 = vpow.pop %v1335
  %v1337 = vmul.f32 %v1256, 1.442695
  %v1338 = vpow.pop %v1337
  %v1339 = vmul.f32 %v1257, 1.442695
  %v1340 = vpow.pop %v1339
  %v1341 = vmul.f32 %v1258, 1.442695
  %v1342 = vpow.pop %v1341
  %v1343 = vlaneseq
  %v1344 = vshrl.u32 %v1343, 7
  %v1345 = vsub.s32 0, %v1344
  %v1346 = vrot.slane %v569, %v1345
  %s1348 = sor.u32 256, 4
  %1349 = vbcast.lane.b32.xlu0 %v1346, %s1348
  %v1350 = vpop.permute.xlu0 %1349
  %v1351 = vlaneseq
  %v1352 = vshrl.u32 %v1351, 7
  %v1353 = vsub.s32 1, %v1352
  %v1354 = vrot.slane %v569, %v1353
  %s1356 = sor.u32 256, 4
  %1357 = vbcast.lane.b32.xlu0 %v1354, %s1356
  %v1358 = vpop.permute.xlu0 %1357
  %v1359 = vlaneseq
  %v1360 = vshrl.u32 %v1359, 7
  %v1361 = vsub.s32 2, %v1360
  %v1362 = vrot.slane %v569, %v1361
  %s1364 = sor.u32 256, 4
  %1365 = vbcast.lane.b32.xlu0 %v1362, %s1364
  %v1366 = vpop.permute.xlu0 %1365
  %v1367 = vlaneseq
  %v1368 = vshrl.u32 %v1367, 7
  %v1369 = vsub.s32 3, %v1368
  %v1370 = vrot.slane %v569, %v1369
  %s1372 = sor.u32 256, 4
  %1373 = vbcast.lane.b32.xlu0 %v1370, %s1372
  %v1374 = vpop.permute.xlu0 %1373
  %v1375 = vlaneseq
  %v1376 = vshrl.u32 %v1375, 7
  %v1377 = vsub.s32 4, %v1376
  %v1378 = vrot.slane %v569, %v1377
  %s1380 = sor.u32 256, 4
  %1381 = vbcast.lane.b32.xlu0 %v1378, %s1380
  %v1382 = vpop.permute.xlu0 %1381
  %v1383 = vlaneseq
  %v1384 = vshrl.u32 %v1383, 7
  %v1385 = vsub.s32 5, %v1384
  %v1386 = vrot.slane %v569, %v1385
  %s1388 = sor.u32 256, 4
  %1389 = vbcast.lane.b32.xlu0 %v1386, %s1388
  %v1390 = vpop.permute.xlu0 %1389
  %v1391 = vlaneseq
  %v1392 = vshrl.u32 %v1391, 7
  %v1393 = vsub.s32 6, %v1392
  %v1394 = vrot.slane %v569, %v1393
  %s1396 = sor.u32 256, 4
  %1397 = vbcast.lane.b32.xlu0 %v1394, %s1396
  %v1398 = vpop.permute.xlu0 %1397
  %v1399 = vlaneseq
  %v1400 = vshrl.u32 %v1399, 7
  %v1401 = vsub.s32 7, %v1400
  %v1402 = vrot.slane %v569, %v1401
  %s1404 = sor.u32 256, 4
  %1405 = vbcast.lane.b32.xlu0 %v1402, %s1404
  %v1406 = vpop.permute.xlu0 %1405
  %v1407 = vlaneseq
  %v1408 = vshrl.u32 %v1407, 7
  %v1409 = vsub.s32 0, %v1408
  %v1410 = vrot.slane %v572, %v1409
  %s1412 = sor.u32 256, 4
  %1413 = vbcast.lane.b32.xlu0 %v1410, %s1412
  %v1414 = vpop.permute.xlu0 %1413
  %v1415 = vlaneseq
  %v1416 = vshrl.u32 %v1415, 7
  %v1417 = vsub.s32 1, %v1416
  %v1418 = vrot.slane %v572, %v1417
  %s1420 = sor.u32 256, 4
  %1421 = vbcast.lane.b32.xlu0 %v1418, %s1420
  %v1422 = vpop.permute.xlu0 %1421
  %v1423 = vlaneseq
  %v1424 = vshrl.u32 %v1423, 7
  %v1425 = vsub.s32 2, %v1424
  %v1426 = vrot.slane %v572, %v1425
  %s1428 = sor.u32 256, 4
  %1429 = vbcast.lane.b32.xlu0 %v1426, %s1428
  %v1430 = vpop.permute.xlu0 %1429
  %v1431 = vlaneseq
  %v1432 = vshrl.u32 %v1431, 7
  %v1433 = vsub.s32 3, %v1432
  %v1434 = vrot.slane %v572, %v1433
  %s1436 = sor.u32 256, 4
  %1437 = vbcast.lane.b32.xlu0 %v1434, %s1436
  %v1438 = vpop.permute.xlu0 %1437
  %v1439 = vlaneseq
  %v1440 = vshrl.u32 %v1439, 7
  %v1441 = vsub.s32 4, %v1440
  %v1442 = vrot.slane %v572, %v1441
  %s1444 = sor.u32 256, 4
  %1445 = vbcast.lane.b32.xlu0 %v1442, %s1444
  %v1446 = vpop.permute.xlu0 %1445
  %v1447 = vlaneseq
  %v1448 = vshrl.u32 %v1447, 7
  %v1449 = vsub.s32 5, %v1448
  %v1450 = vrot.slane %v572, %v1449
  %s1452 = sor.u32 256, 4
  %1453 = vbcast.lane.b32.xlu0 %v1450, %s1452
  %v1454 = vpop.permute.xlu0 %1453
  %v1455 = vlaneseq
  %v1456 = vshrl.u32 %v1455, 7
  %v1457 = vsub.s32 6, %v1456
  %v1458 = vrot.slane %v572, %v1457
  %s1460 = sor.u32 256, 4
  %1461 = vbcast.lane.b32.xlu0 %v1458, %s1460
  %v1462 = vpop.permute.xlu0 %1461
  %v1463 = vlaneseq
  %v1464 = vshrl.u32 %v1463, 7
  %v1465 = vsub.s32 7, %v1464
  %v1466 = vrot.slane %v572, %v1465
  %s1468 = sor.u32 256, 4
  %1469 = vbcast.lane.b32.xlu0 %v1466, %s1468
  %v1470 = vpop.permute.xlu0 %1469
  %v1471 = vlaneseq
  %v1472 = vshrl.u32 %v1471, 7
  %v1473 = vsub.s32 0, %v1472
  %v1474 = vrot.slane %v577, %v1473
  %s1476 = sor.u32 256, 4
  %1477 = vbcast.lane.b32.xlu0 %v1474, %s1476
  %v1478 = vpop.permute.xlu0 %1477
  %v1479 = vlaneseq
  %v1480 = vshrl.u32 %v1479, 7
  %v1481 = vsub.s32 1, %v1480
  %v1482 = vrot.slane %v577, %v1481
  %s1484 = sor.u32 256, 4
  %1485 = vbcast.lane.b32.xlu0 %v1482, %s1484
  %v1486 = vpop.permute.xlu0 %1485
  %v1487 = vlaneseq
  %v1488 = vshrl.u32 %v1487, 7
  %v1489 = vsub.s32 2, %v1488
  %v1490 = vrot.slane %v577, %v1489
  %s1492 = sor.u32 256, 4
  %1493 = vbcast.lane.b32.xlu0 %v1490, %s1492
  %v1494 = vpop.permute.xlu0 %1493
  %v1495 = vlaneseq
  %v1496 = vshrl.u32 %v1495, 7
  %v1497 = vsub.s32 3, %v1496
  %v1498 = vrot.slane %v577, %v1497
  %s1500 = sor.u32 256, 4
  %1501 = vbcast.lane.b32.xlu0 %v1498, %s1500
  %v1502 = vpop.permute.xlu0 %1501
  %v1503 = vlaneseq
  %v1504 = vshrl.u32 %v1503, 7
  %v1505 = vsub.s32 4, %v1504
  %v1506 = vrot.slane %v577, %v1505
  %s1508 = sor.u32 256, 4
  %1509 = vbcast.lane.b32.xlu0 %v1506, %s1508
  %v1510 = vpop.permute.xlu0 %1509
  %v1511 = vlaneseq
  %v1512 = vshrl.u32 %v1511, 7
  %v1513 = vsub.s32 5, %v1512
  %v1514 = vrot.slane %v577, %v1513
  %s1516 = sor.u32 256, 4
  %1517 = vbcast.lane.b32.xlu0 %v1514, %s1516
  %v1518 = vpop.permute.xlu0 %1517
  %v1519 = vlaneseq
  %v1520 = vshrl.u32 %v1519, 7
  %v1521 = vsub.s32 6, %v1520
  %v1522 = vrot.slane %v577, %v1521
  %s1524 = sor.u32 256, 4
  %1525 = vbcast.lane.b32.xlu0 %v1522, %s1524
  %v1526 = vpop.permute.xlu0 %1525
  %v1527 = vlaneseq
  %v1528 = vshrl.u32 %v1527, 7
  %v1529 = vsub.s32 7, %v1528
  %v1530 = vrot.slane %v577, %v1529
  %s1532 = sor.u32 256, 4
  %1533 = vbcast.lane.b32.xlu0 %v1530, %s1532
  %v1534 = vpop.permute.xlu0 %1533
  %v1535 = vlaneseq
  %v1536 = vshrl.u32 %v1535, 7
  %v1537 = vsub.s32 0, %v1536
  %v1538 = vrot.slane %v580, %v1537
  %s1540 = sor.u32 256, 4
  %1541 = vbcast.lane.b32.xlu0 %v1538, %s1540
  %v1542 = vpop.permute.xlu0 %1541
  %v1543 = vlaneseq
  %v1544 = vshrl.u32 %v1543, 7
  %v1545 = vsub.s32 1, %v1544
  %v1546 = vrot.slane %v580, %v1545
  %s1548 = sor.u32 256, 4
  %1549 = vbcast.lane.b32.xlu0 %v1546, %s1548
  %v1550 = vpop.permute.xlu0 %1549
  %v1551 = vlaneseq
  %v1552 = vshrl.u32 %v1551, 7
  %v1553 = vsub.s32 2, %v1552
  %v1554 = vrot.slane %v580, %v1553
  %s1556 = sor.u32 256, 4
  %1557 = vbcast.lane.b32.xlu0 %v1554, %s1556
  %v1558 = vpop.permute.xlu0 %1557
  %v1559 = vlaneseq
  %v1560 = vshrl.u32 %v1559, 7
  %v1561 = vsub.s32 3, %v1560
  %v1562 = vrot.slane %v580, %v1561
  %s1564 = sor.u32 256, 4
  %1565 = vbcast.lane.b32.xlu0 %v1562, %s1564
  %v1566 = vpop.permute.xlu0 %1565
  %v1567 = vlaneseq
  %v1568 = vshrl.u32 %v1567, 7
  %v1569 = vsub.s32 4, %v1568
  %v1570 = vrot.slane %v580, %v1569
  %s1572 = sor.u32 256, 4
  %1573 = vbcast.lane.b32.xlu0 %v1570, %s1572
  %v1574 = vpop.permute.xlu0 %1573
  %v1575 = vlaneseq
  %v1576 = vshrl.u32 %v1575, 7
  %v1577 = vsub.s32 5, %v1576
  %v1578 = vrot.slane %v580, %v1577
  %s1580 = sor.u32 256, 4
  %1581 = vbcast.lane.b32.xlu0 %v1578, %s1580
  %v1582 = vpop.permute.xlu0 %1581
  %v1583 = vlaneseq
  %v1584 = vshrl.u32 %v1583, 7
  %v1585 = vsub.s32 6, %v1584
  %v1586 = vrot.slane %v580, %v1585
  %s1588 = sor.u32 256, 4
  %1589 = vbcast.lane.b32.xlu0 %v1586, %s1588
  %v1590 = vpop.permute.xlu0 %1589
  %v1591 = vlaneseq
  %v1592 = vshrl.u32 %v1591, 7
  %v1593 = vsub.s32 7, %v1592
  %v1594 = vrot.slane %v580, %v1593
  %s1596 = sor.u32 256, 4
  %1597 = vbcast.lane.b32.xlu0 %v1594, %s1596
  %v1598 = vpop.permute.xlu0 %1597
  %v1599 = vlaneseq
  %v1600 = vshrl.u32 %v1599, 7
  %v1601 = vsub.s32 0, %v1600
  %v1602 = vrot.slane %v585, %v1601
  %s1604 = sor.u32 256, 4
  %1605 = vbcast.lane.b32.xlu0 %v1602, %s1604
  %v1606 = vpop.permute.xlu0 %1605
  %v1607 = vlaneseq
  %v1608 = vshrl.u32 %v1607, 7
  %v1609 = vsub.s32 1, %v1608
  %v1610 = vrot.slane %v585, %v1609
  %s1612 = sor.u32 256, 4
  %1613 = vbcast.lane.b32.xlu0 %v1610, %s1612
  %v1614 = vpop.permute.xlu0 %1613
  %v1615 = vlaneseq
  %v1616 = vshrl.u32 %v1615, 7
  %v1617 = vsub.s32 2, %v1616
  %v1618 = vrot.slane %v585, %v1617
  %s1620 = sor.u32 256, 4
  %1621 = vbcast.lane.b32.xlu0 %v1618, %s1620
  %v1622 = vpop.permute.xlu0 %1621
  %v1623 = vlaneseq
  %v1624 = vshrl.u32 %v1623, 7
  %v1625 = vsub.s32 3, %v1624
  %v1626 = vrot.slane %v585, %v1625
  %s1628 = sor.u32 256, 4
  %1629 = vbcast.lane.b32.xlu0 %v1626, %s1628
  %v1630 = vpop.permute.xlu0 %1629
  %v1631 = vlaneseq
  %v1632 = vshrl.u32 %v1631, 7
  %v1633 = vsub.s32 4, %v1632
  %v1634 = vrot.slane %v585, %v1633
  %s1636 = sor.u32 256, 4
  %1637 = vbcast.lane.b32.xlu0 %v1634, %s1636
  %v1638 = vpop.permute.xlu0 %1637
  %v1639 = vlaneseq
  %v1640 = vshrl.u32 %v1639, 7
  %v1641 = vsub.s32 5, %v1640
  %v1642 = vrot.slane %v585, %v1641
  %s1644 = sor.u32 256, 4
  %1645 = vbcast.lane.b32.xlu0 %v1642, %s1644
  %v1646 = vpop.permute.xlu0 %1645
  %v1647 = vlaneseq
  %v1648 = vshrl.u32 %v1647, 7
  %v1649 = vsub.s32 6, %v1648
  %v1650 = vrot.slane %v585, %v1649
  %s1652 = sor.u32 256, 4
  %1653 = vbcast.lane.b32.xlu0 %v1650, %s1652
  %v1654 = vpop.permute.xlu0 %1653
  %v1655 = vlaneseq
  %v1656 = vshrl.u32 %v1655, 7
  %v1657 = vsub.s32 7, %v1656
  %v1658 = vrot.slane %v585, %v1657
  %s1660 = sor.u32 256, 4
  %1661 = vbcast.lane.b32.xlu0 %v1658, %s1660
  %v1662 = vpop.permute.xlu0 %1661
  %v1663 = vlaneseq
  %v1664 = vshrl.u32 %v1663, 7
  %v1665 = vsub.s32 0, %v1664
  %v1666 = vrot.slane %v588, %v1665
  %s1668 = sor.u32 256, 4
  %1669 = vbcast.lane.b32.xlu0 %v1666, %s1668
  %v1670 = vpop.permute.xlu0 %1669
  %v1671 = vlaneseq
  %v1672 = vshrl.u32 %v1671, 7
  %v1673 = vsub.s32 1, %v1672
  %v1674 = vrot.slane %v588, %v1673
  %s1676 = sor.u32 256, 4
  %1677 = vbcast.lane.b32.xlu0 %v1674, %s1676
  %v1678 = vpop.permute.xlu0 %1677
  %s1680 = sor.u32 256, 12
  %1681 = vbcast.lane.b32.xlu0 %v1346, %s1680
  %v1682 = vpop.permute.xlu0 %1681
  %s1684 = sor.u32 256, 12
  %1685 = vbcast.lane.b32.xlu0 %v1354, %s1684
  %v1686 = vpop.permute.xlu0 %1685
  %s1688 = sor.u32 256, 12
  %1689 = vbcast.lane.b32.xlu0 %v1362, %s1688
  %v1690 = vpop.permute.xlu0 %1689
  %s1692 = sor.u32 256, 12
  %1693 = vbcast.lane.b32.xlu0 %v1370, %s1692
  %v1694 = vpop.permute.xlu0 %1693
  %s1696 = sor.u32 256, 12
  %1697 = vbcast.lane.b32.xlu0 %v1378, %s1696
  %v1698 = vpop.permute.xlu0 %1697
  %s1700 = sor.u32 256, 12
  %1701 = vbcast.lane.b32.xlu0 %v1386, %s1700
  %v1702 = vpop.permute.xlu0 %1701
  %s1704 = sor.u32 256, 12
  %1705 = vbcast.lane.b32.xlu0 %v1394, %s1704
  %v1706 = vpop.permute.xlu0 %1705
  %s1708 = sor.u32 256, 12
  %1709 = vbcast.lane.b32.xlu0 %v1402, %s1708
  %v1710 = vpop.permute.xlu0 %1709
  %s1712 = sor.u32 256, 12
  %1713 = vbcast.lane.b32.xlu0 %v1410, %s1712
  %v1714 = vpop.permute.xlu0 %1713
  %s1716 = sor.u32 256, 12
  %1717 = vbcast.lane.b32.xlu0 %v1418, %s1716
  %v1718 = vpop.permute.xlu0 %1717
  %s1720 = sor.u32 256, 12
  %1721 = vbcast.lane.b32.xlu0 %v1426, %s1720
  %v1722 = vpop.permute.xlu0 %1721
  %s1724 = sor.u32 256, 12
  %1725 = vbcast.lane.b32.xlu0 %v1434, %s1724
  %v1726 = vpop.permute.xlu0 %1725
  %s1728 = sor.u32 256, 12
  %1729 = vbcast.lane.b32.xlu0 %v1442, %s1728
  %v1730 = vpop.permute.xlu0 %1729
  %s1732 = sor.u32 256, 12
  %1733 = vbcast.lane.b32.xlu0 %v1450, %s1732
  %v1734 = vpop.permute.xlu0 %1733
  %s1736 = sor.u32 256, 12
  %1737 = vbcast.lane.b32.xlu0 %v1458, %s1736
  %v1738 = vpop.permute.xlu0 %1737
  %s1740 = sor.u32 256, 12
  %1741 = vbcast.lane.b32.xlu0 %v1466, %s1740
  %v1742 = vpop.permute.xlu0 %1741
  %s1744 = sor.u32 256, 12
  %1745 = vbcast.lane.b32.xlu0 %v1474, %s1744
  %v1746 = vpop.permute.xlu0 %1745
  %s1748 = sor.u32 256, 12
  %1749 = vbcast.lane.b32.xlu0 %v1482, %s1748
  %v1750 = vpop.permute.xlu0 %1749
  %s1752 = sor.u32 256, 12
  %1753 = vbcast.lane.b32.xlu0 %v1490, %s1752
  %v1754 = vpop.permute.xlu0 %1753
  %s1756 = sor.u32 256, 12
  %1757 = vbcast.lane.b32.xlu0 %v1498, %s1756
  %v1758 = vpop.permute.xlu0 %1757
  %s1760 = sor.u32 256, 12
  %1761 = vbcast.lane.b32.xlu0 %v1506, %s1760
  %v1762 = vpop.permute.xlu0 %1761
  %s1764 = sor.u32 256, 12
  %1765 = vbcast.lane.b32.xlu0 %v1514, %s1764
  %v1766 = vpop.permute.xlu0 %1765
  %s1768 = sor.u32 256, 12
  %1769 = vbcast.lane.b32.xlu0 %v1522, %s1768
  %v1770 = vpop.permute.xlu0 %1769
  %s1772 = sor.u32 256, 12
  %1773 = vbcast.lane.b32.xlu0 %v1530, %s1772
  %v1774 = vpop.permute.xlu0 %1773
  %s1776 = sor.u32 256, 12
  %1777 = vbcast.lane.b32.xlu0 %v1538, %s1776
  %v1778 = vpop.permute.xlu0 %1777
  %s1780 = sor.u32 256, 12
  %1781 = vbcast.lane.b32.xlu0 %v1546, %s1780
  %v1782 = vpop.permute.xlu0 %1781
  %s1784 = sor.u32 256, 12
  %1785 = vbcast.lane.b32.xlu0 %v1554, %s1784
  %v1786 = vpop.permute.xlu0 %1785
  %s1788 = sor.u32 256, 12
  %1789 = vbcast.lane.b32.xlu0 %v1562, %s1788
  %v1790 = vpop.permute.xlu0 %1789
  %s1792 = sor.u32 256, 12
  %1793 = vbcast.lane.b32.xlu0 %v1570, %s1792
  %v1794 = vpop.permute.xlu0 %1793
  %s1796 = sor.u32 256, 12
  %1797 = vbcast.lane.b32.xlu0 %v1578, %s1796
  %v1798 = vpop.permute.xlu0 %1797
  %s1800 = sor.u32 256, 12
  %1801 = vbcast.lane.b32.xlu0 %v1586, %s1800
  %v1802 = vpop.permute.xlu0 %1801
  %s1804 = sor.u32 256, 12
  %1805 = vbcast.lane.b32.xlu0 %v1594, %s1804
  %v1806 = vpop.permute.xlu0 %1805
  %s1808 = sor.u32 256, 12
  %1809 = vbcast.lane.b32.xlu0 %v1602, %s1808
  %v1810 = vpop.permute.xlu0 %1809
  %s1812 = sor.u32 256, 12
  %1813 = vbcast.lane.b32.xlu0 %v1610, %s1812
  %v1814 = vpop.permute.xlu0 %1813
  %s1816 = sor.u32 256, 12
  %1817 = vbcast.lane.b32.xlu0 %v1618, %s1816
  %v1818 = vpop.permute.xlu0 %1817
  %s1820 = sor.u32 256, 12
  %1821 = vbcast.lane.b32.xlu0 %v1626, %s1820
  %v1822 = vpop.permute.xlu0 %1821
  %s1824 = sor.u32 256, 12
  %1825 = vbcast.lane.b32.xlu0 %v1634, %s1824
  %v1826 = vpop.permute.xlu0 %1825
  %s1828 = sor.u32 256, 12
  %1829 = vbcast.lane.b32.xlu0 %v1642, %s1828
  %v1830 = vpop.permute.xlu0 %1829
  %s1832 = sor.u32 256, 12
  %1833 = vbcast.lane.b32.xlu0 %v1650, %s1832
  %v1834 = vpop.permute.xlu0 %1833
  %s1836 = sor.u32 256, 12
  %1837 = vbcast.lane.b32.xlu0 %v1658, %s1836
  %v1838 = vpop.permute.xlu0 %1837
  %s1840 = sor.u32 256, 12
  %1841 = vbcast.lane.b32.xlu0 %v1666, %s1840
  %v1842 = vpop.permute.xlu0 %1841
  %s1844 = sor.u32 256, 12
  %1845 = vbcast.lane.b32.xlu0 %v1674, %s1844
  %v1846 = vpop.permute.xlu0 %1845
  %s1848 = sor.u32 256, 20
  %1849 = vbcast.lane.b32.xlu0 %v1346, %s1848
  %v1850 = vpop.permute.xlu0 %1849
  %s1852 = sor.u32 256, 20
  %1853 = vbcast.lane.b32.xlu0 %v1354, %s1852
  %v1854 = vpop.permute.xlu0 %1853
  %s1856 = sor.u32 256, 20
  %1857 = vbcast.lane.b32.xlu0 %v1362, %s1856
  %v1858 = vpop.permute.xlu0 %1857
  %s1860 = sor.u32 256, 20
  %1861 = vbcast.lane.b32.xlu0 %v1370, %s1860
  %v1862 = vpop.permute.xlu0 %1861
  %s1864 = sor.u32 256, 20
  %1865 = vbcast.lane.b32.xlu0 %v1378, %s1864
  %v1866 = vpop.permute.xlu0 %1865
  %s1868 = sor.u32 256, 20
  %1869 = vbcast.lane.b32.xlu0 %v1386, %s1868
  %v1870 = vpop.permute.xlu0 %1869
  %s1872 = sor.u32 256, 20
  %1873 = vbcast.lane.b32.xlu0 %v1394, %s1872
  %v1874 = vpop.permute.xlu0 %1873
  %s1876 = sor.u32 256, 20
  %1877 = vbcast.lane.b32.xlu0 %v1402, %s1876
  %v1878 = vpop.permute.xlu0 %1877
  %s1880 = sor.u32 256, 20
  %1881 = vbcast.lane.b32.xlu0 %v1410, %s1880
  %v1882 = vpop.permute.xlu0 %1881
  %s1884 = sor.u32 256, 20
  %1885 = vbcast.lane.b32.xlu0 %v1418, %s1884
  %v1886 = vpop.permute.xlu0 %1885
  %s1888 = sor.u32 256, 20
  %1889 = vbcast.lane.b32.xlu0 %v1426, %s1888
  %v1890 = vpop.permute.xlu0 %1889
  %s1892 = sor.u32 256, 20
  %1893 = vbcast.lane.b32.xlu0 %v1434, %s1892
  %v1894 = vpop.permute.xlu0 %1893
  %s1896 = sor.u32 256, 20
  %1897 = vbcast.lane.b32.xlu0 %v1442, %s1896
  %v1898 = vpop.permute.xlu0 %1897
  %s1900 = sor.u32 256, 20
  %1901 = vbcast.lane.b32.xlu0 %v1450, %s1900
  %v1902 = vpop.permute.xlu0 %1901
  %s1904 = sor.u32 256, 20
  %1905 = vbcast.lane.b32.xlu0 %v1458, %s1904
  %v1906 = vpop.permute.xlu0 %1905
  %s1908 = sor.u32 256, 20
  %1909 = vbcast.lane.b32.xlu0 %v1466, %s1908
  %v1910 = vpop.permute.xlu0 %1909
  %s1912 = sor.u32 256, 20
  %1913 = vbcast.lane.b32.xlu0 %v1474, %s1912
  %v1914 = vpop.permute.xlu0 %1913
  %s1916 = sor.u32 256, 20
  %1917 = vbcast.lane.b32.xlu0 %v1482, %s1916
  %v1918 = vpop.permute.xlu0 %1917
  %s1920 = sor.u32 256, 20
  %1921 = vbcast.lane.b32.xlu0 %v1490, %s1920
  %v1922 = vpop.permute.xlu0 %1921
  %s1924 = sor.u32 256, 20
  %1925 = vbcast.lane.b32.xlu0 %v1498, %s1924
  %v1926 = vpop.permute.xlu0 %1925
  %s1928 = sor.u32 256, 20
  %1929 = vbcast.lane.b32.xlu0 %v1506, %s1928
  %v1930 = vpop.permute.xlu0 %1929
  %s1932 = sor.u32 256, 20
  %1933 = vbcast.lane.b32.xlu0 %v1514, %s1932
  %v1934 = vpop.permute.xlu0 %1933
  %s1936 = sor.u32 256, 20
  %1937 = vbcast.lane.b32.xlu0 %v1522, %s1936
  %v1938 = vpop.permute.xlu0 %1937
  %s1940 = sor.u32 256, 20
  %1941 = vbcast.lane.b32.xlu0 %v1530, %s1940
  %v1942 = vpop.permute.xlu0 %1941
  %s1944 = sor.u32 256, 20
  %1945 = vbcast.lane.b32.xlu0 %v1538, %s1944
  %v1946 = vpop.permute.xlu0 %1945
  %s1948 = sor.u32 256, 20
  %1949 = vbcast.lane.b32.xlu0 %v1546, %s1948
  %v1950 = vpop.permute.xlu0 %1949
  %s1952 = sor.u32 256, 20
  %1953 = vbcast.lane.b32.xlu0 %v1554, %s1952
  %v1954 = vpop.permute.xlu0 %1953
  %s1956 = sor.u32 256, 20
  %1957 = vbcast.lane.b32.xlu0 %v1562, %s1956
  %v1958 = vpop.permute.xlu0 %1957
  %s1960 = sor.u32 256, 20
  %1961 = vbcast.lane.b32.xlu0 %v1570, %s1960
  %v1962 = vpop.permute.xlu0 %1961
  %s1964 = sor.u32 256, 20
  %1965 = vbcast.lane.b32.xlu0 %v1578, %s1964
  %v1966 = vpop.permute.xlu0 %1965
  %s1968 = sor.u32 256, 20
  %1969 = vbcast.lane.b32.xlu0 %v1586, %s1968
  %v1970 = vpop.permute.xlu0 %1969
  %s1972 = sor.u32 256, 20
  %1973 = vbcast.lane.b32.xlu0 %v1594, %s1972
  %v1974 = vpop.permute.xlu0 %1973
  %s1976 = sor.u32 256, 20
  %1977 = vbcast.lane.b32.xlu0 %v1602, %s1976
  %v1978 = vpop.permute.xlu0 %1977
  %s1980 = sor.u32 256, 20
  %1981 = vbcast.lane.b32.xlu0 %v1610, %s1980
  %v1982 = vpop.permute.xlu0 %1981
  %s1984 = sor.u32 256, 20
  %1985 = vbcast.lane.b32.xlu0 %v1618, %s1984
  %v1986 = vpop.permute.xlu0 %1985
  %s1988 = sor.u32 256, 20
  %1989 = vbcast.lane.b32.xlu0 %v1626, %s1988
  %v1990 = vpop.permute.xlu0 %1989
  %s1992 = sor.u32 256, 20
  %1993 = vbcast.lane.b32.xlu0 %v1634, %s1992
  %v1994 = vpop.permute.xlu0 %1993
  %s1996 = sor.u32 256, 20
  %1997 = vbcast.lane.b32.xlu0 %v1642, %s1996
  %v1998 = vpop.permute.xlu0 %1997
  %s2000 = sor.u32 256, 20
  %2001 = vbcast.lane.b32.xlu0 %v1650, %s2000
  %v2002 = vpop.permute.xlu0 %2001
  %s2004 = sor.u32 256, 20
  %2005 = vbcast.lane.b32.xlu0 %v1658, %s2004
  %v2006 = vpop.permute.xlu0 %2005
  %s2008 = sor.u32 256, 20
  %2009 = vbcast.lane.b32.xlu0 %v1666, %s2008
  %v2010 = vpop.permute.xlu0 %2009
  %s2012 = sor.u32 256, 20
  %2013 = vbcast.lane.b32.xlu0 %v1674, %s2012
  %v2014 = vpop.permute.xlu0 %2013
  %s2016 = sor.u32 256, 28
  %2017 = vbcast.lane.b32.xlu0 %v1346, %s2016
  %v2018 = vpop.permute.xlu0 %2017
  %s2020 = sor.u32 256, 28
  %2021 = vbcast.lane.b32.xlu0 %v1354, %s2020
  %v2022 = vpop.permute.xlu0 %2021
  %s2024 = sor.u32 256, 28
  %2025 = vbcast.lane.b32.xlu0 %v1362, %s2024
  %v2026 = vpop.permute.xlu0 %2025
  %s2028 = sor.u32 256, 28
  %2029 = vbcast.lane.b32.xlu0 %v1370, %s2028
  %v2030 = vpop.permute.xlu0 %2029
  %s2032 = sor.u32 256, 28
  %2033 = vbcast.lane.b32.xlu0 %v1378, %s2032
  %v2034 = vpop.permute.xlu0 %2033
  %s2036 = sor.u32 256, 28
  %2037 = vbcast.lane.b32.xlu0 %v1386, %s2036
  %v2038 = vpop.permute.xlu0 %2037
  %s2040 = sor.u32 256, 28
  %2041 = vbcast.lane.b32.xlu0 %v1394, %s2040
  %v2042 = vpop.permute.xlu0 %2041
  %s2044 = sor.u32 256, 28
  %2045 = vbcast.lane.b32.xlu0 %v1402, %s2044
  %v2046 = vpop.permute.xlu0 %2045
  %s2048 = sor.u32 256, 28
  %2049 = vbcast.lane.b32.xlu0 %v1410, %s2048
  %v2050 = vpop.permute.xlu0 %2049
  %s2052 = sor.u32 256, 28
  %2053 = vbcast.lane.b32.xlu0 %v1418, %s2052
  %v2054 = vpop.permute.xlu0 %2053
  %s2056 = sor.u32 256, 28
  %2057 = vbcast.lane.b32.xlu0 %v1426, %s2056
  %v2058 = vpop.permute.xlu0 %2057
  %s2060 = sor.u32 256, 28
  %2061 = vbcast.lane.b32.xlu0 %v1434, %s2060
  %v2062 = vpop.permute.xlu0 %2061
  %s2064 = sor.u32 256, 28
  %2065 = vbcast.lane.b32.xlu0 %v1442, %s2064
  %v2066 = vpop.permute.xlu0 %2065
  %s2068 = sor.u32 256, 28
  %2069 = vbcast.lane.b32.xlu0 %v1450, %s2068
  %v2070 = vpop.permute.xlu0 %2069
  %s2072 = sor.u32 256, 28
  %2073 = vbcast.lane.b32.xlu0 %v1458, %s2072
  %v2074 = vpop.permute.xlu0 %2073
  %s2076 = sor.u32 256, 28
  %2077 = vbcast.lane.b32.xlu0 %v1466, %s2076
  %v2078 = vpop.permute.xlu0 %2077
  %s2080 = sor.u32 256, 28
  %2081 = vbcast.lane.b32.xlu0 %v1474, %s2080
  %v2082 = vpop.permute.xlu0 %2081
  %s2084 = sor.u32 256, 28
  %2085 = vbcast.lane.b32.xlu0 %v1482, %s2084
  %v2086 = vpop.permute.xlu0 %2085
  %s2088 = sor.u32 256, 28
  %2089 = vbcast.lane.b32.xlu0 %v1490, %s2088
  %v2090 = vpop.permute.xlu0 %2089
  %s2092 = sor.u32 256, 28
  %2093 = vbcast.lane.b32.xlu0 %v1498, %s2092
  %v2094 = vpop.permute.xlu0 %2093
  %s2096 = sor.u32 256, 28
  %2097 = vbcast.lane.b32.xlu0 %v1506, %s2096
  %v2098 = vpop.permute.xlu0 %2097
  %s2100 = sor.u32 256, 28
  %2101 = vbcast.lane.b32.xlu0 %v1514, %s2100
  %v2102 = vpop.permute.xlu0 %2101
  %s2104 = sor.u32 256, 28
  %2105 = vbcast.lane.b32.xlu0 %v1522, %s2104
  %v2106 = vpop.permute.xlu0 %2105
  %s2108 = sor.u32 256, 28
  %2109 = vbcast.lane.b32.xlu0 %v1530, %s2108
  %v2110 = vpop.permute.xlu0 %2109
  %s2112 = sor.u32 256, 28
  %2113 = vbcast.lane.b32.xlu0 %v1538, %s2112
  %v2114 = vpop.permute.xlu0 %2113
  %s2116 = sor.u32 256, 28
  %2117 = vbcast.lane.b32.xlu0 %v1546, %s2116
  %v2118 = vpop.permute.xlu0 %2117
  %s2120 = sor.u32 256, 28
  %2121 = vbcast.lane.b32.xlu0 %v1554, %s2120
  %v2122 = vpop.permute.xlu0 %2121
  %s2124 = sor.u32 256, 28
  %2125 = vbcast.lane.b32.xlu0 %v1562, %s2124
  %v2126 = vpop.permute.xlu0 %2125
  %s2128 = sor.u32 256, 28
  %2129 = vbcast.lane.b32.xlu0 %v1570, %s2128
  %v2130 = vpop.permute.xlu0 %2129
  %s2132 = sor.u32 256, 28
  %2133 = vbcast.lane.b32.xlu0 %v1578, %s2132
  %v2134 = vpop.permute.xlu0 %2133
  %s2136 = sor.u32 256, 28
  %2137 = vbcast.lane.b32.xlu0 %v1586, %s2136
  %v2138 = vpop.permute.xlu0 %2137
  %s2140 = sor.u32 256, 28
  %2141 = vbcast.lane.b32.xlu0 %v1594, %s2140
  %v2142 = vpop.permute.xlu0 %2141
  %s2144 = sor.u32 256, 28
  %2145 = vbcast.lane.b32.xlu0 %v1602, %s2144
  %v2146 = vpop.permute.xlu0 %2145
  %s2148 = sor.u32 256, 28
  %2149 = vbcast.lane.b32.xlu0 %v1610, %s2148
  %v2150 = vpop.permute.xlu0 %2149
  %s2152 = sor.u32 256, 28
  %2153 = vbcast.lane.b32.xlu0 %v1618, %s2152
  %v2154 = vpop.permute.xlu0 %2153
  %s2156 = sor.u32 256, 28
  %2157 = vbcast.lane.b32.xlu0 %v1626, %s2156
  %v2158 = vpop.permute.xlu0 %2157
  %s2160 = sor.u32 256, 28
  %2161 = vbcast.lane.b32.xlu0 %v1634, %s2160
  %v2162 = vpop.permute.xlu0 %2161
  %s2164 = sor.u32 256, 28
  %2165 = vbcast.lane.b32.xlu0 %v1642, %s2164
  %v2166 = vpop.permute.xlu0 %2165
  %s2168 = sor.u32 256, 28
  %2169 = vbcast.lane.b32.xlu0 %v1650, %s2168
  %v2170 = vpop.permute.xlu0 %2169
  %s2172 = sor.u32 256, 28
  %2173 = vbcast.lane.b32.xlu0 %v1658, %s2172
  %v2174 = vpop.permute.xlu0 %2173
  %s2176 = sor.u32 256, 28
  %2177 = vbcast.lane.b32.xlu0 %v1666, %s2176
  %v2178 = vpop.permute.xlu0 %2177
  %s2180 = sor.u32 256, 28
  %2181 = vbcast.lane.b32.xlu0 %v1674, %s2180
  %v2182 = vpop.permute.xlu0 %2181
  %2183 = vst.msk [vmem:[#allocation2] sm:$0xff] %vm234, %v1260
  %2184 = vst.msk [vmem:[#allocation2 + $0x8] sm:$0xff] %vm234, %v1262
  %2185 = vst.msk [vmem:[#allocation2 + $0x10] sm:$0xff] %vm234, %v1264
  %2186 = vst.msk [vmem:[#allocation2 + $0x18] sm:$0xff] %vm234, %v1266
  %2187 = vst.msk [vmem:[#allocation2 + $0x20] sm:$0xff] %vm234, %v1268
  %2188 = vst.msk [vmem:[#allocation2 + $0x28] sm:$0xff] %vm234, %v1270
  %2189 = vst.msk [vmem:[#allocation2 + $0x30] sm:$0xff] %vm234, %v1272
  %2190 = vst.msk [vmem:[#allocation2 + $0x38] sm:$0xff] %vm234, %v1274
  %2191 = vst.msk [vmem:[#allocation2 + $0x40] sm:$0xff] %vm234, %v1276
  %2192 = vst.msk [vmem:[#allocation2 + $0x48] sm:$0xff] %vm234, %v1278
  %2193 = vst.msk [vmem:[#allocation2 + $0x50] sm:$0xff] %vm234, %v1280
  %2194 = vst.msk [vmem:[#allocation2 + $0x58] sm:$0xff] %vm234, %v1282
  %2195 = vst.msk [vmem:[#allocation2 + $0x60] sm:$0xff] %vm234, %v1284
  %2196 = vst.msk [vmem:[#allocation2 + $0x68] sm:$0xff] %vm234, %v1286
  %2197 = vst.msk [vmem:[#allocation2 + $0x70] sm:$0xff] %vm234, %v1288
  %2198 = vst.msk [vmem:[#allocation2 + $0x78] sm:$0xff] %vm234, %v1290
  %2199 = vst.msk [vmem:[#allocation2 + $0x80] sm:$0xff] %vm234, %v1292
  %2200 = vst.msk [vmem:[#allocation2 + $0x88] sm:$0xff] %vm234, %v1294
  %2201 = vst.msk [vmem:[#allocation2 + $0x90] sm:$0xff] %vm234, %v1296
  %2202 = vst.msk [vmem:[#allocation2 + $0x98] sm:$0xff] %vm234, %v1298
  %2203 = vst.msk [vmem:[#allocation2 + $0xa0] sm:$0xff] %vm234, %v1300
  %2204 = vst.msk [vmem:[#allocation2 + $0xa8] sm:$0xff] %vm234, %v1302
  %2205 = vst.msk [vmem:[#allocation2 + $0xb0] sm:$0xff] %vm234, %v1304
  %2206 = vst.msk [vmem:[#allocation2 + $0xb8] sm:$0xff] %vm234, %v1306
  %2207 = vst.msk [vmem:[#allocation2 + $0xc0] sm:$0xff] %vm234, %v1308
  %2208 = vst.msk [vmem:[#allocation2 + $0xc8] sm:$0xff] %vm234, %v1310
  %2209 = vst.msk [vmem:[#allocation2 + $0xd0] sm:$0xff] %vm234, %v1312
  %2210 = vst.msk [vmem:[#allocation2 + $0xd8] sm:$0xff] %vm234, %v1314
  %2211 = vst.msk [vmem:[#allocation2 + $0xe0] sm:$0xff] %vm234, %v1316
  %2212 = vst.msk [vmem:[#allocation2 + $0xe8] sm:$0xff] %vm234, %v1318
  %2213 = vst.msk [vmem:[#allocation2 + $0xf0] sm:$0xff] %vm234, %v1320
  %2214 = vst.msk [vmem:[#allocation2 + $0xf8] sm:$0xff] %vm234, %v1322
  %2215 = vst.msk [vmem:[#allocation2 + $0x100] sm:$0xff] %vm234, %v1324
  %2216 = vst.msk [vmem:[#allocation2 + $0x108] sm:$0xff] %vm234, %v1326
  %2217 = vst.msk [vmem:[#allocation2 + $0x110] sm:$0xff] %vm234, %v1328
  %2218 = vst.msk [vmem:[#allocation2 + $0x118] sm:$0xff] %vm234, %v1330
  %2219 = vst.msk [vmem:[#allocation2 + $0x120] sm:$0xff] %vm234, %v1332
  %2220 = vst.msk [vmem:[#allocation2 + $0x128] sm:$0xff] %vm234, %v1334
  %2221 = vst.msk [vmem:[#allocation2 + $0x130] sm:$0xff] %vm234, %v1336
  %2222 = vst.msk [vmem:[#allocation2 + $0x138] sm:$0xff] %vm234, %v1338
  %2223 = vst.msk [vmem:[#allocation2 + $0x140] sm:$0xff] %vm234, %v1340
  %2224 = vst.msk [vmem:[#allocation2 + $0x148] sm:$0xff] %vm234, %v1342
  %2267 = vrot.lane.b32.xlu0 %v1260, 96
  %v2268 = vpop.permute.xlu0 %2267
  %2269 = vrot.lane.b32.xlu0 %v1262, 96
  %v2270 = vpop.permute.xlu0 %2269
  %2271 = vrot.lane.b32.xlu0 %v1264, 96
  %v2272 = vpop.permute.xlu0 %2271
  %2273 = vrot.lane.b32.xlu0 %v1266, 96
  %v2274 = vpop.permute.xlu0 %2273
  %2275 = vrot.lane.b32.xlu0 %v1268, 96
  %v2276 = vpop.permute.xlu0 %2275
  %2277 = vrot.lane.b32.xlu0 %v1270, 96
  %v2278 = vpop.permute.xlu0 %2277
  %2279 = vrot.lane.b32.xlu0 %v1272, 96
  %v2280 = vpop.permute.xlu0 %2279
  %2281 = vrot.lane.b32.xlu0 %v1274, 96
  %v2282 = vpop.permute.xlu0 %2281
  %2283 = vrot.lane.b32.xlu0 %v1276, 96
  %v2284 = vpop.permute.xlu0 %2283
  %2285 = vrot.lane.b32.xlu0 %v1278, 96
  %v2286 = vpop.permute.xlu0 %2285
  %2287 = vrot.lane.b32.xlu0 %v1280, 96
  %v2288 = vpop.permute.xlu0 %2287
  %2289 = vrot.lane.b32.xlu0 %v1282, 96
  %v2290 = vpop.permute.xlu0 %2289
  %2291 = vrot.lane.b32.xlu0 %v1284, 96
  %v2292 = vpop.permute.xlu0 %2291
  %2293 = vrot.lane.b32.xlu0 %v1286, 96
  %v2294 = vpop.permute.xlu0 %2293
  %2295 = vrot.lane.b32.xlu0 %v1288, 96
  %v2296 = vpop.permute.xlu0 %2295
  %2297 = vrot.lane.b32.xlu0 %v1290, 96
  %v2298 = vpop.permute.xlu0 %2297
  %2299 = vrot.lane.b32.xlu0 %v1292, 96
  %v2300 = vpop.permute.xlu0 %2299
  %2301 = vrot.lane.b32.xlu0 %v1294, 96
  %v2302 = vpop.permute.xlu0 %2301
  %2303 = vrot.lane.b32.xlu0 %v1296, 96
  %v2304 = vpop.permute.xlu0 %2303
  %2305 = vrot.lane.b32.xlu0 %v1298, 96
  %v2306 = vpop.permute.xlu0 %2305
  %2307 = vrot.lane.b32.xlu0 %v1300, 96
  %v2308 = vpop.permute.xlu0 %2307
  %2309 = vrot.lane.b32.xlu0 %v1302, 96
  %v2310 = vpop.permute.xlu0 %2309
  %2311 = vrot.lane.b32.xlu0 %v1304, 96
  %v2312 = vpop.permute.xlu0 %2311
  %2313 = vrot.lane.b32.xlu0 %v1306, 96
  %v2314 = vpop.permute.xlu0 %2313
  %2315 = vrot.lane.b32.xlu0 %v1308, 96
  %v2316 = vpop.permute.xlu0 %2315
  %2317 = vrot.lane.b32.xlu0 %v1310, 96
  %v2318 = vpop.permute.xlu0 %2317
  %2319 = vrot.lane.b32.xlu0 %v1312, 96
  %v2320 = vpop.permute.xlu0 %2319
  %2321 = vrot.lane.b32.xlu0 %v1314, 96
  %v2322 = vpop.permute.xlu0 %2321
  %2323 = vrot.lane.b32.xlu0 %v1316, 96
  %v2324 = vpop.permute.xlu0 %2323
  %2325 = vrot.lane.b32.xlu0 %v1318, 96
  %v2326 = vpop.permute.xlu0 %2325
  %2327 = vrot.lane.b32.xlu0 %v1320, 96
  %v2328 = vpop.permute.xlu0 %2327
  %2329 = vrot.lane.b32.xlu0 %v1322, 96
  %v2330 = vpop.permute.xlu0 %2329
  %2331 = vrot.lane.b32.xlu0 %v1324, 96
  %v2332 = vpop.permute.xlu0 %2331
  %2333 = vrot.lane.b32.xlu0 %v1326, 96
  %v2334 = vpop.permute.xlu0 %2333
  %2335 = vrot.lane.b32.xlu0 %v1328, 96
  %v2336 = vpop.permute.xlu0 %2335
  %2337 = vrot.lane.b32.xlu0 %v1330, 96
  %v2338 = vpop.permute.xlu0 %2337
  %2339 = vrot.lane.b32.xlu0 %v1332, 96
  %v2340 = vpop.permute.xlu0 %2339
  %2341 = vrot.lane.b32.xlu0 %v1334, 96
  %v2342 = vpop.permute.xlu0 %2341
  %2343 = vrot.lane.b32.xlu0 %v1336, 96
  %v2344 = vpop.permute.xlu0 %2343
  %2345 = vrot.lane.b32.xlu0 %v1338, 96
  %v2346 = vpop.permute.xlu0 %2345
  %2347 = vrot.lane.b32.xlu0 %v1340, 96
  %v2348 = vpop.permute.xlu0 %2347
  %2349 = vrot.lane.b32.xlu0 %v1342, 96
  %v2350 = vpop.permute.xlu0 %2349
  %2393 = vst.msk [vmem:[#allocation3] sm:$0xff] %vm234, %v2268
  %2394 = vst.msk [vmem:[#allocation3 + $0x8] sm:$0xff] %vm234, %v2270
  %2395 = vst.msk [vmem:[#allocation3 + $0x10] sm:$0xff] %vm234, %v2272
  %2396 = vst.msk [vmem:[#allocation3 + $0x18] sm:$0xff] %vm234, %v2274
  %2397 = vst.msk [vmem:[#allocation3 + $0x20] sm:$0xff] %vm234, %v2276
  %2398 = vst.msk [vmem:[#allocation3 + $0x28] sm:$0xff] %vm234, %v2278
  %2399 = vst.msk [vmem:[#allocation3 + $0x30] sm:$0xff] %vm234, %v2280
  %2400 = vst.msk [vmem:[#allocation3 + $0x38] sm:$0xff] %vm234, %v2282
  %2401 = vst.msk [vmem:[#allocation3 + $0x40] sm:$0xff] %vm234, %v2284
  %2402 = vst.msk [vmem:[#allocation3 + $0x48] sm:$0xff] %vm234, %v2286
  %2403 = vst.msk [vmem:[#allocation3 + $0x50] sm:$0xff] %vm234, %v2288
  %2404 = vst.msk [vmem:[#allocation3 + $0x58] sm:$0xff] %vm234, %v2290
  %2405 = vst.msk [vmem:[#allocation3 + $0x60] sm:$0xff] %vm234, %v2292
  %2406 = vst.msk [vmem:[#allocation3 + $0x68] sm:$0xff] %vm234, %v2294
  %2407 = vst.msk [vmem:[#allocation3 + $0x70] sm:$0xff] %vm234, %v2296
  %2408 = vst.msk [vmem:[#allocation3 + $0x78] sm:$0xff] %vm234, %v2298
  %2409 = vst.msk [vmem:[#allocation3 + $0x80] sm:$0xff] %vm234, %v2300
  %2410 = vst.msk [vmem:[#allocation3 + $0x88] sm:$0xff] %vm234, %v2302
  %2411 = vst.msk [vmem:[#allocation3 + $0x90] sm:$0xff] %vm234, %v2304
  %2412 = vst.msk [vmem:[#allocation3 + $0x98] sm:$0xff] %vm234, %v2306
  %2413 = vst.msk [vmem:[#allocation3 + $0xa0] sm:$0xff] %vm234, %v2308
  %2414 = vst.msk [vmem:[#allocation3 + $0xa8] sm:$0xff] %vm234, %v2310
  %2415 = vst.msk [vmem:[#allocation3 + $0xb0] sm:$0xff] %vm234, %v2312
  %2416 = vst.msk [vmem:[#allocation3 + $0xb8] sm:$0xff] %vm234, %v2314
  %2417 = vst.msk [vmem:[#allocation3 + $0xc0] sm:$0xff] %vm234, %v2316
  %2418 = vst.msk [vmem:[#allocation3 + $0xc8] sm:$0xff] %vm234, %v2318
  %2419 = vst.msk [vmem:[#allocation3 + $0xd0] sm:$0xff] %vm234, %v2320
  %2420 = vst.msk [vmem:[#allocation3 + $0xd8] sm:$0xff] %vm234, %v2322
  %2421 = vst.msk [vmem:[#allocation3 + $0xe0] sm:$0xff] %vm234, %v2324
  %2422 = vst.msk [vmem:[#allocation3 + $0xe8] sm:$0xff] %vm234, %v2326
  %2423 = vst.msk [vmem:[#allocation3 + $0xf0] sm:$0xff] %vm234, %v2328
  %2424 = vst.msk [vmem:[#allocation3 + $0xf8] sm:$0xff] %vm234, %v2330
  %2425 = vst.msk [vmem:[#allocation3 + $0x100] sm:$0xff] %vm234, %v2332
  %2426 = vst.msk [vmem:[#allocation3 + $0x108] sm:$0xff] %vm234, %v2334
  %2427 = vst.msk [vmem:[#allocation3 + $0x110] sm:$0xff] %vm234, %v2336
  %2428 = vst.msk [vmem:[#allocation3 + $0x118] sm:$0xff] %vm234, %v2338
  %2429 = vst.msk [vmem:[#allocation3 + $0x120] sm:$0xff] %vm234, %v2340
  %2430 = vst.msk [vmem:[#allocation3 + $0x128] sm:$0xff] %vm234, %v2342
  %2431 = vst.msk [vmem:[#allocation3 + $0x130] sm:$0xff] %vm234, %v2344
  %2432 = vst.msk [vmem:[#allocation3 + $0x138] sm:$0xff] %vm234, %v2346
  %2433 = vst.msk [vmem:[#allocation3 + $0x140] sm:$0xff] %vm234, %v2348
  %2434 = vst.msk [vmem:[#allocation3 + $0x148] sm:$0xff] %vm234, %v2350
  %v2441 = vcombine.high %v727, %v727
  %v2443 = vunpack.c.l.s4 1966171168
  %v2444 = vunpack.c.0.s8 %v2443
  %v2445 = vlaneseq
  %v2446 = vshrl.u32 %v2445, 7
  %v2447 = vsub.s32 %v2444, %v2446
  %v2448 = vrot.slane %v727, %v2447
  %v2450 = vunpack.c.l.s4 1966171168
  %v2451 = vunpack.c.0.s8 %v2450
  %v2452 = vlaneseq
  %v2453 = vshrl.u32 %v2452, 7
  %v2454 = vsub.s32 %v2451, %v2453
  %v2455 = vrot.slane %v2441, %v2454
  %v2456 = vcombine.high %v2448, %v2448
  %v2457 = vcombine.high %v2455, %v2455
  %v2459 = vunpack.c.l.s4 1966171168
  %v2460 = vunpack.c.0.s8 %v2459
  %v2461 = vlaneseq
  %v2462 = vshrl.u32 %v2461, 7
  %v2463 = vsub.s32 %v2460, %v2462
  %v2464 = vrot.slane %v2448, %v2463
  %v2466 = vunpack.c.l.s4 1966171168
  %v2467 = vunpack.c.0.s8 %v2466
  %v2468 = vlaneseq
  %v2469 = vshrl.u32 %v2468, 7
  %v2470 = vsub.s32 %v2467, %v2469
  %v2471 = vrot.slane %v2455, %v2470
  %v2473 = vunpack.c.l.s4 1966171168
  %v2474 = vunpack.c.0.s8 %v2473
  %v2475 = vlaneseq
  %v2476 = vshrl.u32 %v2475, 7
  %v2477 = vsub.s32 %v2474, %v2476
  %v2478 = vrot.slane %v2456, %v2477
  %v2480 = vunpack.c.l.s4 1966171168
  %v2481 = vunpack.c.0.s8 %v2480
  %v2482 = vlaneseq
  %v2483 = vshrl.u32 %v2482, 7
  %v2484 = vsub.s32 %v2481, %v2483
  %v2485 = vrot.slane %v2457, %v2484
  %v2486 = vcombine.high %v2464, %v2464
  %v2487 = vcombine.high %v2471, %v2471
  %v2488 = vcombine.high %v2478, %v2478
  %v2489 = vcombine.high %v2485, %v2485
  %v2490 = vcombine.high %v728, %v728
  %v2492 = vunpack.c.l.s4 1966171168
  %v2493 = vunpack.c.0.s8 %v2492
  %v2494 = vlaneseq
  %v2495 = vshrl.u32 %v2494, 7
  %v2496 = vsub.s32 %v2493, %v2495
  %v2497 = vrot.slane %v728, %v2496
  %v2499 = vunpack.c.l.s4 1966171168
  %v2500 = vunpack.c.0.s8 %v2499
  %v2501 = vlaneseq
  %v2502 = vshrl.u32 %v2501, 7
  %v2503 = vsub.s32 %v2500, %v2502
  %v2504 = vrot.slane %v2490, %v2503
  %v2505 = vcombine.high %v2497, %v2497
  %v2506 = vcombine.high %v2504, %v2504
  %v2508 = vunpack.c.l.s4 1966171168
  %v2509 = vunpack.c.0.s8 %v2508
  %v2510 = vlaneseq
  %v2511 = vshrl.u32 %v2510, 7
  %v2512 = vsub.s32 %v2509, %v2511
  %v2513 = vrot.slane %v2497, %v2512
  %v2515 = vunpack.c.l.s4 1966171168
  %v2516 = vunpack.c.0.s8 %v2515
  %v2517 = vlaneseq
  %v2518 = vshrl.u32 %v2517, 7
  %v2519 = vsub.s32 %v2516, %v2518
  %v2520 = vrot.slane %v2504, %v2519
  %v2522 = vunpack.c.l.s4 1966171168
  %v2523 = vunpack.c.0.s8 %v2522
  %v2524 = vlaneseq
  %v2525 = vshrl.u32 %v2524, 7
  %v2526 = vsub.s32 %v2523, %v2525
  %v2527 = vrot.slane %v2505, %v2526
  %v2529 = vunpack.c.l.s4 1966171168
  %v2530 = vunpack.c.0.s8 %v2529
  %v2531 = vlaneseq
  %v2532 = vshrl.u32 %v2531, 7
  %v2533 = vsub.s32 %v2530, %v2532
  %v2534 = vrot.slane %v2506, %v2533
  %v2535 = vcombine.high %v2513, %v2513
  %v2536 = vcombine.high %v2520, %v2520
  %v2537 = vcombine.high %v2527, %v2527
  %v2538 = vcombine.high %v2534, %v2534
  %v2539 = vcombine.high %v729, %v729
  %v2541 = vunpack.c.l.s4 1966171168
  %v2542 = vunpack.c.0.s8 %v2541
  %v2543 = vlaneseq
  %v2544 = vshrl.u32 %v2543, 7
  %v2545 = vsub.s32 %v2542, %v2544
  %v2546 = vrot.slane %v729, %v2545
  %v2548 = vunpack.c.l.s4 1966171168
  %v2549 = vunpack.c.0.s8 %v2548
  %v2550 = vlaneseq
  %v2551 = vshrl.u32 %v2550, 7
  %v2552 = vsub.s32 %v2549, %v2551
  %v2553 = vrot.slane %v2539, %v2552
  %v2554 = vcombine.high %v2546, %v2546
  %v2555 = vcombine.high %v2553, %v2553
  %v2557 = vunpack.c.l.s4 1966171168
  %v2558 = vunpack.c.0.s8 %v2557
  %v2559 = vlaneseq
  %v2560 = vshrl.u32 %v2559, 7
  %v2561 = vsub.s32 %v2558, %v2560
  %v2562 = vrot.slane %v2546, %v2561
  %v2564 = vunpack.c.l.s4 1966171168
  %v2565 = vunpack.c.0.s8 %v2564
  %v2566 = vlaneseq
  %v2567 = vshrl.u32 %v2566, 7
  %v2568 = vsub.s32 %v2565, %v2567
  %v2569 = vrot.slane %v2553, %v2568
  %v2571 = vunpack.c.l.s4 1966171168
  %v2572 = vunpack.c.0.s8 %v2571
  %v2573 = vlaneseq
  %v2574 = vshrl.u32 %v2573, 7
  %v2575 = vsub.s32 %v2572, %v2574
  %v2576 = vrot.slane %v2554, %v2575
  %v2578 = vunpack.c.l.s4 1966171168
  %v2579 = vunpack.c.0.s8 %v2578
  %v2580 = vlaneseq
  %v2581 = vshrl.u32 %v2580, 7
  %v2582 = vsub.s32 %v2579, %v2581
  %v2583 = vrot.slane %v2555, %v2582
  %v2584 = vcombine.high %v2562, %v2562
  %v2585 = vcombine.high %v2569, %v2569
  %v2586 = vcombine.high %v2576, %v2576
  %v2587 = vcombine.high %v2583, %v2583
  %v2588 = vcombine.high %v730, %v730
  %v2590 = vunpack.c.l.s4 1966171168
  %v2591 = vunpack.c.0.s8 %v2590
  %v2592 = vlaneseq
  %v2593 = vshrl.u32 %v2592, 7
  %v2594 = vsub.s32 %v2591, %v2593
  %v2595 = vrot.slane %v730, %v2594
  %v2597 = vunpack.c.l.s4 1966171168
  %v2598 = vunpack.c.0.s8 %v2597
  %v2599 = vlaneseq
  %v2600 = vshrl.u32 %v2599, 7
  %v2601 = vsub.s32 %v2598, %v2600
  %v2602 = vrot.slane %v2588, %v2601
  %v2603 = vcombine.high %v2595, %v2595
  %v2604 = vcombine.high %v2602, %v2602
  %v2606 = vunpack.c.l.s4 1966171168
  %v2607 = vunpack.c.0.s8 %v2606
  %v2608 = vlaneseq
  %v2609 = vshrl.u32 %v2608, 7
  %v2610 = vsub.s32 %v2607, %v2609
  %v2611 = vrot.slane %v2595, %v2610
  %v2613 = vunpack.c.l.s4 1966171168
  %v2614 = vunpack.c.0.s8 %v2613
  %v2615 = vlaneseq
  %v2616 = vshrl.u32 %v2615, 7
  %v2617 = vsub.s32 %v2614, %v2616
  %v2618 = vrot.slane %v2602, %v2617
  %v2620 = vunpack.c.l.s4 1966171168
  %v2621 = vunpack.c.0.s8 %v2620
  %v2622 = vlaneseq
  %v2623 = vshrl.u32 %v2622, 7
  %v2624 = vsub.s32 %v2621, %v2623
  %v2625 = vrot.slane %v2603, %v2624
  %v2627 = vunpack.c.l.s4 1966171168
  %v2628 = vunpack.c.0.s8 %v2627
  %v2629 = vlaneseq
  %v2630 = vshrl.u32 %v2629, 7
  %v2631 = vsub.s32 %v2628, %v2630
  %v2632 = vrot.slane %v2604, %v2631
  %v2633 = vcombine.high %v2611, %v2611
  %v2634 = vcombine.high %v2618, %v2618
  %v2635 = vcombine.high %v2625, %v2625
  %v2636 = vcombine.high %v2632, %v2632
  %v2637 = vcombine.high %v731, %v731
  %v2639 = vunpack.c.l.s4 1966171168
  %v2640 = vunpack.c.0.s8 %v2639
  %v2641 = vlaneseq
  %v2642 = vshrl.u32 %v2641, 7
  %v2643 = vsub.s32 %v2640, %v2642
  %v2644 = vrot.slane %v731, %v2643
  %v2646 = vunpack.c.l.s4 1966171168
  %v2647 = vunpack.c.0.s8 %v2646
  %v2648 = vlaneseq
  %v2649 = vshrl.u32 %v2648, 7
  %v2650 = vsub.s32 %v2647, %v2649
  %v2651 = vrot.slane %v2637, %v2650
  %v2652 = vcombine.high %v2644, %v2644
  %v2653 = vcombine.high %v2651, %v2651
  %v2655 = vunpack.c.l.s4 1966171168
  %v2656 = vunpack.c.0.s8 %v2655
  %v2657 = vlaneseq
  %v2658 = vshrl.u32 %v2657, 7
  %v2659 = vsub.s32 %v2656, %v2658
  %v2660 = vrot.slane %v2644, %v2659
  %v2662 = vunpack.c.l.s4 1966171168
  %v2663 = vunpack.c.0.s8 %v2662
  %v2664 = vlaneseq
  %v2665 = vshrl.u32 %v2664, 7
  %v2666 = vsub.s32 %v2663, %v2665
  %v2667 = vrot.slane %v2651, %v2666
  %v2669 = vunpack.c.l.s4 1966171168
  %v2670 = vunpack.c.0.s8 %v2669
  %v2671 = vlaneseq
  %v2672 = vshrl.u32 %v2671, 7
  %v2673 = vsub.s32 %v2670, %v2672
  %v2674 = vrot.slane %v2652, %v2673
  %v2676 = vunpack.c.l.s4 1966171168
  %v2677 = vunpack.c.0.s8 %v2676
  %v2678 = vlaneseq
  %v2679 = vshrl.u32 %v2678, 7
  %v2680 = vsub.s32 %v2677, %v2679
  %v2681 = vrot.slane %v2653, %v2680
  %v2682 = vcombine.high %v2660, %v2660
  %v2683 = vcombine.high %v2667, %v2667
  %v2684 = vcombine.high %v2674, %v2674
  %v2685 = vcombine.high %v2681, %v2681
  %v2687 = vunpack.c.l.s4 1966171168
  %v2688 = vunpack.c.0.s8 %v2687
  %v2689 = vlaneseq
  %v2690 = vshrl.u32 %v2689, 7
  %v2691 = vsub.s32 %v2688, %v2690
  %v2692 = vrot.slane %v732, %v2691
  %v2693 = vcombine.high %v2692, %v2692
  %v2695 = vunpack.c.l.s4 1966171168
  %v2696 = vunpack.c.0.s8 %v2695
  %v2697 = vlaneseq
  %v2698 = vshrl.u32 %v2697, 7
  %v2699 = vsub.s32 %v2696, %v2698
  %v2700 = vrot.slane %v2692, %v2699
  %v2702 = vunpack.c.l.s4 1966171168
  %v2703 = vunpack.c.0.s8 %v2702
  %v2704 = vlaneseq
  %v2705 = vshrl.u32 %v2704, 7
  %v2706 = vsub.s32 %v2703, %v2705
  %v2707 = vrot.slane %v2693, %v2706
  %v2708 = vlaneseq
  %v2709 = vshrl.u32 %v2708, 7
  %v2710 = vsub.s32 0, %v2709
  %v2711 = vrot.slane %v2464, %v2710
  %v2712 = vlaneseq
  %v2713 = vshrl.u32 %v2712, 7
  %v2714 = vsub.s32 0, %v2713
  %v2715 = vrot.slane %v2478, %v2714
  %v2716 = vlaneseq
  %v2717 = vshrl.u32 %v2716, 7
  %v2718 = vsub.s32 0, %v2717
  %v2719 = vrot.slane %v2486, %v2718
  %v2720 = vlaneseq
  %v2721 = vshrl.u32 %v2720, 7
  %v2722 = vsub.s32 0, %v2721
  %v2723 = vrot.slane %v2488, %v2722
  %v2724 = vlaneseq
  %v2725 = vshrl.u32 %v2724, 7
  %v2726 = vsub.s32 0, %v2725
  %v2727 = vrot.slane %v2471, %v2726
  %v2728 = vlaneseq
  %v2729 = vshrl.u32 %v2728, 7
  %v2730 = vsub.s32 0, %v2729
  %v2731 = vrot.slane %v2485, %v2730
  %v2732 = vlaneseq
  %v2733 = vshrl.u32 %v2732, 7
  %v2734 = vsub.s32 0, %v2733
  %v2735 = vrot.slane %v2487, %v2734
  %v2736 = vlaneseq
  %v2737 = vshrl.u32 %v2736, 7
  %v2738 = vsub.s32 0, %v2737
  %v2739 = vrot.slane %v2489, %v2738
  %v2740 = vlaneseq
  %v2741 = vshrl.u32 %v2740, 7
  %v2742 = vsub.s32 0, %v2741
  %v2743 = vrot.slane %v2513, %v2742
  %v2744 = vlaneseq
  %v2745 = vshrl.u32 %v2744, 7
  %v2746 = vsub.s32 0, %v2745
  %v2747 = vrot.slane %v2527, %v2746
  %v2748 = vlaneseq
  %v2749 = vshrl.u32 %v2748, 7
  %v2750 = vsub.s32 0, %v2749
  %v2751 = vrot.slane %v2535, %v2750
  %v2752 = vlaneseq
  %v2753 = vshrl.u32 %v2752, 7
  %v2754 = vsub.s32 0, %v2753
  %v2755 = vrot.slane %v2537, %v2754
  %v2756 = vlaneseq
  %v2757 = vshrl.u32 %v2756, 7
  %v2758 = vsub.s32 0, %v2757
  %v2759 = vrot.slane %v2520, %v2758
  %v2760 = vlaneseq
  %v2761 = vshrl.u32 %v2760, 7
  %v2762 = vsub.s32 0, %v2761
  %v2763 = vrot.slane %v2534, %v2762
  %v2764 = vlaneseq
  %v2765 = vshrl.u32 %v2764, 7
  %v2766 = vsub.s32 0, %v2765
  %v2767 = vrot.slane %v2536, %v2766
  %v2768 = vlaneseq
  %v2769 = vshrl.u32 %v2768, 7
  %v2770 = vsub.s32 0, %v2769
  %v2771 = vrot.slane %v2538, %v2770
  %v2772 = vlaneseq
  %v2773 = vshrl.u32 %v2772, 7
  %v2774 = vsub.s32 0, %v2773
  %v2775 = vrot.slane %v2562, %v2774
  %v2776 = vlaneseq
  %v2777 = vshrl.u32 %v2776, 7
  %v2778 = vsub.s32 0, %v2777
  %v2779 = vrot.slane %v2576, %v2778
  %v2780 = vlaneseq
  %v2781 = vshrl.u32 %v2780, 7
  %v2782 = vsub.s32 0, %v2781
  %v2783 = vrot.slane %v2584, %v2782
  %v2784 = vlaneseq
  %v2785 = vshrl.u32 %v2784, 7
  %v2786 = vsub.s32 0, %v2785
  %v2787 = vrot.slane %v2586, %v2786
  %v2788 = vlaneseq
  %v2789 = vshrl.u32 %v2788, 7
  %v2790 = vsub.s32 0, %v2789
  %v2791 = vrot.slane %v2569, %v2790
  %v2792 = vlaneseq
  %v2793 = vshrl.u32 %v2792, 7
  %v2794 = vsub.s32 0, %v2793
  %v2795 = vrot.slane %v2583, %v2794
  %v2796 = vlaneseq
  %v2797 = vshrl.u32 %v2796, 7
  %v2798 = vsub.s32 0, %v2797
  %v2799 = vrot.slane %v2585, %v2798
  %v2800 = vlaneseq
  %v2801 = vshrl.u32 %v2800, 7
  %v2802 = vsub.s32 0, %v2801
  %v2803 = vrot.slane %v2587, %v2802
  %v2804 = vlaneseq
  %v2805 = vshrl.u32 %v2804, 7
  %v2806 = vsub.s32 0, %v2805
  %v2807 = vrot.slane %v2611, %v2806
  %v2808 = vlaneseq
  %v2809 = vshrl.u32 %v2808, 7
  %v2810 = vsub.s32 0, %v2809
  %v2811 = vrot.slane %v2625, %v2810
  %v2812 = vlaneseq
  %v2813 = vshrl.u32 %v2812, 7
  %v2814 = vsub.s32 0, %v2813
  %v2815 = vrot.slane %v2633, %v2814
  %v2816 = vlaneseq
  %v2817 = vshrl.u32 %v2816, 7
  %v2818 = vsub.s32 0, %v2817
  %v2819 = vrot.slane %v2635, %v2818
  %v2820 = vlaneseq
  %v2821 = vshrl.u32 %v2820, 7
  %v2822 = vsub.s32 0, %v2821
  %v2823 = vrot.slane %v2618, %v2822
  %v2824 = vlaneseq
  %v2825 = vshrl.u32 %v2824, 7
  %v2826 = vsub.s32 0, %v2825
  %v2827 = vrot.slane %v2632, %v2826
  %v2828 = vlaneseq
  %v2829 = vshrl.u32 %v2828, 7
  %v2830 = vsub.s32 0, %v2829
  %v2831 = vrot.slane %v2634, %v2830
  %v2832 = vlaneseq
  %v2833 = vshrl.u32 %v2832, 7
  %v2834 = vsub.s32 0, %v2833
  %v2835 = vrot.slane %v2636, %v2834
  %v2836 = vlaneseq
  %v2837 = vshrl.u32 %v2836, 7
  %v2838 = vsub.s32 0, %v2837
  %v2839 = vrot.slane %v2660, %v2838
  %v2840 = vlaneseq
  %v2841 = vshrl.u32 %v2840, 7
  %v2842 = vsub.s32 0, %v2841
  %v2843 = vrot.slane %v2674, %v2842
  %v2844 = vlaneseq
  %v2845 = vshrl.u32 %v2844, 7
  %v2846 = vsub.s32 0, %v2845
  %v2847 = vrot.slane %v2682, %v2846
  %v2848 = vlaneseq
  %v2849 = vshrl.u32 %v2848, 7
  %v2850 = vsub.s32 0, %v2849
  %v2851 = vrot.slane %v2684, %v2850
  %v2852 = vlaneseq
  %v2853 = vshrl.u32 %v2852, 7
  %v2854 = vsub.s32 0, %v2853
  %v2855 = vrot.slane %v2667, %v2854
  %v2856 = vlaneseq
  %v2857 = vshrl.u32 %v2856, 7
  %v2858 = vsub.s32 0, %v2857
  %v2859 = vrot.slane %v2681, %v2858
  %v2860 = vlaneseq
  %v2861 = vshrl.u32 %v2860, 7
  %v2862 = vsub.s32 0, %v2861
  %v2863 = vrot.slane %v2683, %v2862
  %v2864 = vlaneseq
  %v2865 = vshrl.u32 %v2864, 7
  %v2866 = vsub.s32 0, %v2865
  %v2867 = vrot.slane %v2685, %v2866
  %v2868 = vlaneseq
  %v2869 = vshrl.u32 %v2868, 7
  %v2870 = vsub.s32 0, %v2869
  %v2871 = vrot.slane %v2700, %v2870
  %v2872 = vlaneseq
  %v2873 = vshrl.u32 %v2872, 7
  %v2874 = vsub.s32 0, %v2873
  %v2875 = vrot.slane %v2707, %v2874
  %v2918 = vmul.f32 %v1350, %v2711
  %v2919 = vmul.f32 %v1358, %v2715
  %v2920 = vmul.f32 %v1366, %v2719
  %v2921 = vmul.f32 %v1374, %v2723
  %v2922 = vmul.f32 %v1382, %v2727
  %v2923 = vmul.f32 %v1390, %v2731
  %v2924 = vmul.f32 %v1398, %v2735
  %v2925 = vmul.f32 %v1406, %v2739
  %v2926 = vmul.f32 %v1414, %v2743
  %v2927 = vmul.f32 %v1422, %v2747
  %v2928 = vmul.f32 %v1430, %v2751
  %v2929 = vmul.f32 %v1438, %v2755
  %v2930 = vmul.f32 %v1446, %v2759
  %v2931 = vmul.f32 %v1454, %v2763
  %v2932 = vmul.f32 %v1462, %v2767
  %v2933 = vmul.f32 %v1470, %v2771
  %v2934 = vmul.f32 %v1478, %v2775
  %v2935 = vmul.f32 %v1486, %v2779
  %v2936 = vmul.f32 %v1494, %v2783
  %v2937 = vmul.f32 %v1502, %v2787
  %v2938 = vmul.f32 %v1510, %v2791
  %v2939 = vmul.f32 %v1518, %v2795
  %v2940 = vmul.f32 %v1526, %v2799
  %v2941 = vmul.f32 %v1534, %v2803
  %v2942 = vmul.f32 %v1542, %v2807
  %v2943 = vmul.f32 %v1550, %v2811
  %v2944 = vmul.f32 %v1558, %v2815
  %v2945 = vmul.f32 %v1566, %v2819
  %v2946 = vmul.f32 %v1574, %v2823
  %v2947 = vmul.f32 %v1582, %v2827
  %v2948 = vmul.f32 %v1590, %v2831
  %v2949 = vmul.f32 %v1598, %v2835
  %v2950 = vmul.f32 %v1606, %v2839
  %v2951 = vmul.f32 %v1614, %v2843
  %v2952 = vmul.f32 %v1622, %v2847
  %v2953 = vmul.f32 %v1630, %v2851
  %v2954 = vmul.f32 %v1638, %v2855
  %v2955 = vmul.f32 %v1646, %v2859
  %v2956 = vmul.f32 %v1654, %v2863
  %v2957 = vmul.f32 %v1662, %v2867
  %v2958 = vmul.f32 %v1670, %v2871
  %v2959 = vmul.f32 %v1678, %v2875
  %2960 = vst.msk [vmem:[#allocation4] sm:$0xff] %vm234, %v2918
  %2961 = vst.msk [vmem:[#allocation4 + $0x8] sm:$0xff] %vm234, %v2919
  %2962 = vst.msk [vmem:[#allocation4 + $0x10] sm:$0xff] %vm234, %v2920
  %2963 = vst.msk [vmem:[#allocation4 + $0x18] sm:$0xff] %vm234, %v2921
  %2964 = vst.msk [vmem:[#allocation4 + $0x20] sm:$0xff] %vm234, %v2922
  %2965 = vst.msk [vmem:[#allocation4 + $0x28] sm:$0xff] %vm234, %v2923
  %2966 = vst.msk [vmem:[#allocation4 + $0x30] sm:$0xff] %vm234, %v2924
  %2967 = vst.msk [vmem:[#allocation4 + $0x38] sm:$0xff] %vm234, %v2925
  %2968 = vst.msk [vmem:[#allocation4 + $0x40] sm:$0xff] %vm234, %v2926
  %2969 = vst.msk [vmem:[#allocation4 + $0x48] sm:$0xff] %vm234, %v2927
  %2970 = vst.msk [vmem:[#allocation4 + $0x50] sm:$0xff] %vm234, %v2928
  %2971 = vst.msk [vmem:[#allocation4 + $0x58] sm:$0xff] %vm234, %v2929
  %2972 = vst.msk [vmem:[#allocation4 + $0x60] sm:$0xff] %vm234, %v2930
  %2973 = vst.msk [vmem:[#allocation4 + $0x68] sm:$0xff] %vm234, %v2931
  %2974 = vst.msk [vmem:[#allocation4 + $0x70] sm:$0xff] %vm234, %v2932
  %2975 = vst.msk [vmem:[#allocation4 + $0x78] sm:$0xff] %vm234, %v2933
  %2976 = vst.msk [vmem:[#allocation4 + $0x80] sm:$0xff] %vm234, %v2934
  %2977 = vst.msk [vmem:[#allocation4 + $0x88] sm:$0xff] %vm234, %v2935
  %2978 = vst.msk [vmem:[#allocation4 + $0x90] sm:$0xff] %vm234, %v2936
  %2979 = vst.msk [vmem:[#allocation4 + $0x98] sm:$0xff] %vm234, %v2937
  %2980 = vst.msk [vmem:[#allocation4 + $0xa0] sm:$0xff] %vm234, %v2938
  %2981 = vst.msk [vmem:[#allocation4 + $0xa8] sm:$0xff] %vm234, %v2939
  %2982 = vst.msk [vmem:[#allocation4 + $0xb0] sm:$0xff] %vm234, %v2940
  %2983 = vst.msk [vmem:[#allocation4 + $0xb8] sm:$0xff] %vm234, %v2941
  %2984 = vst.msk [vmem:[#allocation4 + $0xc0] sm:$0xff] %vm234, %v2942
  %2985 = vst.msk [vmem:[#allocation4 + $0xc8] sm:$0xff] %vm234, %v2943
  %2986 = vst.msk [vmem:[#allocation4 + $0xd0] sm:$0xff] %vm234, %v2944
  %2987 = vst.msk [vmem:[#allocation4 + $0xd8] sm:$0xff] %vm234, %v2945
  %2988 = vst.msk [vmem:[#allocation4 + $0xe0] sm:$0xff] %vm234, %v2946
  %2989 = vst.msk [vmem:[#allocation4 + $0xe8] sm:$0xff] %vm234, %v2947
  %2990 = vst.msk [vmem:[#allocation4 + $0xf0] sm:$0xff] %vm234, %v2948
  %2991 = vst.msk [vmem:[#allocation4 + $0xf8] sm:$0xff] %vm234, %v2949
  %2992 = vst.msk [vmem:[#allocation4 + $0x100] sm:$0xff] %vm234, %v2950
  %2993 = vst.msk [vmem:[#allocation4 + $0x108] sm:$0xff] %vm234, %v2951
  %2994 = vst.msk [vmem:[#allocation4 + $0x110] sm:$0xff] %vm234, %v2952
  %2995 = vst.msk [vmem:[#allocation4 + $0x118] sm:$0xff] %vm234, %v2953
  %2996 = vst.msk [vmem:[#allocation4 + $0x120] sm:$0xff] %vm234, %v2954
  %2997 = vst.msk [vmem:[#allocation4 + $0x128] sm:$0xff] %vm234, %v2955
  %2998 = vst.msk [vmem:[#allocation4 + $0x130] sm:$0xff] %vm234, %v2956
  %2999 = vst.msk [vmem:[#allocation4 + $0x138] sm:$0xff] %vm234, %v2957
  %3000 = vst.msk [vmem:[#allocation4 + $0x140] sm:$0xff] %vm234, %v2958
  %3001 = vst.msk [vmem:[#allocation4 + $0x148] sm:$0xff] %vm234, %v2959
  %v3002 = vmul.f32 %v1850, %v2711
  %v3003 = vmul.f32 %v1854, %v2715
  %v3004 = vmul.f32 %v1858, %v2719
  %v3005 = vmul.f32 %v1862, %v2723
  %v3006 = vmul.f32 %v1866, %v2727
  %v3007 = vmul.f32 %v1870, %v2731
  %v3008 = vmul.f32 %v1874, %v2735
  %v3009 = vmul.f32 %v1878, %v2739
  %v3010 = vmul.f32 %v1882, %v2743
  %v3011 = vmul.f32 %v1886, %v2747
  %v3012 = vmul.f32 %v1890, %v2751
  %v3013 = vmul.f32 %v1894, %v2755
  %v3014 = vmul.f32 %v1898, %v2759
  %v3015 = vmul.f32 %v1902, %v2763
  %v3016 = vmul.f32 %v1906, %v2767
  %v3017 = vmul.f32 %v1910, %v2771
  %v3018 = vmul.f32 %v1914, %v2775
  %v3019 = vmul.f32 %v1918, %v2779
  %v3020 = vmul.f32 %v1922, %v2783
  %v3021 = vmul.f32 %v1926, %v2787
  %v3022 = vmul.f32 %v1930, %v2791
  %v3023 = vmul.f32 %v1934, %v2795
  %v3024 = vmul.f32 %v1938, %v2799
  %v3025 = vmul.f32 %v1942, %v2803
  %v3026 = vmul.f32 %v1946, %v2807
  %v3027 = vmul.f32 %v1950, %v2811
  %v3028 = vmul.f32 %v1954, %v2815
  %v3029 = vmul.f32 %v1958, %v2819
  %v3030 = vmul.f32 %v1962, %v2823
  %v3031 = vmul.f32 %v1966, %v2827
  %v3032 = vmul.f32 %v1970, %v2831
  %v3033 = vmul.f32 %v1974, %v2835
  %v3034 = vmul.f32 %v1978, %v2839
  %v3035 = vmul.f32 %v1982, %v2843
  %v3036 = vmul.f32 %v1986, %v2847
  %v3037 = vmul.f32 %v1990, %v2851
  %v3038 = vmul.f32 %v1994, %v2855
  %v3039 = vmul.f32 %v1998, %v2859
  %v3040 = vmul.f32 %v2002, %v2863
  %v3041 = vmul.f32 %v2006, %v2867
  %v3042 = vmul.f32 %v2010, %v2871
  %v3043 = vmul.f32 %v2014, %v2875
  %3086 = vrot.lane.b32.xlu0 %v3002, 96
  %v3087 = vpop.permute.xlu0 %3086
  %3088 = vrot.lane.b32.xlu0 %v3003, 96
  %v3089 = vpop.permute.xlu0 %3088
  %3090 = vrot.lane.b32.xlu0 %v3004, 96
  %v3091 = vpop.permute.xlu0 %3090
  %3092 = vrot.lane.b32.xlu0 %v3005, 96
  %v3093 = vpop.permute.xlu0 %3092
  %3094 = vrot.lane.b32.xlu0 %v3006, 96
  %v3095 = vpop.permute.xlu0 %3094
  %3096 = vrot.lane.b32.xlu0 %v3007, 96
  %v3097 = vpop.permute.xlu0 %3096
  %3098 = vrot.lane.b32.xlu0 %v3008, 96
  %v3099 = vpop.permute.xlu0 %3098
  %3100 = vrot.lane.b32.xlu0 %v3009, 96
  %v3101 = vpop.permute.xlu0 %3100
  %3102 = vrot.lane.b32.xlu0 %v3010, 96
  %v3103 = vpop.permute.xlu0 %3102
  %3104 = vrot.lane.b32.xlu0 %v3011, 96
  %v3105 = vpop.permute.xlu0 %3104
  %3106 = vrot.lane.b32.xlu0 %v3012, 96
  %v3107 = vpop.permute.xlu0 %3106
  %3108 = vrot.lane.b32.xlu0 %v3013, 96
  %v3109 = vpop.permute.xlu0 %3108
  %3110 = vrot.lane.b32.xlu0 %v3014, 96
  %v3111 = vpop.permute.xlu0 %3110
  %3112 = vrot.lane.b32.xlu0 %v3015, 96
  %v3113 = vpop.permute.xlu0 %3112
  %3114 = vrot.lane.b32.xlu0 %v3016, 96
  %v3115 = vpop.permute.xlu0 %3114
  %3116 = vrot.lane.b32.xlu0 %v3017, 96
  %v3117 = vpop.permute.xlu0 %3116
  %3118 = vrot.lane.b32.xlu0 %v3018, 96
  %v3119 = vpop.permute.xlu0 %3118
  %3120 = vrot.lane.b32.xlu0 %v3019, 96
  %v3121 = vpop.permute.xlu0 %3120
  %3122 = vrot.lane.b32.xlu0 %v3020, 96
  %v3123 = vpop.permute.xlu0 %3122
  %3124 = vrot.lane.b32.xlu0 %v3021, 96
  %v3125 = vpop.permute.xlu0 %3124
  %3126 = vrot.lane.b32.xlu0 %v3022, 96
  %v3127 = vpop.permute.xlu0 %3126
  %3128 = vrot.lane.b32.xlu0 %v3023, 96
  %v3129 = vpop.permute.xlu0 %3128
  %3130 = vrot.lane.b32.xlu0 %v3024, 96
  %v3131 = vpop.permute.xlu0 %3130
  %3132 = vrot.lane.b32.xlu0 %v3025, 96
  %v3133 = vpop.permute.xlu0 %3132
  %3134 = vrot.lane.b32.xlu0 %v3026, 96
  %v3135 = vpop.permute.xlu0 %3134
  %3136 = vrot.lane.b32.xlu0 %v3027, 96
  %v3137 = vpop.permute.xlu0 %3136
  %3138 = vrot.lane.b32.xlu0 %v3028, 96
  %v3139 = vpop.permute.xlu0 %3138
  %3140 = vrot.lane.b32.xlu0 %v3029, 96
  %v3141 = vpop.permute.xlu0 %3140
  %3142 = vrot.lane.b32.xlu0 %v3030, 96
  %v3143 = vpop.permute.xlu0 %3142
  %3144 = vrot.lane.b32.xlu0 %v3031, 96
  %v3145 = vpop.permute.xlu0 %3144
  %3146 = vrot.lane.b32.xlu0 %v3032, 96
  %v3147 = vpop.permute.xlu0 %3146
  %3148 = vrot.lane.b32.xlu0 %v3033, 96
  %v3149 = vpop.permute.xlu0 %3148
  %3150 = vrot.lane.b32.xlu0 %v3034, 96
  %v3151 = vpop.permute.xlu0 %3150
  %3152 = vrot.lane.b32.xlu0 %v3035, 96
  %v3153 = vpop.permute.xlu0 %3152
  %3154 = vrot.lane.b32.xlu0 %v3036, 96
  %v3155 = vpop.permute.xlu0 %3154
  %3156 = vrot.lane.b32.xlu0 %v3037, 96
  %v3157 = vpop.permute.xlu0 %3156
  %3158 = vrot.lane.b32.xlu0 %v3038, 96
  %v3159 = vpop.permute.xlu0 %3158
  %3160 = vrot.lane.b32.xlu0 %v3039, 96
  %v3161 = vpop.permute.xlu0 %3160
  %3162 = vrot.lane.b32.xlu0 %v3040, 96
  %v3163 = vpop.permute.xlu0 %3162
  %3164 = vrot.lane.b32.xlu0 %v3041, 96
  %v3165 = vpop.permute.xlu0 %3164
  %3166 = vrot.lane.b32.xlu0 %v3042, 96
  %v3167 = vpop.permute.xlu0 %3166
  %3168 = vrot.lane.b32.xlu0 %v3043, 96
  %v3169 = vpop.permute.xlu0 %3168
  %3212 = vst.msk [vmem:[#allocation5] sm:$0xff] %vm234, %v3087
  %3213 = vst.msk [vmem:[#allocation5 + $0x8] sm:$0xff] %vm234, %v3089
  %3214 = vst.msk [vmem:[#allocation5 + $0x10] sm:$0xff] %vm234, %v3091
  %3215 = vst.msk [vmem:[#allocation5 + $0x18] sm:$0xff] %vm234, %v3093
  %3216 = vst.msk [vmem:[#allocation5 + $0x20] sm:$0xff] %vm234, %v3095
  %3217 = vst.msk [vmem:[#allocation5 + $0x28] sm:$0xff] %vm234, %v3097
  %3218 = vst.msk [vmem:[#allocation5 + $0x30] sm:$0xff] %vm234, %v3099
  %3219 = vst.msk [vmem:[#allocation5 + $0x38] sm:$0xff] %vm234, %v3101
  %3220 = vst.msk [vmem:[#allocation5 + $0x40] sm:$0xff] %vm234, %v3103
  %3221 = vst.msk [vmem:[#allocation5 + $0x48] sm:$0xff] %vm234, %v3105
  %3222 = vst.msk [vmem:[#allocation5 + $0x50] sm:$0xff] %vm234, %v3107
  %3223 = vst.msk [vmem:[#allocation5 + $0x58] sm:$0xff] %vm234, %v3109
  %3224 = vst.msk [vmem:[#allocation5 + $0x60] sm:$0xff] %vm234, %v3111
  %3225 = vst.msk [vmem:[#allocation5 + $0x68] sm:$0xff] %vm234, %v3113
  %3226 = vst.msk [vmem:[#allocation5 + $0x70] sm:$0xff] %vm234, %v3115
  %3227 = vst.msk [vmem:[#allocation5 + $0x78] sm:$0xff] %vm234, %v3117
  %3228 = vst.msk [vmem:[#allocation5 + $0x80] sm:$0xff] %vm234, %v3119
  %3229 = vst.msk [vmem:[#allocation5 + $0x88] sm:$0xff] %vm234, %v3121
  %3230 = vst.msk [vmem:[#allocation5 + $0x90] sm:$0xff] %vm234, %v3123
  %3231 = vst.msk [vmem:[#allocation5 + $0x98] sm:$0xff] %vm234, %v3125
  %3232 = vst.msk [vmem:[#allocation5 + $0xa0] sm:$0xff] %vm234, %v3127
  %3233 = vst.msk [vmem:[#allocation5 + $0xa8] sm:$0xff] %vm234, %v3129
  %3234 = vst.msk [vmem:[#allocation5 + $0xb0] sm:$0xff] %vm234, %v3131
  %3235 = vst.msk [vmem:[#allocation5 + $0xb8] sm:$0xff] %vm234, %v3133
  %3236 = vst.msk [vmem:[#allocation5 + $0xc0] sm:$0xff] %vm234, %v3135
  %3237 = vst.msk [vmem:[#allocation5 + $0xc8] sm:$0xff] %vm234, %v3137
  %3238 = vst.msk [vmem:[#allocation5 + $0xd0] sm:$0xff] %vm234, %v3139
  %3239 = vst.msk [vmem:[#allocation5 + $0xd8] sm:$0xff] %vm234, %v3141
  %3240 = vst.msk [vmem:[#allocation5 + $0xe0] sm:$0xff] %vm234, %v3143
  %3241 = vst.msk [vmem:[#allocation5 + $0xe8] sm:$0xff] %vm234, %v3145
  %3242 = vst.msk [vmem:[#allocation5 + $0xf0] sm:$0xff] %vm234, %v3147
  %3243 = vst.msk [vmem:[#allocation5 + $0xf8] sm:$0xff] %vm234, %v3149
  %3244 = vst.msk [vmem:[#allocation5 + $0x100] sm:$0xff] %vm234, %v3151
  %3245 = vst.msk [vmem:[#allocation5 + $0x108] sm:$0xff] %vm234, %v3153
  %3246 = vst.msk [vmem:[#allocation5 + $0x110] sm:$0xff] %vm234, %v3155
  %3247 = vst.msk [vmem:[#allocation5 + $0x118] sm:$0xff] %vm234, %v3157
  %3248 = vst.msk [vmem:[#allocation5 + $0x120] sm:$0xff] %vm234, %v3159
  %3249 = vst.msk [vmem:[#allocation5 + $0x128] sm:$0xff] %vm234, %v3161
  %3250 = vst.msk [vmem:[#allocation5 + $0x130] sm:$0xff] %vm234, %v3163
  %3251 = vst.msk [vmem:[#allocation5 + $0x138] sm:$0xff] %vm234, %v3165
  %3252 = vst.msk [vmem:[#allocation5 + $0x140] sm:$0xff] %vm234, %v3167
  %3253 = vst.msk [vmem:[#allocation5 + $0x148] sm:$0xff] %vm234, %v3169
  loop: start=0, step=1, limit=21
  $region46: #{_lambda_.11} parent=0 // loop_pre_header
    _
  $region47: #{_lambda_.11} parent=0 // loop_header
    %s3255 = sphi 0, %s3259
    %p3256 = scmp.ge.s32.totalorder %s3255, 21
    %v3260 = vphi 0.0, %v3274
    %v3261 = vphi 0.0, %v3275
    %v3262 = vphi 0.0, %v3285
    %v3263 = vphi 0.0, %v3286
  $region48: #{_lambda_.11} parent=0 // loop_header_branch
    %3258 = sbr.rel (%p3256) target = $region52
  $region49: #{_lambda_.11} parent=0 // loop_body
    %s3264 = ssub.s32 20, %s3255
    %s3265 = smul.u32 %s3255, 16
    %s3266 = scalar_lea.vmem [#allocation2], %s3265
    %v3267 = vld [vmem:[%s3266] sm:$0xff]
    %v3268 = vld [vmem:[%s3266 + $0x8] sm:$0xff]
    %v3269 = vmul.f32 %v3267, %v3260
    %v3270 = vmul.f32 %v3268, %v3261
    %s3271 = scalar_lea.vmem [#allocation4], %s3265
    %v3272 = vld [vmem:[%s3271] sm:$0xff]
    %v3273 = vld [vmem:[%s3271 + $0x8] sm:$0xff]
    %v3274 = vadd.f32 %v3269, %v3272
    %v3275 = vadd.f32 %v3270, %v3273
    %s3276 = smul.u32 %s3264, 16
    %s3277 = scalar_lea.vmem [#allocation3], %s3276
    %v3278 = vld [vmem:[%s3277] sm:$0xff]
    %v3279 = vld [vmem:[%s3277 + $0x8] sm:$0xff]
    %v3280 = vmul.f32 %v3278, %v3262
    %v3281 = vmul.f32 %v3279, %v3263
    %s3282 = scalar_lea.vmem [#allocation5], %s3276
    %v3283 = vld [vmem:[%s3282] sm:$0xff]
    %v3284 = vld [vmem:[%s3282 + $0x8] sm:$0xff]
    %v3285 = vadd.f32 %v3280, %v3283
    %v3286 = vadd.f32 %v3281, %v3284
    %s3287 = scalar_lea.vmem [#allocation6], %s3265
    %3288 = vst.msk [vmem:[%s3287] sm:$0xff] %vm234, %v3274
    %3289 = vst.msk [vmem:[%s3287 + $0x8] sm:$0xff] %vm234, %v3275
    %s3290 = scalar_lea.vmem [#allocation7], %s3276
    %3291 = vst.msk [vmem:[%s3290] sm:$0xff] %vm234, %v3285
    %3292 = vst.msk [vmem:[%s3290 + $0x8] sm:$0xff] %vm234, %v3286
  $region50: #{_lambda_.11} parent=0 // loop_footer
    %s3259 = sadd.s32 1, %s3255
  $region51: #{_lambda_.11} parent=0 // loop_footer_branch
    %3254 = sbr.rel target = $region47
  $region52: #{_lambda_.11} parent=0 // loop_exit
    _
  %v3293 = vld [vmem:[#allocation6] sm:$0xff]
  %v3294 = vld [vmem:[#allocation6 + $0x8] sm:$0xff]
  %v3295 = vld [vmem:[#allocation6 + $0x10] sm:$0xff]
  %v3296 = vld [vmem:[#allocation6 + $0x18] sm:$0xff]
  %v3297 = vld [vmem:[#allocation6 + $0x20] sm:$0xff]
  %v3298 = vld [vmem:[#allocation6 + $0x28] sm:$0xff]
  %v3299 = vld [vmem:[#allocation6 + $0x30] sm:$0xff]
  %v3300 = vld [vmem:[#allocation6 + $0x38] sm:$0xff]
  %v3301 = vld [vmem:[#allocation6 + $0x40] sm:$0xff]
  %v3302 = vld [vmem:[#allocation6 + $0x48] sm:$0xff]
  %v3303 = vld [vmem:[#allocation6 + $0x50] sm:$0xff]
  %v3304 = vld [vmem:[#allocation6 + $0x58] sm:$0xff]
  %v3305 = vld [vmem:[#allocation6 + $0x60] sm:$0xff]
  %v3306 = vld [vmem:[#allocation6 + $0x68] sm:$0xff]
  %v3307 = vld [vmem:[#allocation6 + $0x70] sm:$0xff]
  %v3308 = vld [vmem:[#allocation6 + $0x78] sm:$0xff]
  %v3309 = vld [vmem:[#allocation6 + $0x80] sm:$0xff]
  %v3310 = vld [vmem:[#allocation6 + $0x88] sm:$0xff]
  %v3311 = vld [vmem:[#allocation6 + $0x90] sm:$0xff]
  %v3312 = vld [vmem:[#allocation6 + $0x98] sm:$0xff]
  %v3313 = vld [vmem:[#allocation6 + $0xa0] sm:$0xff]
  %v3314 = vld [vmem:[#allocation6 + $0xa8] sm:$0xff]
  %v3315 = vld [vmem:[#allocation6 + $0xb0] sm:$0xff]
  %v3316 = vld [vmem:[#allocation6 + $0xb8] sm:$0xff]
  %v3317 = vld [vmem:[#allocation6 + $0xc0] sm:$0xff]
  %v3318 = vld [vmem:[#allocation6 + $0xc8] sm:$0xff]
  %v3319 = vld [vmem:[#allocation6 + $0xd0] sm:$0xff]
  %v3320 = vld [vmem:[#allocation6 + $0xd8] sm:$0xff]
  %v3321 = vld [vmem:[#allocation6 + $0xe0] sm:$0xff]
  %v3322 = vld [vmem:[#allocation6 + $0xe8] sm:$0xff]
  %v3323 = vld [vmem:[#allocation6 + $0xf0] sm:$0xff]
  %v3324 = vld [vmem:[#allocation6 + $0xf8] sm:$0xff]
  %v3325 = vld [vmem:[#allocation6 + $0x100] sm:$0xff]
  %v3326 = vld [vmem:[#allocation6 + $0x108] sm:$0xff]
  %v3327 = vld [vmem:[#allocation6 + $0x110] sm:$0xff]
  %v3328 = vld [vmem:[#allocation6 + $0x118] sm:$0xff]
  %v3329 = vld [vmem:[#allocation6 + $0x120] sm:$0xff]
  %v3330 = vld [vmem:[#allocation6 + $0x128] sm:$0xff]
  %v3331 = vld [vmem:[#allocation6 + $0x130] sm:$0xff]
  %v3332 = vld [vmem:[#allocation6 + $0x138] sm:$0xff]
  %v3333 = vld [vmem:[#allocation6 + $0x140] sm:$0xff]
  %v3334 = vld [vmem:[#allocation6 + $0x148] sm:$0xff]
  %v3335 = vmul.f32 %v3293, %v1682
  %v3336 = vmul.f32 %v3294, %v1686
  %v3337 = vmul.f32 %v3295, %v1690
  %v3338 = vmul.f32 %v3296, %v1694
  %v3339 = vmul.f32 %v3297, %v1698
  %v3340 = vmul.f32 %v3298, %v1702
  %v3341 = vmul.f32 %v3299, %v1706
  %v3342 = vmul.f32 %v3300, %v1710
  %v3343 = vmul.f32 %v3301, %v1714
  %v3344 = vmul.f32 %v3302, %v1718
  %v3345 = vmul.f32 %v3303, %v1722
  %v3346 = vmul.f32 %v3304, %v1726
  %v3347 = vmul.f32 %v3305, %v1730
  %v3348 = vmul.f32 %v3306, %v1734
  %v3349 = vmul.f32 %v3307, %v1738
  %v3350 = vmul.f32 %v3308, %v1742
  %v3351 = vmul.f32 %v3309, %v1746
  %v3352 = vmul.f32 %v3310, %v1750
  %v3353 = vmul.f32 %v3311, %v1754
  %v3354 = vmul.f32 %v3312, %v1758
  %v3355 = vmul.f32 %v3313, %v1762
  %v3356 = vmul.f32 %v3314, %v1766
  %v3357 = vmul.f32 %v3315, %v1770
  %v3358 = vmul.f32 %v3316, %v1774
  %v3359 = vmul.f32 %v3317, %v1778
  %v3360 = vmul.f32 %v3318, %v1782
  %v3361 = vmul.f32 %v3319, %v1786
  %v3362 = vmul.f32 %v3320, %v1790
  %v3363 = vmul.f32 %v3321, %v1794
  %v3364 = vmul.f32 %v3322, %v1798
  %v3365 = vmul.f32 %v3323, %v1802
  %v3366 = vmul.f32 %v3324, %v1806
  %v3367 = vmul.f32 %v3325, %v1810
  %v3368 = vmul.f32 %v3326, %v1814
  %v3369 = vmul.f32 %v3327, %v1818
  %v3370 = vmul.f32 %v3328, %v1822
  %v3371 = vmul.f32 %v3329, %v1826
  %v3372 = vmul.f32 %v3330, %v1830
  %v3373 = vmul.f32 %v3331, %v1834
  %v3374 = vmul.f32 %v3332, %v1838
  %v3375 = vmul.f32 %v3333, %v1842
  %v3376 = vmul.f32 %v3334, %v1846
  %v3377 = vsel %vm234, %v3335, 0.0
  %v3378 = vrot.slane %v3377, 4
  %v3379 = vadd.f32 %v3377, %v3378
  %v3380 = vrot.slane %v3379, 2
  %v3381 = vadd.f32 %v3379, %v3380
  %v3382 = vrot.slane %v3381, 1
  %v3383 = vadd.f32 %v3381, %v3382
  %v3384 = vsel %vm234, %v3336, 0.0
  %v3385 = vrot.slane %v3384, 4
  %v3386 = vadd.f32 %v3384, %v3385
  %v3387 = vrot.slane %v3386, 2
  %v3388 = vadd.f32 %v3386, %v3387
  %v3389 = vrot.slane %v3388, 1
  %v3390 = vadd.f32 %v3388, %v3389
  %v3391 = vsel %vm234, %v3337, 0.0
  %v3392 = vrot.slane %v3391, 4
  %v3393 = vadd.f32 %v3391, %v3392
  %v3394 = vrot.slane %v3393, 2
  %v3395 = vadd.f32 %v3393, %v3394
  %v3396 = vrot.slane %v3395, 1
  %v3397 = vadd.f32 %v3395, %v3396
  %v3398 = vsel %vm234, %v3338, 0.0
  %v3399 = vrot.slane %v3398, 4
  %v3400 = vadd.f32 %v3398, %v3399
  %v3401 = vrot.slane %v3400, 2
  %v3402 = vadd.f32 %v3400, %v3401
  %v3403 = vrot.slane %v3402, 1
  %v3404 = vadd.f32 %v3402, %v3403
  %v3405 = vsel %vm234, %v3339, 0.0
  %v3406 = vrot.slane %v3405, 4
  %v3407 = vadd.f32 %v3405, %v3406
  %v3408 = vrot.slane %v3407, 2
  %v3409 = vadd.f32 %v3407, %v3408
  %v3410 = vrot.slane %v3409, 1
  %v3411 = vadd.f32 %v3409, %v3410
  %v3412 = vsel %vm234, %v3340, 0.0
  %v3413 = vrot.slane %v3412, 4
  %v3414 = vadd.f32 %v3412, %v3413
  %v3415 = vrot.slane %v3414, 2
  %v3416 = vadd.f32 %v3414, %v3415
  %v3417 = vrot.slane %v3416, 1
  %v3418 = vadd.f32 %v3416, %v3417
  %v3419 = vsel %vm234, %v3341, 0.0
  %v3420 = vrot.slane %v3419, 4
  %v3421 = vadd.f32 %v3419, %v3420
  %v3422 = vrot.slane %v3421, 2
  %v3423 = vadd.f32 %v3421, %v3422
  %v3424 = vrot.slane %v3423, 1
  %v3425 = vadd.f32 %v3423, %v3424
  %v3426 = vsel %vm234, %v3342, 0.0
  %v3427 = vrot.slane %v3426, 4
  %v3428 = vadd.f32 %v3426, %v3427
  %v3429 = vrot.slane %v3428, 2
  %v3430 = vadd.f32 %v3428, %v3429
  %v3431 = vrot.slane %v3430, 1
  %v3432 = vadd.f32 %v3430, %v3431
  %v3433 = vsel %vm234, %v3343, 0.0
  %v3434 = vrot.slane %v3433, 4
  %v3435 = vadd.f32 %v3433, %v3434
  %v3436 = vrot.slane %v3435, 2
  %v3437 = vadd.f32 %v3435, %v3436
  %v3438 = vrot.slane %v3437, 1
  %v3439 = vadd.f32 %v3437, %v3438
  %v3440 = vsel %vm234, %v3344, 0.0
  %v3441 = vrot.slane %v3440, 4
  %v3442 = vadd.f32 %v3440, %v3441
  %v3443 = vrot.slane %v3442, 2
  %v3444 = vadd.f32 %v3442, %v3443
  %v3445 = vrot.slane %v3444, 1
  %v3446 = vadd.f32 %v3444, %v3445
  %v3447 = vsel %vm234, %v3345, 0.0
  %v3448 = vrot.slane %v3447, 4
  %v3449 = vadd.f32 %v3447, %v3448
  %v3450 = vrot.slane %v3449, 2
  %v3451 = vadd.f32 %v3449, %v3450
  %v3452 = vrot.slane %v3451, 1
  %v3453 = vadd.f32 %v3451, %v3452
  %v3454 = vsel %vm234, %v3346, 0.0
  %v3455 = vrot.slane %v3454, 4
  %v3456 = vadd.f32 %v3454, %v3455
  %v3457 = vrot.slane %v3456, 2
  %v3458 = vadd.f32 %v3456, %v3457
  %v3459 = vrot.slane %v3458, 1
  %v3460 = vadd.f32 %v3458, %v3459
  %v3461 = vsel %vm234, %v3347, 0.0
  %v3462 = vrot.slane %v3461, 4
  %v3463 = vadd.f32 %v3461, %v3462
  %v3464 = vrot.slane %v3463, 2
  %v3465 = vadd.f32 %v3463, %v3464
  %v3466 = vrot.slane %v3465, 1
  %v3467 = vadd.f32 %v3465, %v3466
  %v3468 = vsel %vm234, %v3348, 0.0
  %v3469 = vrot.slane %v3468, 4
  %v3470 = vadd.f32 %v3468, %v3469
  %v3471 = vrot.slane %v3470, 2
  %v3472 = vadd.f32 %v3470, %v3471
  %v3473 = vrot.slane %v3472, 1
  %v3474 = vadd.f32 %v3472, %v3473
  %v3475 = vsel %vm234, %v3349, 0.0
  %v3476 = vrot.slane %v3475, 4
  %v3477 = vadd.f32 %v3475, %v3476
  %v3478 = vrot.slane %v3477, 2
  %v3479 = vadd.f32 %v3477, %v3478
  %v3480 = vrot.slane %v3479, 1
  %v3481 = vadd.f32 %v3479, %v3480
  %v3482 = vsel %vm234, %v3350, 0.0
  %v3483 = vrot.slane %v3482, 4
  %v3484 = vadd.f32 %v3482, %v3483
  %v3485 = vrot.slane %v3484, 2
  %v3486 = vadd.f32 %v3484, %v3485
  %v3487 = vrot.slane %v3486, 1
  %v3488 = vadd.f32 %v3486, %v3487
  %v3489 = vsel %vm234, %v3351, 0.0
  %v3490 = vrot.slane %v3489, 4
  %v3491 = vadd.f32 %v3489, %v3490
  %v3492 = vrot.slane %v3491, 2
  %v3493 = vadd.f32 %v3491, %v3492
  %v3494 = vrot.slane %v3493, 1
  %v3495 = vadd.f32 %v3493, %v3494
  %v3496 = vsel %vm234, %v3352, 0.0
  %v3497 = vrot.slane %v3496, 4
  %v3498 = vadd.f32 %v3496, %v3497
  %v3499 = vrot.slane %v3498, 2
  %v3500 = vadd.f32 %v3498, %v3499
  %v3501 = vrot.slane %v3500, 1
  %v3502 = vadd.f32 %v3500, %v3501
  %v3503 = vsel %vm234, %v3353, 0.0
  %v3504 = vrot.slane %v3503, 4
  %v3505 = vadd.f32 %v3503, %v3504
  %v3506 = vrot.slane %v3505, 2
  %v3507 = vadd.f32 %v3505, %v3506
  %v3508 = vrot.slane %v3507, 1
  %v3509 = vadd.f32 %v3507, %v3508
  %v3510 = vsel %vm234, %v3354, 0.0
  %v3511 = vrot.slane %v3510, 4
  %v3512 = vadd.f32 %v3510, %v3511
  %v3513 = vrot.slane %v3512, 2
  %v3514 = vadd.f32 %v3512, %v3513
  %v3515 = vrot.slane %v3514, 1
  %v3516 = vadd.f32 %v3514, %v3515
  %v3517 = vsel %vm234, %v3355, 0.0
  %v3518 = vrot.slane %v3517, 4
  %v3519 = vadd.f32 %v3517, %v3518
  %v3520 = vrot.slane %v3519, 2
  %v3521 = vadd.f32 %v3519, %v3520
  %v3522 = vrot.slane %v3521, 1
  %v3523 = vadd.f32 %v3521, %v3522
  %v3524 = vsel %vm234, %v3356, 0.0
  %v3525 = vrot.slane %v3524, 4
  %v3526 = vadd.f32 %v3524, %v3525
  %v3527 = vrot.slane %v3526, 2
  %v3528 = vadd.f32 %v3526, %v3527
  %v3529 = vrot.slane %v3528, 1
  %v3530 = vadd.f32 %v3528, %v3529
  %v3531 = vsel %vm234, %v3357, 0.0
  %v3532 = vrot.slane %v3531, 4
  %v3533 = vadd.f32 %v3531, %v3532
  %v3534 = vrot.slane %v3533, 2
  %v3535 = vadd.f32 %v3533, %v3534
  %v3536 = vrot.slane %v3535, 1
  %v3537 = vadd.f32 %v3535, %v3536
  %v3538 = vsel %vm234, %v3358, 0.0
  %v3539 = vrot.slane %v3538, 4
  %v3540 = vadd.f32 %v3538, %v3539
  %v3541 = vrot.slane %v3540, 2
  %v3542 = vadd.f32 %v3540, %v3541
  %v3543 = vrot.slane %v3542, 1
  %v3544 = vadd.f32 %v3542, %v3543
  %v3545 = vsel %vm234, %v3359, 0.0
  %v3546 = vrot.slane %v3545, 4
  %v3547 = vadd.f32 %v3545, %v3546
  %v3548 = vrot.slane %v3547, 2
  %v3549 = vadd.f32 %v3547, %v3548
  %v3550 = vrot.slane %v3549, 1
  %v3551 = vadd.f32 %v3549, %v3550
  %v3552 = vsel %vm234, %v3360, 0.0
  %v3553 = vrot.slane %v3552, 4
  %v3554 = vadd.f32 %v3552, %v3553
  %v3555 = vrot.slane %v3554, 2
  %v3556 = vadd.f32 %v3554, %v3555
  %v3557 = vrot.slane %v3556, 1
  %v3558 = vadd.f32 %v3556, %v3557
  %v3559 = vsel %vm234, %v3361, 0.0
  %v3560 = vrot.slane %v3559, 4
  %v3561 = vadd.f32 %v3559, %v3560
  %v3562 = vrot.slane %v3561, 2
  %v3563 = vadd.f32 %v3561, %v3562
  %v3564 = vrot.slane %v3563, 1
  %v3565 = vadd.f32 %v3563, %v3564
  %v3566 = vsel %vm234, %v3362, 0.0
  %v3567 = vrot.slane %v3566, 4
  %v3568 = vadd.f32 %v3566, %v3567
  %v3569 = vrot.slane %v3568, 2
  %v3570 = vadd.f32 %v3568, %v3569
  %v3571 = vrot.slane %v3570, 1
  %v3572 = vadd.f32 %v3570, %v3571
  %v3573 = vsel %vm234, %v3363, 0.0
  %v3574 = vrot.slane %v3573, 4
  %v3575 = vadd.f32 %v3573, %v3574
  %v3576 = vrot.slane %v3575, 2
  %v3577 = vadd.f32 %v3575, %v3576
  %v3578 = vrot.slane %v3577, 1
  %v3579 = vadd.f32 %v3577, %v3578
  %v3580 = vsel %vm234, %v3364, 0.0
  %v3581 = vrot.slane %v3580, 4
  %v3582 = vadd.f32 %v3580, %v3581
  %v3583 = vrot.slane %v3582, 2
  %v3584 = vadd.f32 %v3582, %v3583
  %v3585 = vrot.slane %v3584, 1
  %v3586 = vadd.f32 %v3584, %v3585
  %v3587 = vsel %vm234, %v3365, 0.0
  %v3588 = vrot.slane %v3587, 4
  %v3589 = vadd.f32 %v3587, %v3588
  %v3590 = vrot.slane %v3589, 2
  %v3591 = vadd.f32 %v3589, %v3590
  %v3592 = vrot.slane %v3591, 1
  %v3593 = vadd.f32 %v3591, %v3592
  %v3594 = vsel %vm234, %v3366, 0.0
  %v3595 = vrot.slane %v3594, 4
  %v3596 = vadd.f32 %v3594, %v3595
  %v3597 = vrot.slane %v3596, 2
  %v3598 = vadd.f32 %v3596, %v3597
  %v3599 = vrot.slane %v3598, 1
  %v3600 = vadd.f32 %v3598, %v3599
  %v3601 = vsel %vm234, %v3367, 0.0
  %v3602 = vrot.slane %v3601, 4
  %v3603 = vadd.f32 %v3601, %v3602
  %v3604 = vrot.slane %v3603, 2
  %v3605 = vadd.f32 %v3603, %v3604
  %v3606 = vrot.slane %v3605, 1
  %v3607 = vadd.f32 %v3605, %v3606
  %v3608 = vsel %vm234, %v3368, 0.0
  %v3609 = vrot.slane %v3608, 4
  %v3610 = vadd.f32 %v3608, %v3609
  %v3611 = vrot.slane %v3610, 2
  %v3612 = vadd.f32 %v3610, %v3611
  %v3613 = vrot.slane %v3612, 1
  %v3614 = vadd.f32 %v3612, %v3613
  %v3615 = vsel %vm234, %v3369, 0.0
  %v3616 = vrot.slane %v3615, 4
  %v3617 = vadd.f32 %v3615, %v3616
  %v3618 = vrot.slane %v3617, 2
  %v3619 = vadd.f32 %v3617, %v3618
  %v3620 = vrot.slane %v3619, 1
  %v3621 = vadd.f32 %v3619, %v3620
  %v3622 = vsel %vm234, %v3370, 0.0
  %v3623 = vrot.slane %v3622, 4
  %v3624 = vadd.f32 %v3622, %v3623
  %v3625 = vrot.slane %v3624, 2
  %v3626 = vadd.f32 %v3624, %v3625
  %v3627 = vrot.slane %v3626, 1
  %v3628 = vadd.f32 %v3626, %v3627
  %v3629 = vsel %vm234, %v3371, 0.0
  %v3630 = vrot.slane %v3629, 4
  %v3631 = vadd.f32 %v3629, %v3630
  %v3632 = vrot.slane %v3631, 2
  %v3633 = vadd.f32 %v3631, %v3632
  %v3634 = vrot.slane %v3633, 1
  %v3635 = vadd.f32 %v3633, %v3634
  %v3636 = vsel %vm234, %v3372, 0.0
  %v3637 = vrot.slane %v3636, 4
  %v3638 = vadd.f32 %v3636, %v3637
  %v3639 = vrot.slane %v3638, 2
  %v3640 = vadd.f32 %v3638, %v3639
  %v3641 = vrot.slane %v3640, 1
  %v3642 = vadd.f32 %v3640, %v3641
  %v3643 = vsel %vm234, %v3373, 0.0
  %v3644 = vrot.slane %v3643, 4
  %v3645 = vadd.f32 %v3643, %v3644
  %v3646 = vrot.slane %v3645, 2
  %v3647 = vadd.f32 %v3645, %v3646
  %v3648 = vrot.slane %v3647, 1
  %v3649 = vadd.f32 %v3647, %v3648
  %v3650 = vsel %vm234, %v3374, 0.0
  %v3651 = vrot.slane %v3650, 4
  %v3652 = vadd.f32 %v3650, %v3651
  %v3653 = vrot.slane %v3652, 2
  %v3654 = vadd.f32 %v3652, %v3653
  %v3655 = vrot.slane %v3654, 1
  %v3656 = vadd.f32 %v3654, %v3655
  %v3657 = vsel %vm234, %v3375, 0.0
  %v3658 = vrot.slane %v3657, 4
  %v3659 = vadd.f32 %v3657, %v3658
  %v3660 = vrot.slane %v3659, 2
  %v3661 = vadd.f32 %v3659, %v3660
  %v3662 = vrot.slane %v3661, 1
  %v3663 = vadd.f32 %v3661, %v3662
  %v3664 = vsel %vm234, %v3376, 0.0
  %v3665 = vrot.slane %v3664, 4
  %v3666 = vadd.f32 %v3664, %v3665
  %v3667 = vrot.slane %v3666, 2
  %v3668 = vadd.f32 %v3666, %v3667
  %v3669 = vrot.slane %v3668, 1
  %v3670 = vadd.f32 %v3668, %v3669
  %v3671 = vld [vmem:[#allocation7] sm:$0xff]
  %v3672 = vld [vmem:[#allocation7 + $0x8] sm:$0xff]
  %v3673 = vld [vmem:[#allocation7 + $0x10] sm:$0xff]
  %v3674 = vld [vmem:[#allocation7 + $0x18] sm:$0xff]
  %v3675 = vld [vmem:[#allocation7 + $0x20] sm:$0xff]
  %v3676 = vld [vmem:[#allocation7 + $0x28] sm:$0xff]
  %v3677 = vld [vmem:[#allocation7 + $0x30] sm:$0xff]
  %v3678 = vld [vmem:[#allocation7 + $0x38] sm:$0xff]
  %v3679 = vld [vmem:[#allocation7 + $0x40] sm:$0xff]
  %v3680 = vld [vmem:[#allocation7 + $0x48] sm:$0xff]
  %v3681 = vld [vmem:[#allocation7 + $0x50] sm:$0xff]
  %v3682 = vld [vmem:[#allocation7 + $0x58] sm:$0xff]
  %v3683 = vld [vmem:[#allocation7 + $0x60] sm:$0xff]
  %v3684 = vld [vmem:[#allocation7 + $0x68] sm:$0xff]
  %v3685 = vld [vmem:[#allocation7 + $0x70] sm:$0xff]
  %v3686 = vld [vmem:[#allocation7 + $0x78] sm:$0xff]
  %v3687 = vld [vmem:[#allocation7 + $0x80] sm:$0xff]
  %v3688 = vld [vmem:[#allocation7 + $0x88] sm:$0xff]
  %v3689 = vld [vmem:[#allocation7 + $0x90] sm:$0xff]
  %v3690 = vld [vmem:[#allocation7 + $0x98] sm:$0xff]
  %v3691 = vld [vmem:[#allocation7 + $0xa0] sm:$0xff]
  %v3692 = vld [vmem:[#allocation7 + $0xa8] sm:$0xff]
  %v3693 = vld [vmem:[#allocation7 + $0xb0] sm:$0xff]
  %v3694 = vld [vmem:[#allocation7 + $0xb8] sm:$0xff]
  %v3695 = vld [vmem:[#allocation7 + $0xc0] sm:$0xff]
  %v3696 = vld [vmem:[#allocation7 + $0xc8] sm:$0xff]
  %v3697 = vld [vmem:[#allocation7 + $0xd0] sm:$0xff]
  %v3698 = vld [vmem:[#allocation7 + $0xd8] sm:$0xff]
  %v3699 = vld [vmem:[#allocation7 + $0xe0] sm:$0xff]
  %v3700 = vld [vmem:[#allocation7 + $0xe8] sm:$0xff]
  %v3701 = vld [vmem:[#allocation7 + $0xf0] sm:$0xff]
  %v3702 = vld [vmem:[#allocation7 + $0xf8] sm:$0xff]
  %v3703 = vld [vmem:[#allocation7 + $0x100] sm:$0xff]
  %v3704 = vld [vmem:[#allocation7 + $0x108] sm:$0xff]
  %v3705 = vld [vmem:[#allocation7 + $0x110] sm:$0xff]
  %v3706 = vld [vmem:[#allocation7 + $0x118] sm:$0xff]
  %v3707 = vld [vmem:[#allocation7 + $0x120] sm:$0xff]
  %v3708 = vld [vmem:[#allocation7 + $0x128] sm:$0xff]
  %v3709 = vld [vmem:[#allocation7 + $0x130] sm:$0xff]
  %v3710 = vld [vmem:[#allocation7 + $0x138] sm:$0xff]
  %v3711 = vld [vmem:[#allocation7 + $0x140] sm:$0xff]
  %v3712 = vld [vmem:[#allocation7 + $0x148] sm:$0xff]
  %v3713 = vmul.f32 %v3671, %v2018
  %v3714 = vmul.f32 %v3672, %v2022
  %v3715 = vmul.f32 %v3673, %v2026
  %v3716 = vmul.f32 %v3674, %v2030
  %v3717 = vmul.f32 %v3675, %v2034
  %v3718 = vmul.f32 %v3676, %v2038
  %v3719 = vmul.f32 %v3677, %v2042
  %v3720 = vmul.f32 %v3678, %v2046
  %v3721 = vmul.f32 %v3679, %v2050
  %v3722 = vmul.f32 %v3680, %v2054
  %v3723 = vmul.f32 %v3681, %v2058
  %v3724 = vmul.f32 %v3682, %v2062
  %v3725 = vmul.f32 %v3683, %v2066
  %v3726 = vmul.f32 %v3684, %v2070
  %v3727 = vmul.f32 %v3685, %v2074
  %v3728 = vmul.f32 %v3686, %v2078
  %v3729 = vmul.f32 %v3687, %v2082
  %v3730 = vmul.f32 %v3688, %v2086
  %v3731 = vmul.f32 %v3689, %v2090
  %v3732 = vmul.f32 %v3690, %v2094
  %v3733 = vmul.f32 %v3691, %v2098
  %v3734 = vmul.f32 %v3692, %v2102
  %v3735 = vmul.f32 %v3693, %v2106
  %v3736 = vmul.f32 %v3694, %v2110
  %v3737 = vmul.f32 %v3695, %v2114
  %v3738 = vmul.f32 %v3696, %v2118
  %v3739 = vmul.f32 %v3697, %v2122
  %v3740 = vmul.f32 %v3698, %v2126
  %v3741 = vmul.f32 %v3699, %v2130
  %v3742 = vmul.f32 %v3700, %v2134
  %v3743 = vmul.f32 %v3701, %v2138
  %v3744 = vmul.f32 %v3702, %v2142
  %v3745 = vmul.f32 %v3703, %v2146
  %v3746 = vmul.f32 %v3704, %v2150
  %v3747 = vmul.f32 %v3705, %v2154
  %v3748 = vmul.f32 %v3706, %v2158
  %v3749 = vmul.f32 %v3707, %v2162
  %v3750 = vmul.f32 %v3708, %v2166
  %v3751 = vmul.f32 %v3709, %v2170
  %v3752 = vmul.f32 %v3710, %v2174
  %v3753 = vmul.f32 %v3711, %v2178
  %v3754 = vmul.f32 %v3712, %v2182
  %v3755 = vsel %vm234, %v3713, 0.0
  %v3756 = vrot.slane %v3755, 4
  %v3757 = vadd.f32 %v3755, %v3756
  %v3758 = vrot.slane %v3757, 2
  %v3759 = vadd.f32 %v3757, %v3758
  %v3760 = vrot.slane %v3759, 1
  %v3761 = vadd.f32 %v3759, %v3760
  %v3762 = vsel %vm234, %v3714, 0.0
  %v3763 = vrot.slane %v3762, 4
  %v3764 = vadd.f32 %v3762, %v3763
  %v3765 = vrot.slane %v3764, 2
  %v3766 = vadd.f32 %v3764, %v3765
  %v3767 = vrot.slane %v3766, 1
  %v3768 = vadd.f32 %v3766, %v3767
  %v3769 = vsel %vm234, %v3715, 0.0
  %v3770 = vrot.slane %v3769, 4
  %v3771 = vadd.f32 %v3769, %v3770
  %v3772 = vrot.slane %v3771, 2
  %v3773 = vadd.f32 %v3771, %v3772
  %v3774 = vrot.slane %v3773, 1
  %v3775 = vadd.f32 %v3773, %v3774
  %v3776 = vsel %vm234, %v3716, 0.0
  %v3777 = vrot.slane %v3776, 4
  %v3778 = vadd.f32 %v3776, %v3777
  %v3779 = vrot.slane %v3778, 2
  %v3780 = vadd.f32 %v3778, %v3779
  %v3781 = vrot.slane %v3780, 1
  %v3782 = vadd.f32 %v3780, %v3781
  %v3783 = vsel %vm234, %v3717, 0.0
  %v3784 = vrot.slane %v3783, 4
  %v3785 = vadd.f32 %v3783, %v3784
  %v3786 = vrot.slane %v3785, 2
  %v3787 = vadd.f32 %v3785, %v3786
  %v3788 = vrot.slane %v3787, 1
  %v3789 = vadd.f32 %v3787, %v3788
  %v3790 = vsel %vm234, %v3718, 0.0
  %v3791 = vrot.slane %v3790, 4
  %v3792 = vadd.f32 %v3790, %v3791
  %v3793 = vrot.slane %v3792, 2
  %v3794 = vadd.f32 %v3792, %v3793
  %v3795 = vrot.slane %v3794, 1
  %v3796 = vadd.f32 %v3794, %v3795
  %v3797 = vsel %vm234, %v3719, 0.0
  %v3798 = vrot.slane %v3797, 4
  %v3799 = vadd.f32 %v3797, %v3798
  %v3800 = vrot.slane %v3799, 2
  %v3801 = vadd.f32 %v3799, %v3800
  %v3802 = vrot.slane %v3801, 1
  %v3803 = vadd.f32 %v3801, %v3802
  %v3804 = vsel %vm234, %v3720, 0.0
  %v3805 = vrot.slane %v3804, 4
  %v3806 = vadd.f32 %v3804, %v3805
  %v3807 = vrot.slane %v3806, 2
  %v3808 = vadd.f32 %v3806, %v3807
  %v3809 = vrot.slane %v3808, 1
  %v3810 = vadd.f32 %v3808, %v3809
  %v3811 = vsel %vm234, %v3721, 0.0
  %v3812 = vrot.slane %v3811, 4
  %v3813 = vadd.f32 %v3811, %v3812
  %v3814 = vrot.slane %v3813, 2
  %v3815 = vadd.f32 %v3813, %v3814
  %v3816 = vrot.slane %v3815, 1
  %v3817 = vadd.f32 %v3815, %v3816
  %v3818 = vsel %vm234, %v3722, 0.0
  %v3819 = vrot.slane %v3818, 4
  %v3820 = vadd.f32 %v3818, %v3819
  %v3821 = vrot.slane %v3820, 2
  %v3822 = vadd.f32 %v3820, %v3821
  %v3823 = vrot.slane %v3822, 1
  %v3824 = vadd.f32 %v3822, %v3823
  %v3825 = vsel %vm234, %v3723, 0.0
  %v3826 = vrot.slane %v3825, 4
  %v3827 = vadd.f32 %v3825, %v3826
  %v3828 = vrot.slane %v3827, 2
  %v3829 = vadd.f32 %v3827, %v3828
  %v3830 = vrot.slane %v3829, 1
  %v3831 = vadd.f32 %v3829, %v3830
  %v3832 = vsel %vm234, %v3724, 0.0
  %v3833 = vrot.slane %v3832, 4
  %v3834 = vadd.f32 %v3832, %v3833
  %v3835 = vrot.slane %v3834, 2
  %v3836 = vadd.f32 %v3834, %v3835
  %v3837 = vrot.slane %v3836, 1
  %v3838 = vadd.f32 %v3836, %v3837
  %v3839 = vsel %vm234, %v3725, 0.0
  %v3840 = vrot.slane %v3839, 4
  %v3841 = vadd.f32 %v3839, %v3840
  %v3842 = vrot.slane %v3841, 2
  %v3843 = vadd.f32 %v3841, %v3842
  %v3844 = vrot.slane %v3843, 1
  %v3845 = vadd.f32 %v3843, %v3844
  %v3846 = vsel %vm234, %v3726, 0.0
  %v3847 = vrot.slane %v3846, 4
  %v3848 = vadd.f32 %v3846, %v3847
  %v3849 = vrot.slane %v3848, 2
  %v3850 = vadd.f32 %v3848, %v3849
  %v3851 = vrot.slane %v3850, 1
  %v3852 = vadd.f32 %v3850, %v3851
  %v3853 = vsel %vm234, %v3727, 0.0
  %v3854 = vrot.slane %v3853, 4
  %v3855 = vadd.f32 %v3853, %v3854
  %v3856 = vrot.slane %v3855, 2
  %v3857 = vadd.f32 %v3855, %v3856
  %v3858 = vrot.slane %v3857, 1
  %v3859 = vadd.f32 %v3857, %v3858
  %v3860 = vsel %vm234, %v3728, 0.0
  %v3861 = vrot.slane %v3860, 4
  %v3862 = vadd.f32 %v3860, %v3861
  %v3863 = vrot.slane %v3862, 2
  %v3864 = vadd.f32 %v3862, %v3863
  %v3865 = vrot.slane %v3864, 1
  %v3866 = vadd.f32 %v3864, %v3865
  %v3867 = vsel %vm234, %v3729, 0.0
  %v3868 = vrot.slane %v3867, 4
  %v3869 = vadd.f32 %v3867, %v3868
  %v3870 = vrot.slane %v3869, 2
  %v3871 = vadd.f32 %v3869, %v3870
  %v3872 = vrot.slane %v3871, 1
  %v3873 = vadd.f32 %v3871, %v3872
  %v3874 = vsel %vm234, %v3730, 0.0
  %v3875 = vrot.slane %v3874, 4
  %v3876 = vadd.f32 %v3874, %v3875
  %v3877 = vrot.slane %v3876, 2
  %v3878 = vadd.f32 %v3876, %v3877
  %v3879 = vrot.slane %v3878, 1
  %v3880 = vadd.f32 %v3878, %v3879
  %v3881 = vsel %vm234, %v3731, 0.0
  %v3882 = vrot.slane %v3881, 4
  %v3883 = vadd.f32 %v3881, %v3882
  %v3884 = vrot.slane %v3883, 2
  %v3885 = vadd.f32 %v3883, %v3884
  %v3886 = vrot.slane %v3885, 1
  %v3887 = vadd.f32 %v3885, %v3886
  %v3888 = vsel %vm234, %v3732, 0.0
  %v3889 = vrot.slane %v3888, 4
  %v3890 = vadd.f32 %v3888, %v3889
  %v3891 = vrot.slane %v3890, 2
  %v3892 = vadd.f32 %v3890, %v3891
  %v3893 = vrot.slane %v3892, 1
  %v3894 = vadd.f32 %v3892, %v3893
  %v3895 = vsel %vm234, %v3733, 0.0
  %v3896 = vrot.slane %v3895, 4
  %v3897 = vadd.f32 %v3895, %v3896
  %v3898 = vrot.slane %v3897, 2
  %v3899 = vadd.f32 %v3897, %v3898
  %v3900 = vrot.slane %v3899, 1
  %v3901 = vadd.f32 %v3899, %v3900
  %v3902 = vsel %vm234, %v3734, 0.0
  %v3903 = vrot.slane %v3902, 4
  %v3904 = vadd.f32 %v3902, %v3903
  %v3905 = vrot.slane %v3904, 2
  %v3906 = vadd.f32 %v3904, %v3905
  %v3907 = vrot.slane %v3906, 1
  %v3908 = vadd.f32 %v3906, %v3907
  %v3909 = vsel %vm234, %v3735, 0.0
  %v3910 = vrot.slane %v3909, 4
  %v3911 = vadd.f32 %v3909, %v3910
  %v3912 = vrot.slane %v3911, 2
  %v3913 = vadd.f32 %v3911, %v3912
  %v3914 = vrot.slane %v3913, 1
  %v3915 = vadd.f32 %v3913, %v3914
  %v3916 = vsel %vm234, %v3736, 0.0
  %v3917 = vrot.slane %v3916, 4
  %v3918 = vadd.f32 %v3916, %v3917
  %v3919 = vrot.slane %v3918, 2
  %v3920 = vadd.f32 %v3918, %v3919
  %v3921 = vrot.slane %v3920, 1
  %v3922 = vadd.f32 %v3920, %v3921
  %v3923 = vsel %vm234, %v3737, 0.0
  %v3924 = vrot.slane %v3923, 4
  %v3925 = vadd.f32 %v3923, %v3924
  %v3926 = vrot.slane %v3925, 2
  %v3927 = vadd.f32 %v3925, %v3926
  %v3928 = vrot.slane %v3927, 1
  %v3929 = vadd.f32 %v3927, %v3928
  %v3930 = vsel %vm234, %v3738, 0.0
  %v3931 = vrot.slane %v3930, 4
  %v3932 = vadd.f32 %v3930, %v3931
  %v3933 = vrot.slane %v3932, 2
  %v3934 = vadd.f32 %v3932, %v3933
  %v3935 = vrot.slane %v3934, 1
  %v3936 = vadd.f32 %v3934, %v3935
  %v3937 = vsel %vm234, %v3739, 0.0
  %v3938 = vrot.slane %v3937, 4
  %v3939 = vadd.f32 %v3937, %v3938
  %v3940 = vrot.slane %v3939, 2
  %v3941 = vadd.f32 %v3939, %v3940
  %v3942 = vrot.slane %v3941, 1
  %v3943 = vadd.f32 %v3941, %v3942
  %v3944 = vsel %vm234, %v3740, 0.0
  %v3945 = vrot.slane %v3944, 4
  %v3946 = vadd.f32 %v3944, %v3945
  %v3947 = vrot.slane %v3946, 2
  %v3948 = vadd.f32 %v3946, %v3947
  %v3949 = vrot.slane %v3948, 1
  %v3950 = vadd.f32 %v3948, %v3949
  %v3951 = vsel %vm234, %v3741, 0.0
  %v3952 = vrot.slane %v3951, 4
  %v3953 = vadd.f32 %v3951, %v3952
  %v3954 = vrot.slane %v3953, 2
  %v3955 = vadd.f32 %v3953, %v3954
  %v3956 = vrot.slane %v3955, 1
  %v3957 = vadd.f32 %v3955, %v3956
  %v3958 = vsel %vm234, %v3742, 0.0
  %v3959 = vrot.slane %v3958, 4
  %v3960 = vadd.f32 %v3958, %v3959
  %v3961 = vrot.slane %v3960, 2
  %v3962 = vadd.f32 %v3960, %v3961
  %v3963 = vrot.slane %v3962, 1
  %v3964 = vadd.f32 %v3962, %v3963
  %v3965 = vsel %vm234, %v3743, 0.0
  %v3966 = vrot.slane %v3965, 4
  %v3967 = vadd.f32 %v3965, %v3966
  %v3968 = vrot.slane %v3967, 2
  %v3969 = vadd.f32 %v3967, %v3968
  %v3970 = vrot.slane %v3969, 1
  %v3971 = vadd.f32 %v3969, %v3970
  %v3972 = vsel %vm234, %v3744, 0.0
  %v3973 = vrot.slane %v3972, 4
  %v3974 = vadd.f32 %v3972, %v3973
  %v3975 = vrot.slane %v3974, 2
  %v3976 = vadd.f32 %v3974, %v3975
  %v3977 = vrot.slane %v3976, 1
  %v3978 = vadd.f32 %v3976, %v3977
  %v3979 = vsel %vm234, %v3745, 0.0
  %v3980 = vrot.slane %v3979, 4
  %v3981 = vadd.f32 %v3979, %v3980
  %v3982 = vrot.slane %v3981, 2
  %v3983 = vadd.f32 %v3981, %v3982
  %v3984 = vrot.slane %v3983, 1
  %v3985 = vadd.f32 %v3983, %v3984
  %v3986 = vsel %vm234, %v3746, 0.0
  %v3987 = vrot.slane %v3986, 4
  %v3988 = vadd.f32 %v3986, %v3987
  %v3989 = vrot.slane %v3988, 2
  %v3990 = vadd.f32 %v3988, %v3989
  %v3991 = vrot.slane %v3990, 1
  %v3992 = vadd.f32 %v3990, %v3991
  %v3993 = vsel %vm234, %v3747, 0.0
  %v3994 = vrot.slane %v3993, 4
  %v3995 = vadd.f32 %v3993, %v3994
  %v3996 = vrot.slane %v3995, 2
  %v3997 = vadd.f32 %v3995, %v3996
  %v3998 = vrot.slane %v3997, 1
  %v3999 = vadd.f32 %v3997, %v3998
  %v4000 = vsel %vm234, %v3748, 0.0
  %v4001 = vrot.slane %v4000, 4
  %v4002 = vadd.f32 %v4000, %v4001
  %v4003 = vrot.slane %v4002, 2
  %v4004 = vadd.f32 %v4002, %v4003
  %v4005 = vrot.slane %v4004, 1
  %v4006 = vadd.f32 %v4004, %v4005
  %v4007 = vsel %vm234, %v3749, 0.0
  %v4008 = vrot.slane %v4007, 4
  %v4009 = vadd.f32 %v4007, %v4008
  %v4010 = vrot.slane %v4009, 2
  %v4011 = vadd.f32 %v4009, %v4010
  %v4012 = vrot.slane %v4011, 1
  %v4013 = vadd.f32 %v4011, %v4012
  %v4014 = vsel %vm234, %v3750, 0.0
  %v4015 = vrot.slane %v4014, 4
  %v4016 = vadd.f32 %v4014, %v4015
  %v4017 = vrot.slane %v4016, 2
  %v4018 = vadd.f32 %v4016, %v4017
  %v4019 = vrot.slane %v4018, 1
  %v4020 = vadd.f32 %v4018, %v4019
  %v4021 = vsel %vm234, %v3751, 0.0
  %v4022 = vrot.slane %v4021, 4
  %v4023 = vadd.f32 %v4021, %v4022
  %v4024 = vrot.slane %v4023, 2
  %v4025 = vadd.f32 %v4023, %v4024
  %v4026 = vrot.slane %v4025, 1
  %v4027 = vadd.f32 %v4025, %v4026
  %v4028 = vsel %vm234, %v3752, 0.0
  %v4029 = vrot.slane %v4028, 4
  %v4030 = vadd.f32 %v4028, %v4029
  %v4031 = vrot.slane %v4030, 2
  %v4032 = vadd.f32 %v4030, %v4031
  %v4033 = vrot.slane %v4032, 1
  %v4034 = vadd.f32 %v4032, %v4033
  %v4035 = vsel %vm234, %v3753, 0.0
  %v4036 = vrot.slane %v4035, 4
  %v4037 = vadd.f32 %v4035, %v4036
  %v4038 = vrot.slane %v4037, 2
  %v4039 = vadd.f32 %v4037, %v4038
  %v4040 = vrot.slane %v4039, 1
  %v4041 = vadd.f32 %v4039, %v4040
  %v4042 = vsel %vm234, %v3754, 0.0
  %v4043 = vrot.slane %v4042, 4
  %v4044 = vadd.f32 %v4042, %v4043
  %v4045 = vrot.slane %v4044, 2
  %v4046 = vadd.f32 %v4044, %v4045
  %v4047 = vrot.slane %v4046, 1
  %v4048 = vadd.f32 %v4046, %v4047
  %v4049 = vsub.f32 0.0, %v279
  %v4050 = vsub.f32 0.0, %v282
  %v4051 = vsub.f32 0.0, %v287
  %v4052 = vsub.f32 0.0, %v290
  %v4053 = vsub.f32 0.0, %v295
  %v4054 = vsub.f32 0.0, %v298
  %v4055 = vmul.f32 %v4049, 1.442695
  %v4056 = vpow.pop %v4055
  %v4057 = vmul.f32 %v4050, 1.442695
  %v4058 = vpow.pop %v4057
  %v4059 = vmul.f32 %v4051, 1.442695
  %v4060 = vpow.pop %v4059
  %v4061 = vmul.f32 %v4052, 1.442695
  %v4062 = vpow.pop %v4061
  %v4063 = vmul.f32 %v4053, 1.442695
  %v4064 = vpow.pop %v4063
  %v4065 = vmul.f32 %v4054, 1.442695
  %v4066 = vpow.pop %v4065
  %v4067 = vadd.f32 %v4056, 1.0
  %v4068 = vadd.f32 %v4058, 1.0
  %v4069 = vadd.f32 %v4060, 1.0
  %v4070 = vadd.f32 %v4062, 1.0
  %v4071 = vadd.f32 %v4064, 1.0
  %v4072 = vadd.f32 %v4066, 1.0
  %v4073 = vrcp.pop %v4067
  %v4074 = vmul.f32 1.0, %v4073
  %v4075 = vrcp.pop %v4068
  %v4076 = vmul.f32 1.0, %v4075
  %v4077 = vrcp.pop %v4069
  %v4078 = vmul.f32 1.0, %v4077
  %v4079 = vrcp.pop %v4070
  %v4080 = vmul.f32 1.0, %v4079
  %v4081 = vrcp.pop %v4071
  %v4082 = vmul.f32 1.0, %v4081
  %v4083 = vrcp.pop %v4072
  %v4084 = vmul.f32 1.0, %v4083
  %v4085 = vmul.f32 %v279, %v4074
  %v4086 = vmul.f32 %v282, %v4076
  %v4087 = vmul.f32 %v287, %v4078
  %v4088 = vmul.f32 %v290, %v4080
  %v4089 = vmul.f32 %v295, %v4082
  %v4090 = vmul.f32 %v298, %v4084
  %v4091 = vld [vmem:[%s9] sm:$0x1]
  %v4093 = vlaneseq
  %v4094 = vshrl.u32 %v4093, 7
  %v4095 = vsub.s32 0, %v4094
  %v4096 = vrot.slane %v4091, %v4095
  %v4098 = vmul.f32 %v483, %v4096
  %v4099 = vmul.f32 %v484, %v4096
  %v4100 = vmul.f32 %v485, %v4096
  %v4101 = vmul.f32 %v486, %v4096
  %v4102 = vmul.f32 %v487, %v4096
  %v4103 = vmul.f32 %v488, %v4096
  %v4110 = vrot.slane %v4098, 1
  %v4111 = vrot.slane %v4098, 2
  %v4112 = vrot.slane %v4098, 3
  %v4113 = vrot.slane %v4098, 4
  %v4114 = vrot.slane %v4098, 5
  %v4115 = vrot.slane %v4098, 6
  %v4116 = vrot.slane %v4098, 7
  %v4117 = vrot.slane %v4099, 1
  %v4118 = vrot.slane %v4099, 2
  %v4119 = vrot.slane %v4099, 3
  %v4120 = vrot.slane %v4099, 4
  %v4121 = vrot.slane %v4099, 5
  %v4122 = vrot.slane %v4099, 6
  %v4123 = vrot.slane %v4099, 7
  %v4124 = vrot.slane %v4100, 1
  %v4125 = vrot.slane %v4100, 2
  %v4126 = vrot.slane %v4100, 3
  %v4127 = vrot.slane %v4100, 4
  %v4128 = vrot.slane %v4100, 5
  %v4129 = vrot.slane %v4100, 6
  %v4130 = vrot.slane %v4100, 7
  %v4131 = vrot.slane %v4101, 1
  %v4132 = vrot.slane %v4101, 2
  %v4133 = vrot.slane %v4101, 3
  %v4134 = vrot.slane %v4101, 4
  %v4135 = vrot.slane %v4101, 5
  %v4136 = vrot.slane %v4101, 6
  %v4137 = vrot.slane %v4101, 7
  %v4138 = vrot.slane %v4102, 1
  %v4139 = vrot.slane %v4102, 2
  %v4140 = vrot.slane %v4102, 3
  %v4141 = vrot.slane %v4102, 4
  %v4142 = vrot.slane %v4102, 5
  %v4143 = vrot.slane %v4102, 6
  %v4144 = vrot.slane %v4102, 7
  %v4145 = vrot.slane %v4103, 1
  %v4188 = vadd.f32 %v3383, %v4098
  %v4189 = vadd.f32 %v3390, %v4110
  %v4190 = vadd.f32 %v3397, %v4111
  %v4191 = vadd.f32 %v3404, %v4112
  %v4192 = vadd.f32 %v3411, %v4113
  %v4193 = vadd.f32 %v3418, %v4114
  %v4194 = vadd.f32 %v3425, %v4115
  %v4195 = vadd.f32 %v3432, %v4116
  %v4196 = vadd.f32 %v3439, %v4099
  %v4197 = vadd.f32 %v3446, %v4117
  %v4198 = vadd.f32 %v3453, %v4118
  %v4199 = vadd.f32 %v3460, %v4119
  %v4200 = vadd.f32 %v3467, %v4120
  %v4201 = vadd.f32 %v3474, %v4121
  %v4202 = vadd.f32 %v3481, %v4122
  %v4203 = vadd.f32 %v3488, %v4123
  %v4204 = vadd.f32 %v3495, %v4100
  %v4205 = vadd.f32 %v3502, %v4124
  %v4206 = vadd.f32 %v3509, %v4125
  %v4207 = vadd.f32 %v3516, %v4126
  %v4208 = vadd.f32 %v3523, %v4127
  %v4209 = vadd.f32 %v3530, %v4128
  %v4210 = vadd.f32 %v3537, %v4129
  %v4211 = vadd.f32 %v3544, %v4130
  %v4212 = vadd.f32 %v3551, %v4101
  %v4213 = vadd.f32 %v3558, %v4131
  %v4214 = vadd.f32 %v3565, %v4132
  %v4215 = vadd.f32 %v3572, %v4133
  %v4216 = vadd.f32 %v3579, %v4134
  %v4217 = vadd.f32 %v3586, %v4135
  %v4218 = vadd.f32 %v3593, %v4136
  %v4219 = vadd.f32 %v3600, %v4137
  %v4220 = vadd.f32 %v3607, %v4102
  %v4221 = vadd.f32 %v3614, %v4138
  %v4222 = vadd.f32 %v3621, %v4139
  %v4223 = vadd.f32 %v3628, %v4140
  %v4224 = vadd.f32 %v3635, %v4141
  %v4225 = vadd.f32 %v3642, %v4142
  %v4226 = vadd.f32 %v3649, %v4143
  %v4227 = vadd.f32 %v3656, %v4144
  %v4228 = vadd.f32 %v3663, %v4103
  %v4229 = vadd.f32 %v3670, %v4145
  %v4236 = vrot.slane %v4085, 1
  %v4237 = vrot.slane %v4085, 2
  %v4238 = vrot.slane %v4085, 3
  %v4239 = vrot.slane %v4085, 4
  %v4240 = vrot.slane %v4085, 5
  %v4241 = vrot.slane %v4085, 6
  %v4242 = vrot.slane %v4085, 7
  %v4243 = vrot.slane %v4086, 1
  %v4244 = vrot.slane %v4086, 2
  %v4245 = vrot.slane %v4086, 3
  %v4246 = vrot.slane %v4086, 4
  %v4247 = vrot.slane %v4086, 5
  %v4248 = vrot.slane %v4086, 6
  %v4249 = vrot.slane %v4086, 7
  %v4250 = vrot.slane %v4087, 1
  %v4251 = vrot.slane %v4087, 2
  %v4252 = vrot.slane %v4087, 3
  %v4253 = vrot.slane %v4087, 4
  %v4254 = vrot.slane %v4087, 5
  %v4255 = vrot.slane %v4087, 6
  %v4256 = vrot.slane %v4087, 7
  %v4257 = vrot.slane %v4088, 1
  %v4258 = vrot.slane %v4088, 2
  %v4259 = vrot.slane %v4088, 3
  %v4260 = vrot.slane %v4088, 4
  %v4261 = vrot.slane %v4088, 5
  %v4262 = vrot.slane %v4088, 6
  %v4263 = vrot.slane %v4088, 7
  %v4264 = vrot.slane %v4089, 1
  %v4265 = vrot.slane %v4089, 2
  %v4266 = vrot.slane %v4089, 3
  %v4267 = vrot.slane %v4089, 4
  %v4268 = vrot.slane %v4089, 5
  %v4269 = vrot.slane %v4089, 6
  %v4270 = vrot.slane %v4089, 7
  %v4271 = vrot.slane %v4090, 1
  %4272 = vrot.lane.b32.xlu0 %v4085, 64
  %v4273 = vpop.permute.xlu0 %4272
  %4274 = vrot.lane.b32.xlu0 %v4236, 64
  %v4275 = vpop.permute.xlu0 %4274
  %4276 = vrot.lane.b32.xlu0 %v4237, 64
  %v4277 = vpop.permute.xlu0 %4276
  %4278 = vrot.lane.b32.xlu0 %v4238, 64
  %v4279 = vpop.permute.xlu0 %4278
  %4280 = vrot.lane.b32.xlu0 %v4239, 64
  %v4281 = vpop.permute.xlu0 %4280
  %4282 = vrot.lane.b32.xlu0 %v4240, 64
  %v4283 = vpop.permute.xlu0 %4282
  %4284 = vrot.lane.b32.xlu0 %v4241, 64
  %v4285 = vpop.permute.xlu0 %4284
  %4286 = vrot.lane.b32.xlu0 %v4242, 64
  %v4287 = vpop.permute.xlu0 %4286
  %4288 = vrot.lane.b32.xlu0 %v4086, 64
  %v4289 = vpop.permute.xlu0 %4288
  %4290 = vrot.lane.b32.xlu0 %v4243, 64
  %v4291 = vpop.permute.xlu0 %4290
  %4292 = vrot.lane.b32.xlu0 %v4244, 64
  %v4293 = vpop.permute.xlu0 %4292
  %4294 = vrot.lane.b32.xlu0 %v4245, 64
  %v4295 = vpop.permute.xlu0 %4294
  %4296 = vrot.lane.b32.xlu0 %v4246, 64
  %v4297 = vpop.permute.xlu0 %4296
  %4298 = vrot.lane.b32.xlu0 %v4247, 64
  %v4299 = vpop.permute.xlu0 %4298
  %4300 = vrot.lane.b32.xlu0 %v4248, 64
  %v4301 = vpop.permute.xlu0 %4300
  %4302 = vrot.lane.b32.xlu0 %v4249, 64
  %v4303 = vpop.permute.xlu0 %4302
  %4304 = vrot.lane.b32.xlu0 %v4087, 64
  %v4305 = vpop.permute.xlu0 %4304
  %4306 = vrot.lane.b32.xlu0 %v4250, 64
  %v4307 = vpop.permute.xlu0 %4306
  %4308 = vrot.lane.b32.xlu0 %v4251, 64
  %v4309 = vpop.permute.xlu0 %4308
  %4310 = vrot.lane.b32.xlu0 %v4252, 64
  %v4311 = vpop.permute.xlu0 %4310
  %4312 = vrot.lane.b32.xlu0 %v4253, 64
  %v4313 = vpop.permute.xlu0 %4312
  %4314 = vrot.lane.b32.xlu0 %v4254, 64
  %v4315 = vpop.permute.xlu0 %4314
  %4316 = vrot.lane.b32.xlu0 %v4255, 64
  %v4317 = vpop.permute.xlu0 %4316
  %4318 = vrot.lane.b32.xlu0 %v4256, 64
  %v4319 = vpop.permute.xlu0 %4318
  %4320 = vrot.lane.b32.xlu0 %v4088, 64
  %v4321 = vpop.permute.xlu0 %4320
  %4322 = vrot.lane.b32.xlu0 %v4257, 64
  %v4323 = vpop.permute.xlu0 %4322
  %4324 = vrot.lane.b32.xlu0 %v4258, 64
  %v4325 = vpop.permute.xlu0 %4324
  %4326 = vrot.lane.b32.xlu0 %v4259, 64
  %v4327 = vpop.permute.xlu0 %4326
  %4328 = vrot.lane.b32.xlu0 %v4260, 64
  %v4329 = vpop.permute.xlu0 %4328
  %4330 = vrot.lane.b32.xlu0 %v4261, 64
  %v4331 = vpop.permute.xlu0 %4330
  %4332 = vrot.lane.b32.xlu0 %v4262, 64
  %v4333 = vpop.permute.xlu0 %4332
  %4334 = vrot.lane.b32.xlu0 %v4263, 64
  %v4335 = vpop.permute.xlu0 %4334
  %4336 = vrot.lane.b32.xlu0 %v4089, 64
  %v4337 = vpop.permute.xlu0 %4336
  %4338 = vrot.lane.b32.xlu0 %v4264, 64
  %v4339 = vpop.permute.xlu0 %4338
  %4340 = vrot.lane.b32.xlu0 %v4265, 64
  %v4341 = vpop.permute.xlu0 %4340
  %4342 = vrot.lane.b32.xlu0 %v4266, 64
  %v4343 = vpop.permute.xlu0 %4342
  %4344 = vrot.lane.b32.xlu0 %v4267, 64
  %v4345 = vpop.permute.xlu0 %4344
  %4346 = vrot.lane.b32.xlu0 %v4268, 64
  %v4347 = vpop.permute.xlu0 %4346
  %4348 = vrot.lane.b32.xlu0 %v4269, 64
  %v4349 = vpop.permute.xlu0 %4348
  %4350 = vrot.lane.b32.xlu0 %v4270, 64
  %v4351 = vpop.permute.xlu0 %4350
  %4352 = vrot.lane.b32.xlu0 %v4090, 64
  %v4353 = vpop.permute.xlu0 %4352
  %4354 = vrot.lane.b32.xlu0 %v4271, 64
  %v4355 = vpop.permute.xlu0 %4354
  %v4398 = vmul.f32 %v4188, %v4273
  %v4399 = vmul.f32 %v4189, %v4275
  %v4400 = vmul.f32 %v4190, %v4277
  %v4401 = vmul.f32 %v4191, %v4279
  %v4402 = vmul.f32 %v4192, %v4281
  %v4403 = vmul.f32 %v4193, %v4283
  %v4404 = vmul.f32 %v4194, %v4285
  %v4405 = vmul.f32 %v4195, %v4287
  %v4406 = vmul.f32 %v4196, %v4289
  %v4407 = vmul.f32 %v4197, %v4291
  %v4408 = vmul.f32 %v4198, %v4293
  %v4409 = vmul.f32 %v4199, %v4295
  %v4410 = vmul.f32 %v4200, %v4297
  %v4411 = vmul.f32 %v4201, %v4299
  %v4412 = vmul.f32 %v4202, %v4301
  %v4413 = vmul.f32 %v4203, %v4303
  %v4414 = vmul.f32 %v4204, %v4305
  %v4415 = vmul.f32 %v4205, %v4307
  %v4416 = vmul.f32 %v4206, %v4309
  %v4417 = vmul.f32 %v4207, %v4311
  %v4418 = vmul.f32 %v4208, %v4313
  %v4419 = vmul.f32 %v4209, %v4315
  %v4420 = vmul.f32 %v4210, %v4317
  %v4421 = vmul.f32 %v4211, %v4319
  %v4422 = vmul.f32 %v4212, %v4321
  %v4423 = vmul.f32 %v4213, %v4323
  %v4424 = vmul.f32 %v4214, %v4325
  %v4425 = vmul.f32 %v4215, %v4327
  %v4426 = vmul.f32 %v4216, %v4329
  %v4427 = vmul.f32 %v4217, %v4331
  %v4428 = vmul.f32 %v4218, %v4333
  %v4429 = vmul.f32 %v4219, %v4335
  %v4430 = vmul.f32 %v4220, %v4337
  %v4431 = vmul.f32 %v4221, %v4339
  %v4432 = vmul.f32 %v4222, %v4341
  %v4433 = vmul.f32 %v4223, %v4343
  %v4434 = vmul.f32 %v4224, %v4345
  %v4435 = vmul.f32 %v4225, %v4347
  %v4436 = vmul.f32 %v4226, %v4349
  %v4437 = vmul.f32 %v4227, %v4351
  %v4438 = vmul.f32 %v4228, %v4353
  %v4439 = vmul.f32 %v4229, %v4355
  %4440 = vrot.lane.b32.xlu0 %v4098, 96
  %v4441 = vpop.permute.xlu0 %4440
  %4442 = vrot.lane.b32.xlu0 %v4110, 96
  %v4443 = vpop.permute.xlu0 %4442
  %4444 = vrot.lane.b32.xlu0 %v4111, 96
  %v4445 = vpop.permute.xlu0 %4444
  %4446 = vrot.lane.b32.xlu0 %v4112, 96
  %v4447 = vpop.permute.xlu0 %4446
  %4448 = vrot.lane.b32.xlu0 %v4113, 96
  %v4449 = vpop.permute.xlu0 %4448
  %4450 = vrot.lane.b32.xlu0 %v4114, 96
  %v4451 = vpop.permute.xlu0 %4450
  %4452 = vrot.lane.b32.xlu0 %v4115, 96
  %v4453 = vpop.permute.xlu0 %4452
  %4454 = vrot.lane.b32.xlu0 %v4116, 96
  %v4455 = vpop.permute.xlu0 %4454
  %4456 = vrot.lane.b32.xlu0 %v4099, 96
  %v4457 = vpop.permute.xlu0 %4456
  %4458 = vrot.lane.b32.xlu0 %v4117, 96
  %v4459 = vpop.permute.xlu0 %4458
  %4460 = vrot.lane.b32.xlu0 %v4118, 96
  %v4461 = vpop.permute.xlu0 %4460
  %4462 = vrot.lane.b32.xlu0 %v4119, 96
  %v4463 = vpop.permute.xlu0 %4462
  %4464 = vrot.lane.b32.xlu0 %v4120, 96
  %v4465 = vpop.permute.xlu0 %4464
  %4466 = vrot.lane.b32.xlu0 %v4121, 96
  %v4467 = vpop.permute.xlu0 %4466
  %4468 = vrot.lane.b32.xlu0 %v4122, 96
  %v4469 = vpop.permute.xlu0 %4468
  %4470 = vrot.lane.b32.xlu0 %v4123, 96
  %v4471 = vpop.permute.xlu0 %4470
  %4472 = vrot.lane.b32.xlu0 %v4100, 96
  %v4473 = vpop.permute.xlu0 %4472
  %4474 = vrot.lane.b32.xlu0 %v4124, 96
  %v4475 = vpop.permute.xlu0 %4474
  %4476 = vrot.lane.b32.xlu0 %v4125, 96
  %v4477 = vpop.permute.xlu0 %4476
  %4478 = vrot.lane.b32.xlu0 %v4126, 96
  %v4479 = vpop.permute.xlu0 %4478
  %4480 = vrot.lane.b32.xlu0 %v4127, 96
  %v4481 = vpop.permute.xlu0 %4480
  %4482 = vrot.lane.b32.xlu0 %v4128, 96
  %v4483 = vpop.permute.xlu0 %4482
  %4484 = vrot.lane.b32.xlu0 %v4129, 96
  %v4485 = vpop.permute.xlu0 %4484
  %4486 = vrot.lane.b32.xlu0 %v4130, 96
  %v4487 = vpop.permute.xlu0 %4486
  %4488 = vrot.lane.b32.xlu0 %v4101, 96
  %v4489 = vpop.permute.xlu0 %4488
  %4490 = vrot.lane.b32.xlu0 %v4131, 96
  %v4491 = vpop.permute.xlu0 %4490
  %4492 = vrot.lane.b32.xlu0 %v4132, 96
  %v4493 = vpop.permute.xlu0 %4492
  %4494 = vrot.lane.b32.xlu0 %v4133, 96
  %v4495 = vpop.permute.xlu0 %4494
  %4496 = vrot.lane.b32.xlu0 %v4134, 96
  %v4497 = vpop.permute.xlu0 %4496
  %4498 = vrot.lane.b32.xlu0 %v4135, 96
  %v4499 = vpop.permute.xlu0 %4498
  %4500 = vrot.lane.b32.xlu0 %v4136, 96
  %v4501 = vpop.permute.xlu0 %4500
  %4502 = vrot.lane.b32.xlu0 %v4137, 96
  %v4503 = vpop.permute.xlu0 %4502
  %4504 = vrot.lane.b32.xlu0 %v4102, 96
  %v4505 = vpop.permute.xlu0 %4504
  %4506 = vrot.lane.b32.xlu0 %v4138, 96
  %v4507 = vpop.permute.xlu0 %4506
  %4508 = vrot.lane.b32.xlu0 %v4139, 96
  %v4509 = vpop.permute.xlu0 %4508
  %4510 = vrot.lane.b32.xlu0 %v4140, 96
  %v4511 = vpop.permute.xlu0 %4510
  %4512 = vrot.lane.b32.xlu0 %v4141, 96
  %v4513 = vpop.permute.xlu0 %4512
  %4514 = vrot.lane.b32.xlu0 %v4142, 96
  %v4515 = vpop.permute.xlu0 %4514
  %4516 = vrot.lane.b32.xlu0 %v4143, 96
  %v4517 = vpop.permute.xlu0 %4516
  %4518 = vrot.lane.b32.xlu0 %v4144, 96
  %v4519 = vpop.permute.xlu0 %4518
  %4520 = vrot.lane.b32.xlu0 %v4103, 96
  %v4521 = vpop.permute.xlu0 %4520
  %4522 = vrot.lane.b32.xlu0 %v4145, 96
  %v4523 = vpop.permute.xlu0 %4522
  %v4566 = vadd.f32 %v3761, %v4441
  %v4567 = vadd.f32 %v3768, %v4443
  %v4568 = vadd.f32 %v3775, %v4445
  %v4569 = vadd.f32 %v3782, %v4447
  %v4570 = vadd.f32 %v3789, %v4449
  %v4571 = vadd.f32 %v3796, %v4451
  %v4572 = vadd.f32 %v3803, %v4453
  %v4573 = vadd.f32 %v3810, %v4455
  %v4574 = vadd.f32 %v3817, %v4457
  %v4575 = vadd.f32 %v3824, %v4459
  %v4576 = vadd.f32 %v3831, %v4461
  %v4577 = vadd.f32 %v3838, %v4463
  %v4578 = vadd.f32 %v3845, %v4465
  %v4579 = vadd.f32 %v3852, %v4467
  %v4580 = vadd.f32 %v3859, %v4469
  %v4581 = vadd.f32 %v3866, %v4471
  %v4582 = vadd.f32 %v3873, %v4473
  %v4583 = vadd.f32 %v3880, %v4475
  %v4584 = vadd.f32 %v3887, %v4477
  %v4585 = vadd.f32 %v3894, %v4479
  %v4586 = vadd.f32 %v3901, %v4481
  %v4587 = vadd.f32 %v3908, %v4483
  %v4588 = vadd.f32 %v3915, %v4485
  %v4589 = vadd.f32 %v3922, %v4487
  %v4590 = vadd.f32 %v3929, %v4489
  %v4591 = vadd.f32 %v3936, %v4491
  %v4592 = vadd.f32 %v3943, %v4493
  %v4593 = vadd.f32 %v3950, %v4495
  %v4594 = vadd.f32 %v3957, %v4497
  %v4595 = vadd.f32 %v3964, %v4499
  %v4596 = vadd.f32 %v3971, %v4501
  %v4597 = vadd.f32 %v3978, %v4503
  %v4598 = vadd.f32 %v3985, %v4505
  %v4599 = vadd.f32 %v3992, %v4507
  %v4600 = vadd.f32 %v3999, %v4509
  %v4601 = vadd.f32 %v4006, %v4511
  %v4602 = vadd.f32 %v4013, %v4513
  %v4603 = vadd.f32 %v4020, %v4515
  %v4604 = vadd.f32 %v4027, %v4517
  %v4605 = vadd.f32 %v4034, %v4519
  %v4606 = vadd.f32 %v4041, %v4521
  %v4607 = vadd.f32 %v4048, %v4523
  %4608 = vrot.lane.b32.xlu0 %v4085, 32
  %v4609 = vpop.permute.xlu0 %4608
  %4610 = vrot.lane.b32.xlu0 %v4236, 32
  %v4611 = vpop.permute.xlu0 %4610
  %4612 = vrot.lane.b32.xlu0 %v4237, 32
  %v4613 = vpop.permute.xlu0 %4612
  %4614 = vrot.lane.b32.xlu0 %v4238, 32
  %v4615 = vpop.permute.xlu0 %4614
  %4616 = vrot.lane.b32.xlu0 %v4239, 32
  %v4617 = vpop.permute.xlu0 %4616
  %4618 = vrot.lane.b32.xlu0 %v4240, 32
  %v4619 = vpop.permute.xlu0 %4618
  %4620 = vrot.lane.b32.xlu0 %v4241, 32
  %v4621 = vpop.permute.xlu0 %4620
  %4622 = vrot.lane.b32.xlu0 %v4242, 32
  %v4623 = vpop.permute.xlu0 %4622
  %4624 = vrot.lane.b32.xlu0 %v4086, 32
  %v4625 = vpop.permute.xlu0 %4624
  %4626 = vrot.lane.b32.xlu0 %v4243, 32
  %v4627 = vpop.permute.xlu0 %4626
  %4628 = vrot.lane.b32.xlu0 %v4244, 32
  %v4629 = vpop.permute.xlu0 %4628
  %4630 = vrot.lane.b32.xlu0 %v4245, 32
  %v4631 = vpop.permute.xlu0 %4630
  %4632 = vrot.lane.b32.xlu0 %v4246, 32
  %v4633 = vpop.permute.xlu0 %4632
  %4634 = vrot.lane.b32.xlu0 %v4247, 32
  %v4635 = vpop.permute.xlu0 %4634
  %4636 = vrot.lane.b32.xlu0 %v4248, 32
  %v4637 = vpop.permute.xlu0 %4636
  %4638 = vrot.lane.b32.xlu0 %v4249, 32
  %v4639 = vpop.permute.xlu0 %4638
  %4640 = vrot.lane.b32.xlu0 %v4087, 32
  %v4641 = vpop.permute.xlu0 %4640
  %4642 = vrot.lane.b32.xlu0 %v4250, 32
  %v4643 = vpop.permute.xlu0 %4642
  %4644 = vrot.lane.b32.xlu0 %v4251, 32
  %v4645 = vpop.permute.xlu0 %4644
  %4646 = vrot.lane.b32.xlu0 %v4252, 32
  %v4647 = vpop.permute.xlu0 %4646
  %4648 = vrot.lane.b32.xlu0 %v4253, 32
  %v4649 = vpop.permute.xlu0 %4648
  %4650 = vrot.lane.b32.xlu0 %v4254, 32
  %v4651 = vpop.permute.xlu0 %4650
  %4652 = vrot.lane.b32.xlu0 %v4255, 32
  %v4653 = vpop.permute.xlu0 %4652
  %4654 = vrot.lane.b32.xlu0 %v4256, 32
  %v4655 = vpop.permute.xlu0 %4654
  %4656 = vrot.lane.b32.xlu0 %v4088, 32
  %v4657 = vpop.permute.xlu0 %4656
  %4658 = vrot.lane.b32.xlu0 %v4257, 32
  %v4659 = vpop.permute.xlu0 %4658
  %4660 = vrot.lane.b32.xlu0 %v4258, 32
  %v4661 = vpop.permute.xlu0 %4660
  %4662 = vrot.lane.b32.xlu0 %v4259, 32
  %v4663 = vpop.permute.xlu0 %4662
  %4664 = vrot.lane.b32.xlu0 %v4260, 32
  %v4665 = vpop.permute.xlu0 %4664
  %4666 = vrot.lane.b32.xlu0 %v4261, 32
  %v4667 = vpop.permute.xlu0 %4666
  %4668 = vrot.lane.b32.xlu0 %v4262, 32
  %v4669 = vpop.permute.xlu0 %4668
  %4670 = vrot.lane.b32.xlu0 %v4263, 32
  %v4671 = vpop.permute.xlu0 %4670
  %4672 = vrot.lane.b32.xlu0 %v4089, 32
  %v4673 = vpop.permute.xlu0 %4672
  %4674 = vrot.lane.b32.xlu0 %v4264, 32
  %v4675 = vpop.permute.xlu0 %4674
  %4676 = vrot.lane.b32.xlu0 %v4265, 32
  %v4677 = vpop.permute.xlu0 %4676
  %4678 = vrot.lane.b32.xlu0 %v4266, 32
  %v4679 = vpop.permute.xlu0 %4678
  %4680 = vrot.lane.b32.xlu0 %v4267, 32
  %v4681 = vpop.permute.xlu0 %4680
  %4682 = vrot.lane.b32.xlu0 %v4268, 32
  %v4683 = vpop.permute.xlu0 %4682
  %4684 = vrot.lane.b32.xlu0 %v4269, 32
  %v4685 = vpop.permute.xlu0 %4684
  %4686 = vrot.lane.b32.xlu0 %v4270, 32
  %v4687 = vpop.permute.xlu0 %4686
  %4688 = vrot.lane.b32.xlu0 %v4090, 32
  %v4689 = vpop.permute.xlu0 %4688
  %4690 = vrot.lane.b32.xlu0 %v4271, 32
  %v4691 = vpop.permute.xlu0 %4690
  %v4734 = vmul.f32 %v4566, %v4609
  %v4735 = vmul.f32 %v4567, %v4611
  %v4736 = vmul.f32 %v4568, %v4613
  %v4737 = vmul.f32 %v4569, %v4615
  %v4738 = vmul.f32 %v4570, %v4617
  %v4739 = vmul.f32 %v4571, %v4619
  %v4740 = vmul.f32 %v4572, %v4621
  %v4741 = vmul.f32 %v4573, %v4623
  %v4742 = vmul.f32 %v4574, %v4625
  %v4743 = vmul.f32 %v4575, %v4627
  %v4744 = vmul.f32 %v4576, %v4629
  %v4745 = vmul.f32 %v4577, %v4631
  %v4746 = vmul.f32 %v4578, %v4633
  %v4747 = vmul.f32 %v4579, %v4635
  %v4748 = vmul.f32 %v4580, %v4637
  %v4749 = vmul.f32 %v4581, %v4639
  %v4750 = vmul.f32 %v4582, %v4641
  %v4751 = vmul.f32 %v4583, %v4643
  %v4752 = vmul.f32 %v4584, %v4645
  %v4753 = vmul.f32 %v4585, %v4647
  %v4754 = vmul.f32 %v4586, %v4649
  %v4755 = vmul.f32 %v4587, %v4651
  %v4756 = vmul.f32 %v4588, %v4653
  %v4757 = vmul.f32 %v4589, %v4655
  %v4758 = vmul.f32 %v4590, %v4657
  %v4759 = vmul.f32 %v4591, %v4659
  %v4760 = vmul.f32 %v4592, %v4661
  %v4761 = vmul.f32 %v4593, %v4663
  %v4762 = vmul.f32 %v4594, %v4665
  %v4763 = vmul.f32 %v4595, %v4667
  %v4764 = vmul.f32 %v4596, %v4669
  %v4765 = vmul.f32 %v4597, %v4671
  %v4766 = vmul.f32 %v4598, %v4673
  %v4767 = vmul.f32 %v4599, %v4675
  %v4768 = vmul.f32 %v4600, %v4677
  %v4769 = vmul.f32 %v4601, %v4679
  %v4770 = vmul.f32 %v4602, %v4681
  %v4771 = vmul.f32 %v4603, %v4683
  %v4772 = vmul.f32 %v4604, %v4685
  %v4773 = vmul.f32 %v4605, %v4687
  %v4774 = vmul.f32 %v4606, %v4689
  %v4775 = vmul.f32 %v4607, %v4691
  %v4776 = vpack.c.bf16 %v4398, %v4398
  %v4777 = vpack.c.bf16 %v4399, %v4399
  %v4778 = vpack.c.bf16 %v4400, %v4400
  %v4779 = vpack.c.bf16 %v4401, %v4401
  %v4780 = vpack.c.bf16 %v4402, %v4402
  %v4781 = vpack.c.bf16 %v4403, %v4403
  %v4782 = vpack.c.bf16 %v4404, %v4404
  %v4783 = vpack.c.bf16 %v4405, %v4405
  %v4784 = vpack.c.bf16 %v4406, %v4406
  %v4785 = vpack.c.bf16 %v4407, %v4407
  %v4786 = vpack.c.bf16 %v4408, %v4408
  %v4787 = vpack.c.bf16 %v4409, %v4409
  %v4788 = vpack.c.bf16 %v4410, %v4410
  %v4789 = vpack.c.bf16 %v4411, %v4411
  %v4790 = vpack.c.bf16 %v4412, %v4412
  %v4791 = vpack.c.bf16 %v4413, %v4413
  %v4792 = vpack.c.bf16 %v4414, %v4414
  %v4793 = vpack.c.bf16 %v4415, %v4415
  %v4794 = vpack.c.bf16 %v4416, %v4416
  %v4795 = vpack.c.bf16 %v4417, %v4417
  %v4796 = vpack.c.bf16 %v4418, %v4418
  %v4797 = vpack.c.bf16 %v4419, %v4419
  %v4798 = vpack.c.bf16 %v4420, %v4420
  %v4799 = vpack.c.bf16 %v4421, %v4421
  %v4800 = vpack.c.bf16 %v4422, %v4422
  %v4801 = vpack.c.bf16 %v4423, %v4423
  %v4802 = vpack.c.bf16 %v4424, %v4424
  %v4803 = vpack.c.bf16 %v4425, %v4425
  %v4804 = vpack.c.bf16 %v4426, %v4426
  %v4805 = vpack.c.bf16 %v4427, %v4427
  %v4806 = vpack.c.bf16 %v4428, %v4428
  %v4807 = vpack.c.bf16 %v4429, %v4429
  %v4808 = vpack.c.bf16 %v4430, %v4430
  %v4809 = vpack.c.bf16 %v4431, %v4431
  %v4810 = vpack.c.bf16 %v4432, %v4432
  %v4811 = vpack.c.bf16 %v4433, %v4433
  %v4812 = vpack.c.bf16 %v4434, %v4434
  %v4813 = vpack.c.bf16 %v4435, %v4435
  %v4814 = vpack.c.bf16 %v4436, %v4436
  %v4815 = vpack.c.bf16 %v4437, %v4437
  %v4816 = vpack.c.bf16 %v4438, %v4438
  %v4817 = vpack.c.bf16 %v4439, %v4439
  %v4818 = vld [vmem:[%s10] sm:$0xf]
  %v4819 = vld [vmem:[%s10 + $0x4] sm:$0xf]
  %v4820 = vld [vmem:[%s10 + $0x8] sm:$0xf]
  %v4821 = vld [vmem:[%s10 + $0xc] sm:$0xf]
  %v4822 = vpack.c.bf16 %v4734, %v4734
  %v4823 = vpack.c.bf16 %v4735, %v4735
  %v4824 = vpack.c.bf16 %v4736, %v4736
  %v4825 = vpack.c.bf16 %v4737, %v4737
  %v4826 = vpack.c.bf16 %v4738, %v4738
  %v4827 = vpack.c.bf16 %v4739, %v4739
  %v4828 = vpack.c.bf16 %v4740, %v4740
  %v4829 = vpack.c.bf16 %v4741, %v4741
  %v4830 = vpack.c.bf16 %v4742, %v4742
  %v4831 = vpack.c.bf16 %v4743, %v4743
  %v4832 = vpack.c.bf16 %v4744, %v4744
  %v4833 = vpack.c.bf16 %v4745, %v4745
  %v4834 = vpack.c.bf16 %v4746, %v4746
  %v4835 = vpack.c.bf16 %v4747, %v4747
  %v4836 = vpack.c.bf16 %v4748, %v4748
  %v4837 = vpack.c.bf16 %v4749, %v4749
  %v4838 = vpack.c.bf16 %v4750, %v4750
  %v4839 = vpack.c.bf16 %v4751, %v4751
  %v4840 = vpack.c.bf16 %v4752, %v4752
  %v4841 = vpack.c.bf16 %v4753, %v4753
  %v4842 = vpack.c.bf16 %v4754, %v4754
  %v4843 = vpack.c.bf16 %v4755, %v4755
  %v4844 = vpack.c.bf16 %v4756, %v4756
  %v4845 = vpack.c.bf16 %v4757, %v4757
  %v4846 = vpack.c.bf16 %v4758, %v4758
  %v4847 = vpack.c.bf16 %v4759, %v4759
  %v4848 = vpack.c.bf16 %v4760, %v4760
  %v4849 = vpack.c.bf16 %v4761, %v4761
  %v4850 = vpack.c.bf16 %v4762, %v4762
  %v4851 = vpack.c.bf16 %v4763, %v4763
  %v4852 = vpack.c.bf16 %v4764, %v4764
  %v4853 = vpack.c.bf16 %v4765, %v4765
  %v4854 = vpack.c.bf16 %v4766, %v4766
  %v4855 = vpack.c.bf16 %v4767, %v4767
  %v4856 = vpack.c.bf16 %v4768, %v4768
  %v4857 = vpack.c.bf16 %v4769, %v4769
  %v4858 = vpack.c.bf16 %v4770, %v4770
  %v4859 = vpack.c.bf16 %v4771, %v4771
  %v4860 = vpack.c.bf16 %v4772, %v4772
  %v4861 = vpack.c.bf16 %v4773, %v4773
  %v4862 = vpack.c.bf16 %v4774, %v4774
  %v4863 = vpack.c.bf16 %v4775, %v4775
  %v4864 = vld [vmem:[%s10 + $0x10] sm:$0xf]
  %v4865 = vld [vmem:[%s10 + $0x14] sm:$0xf]
  %v4866 = vld [vmem:[%s10 + $0x18] sm:$0xf]
  %v4867 = vld [vmem:[%s10 + $0x1c] sm:$0xf]
  %v4910 = vunpack.c.l.b16 %v4822
  %v4911 = vunpack.c.l.b16 %v4823
  %v4912 = vunpack.c.l.b16 %v4824
  %v4913 = vunpack.c.l.b16 %v4825
  %v4914 = vunpack.c.l.b16 %v4826
  %v4915 = vunpack.c.l.b16 %v4827
  %v4916 = vunpack.c.l.b16 %v4828
  %v4917 = vunpack.c.l.b16 %v4829
  %v4918 = vunpack.c.l.b16 %v4830
  %v4919 = vunpack.c.l.b16 %v4831
  %v4920 = vunpack.c.l.b16 %v4832
  %v4921 = vunpack.c.l.b16 %v4833
  %v4922 = vunpack.c.l.b16 %v4834
  %v4923 = vunpack.c.l.b16 %v4835
  %v4924 = vunpack.c.l.b16 %v4836
  %v4925 = vunpack.c.l.b16 %v4837
  %v4926 = vunpack.c.l.b16 %v4838
  %v4927 = vunpack.c.l.b16 %v4839
  %v4928 = vunpack.c.l.b16 %v4840
  %v4929 = vunpack.c.l.b16 %v4841
  %v4930 = vunpack.c.l.b16 %v4842
  %v4931 = vunpack.c.l.b16 %v4843
  %v4932 = vunpack.c.l.b16 %v4844
  %v4933 = vunpack.c.l.b16 %v4845
  %v4934 = vunpack.c.l.b16 %v4846
  %v4935 = vunpack.c.l.b16 %v4847
  %v4936 = vunpack.c.l.b16 %v4848
  %v4937 = vunpack.c.l.b16 %v4849
  %v4938 = vunpack.c.l.b16 %v4850
  %v4939 = vunpack.c.l.b16 %v4851
  %v4940 = vunpack.c.l.b16 %v4852
  %v4941 = vunpack.c.l.b16 %v4853
  %v4942 = vunpack.c.l.b16 %v4854
  %v4943 = vunpack.c.l.b16 %v4855
  %v4944 = vunpack.c.l.b16 %v4856
  %v4945 = vunpack.c.l.b16 %v4857
  %v4946 = vunpack.c.l.b16 %v4858
  %v4947 = vunpack.c.l.b16 %v4859
  %v4948 = vunpack.c.l.b16 %v4860
  %v4949 = vunpack.c.l.b16 %v4861
  %v4950 = vunpack.c.l.b16 %v4862
  %v4951 = vunpack.c.l.b16 %v4863
  %v4952 = vrot.slane %v4911, 7
  %vm4953 = vcmask 1041409
  %v4954 = vsel %vm4953, %v4952, %v4910
  %v4955 = vrot.slane %v4912, 6
  %vm4956 = vcmask 1042434
  %v4957 = vsel %vm4956, %v4955, %v4954
  %v4958 = vrot.slane %v4913, 5
  %vm4959 = vcmask 1043459
  %v4960 = vsel %vm4959, %v4958, %v4957
  %v4961 = vrot.slane %v4914, 4
  %vm4962 = vcmask 1044484
  %v4963 = vsel %vm4962, %v4961, %v4960
  %v4964 = vrot.slane %v4915, 3
  %vm4965 = vcmask 1045509
  %v4966 = vsel %vm4965, %v4964, %v4963
  %v4967 = vrot.slane %v4916, 2
  %vm4968 = vcmask 1046534
  %v4969 = vsel %vm4968, %v4967, %v4966
  %v4970 = vrot.slane %v4917, 1
  %vm4971 = vcmask 1047559
  %v4972 = vsel %vm4971, %v4970, %v4969
  %v4973 = vrot.slane %v4919, 7
  %v4974 = vsel %vm4953, %v4973, %v4918
  %v4975 = vrot.slane %v4920, 6
  %v4976 = vsel %vm4956, %v4975, %v4974
  %v4977 = vrot.slane %v4921, 5
  %v4978 = vsel %vm4959, %v4977, %v4976
  %v4979 = vrot.slane %v4922, 4
  %v4980 = vsel %vm4962, %v4979, %v4978
  %v4981 = vrot.slane %v4923, 3
  %v4982 = vsel %vm4965, %v4981, %v4980
  %v4983 = vrot.slane %v4924, 2
  %v4984 = vsel %vm4968, %v4983, %v4982
  %v4985 = vrot.slane %v4925, 1
  %v4986 = vsel %vm4971, %v4985, %v4984
  %v4987 = vrot.slane %v4927, 7
  %v4988 = vsel %vm4953, %v4987, %v4926
  %v4989 = vrot.slane %v4928, 6
  %v4990 = vsel %vm4956, %v4989, %v4988
  %v4991 = vrot.slane %v4929, 5
  %v4992 = vsel %vm4959, %v4991, %v4990
  %v4993 = vrot.slane %v4930, 4
  %v4994 = vsel %vm4962, %v4993, %v4992
  %v4995 = vrot.slane %v4931, 3
  %v4996 = vsel %vm4965, %v4995, %v4994
  %v4997 = vrot.slane %v4932, 2
  %v4998 = vsel %vm4968, %v4997, %v4996
  %v4999 = vrot.slane %v4933, 1
  %v5000 = vsel %vm4971, %v4999, %v4998
  %v5001 = vrot.slane %v4935, 7
  %v5002 = vsel %vm4953, %v5001, %v4934
  %v5003 = vrot.slane %v4936, 6
  %v5004 = vsel %vm4956, %v5003, %v5002
  %v5005 = vrot.slane %v4937, 5
  %v5006 = vsel %vm4959, %v5005, %v5004
  %v5007 = vrot.slane %v4938, 4
  %v5008 = vsel %vm4962, %v5007, %v5006
  %v5009 = vrot.slane %v4939, 3
  %v5010 = vsel %vm4965, %v5009, %v5008
  %v5011 = vrot.slane %v4940, 2
  %v5012 = vsel %vm4968, %v5011, %v5010
  %v5013 = vrot.slane %v4941, 1
  %v5014 = vsel %vm4971, %v5013, %v5012
  %v5015 = vrot.slane %v4943, 7
  %v5016 = vsel %vm4953, %v5015, %v4942
  %v5017 = vrot.slane %v4944, 6
  %v5018 = vsel %vm4956, %v5017, %v5016
  %v5019 = vrot.slane %v4945, 5
  %v5020 = vsel %vm4959, %v5019, %v5018
  %v5021 = vrot.slane %v4946, 4
  %v5022 = vsel %vm4962, %v5021, %v5020
  %v5023 = vrot.slane %v4947, 3
  %v5024 = vsel %vm4965, %v5023, %v5022
  %v5025 = vrot.slane %v4948, 2
  %v5026 = vsel %vm4968, %v5025, %v5024
  %v5027 = vrot.slane %v4949, 1
  %v5028 = vsel %vm4971, %v5027, %v5026
  %v5029 = vrot.slane %v4951, 7
  %v5030 = vsel %vm4953, %v5029, %v4950
  %v5031 = vpack.c.b16 %v4986, %v4972
  %v5032 = vpack.c.b16 %v5014, %v5000
  %v5033 = vpack.c.b16 %v5030, %v5028
  %v5038 = vunpack.c.l.b16 %v4864
  %v5039 = vunpack.c.l.b16 %v4865
  %v5040 = vunpack.c.l.b16 %v4866
  %v5041 = vunpack.c.l.b16 %v4867
  %v5042 = vpack.c.b16 %v5039, %v5038
  %v5043 = vpack.c.b16 %v5041, %v5040
  %v5047 = vsel %vm234, %v5031, 0
  %v5050 = vsel %vm234, %v5032, 0
  %v5053 = vsel %vm234, %v5033, 0
  %5055 = vmatprep.subr.bf16.mxu0 0
  %5056 = vmatpush1.bf16.msra.mxu0 %v5042
  %5057 = vmatprep.subr.bf16.mxu0 0
  %5058 = vmatpush1.bf16.msra.mxu0 %v5043
  %5059 = vmatprep.subr.bf16.mxu0 0
  %5060 = vmatpush1.bf16.msra.mxu0 0
  %5061 = vmatprep.subr.bf16.mxu0 0
  %5062 = vmatpush1.bf16.msra.mxu0 0
  %5063 = vmatprep.subr.bf16.mxu0 0
  %5064 = vmatpush1.bf16.msra.mxu0 0
  %5065 = vmatprep.subr.bf16.mxu0 0
  %5066 = vmatpush1.bf16.msra.mxu0 0
  %5067 = vmatprep.subr.bf16.mxu0 0
  %5068 = vmatpush1.bf16.msra.mxu0 0
  %5069 = vmatprep.subr.bf16.mxu0 0
  %5070 = vmatpush1.bf16.msra.mxu0 0
  %5071 = vmatprep.subr.bf16.mxu0 0
  %5072 = vmatpush1.bf16.msra.mxu0 0
  %5073 = vmatprep.subr.bf16.mxu0 0
  %5074 = vmatpush1.bf16.msra.mxu0 0
  %5075 = vmatprep.subr.bf16.mxu0 0
  %5076 = vmatpush1.bf16.msra.mxu0 0
  %5077 = vmatprep.subr.bf16.mxu0 0
  %5078 = vmatpush1.bf16.msra.mxu0 0
  %5079 = vmatprep.subr.bf16.mxu0 0
  %5080 = vmatpush1.bf16.msra.mxu0 0
  %5081 = vmatprep.subr.bf16.mxu0 0
  %5082 = vmatpush1.bf16.msra.mxu0 0
  %5083 = vmatprep.subr.bf16.mxu0 0
  %5084 = vmatpush1.bf16.msra.mxu0 0
  %5085 = vmatprep.subr.bf16.mxu0 0
  %5086 = vmatpush1.bf16.msra.mxu0 0
  %5087 = vmatprep.mubr.bf16.mxu0 0
  %5088 = vmatmul.mubr.bf16.gmra.mrb[0].mxu0 %v5047
  %v5089 = vpop.f32.mrb[0].mxu0
  %v5090 = vadd.f32 0.0, %v5089
  %v5091 = vpop.f32.mrb[0].mxu0
  %v5092 = vpop.f32.mrb[0].mxu0
  %v5093 = vadd.f32 0.0, %v5092
  %v5094 = vpop.f32.mrb[0].mxu0
  %5095 = vmatprep.mubr.bf16.mxu0 0
  %5096 = vmatmul.mubr.bf16.gmra.mrb[0].mxu0 %v5050
  %v5097 = vpop.f32.mrb[0].mxu0
  %v5098 = vadd.f32 0.0, %v5097
  %v5099 = vpop.f32.mrb[0].mxu0
  %v5100 = vpop.f32.mrb[0].mxu0
  %v5101 = vadd.f32 0.0, %v5100
  %v5102 = vpop.f32.mrb[0].mxu0
  %5103 = vmatprep.mubr.bf16.mxu0 0
  %5104 = vmatmul.mubr.bf16.gmra.mrb[0].mxu0 %v5053
  %v5105 = vpop.f32.mrb[0].mxu0
  %v5106 = vadd.f32 0.0, %v5105
  %v5107 = vpop.f32.mrb[0].mxu0
  %v5108 = vpop.f32.mrb[0].mxu0
  %v5109 = vadd.f32 0.0, %v5108
  %v5110 = vpop.f32.mrb[0].mxu0
  %5111 = vdwg.mxu0
  %v5154 = vunpack.c.l.b16 %v4776
  %v5155 = vunpack.c.l.b16 %v4777
  %v5156 = vunpack.c.l.b16 %v4778
  %v5157 = vunpack.c.l.b16 %v4779
  %v5158 = vunpack.c.l.b16 %v4780
  %v5159 = vunpack.c.l.b16 %v4781
  %v5160 = vunpack.c.l.b16 %v4782
  %v5161 = vunpack.c.l.b16 %v4783
  %v5162 = vunpack.c.l.b16 %v4784
  %v5163 = vunpack.c.l.b16 %v4785
  %v5164 = vunpack.c.l.b16 %v4786
  %v5165 = vunpack.c.l.b16 %v4787
  %v5166 = vunpack.c.l.b16 %v4788
  %v5167 = vunpack.c.l.b16 %v4789
  %v5168 = vunpack.c.l.b16 %v4790
  %v5169 = vunpack.c.l.b16 %v4791
  %v5170 = vunpack.c.l.b16 %v4792
  %v5171 = vunpack.c.l.b16 %v4793
  %v5172 = vunpack.c.l.b16 %v4794
  %v5173 = vunpack.c.l.b16 %v4795
  %v5174 = vunpack.c.l.b16 %v4796
  %v5175 = vunpack.c.l.b16 %v4797
  %v5176 = vunpack.c.l.b16 %v4798
  %v5177 = vunpack.c.l.b16 %v4799
  %v5178 = vunpack.c.l.b16 %v4800
  %v5179 = vunpack.c.l.b16 %v4801
  %v5180 = vunpack.c.l.b16 %v4802
  %v5181 = vunpack.c.l.b16 %v4803
  %v5182 = vunpack.c.l.b16 %v4804
  %v5183 = vunpack.c.l.b16 %v4805
  %v5184 = vunpack.c.l.b16 %v4806
  %v5185 = vunpack.c.l.b16 %v4807
  %v5186 = vunpack.c.l.b16 %v4808
  %v5187 = vunpack.c.l.b16 %v4809
  %v5188 = vunpack.c.l.b16 %v4810
  %v5189 = vunpack.c.l.b16 %v4811
  %v5190 = vunpack.c.l.b16 %v4812
  %v5191 = vunpack.c.l.b16 %v4813
  %v5192 = vunpack.c.l.b16 %v4814
  %v5193 = vunpack.c.l.b16 %v4815
  %v5194 = vunpack.c.l.b16 %v4816
  %v5195 = vunpack.c.l.b16 %v4817
  %v5196 = vrot.slane %v5155, 7
  %v5197 = vsel %vm4953, %v5196, %v5154
  %v5198 = vrot.slane %v5156, 6
  %v5199 = vsel %vm4956, %v5198, %v5197
  %v5200 = vrot.slane %v5157, 5
  %v5201 = vsel %vm4959, %v5200, %v5199
  %v5202 = vrot.slane %v5158, 4
  %v5203 = vsel %vm4962, %v5202, %v5201
  %v5204 = vrot.slane %v5159, 3
  %v5205 = vsel %vm4965, %v5204, %v5203
  %v5206 = vrot.slane %v5160, 2
  %v5207 = vsel %vm4968, %v5206, %v5205
  %v5208 = vrot.slane %v5161, 1
  %v5209 = vsel %vm4971, %v5208, %v5207
  %v5210 = vrot.slane %v5163, 7
  %v5211 = vsel %vm4953, %v5210, %v5162
  %v5212 = vrot.slane %v5164, 6
  %v5213 = vsel %vm4956, %v5212, %v5211
  %v5214 = vrot.slane %v5165, 5
  %v5215 = vsel %vm4959, %v5214, %v5213
  %v5216 = vrot.slane %v5166, 4
  %v5217 = vsel %vm4962, %v5216, %v5215
  %v5218 = vrot.slane %v5167, 3
  %v5219 = vsel %vm4965, %v5218, %v5217
  %v5220 = vrot.slane %v5168, 2
  %v5221 = vsel %vm4968, %v5220, %v5219
  %v5222 = vrot.slane %v5169, 1
  %v5223 = vsel %vm4971, %v5222, %v5221
  %v5224 = vrot.slane %v5171, 7
  %v5225 = vsel %vm4953, %v5224, %v5170
  %v5226 = vrot.slane %v5172, 6
  %v5227 = vsel %vm4956, %v5226, %v5225
  %v5228 = vrot.slane %v5173, 5
  %v5229 = vsel %vm4959, %v5228, %v5227
  %v5230 = vrot.slane %v5174, 4
  %v5231 = vsel %vm4962, %v5230, %v5229
  %v5232 = vrot.slane %v5175, 3
  %v5233 = vsel %vm4965, %v5232, %v5231
  %v5234 = vrot.slane %v5176, 2
  %v5235 = vsel %vm4968, %v5234, %v5233
  %v5236 = vrot.slane %v5177, 1
  %v5237 = vsel %vm4971, %v5236, %v5235
  %v5238 = vrot.slane %v5179, 7
  %v5239 = vsel %vm4953, %v5238, %v5178
  %v5240 = vrot.slane %v5180, 6
  %v5241 = vsel %vm4956, %v5240, %v5239
  %v5242 = vrot.slane %v5181, 5
  %v5243 = vsel %vm4959, %v5242, %v5241
  %v5244 = vrot.slane %v5182, 4
  %v5245 = vsel %vm4962, %v5244, %v5243
  %v5246 = vrot.slane %v5183, 3
  %v5247 = vsel %vm4965, %v5246, %v5245
  %v5248 = vrot.slane %v5184, 2
  %v5249 = vsel %vm4968, %v5248, %v5247
  %v5250 = vrot.slane %v5185, 1
  %v5251 = vsel %vm4971, %v5250, %v5249
  %v5252 = vrot.slane %v5187, 7
  %v5253 = vsel %vm4953, %v5252, %v5186
  %v5254 = vrot.slane %v5188, 6
  %v5255 = vsel %vm4956, %v5254, %v5253
  %v5256 = vrot.slane %v5189, 5
  %v5257 = vsel %vm4959, %v5256, %v5255
  %v5258 = vrot.slane %v5190, 4
  %v5259 = vsel %vm4962, %v5258, %v5257
  %v5260 = vrot.slane %v5191, 3
  %v5261 = vsel %vm4965, %v5260, %v5259
  %v5262 = vrot.slane %v5192, 2
  %v5263 = vsel %vm4968, %v5262, %v5261
  %v5264 = vrot.slane %v5193, 1
  %v5265 = vsel %vm4971, %v5264, %v5263
  %v5266 = vrot.slane %v5195, 7
  %v5267 = vsel %vm4953, %v5266, %v5194
  %v5268 = vpack.c.b16 %v5223, %v5209
  %v5269 = vpack.c.b16 %v5251, %v5237
  %v5270 = vpack.c.b16 %v5267, %v5265
  %v5275 = vunpack.c.l.b16 %v4818
  %v5276 = vunpack.c.l.b16 %v4819
  %v5277 = vunpack.c.l.b16 %v4820
  %v5278 = vunpack.c.l.b16 %v4821
  %v5279 = vpack.c.b16 %v5276, %v5275
  %v5280 = vpack.c.b16 %v5278, %v5277
  %v5284 = vsel %vm234, %v5268, 0
  %v5287 = vsel %vm234, %v5269, 0
  %v5290 = vsel %vm234, %v5270, 0
  %5292 = vmatprep.subr.bf16.mxu0 0
  %5293 = vmatpush1.bf16.msra.mxu0 %v5279
  %5294 = vmatprep.subr.bf16.mxu0 0
  %5295 = vmatpush1.bf16.msra.mxu0 %v5280
  %5296 = vmatprep.subr.bf16.mxu0 0
  %5297 = vmatpush1.bf16.msra.mxu0 0
  %5298 = vmatprep.subr.bf16.mxu0 0
  %5299 = vmatpush1.bf16.msra.mxu0 0
  %5300 = vmatprep.subr.bf16.mxu0 0
  %5301 = vmatpush1.bf16.msra.mxu0 0
  %5302 = vmatprep.subr.bf16.mxu0 0
  %5303 = vmatpush1.bf16.msra.mxu0 0
  %5304 = vmatprep.subr.bf16.mxu0 0
  %5305 = vmatpush1.bf16.msra.mxu0 0
  %5306 = vmatprep.subr.bf16.mxu0 0
  %5307 = vmatpush1.bf16.msra.mxu0 0
  %5308 = vmatprep.subr.bf16.mxu0 0
  %5309 = vmatpush1.bf16.msra.mxu0 0
  %5310 = vmatprep.subr.bf16.mxu0 0
  %5311 = vmatpush1.bf16.msra.mxu0 0
  %5312 = vmatprep.subr.bf16.mxu0 0
  %5313 = vmatpush1.bf16.msra.mxu0 0
  %5314 = vmatprep.subr.bf16.mxu0 0
  %5315 = vmatpush1.bf16.msra.mxu0 0
  %5316 = vmatprep.subr.bf16.mxu0 0
  %5317 = vmatpush1.bf16.msra.mxu0 0
  %5318 = vmatprep.subr.bf16.mxu0 0
  %5319 = vmatpush1.bf16.msra.mxu0 0
  %5320 = vmatprep.subr.bf16.mxu0 0
  %5321 = vmatpush1.bf16.msra.mxu0 0
  %5322 = vmatprep.subr.bf16.mxu0 0
  %5323 = vmatpush1.bf16.msra.mxu0 0
  %5324 = vmatprep.mubr.bf16.mxu0 0
  %5325 = vmatmul.mubr.bf16.gmra.mrb[0].mxu0 %v5284
  %v5326 = vpop.f32.mrb[0].mxu0
  %v5327 = vadd.f32 %v5090, %v5326
  %v5328 = vpop.f32.mrb[0].mxu0
  %v5329 = vpop.f32.mrb[0].mxu0
  %v5330 = vadd.f32 %v5093, %v5329
  %v5331 = vpop.f32.mrb[0].mxu0
  %5332 = vmatprep.mubr.bf16.mxu0 0
  %5333 = vmatmul.mubr.bf16.gmra.mrb[0].mxu0 %v5287
  %v5334 = vpop.f32.mrb[0].mxu0
  %v5335 = vadd.f32 %v5098, %v5334
  %v5336 = vpop.f32.mrb[0].mxu0
  %v5337 = vpop.f32.mrb[0].mxu0
  %v5338 = vadd.f32 %v5101, %v5337
  %v5339 = vpop.f32.mrb[0].mxu0
  %5340 = vmatprep.mubr.bf16.mxu0 0
  %5341 = vmatmul.mubr.bf16.gmra.mrb[0].mxu0 %v5290
  %v5342 = vpop.f32.mrb[0].mxu0
  %v5343 = vadd.f32 %v5106, %v5342
  %v5344 = vpop.f32.mrb[0].mxu0
  %v5345 = vpop.f32.mrb[0].mxu0
  %v5346 = vadd.f32 %v5109, %v5345
  %v5347 = vpop.f32.mrb[0].mxu0
  %5348 = vdwg.mxu0
  %v5349 = vunpack.c.l.bf16 %v39
  %v5350 = vunpack.c.l.bf16 %v40
  %v5351 = vunpack.c.l.bf16 %v41
  %v5352 = vunpack.c.l.bf16 %v42
  %v5353 = vunpack.c.l.bf16 %v43
  %v5354 = vunpack.c.l.bf16 %v44
  %v5355 = vunpack.c.l.bf16 %v45
  %v5356 = vunpack.c.l.bf16 %v46
  %v5357 = vunpack.c.l.bf16 %v47
  %v5358 = vunpack.c.l.bf16 %v48
  %v5359 = vunpack.c.l.bf16 %v49
  %v5360 = vunpack.c.l.bf16 %v50
  %v5361 = vunpack.c.l.bf16 %v51
  %v5362 = vunpack.c.l.bf16 %v52
  %v5363 = vunpack.c.l.bf16 %v53
  %v5364 = vunpack.c.l.bf16 %v54
  %v5365 = vunpack.c.l.bf16 %v55
  %v5366 = vunpack.c.l.bf16 %v56
  %v5367 = vunpack.c.l.bf16 %v57
  %v5368 = vunpack.c.l.bf16 %v58
  %v5369 = vunpack.c.l.bf16 %v59
  %v5376 = vcombine.high %v5327, %v5327
  %v5378 = vunpack.c.l.s4 1983009808
  %v5379 = vunpack.c.0.s8 %v5378
  %v5380 = vlaneseq
  %v5381 = vshrl.u32 %v5380, 7
  %v5382 = vsub.s32 %v5379, %v5381
  %v5383 = vrot.slane %v5327, %v5382
  %v5385 = vunpack.c.l.s4 1983009808
  %v5386 = vunpack.c.0.s8 %v5385
  %v5387 = vlaneseq
  %v5388 = vshrl.u32 %v5387, 7
  %v5389 = vsub.s32 %v5386, %v5388
  %v5390 = vrot.slane %v5376, %v5389
  %v5391 = vcombine.high %v5383, %v5383
  %v5392 = vcombine.high %v5390, %v5390
  %v5393 = vcombine.high %v5330, %v5330
  %v5395 = vunpack.c.l.s4 1983009808
  %v5396 = vunpack.c.0.s8 %v5395
  %v5397 = vlaneseq
  %v5398 = vshrl.u32 %v5397, 7
  %v5399 = vsub.s32 %v5396, %v5398
  %v5400 = vrot.slane %v5330, %v5399
  %v5402 = vunpack.c.l.s4 1983009808
  %v5403 = vunpack.c.0.s8 %v5402
  %v5404 = vlaneseq
  %v5405 = vshrl.u32 %v5404, 7
  %v5406 = vsub.s32 %v5403, %v5405
  %v5407 = vrot.slane %v5393, %v5406
  %v5408 = vcombine.high %v5400, %v5400
  %v5409 = vcombine.high %v5407, %v5407
  %v5410 = vcombine.high %v5335, %v5335
  %v5412 = vunpack.c.l.s4 1983009808
  %v5413 = vunpack.c.0.s8 %v5412
  %v5414 = vlaneseq
  %v5415 = vshrl.u32 %v5414, 7
  %v5416 = vsub.s32 %v5413, %v5415
  %v5417 = vrot.slane %v5335, %v5416
  %v5419 = vunpack.c.l.s4 1983009808
  %v5420 = vunpack.c.0.s8 %v5419
  %v5421 = vlaneseq
  %v5422 = vshrl.u32 %v5421, 7
  %v5423 = vsub.s32 %v5420, %v5422
  %v5424 = vrot.slane %v5410, %v5423
  %v5425 = vcombine.high %v5417, %v5417
  %v5426 = vcombine.high %v5424, %v5424
  %v5427 = vcombine.high %v5338, %v5338
  %v5429 = vunpack.c.l.s4 1983009808
  %v5430 = vunpack.c.0.s8 %v5429
  %v5431 = vlaneseq
  %v5432 = vshrl.u32 %v5431, 7
  %v5433 = vsub.s32 %v5430, %v5432
  %v5434 = vrot.slane %v5338, %v5433
  %v5436 = vunpack.c.l.s4 1983009808
  %v5437 = vunpack.c.0.s8 %v5436
  %v5438 = vlaneseq
  %v5439 = vshrl.u32 %v5438, 7
  %v5440 = vsub.s32 %v5437, %v5439
  %v5441 = vrot.slane %v5427, %v5440
  %v5442 = vcombine.high %v5434, %v5434
  %v5443 = vcombine.high %v5441, %v5441
  %v5444 = vcombine.high %v5343, %v5343
  %v5446 = vunpack.c.l.s4 1983009808
  %v5447 = vunpack.c.0.s8 %v5446
  %v5448 = vlaneseq
  %v5449 = vshrl.u32 %v5448, 7
  %v5450 = vsub.s32 %v5447, %v5449
  %v5451 = vrot.slane %v5343, %v5450
  %v5453 = vunpack.c.l.s4 1983009808
  %v5454 = vunpack.c.0.s8 %v5453
  %v5455 = vlaneseq
  %v5456 = vshrl.u32 %v5455, 7
  %v5457 = vsub.s32 %v5454, %v5456
  %v5458 = vrot.slane %v5444, %v5457
  %v5459 = vcombine.high %v5451, %v5451
  %v5460 = vcombine.high %v5458, %v5458
  %v5462 = vunpack.c.l.s4 1983009808
  %v5463 = vunpack.c.0.s8 %v5462
  %v5464 = vlaneseq
  %v5465 = vshrl.u32 %v5464, 7
  %v5466 = vsub.s32 %v5463, %v5465
  %v5467 = vrot.slane %v5346, %v5466
  %v5489 = vadd.f32 %v5349, %v5383
  %v5490 = vadd.f32 %v5350, %v5391
  %v5491 = vadd.f32 %v5351, %v5390
  %v5492 = vadd.f32 %v5352, %v5392
  %v5493 = vadd.f32 %v5353, %v5400
  %v5494 = vadd.f32 %v5354, %v5408
  %v5495 = vadd.f32 %v5355, %v5407
  %v5496 = vadd.f32 %v5356, %v5409
  %v5497 = vadd.f32 %v5357, %v5417
  %v5498 = vadd.f32 %v5358, %v5425
  %v5499 = vadd.f32 %v5359, %v5424
  %v5500 = vadd.f32 %v5360, %v5426
  %v5501 = vadd.f32 %v5361, %v5434
  %v5502 = vadd.f32 %v5362, %v5442
  %v5503 = vadd.f32 %v5363, %v5441
  %v5504 = vadd.f32 %v5364, %v5443
  %v5505 = vadd.f32 %v5365, %v5451
  %v5506 = vadd.f32 %v5366, %v5459
  %v5507 = vadd.f32 %v5367, %v5458
  %v5508 = vadd.f32 %v5368, %v5460
  %v5509 = vadd.f32 %v5369, %v5467
  %v5510 = vpack.c.bf16 %v5489, %v5489
  %v5511 = vpack.c.bf16 %v5490, %v5490
  %v5512 = vpack.c.bf16 %v5491, %v5491
  %v5513 = vpack.c.bf16 %v5492, %v5492
  %v5514 = vpack.c.bf16 %v5493, %v5493
  %v5515 = vpack.c.bf16 %v5494, %v5494
  %v5516 = vpack.c.bf16 %v5495, %v5495
  %v5517 = vpack.c.bf16 %v5496, %v5496
  %v5518 = vpack.c.bf16 %v5497, %v5497
  %v5519 = vpack.c.bf16 %v5498, %v5498
  %v5520 = vpack.c.bf16 %v5499, %v5499
  %v5521 = vpack.c.bf16 %v5500, %v5500
  %v5522 = vpack.c.bf16 %v5501, %v5501
  %v5523 = vpack.c.bf16 %v5502, %v5502
  %v5524 = vpack.c.bf16 %v5503, %v5503
  %v5525 = vpack.c.bf16 %v5504, %v5504
  %v5526 = vpack.c.bf16 %v5505, %v5505
  %v5527 = vpack.c.bf16 %v5506, %v5506
  %v5528 = vpack.c.bf16 %v5507, %v5507
  %v5529 = vpack.c.bf16 %v5508, %v5508
  %v5530 = vpack.c.bf16 %v5509, %v5509
  %vm5531 = vcmask 253952
  %5532 = vst.msk [vmem:[%s11] sm:$0x1] %vm5531, %v5510
  %5533 = vst.msk [vmem:[%s11 + $0x1] sm:$0x1] %vm5531, %v5511
  %5534 = vst.msk [vmem:[%s11 + $0x2] sm:$0x1] %vm5531, %v5512
  %5535 = vst.msk [vmem:[%s11 + $0x3] sm:$0x1] %vm5531, %v5513
  %5536 = vst.msk [vmem:[%s11 + $0x4] sm:$0x1] %vm5531, %v5514
  %5537 = vst.msk [vmem:[%s11 + $0x5] sm:$0x1] %vm5531, %v5515
  %5538 = vst.msk [vmem:[%s11 + $0x6] sm:$0x1] %vm5531, %v5516
  %5539 = vst.msk [vmem:[%s11 + $0x7] sm:$0x1] %vm5531, %v5517
  %5540 = vst.msk [vmem:[%s11 + $0x8] sm:$0x1] %vm5531, %v5518
  %5541 = vst.msk [vmem:[%s11 + $0x9] sm:$0x1] %vm5531, %v5519
  %5542 = vst.msk [vmem:[%s11 + $0xa] sm:$0x1] %vm5531, %v5520
  %5543 = vst.msk [vmem:[%s11 + $0xb] sm:$0x1] %vm5531, %v5521
  %5544 = vst.msk [vmem:[%s11 + $0xc] sm:$0x1] %vm5531, %v5522
  %5545 = vst.msk [vmem:[%s11 + $0xd] sm:$0x1] %vm5531, %v5523
  %5546 = vst.msk [vmem:[%s11 + $0xe] sm:$0x1] %vm5531, %v5524
  %5547 = vst.msk [vmem:[%s11 + $0xf] sm:$0x1] %vm5531, %v5525
  %5548 = vst.msk [vmem:[%s11 + $0x10] sm:$0x1] %vm5531, %v5526
  %5549 = vst.msk [vmem:[%s11 + $0x11] sm:$0x1] %vm5531, %v5527
  %5550 = vst.msk [vmem:[%s11 + $0x12] sm:$0x1] %vm5531, %v5528
  %5551 = vst.msk [vmem:[%s11 + $0x13] sm:$0x1] %vm5531, %v5529
  %5552 = vst.msk [vmem:[%s11 + $0x14] sm:$0x1] %vm5531, %v5530
  // Predicated region
  $region53: #{_lambda_.11} parent=0 // pred_check
    _
  $region54: #{_lambda_.11} parent=0 // pred_check_branch
    %5554 = sbr.rel (0) target = $region56
  $region55: #{_lambda_.11} parent=0 // pred_region
    _
  $region56: #{_lambda_.11} parent=0 // pred_fallthru
    _
  // Predicated region
  $region57: #{_lambda_.11} parent=0 // pred_check
    _
  $region58: #{_lambda_.11} parent=0 // pred_check_branch
    %5556 = sbr.rel (0) target = $region60
  $region59: #{_lambda_.11} parent=0 // pred_region
    _
  $region60: #{_lambda_.11} parent=0 // pred_fallthru
    _

</llo_original>
